<compile_context>
chip_gen: v7x
topology: tpu7x:2x2x1
jax: 0.10.0
libtpu: 0.0.40
codegen_flags: <defaults>
</compile_context>

<pallas_src>
import jax
import jax.numpy as jnp
from jax import lax
from jax.experimental import pallas as pl
from jax.experimental.pallas import tpu as pltpu


# ----------------------------- configuration ------------------------------
IN_SIZE = 16                      # spatial size (H = W)
KERNEL = 3                        # conv kernel size
CHANNELS = 4                      # conv output channels
LD = 32                           # latent dim of Linear
BATCH = 2
PAD = (KERNEL - 1) // 2
FLAT = IN_SIZE * IN_SIZE * CHANNELS
NROWS = CHANNELS * IN_SIZE        # 64 (c, h) rows, each IN_SIZE lanes wide
N_ACC = 8                         # independent Linear accumulators


# ------------------------------ fused kernel ------------------------------
def encoder_kernel(xpad_ref, cw_ref, cb_ref, w3_ref, lb_ref, o_ref, feat_ref):
    """Fused conv(1->C) + ReLU + flatten + Linear for the whole batch.

    xpad_ref: (B, H+2P, W+2P) f32  VMEM   zero-padded input images
    cw_ref:   (C*K*K,)        f32  SMEM   conv weights (scalar reads)
    cb_ref:   (C,)            f32  SMEM   conv bias (scalar reads)
    w3_ref:   (C*H, W, LD)    f32  VMEM   Linear weight, permuted host-side
    lb_ref:   (1, LD)         f32  VMEM   Linear bias
    o_ref:    (B, LD)         f32  VMEM   output
    feat_ref: (B, C*H, W)     f32  VMEM   scratch: relu(conv) activations
    """
    B = xpad_ref.shape[0]
    H = IN_SIZE
    W = IN_SIZE

    # ---- conv + relu ------------------------------------------------------
    # One shifted tap per (kh, kw), loaded once and reused by every channel.
    accs = [jnp.zeros((B, H, W), jnp.float32) for _ in range(CHANNELS)]
    for kh in range(KERNEL):
        for kw in range(KERNEL):
            tap = xpad_ref[:, kh:kh + H, kw:kw + W]            # (B, H, W)
            for c in range(CHANNELS):
                wgt = cw_ref[(c * KERNEL + kh) * KERNEL + kw]  # SMEM scalar
                accs[c] = accs[c] + wgt * tap
    for c in range(CHANNELS):
        act = jnp.maximum(accs[c] + cb_ref[c], 0.0)            # (B, H, W)
        # Stack channels along the sublane axis; offsets are multiples of 16
        # (sublane-tile aligned), full lane extent -> plain unmasked stores.
        feat_ref[:, c * H:(c + 1) * H, :] = act

    # ---- linear ------------------------------------------------------------
    # y[b, l] = sum_{q, w} feat[b, q, w] * w3[q, w, l]   with q = c*H + h,
    # which is exactly torch's (C, H, W) flatten order contracted against
    # lin_w.  Each row is one small MXU matmul in its native layout; N_ACC
    # independent accumulators keep the vpop/vadd chain short so the MXU
    # stays busy instead of serializing on a single running sum.
    ys = [jnp.zeros((B, LD), jnp.float32) for _ in range(N_ACC)]
    for q in range(NROWS):
        ys[q % N_ACC] = ys[q % N_ACC] + jnp.dot(
            feat_ref[:, q, :], w3_ref[q], preferred_element_type=jnp.float32)
    # Tree reduction of the partial sums.
    while len(ys) > 1:
        ys = [ys[i] + ys[i + 1] for i in range(0, len(ys), 2)]
    o_ref[...] = ys[0] + lb_ref[...]


# ------------------------------- wrapper -----------------------------------
def encoder_forward(x, conv_w, conv_b, lin_w, lin_b):
    # x: (B, 1, H, W)  (NCHW, like PyTorch)
    B = x.shape[0]
    x2d = x.reshape(B, IN_SIZE, IN_SIZE)
    x_pad = jnp.pad(x2d, ((0, 0), (PAD, PAD), (PAD, PAD)))          # (B, H+2, W+2)
    cw_flat = conv_w.reshape(CHANNELS * KERNEL * KERNEL)            # (C*K*K,)
    # lin_w: (LD, FLAT), FLAT index = c*H*W + h*W + w  (torch flatten order)
    w3 = jnp.transpose(lin_w.reshape(LD, NROWS, IN_SIZE), (1, 2, 0))  # (C*H, W, LD)
    lb2 = lin_b.reshape(1, LD)

    y = pl.pallas_call(
        encoder_kernel,
        out_shape=jax.ShapeDtypeStruct((B, LD), jnp.float32),
        in_specs=[
            pl.BlockSpec(memory_space=pltpu.MemorySpace.VMEM),   # padded input
            pl.BlockSpec(memory_space=pltpu.MemorySpace.SMEM),   # conv weights
            pl.BlockSpec(memory_space=pltpu.MemorySpace.SMEM),   # conv bias
            pl.BlockSpec(memory_space=pltpu.MemorySpace.VMEM),   # linear weight
            pl.BlockSpec(memory_space=pltpu.MemorySpace.VMEM),   # linear bias
        ],
        out_specs=pl.BlockSpec(memory_space=pltpu.MemorySpace.VMEM),
        scratch_shapes=[pltpu.VMEM((B, NROWS, IN_SIZE), jnp.float32)],
    )(x_pad, cw_flat, conv_b, w3, lb2)

    return y.reshape(B, 1, LD)


# ------------------------------ reference ---------------------------------
def encoder_reference(x, conv_w, conv_b, lin_w, lin_b):
    conv = lax.conv_general_dilated(
        x, conv_w.reshape(CHANNELS, 1, KERNEL, KERNEL),
        window_strides=(1, 1), padding=[(PAD, PAD), (PAD, PAD)],
        dimension_numbers=("NCHW", "OIHW", "NCHW"),
    ) + conv_b.reshape(1, CHANNELS, 1, 1)
    act = jnp.maximum(conv, 0.0)
    flat = act.reshape(x.shape[0], FLAT)
    return (flat @ lin_w.T + lin_b).reshape(x.shape[0], 1, LD)


if __name__ == "__main__":
    key = jax.random.PRNGKey(0)
    k_x, k_cw, k_cb, k_lw, k_lb = jax.random.split(key, 5)

    x = jax.random.normal(k_x, (BATCH, 1, IN_SIZE, IN_SIZE), jnp.float32)
    # Conv2d(1, channels, kernel): weight (C, 1, K, K) -> stored as (C, K, K), bias (C,)
    conv_w = jax.random.normal(k_cw, (CHANNELS, KERNEL, KERNEL), jnp.float32) * 0.1
    conv_b = jax.random.normal(k_cb, (CHANNELS,), jnp.float32) * 0.1
    # Linear(flat_size, ld): weight (LD, FLAT), bias (LD,)
    lin_w = jax.random.normal(k_lw, (LD, FLAT), jnp.float32) * 0.02
    lin_b = jax.random.normal(k_lb, (LD,), jnp.float32) * 0.02

    out = jax.jit(encoder_forward)(x, conv_w, conv_b, lin_w, lin_b)
    out = jax.block_until_ready(out)

    ref = encoder_reference(x, conv_w, conv_b, lin_w, lin_b)
    assert out.shape == (BATCH, 1, LD)
    assert jnp.allclose(out, ref, atol=1e-4, rtol=1e-4)

    print("KERNEL_OK")
</pallas_src>

<mosaic_0001>
module attributes {stable_mosaic.version = 11 : i64} {
  func.func @encoder_kernel(%arg0: memref<2x18x18xf32, #tpu.memory_space<vmem>>, %arg1: memref<36xf32, #tpu.memory_space<smem>>, %arg2: memref<4xf32, #tpu.memory_space<smem>>, %arg3: memref<64x16x32xf32, #tpu.memory_space<vmem>>, %arg4: memref<1x32xf32, #tpu.memory_space<vmem>>, %arg5: memref<2x32xf32, #tpu.memory_space<vmem>>, %arg6: memref<2x64x16xf32, #tpu.memory_space<vmem>>) attributes {dimension_semantics = [], scalar_prefetch = 0 : i64, scratch_operands = 1 : i64, tpu.core_type = #tpu.core_type<tc>} {
    %cst = arith.constant 0.000000e+00 : f32
    %0 = vector.broadcast %cst : f32 to vector<2x16x16xf32>
    %cst_0 = arith.constant 0.000000e+00 : f32
    %1 = vector.broadcast %cst_0 : f32 to vector<2x16x16xf32>
    %cst_1 = arith.constant 0.000000e+00 : f32
    %2 = vector.broadcast %cst_1 : f32 to vector<2x16x16xf32>
    %cst_2 = arith.constant 0.000000e+00 : f32
    %3 = vector.broadcast %cst_2 : f32 to vector<2x16x16xf32>
    %c0 = arith.constant 0 : index
    %c0_3 = arith.constant 0 : index
    %c0_4 = arith.constant 0 : index
    %4 = vector.load %arg0[%c0, %c0_3, %c0_4] : memref<2x18x18xf32, #tpu.memory_space<vmem>>, vector<2x16x16xf32>
    %c0_5 = arith.constant 0 : index
    %5 = memref.load %arg1[%c0_5] : memref<36xf32, #tpu.memory_space<smem>>
    %6 = vector.broadcast %5 : f32 to vector<2x16x16xf32>
    %7 = arith.mulf %6, %4 : vector<2x16x16xf32>
    %8 = arith.addf %0, %7 : vector<2x16x16xf32>
    %c9 = arith.constant 9 : index
    %9 = memref.load %arg1[%c9] : memref<36xf32, #tpu.memory_space<smem>>
    %10 = vector.broadcast %9 : f32 to vector<2x16x16xf32>
    %11 = arith.mulf %10, %4 : vector<2x16x16xf32>
    %12 = arith.addf %1, %11 : vector<2x16x16xf32>
    %c18 = arith.constant 18 : index
    %13 = memref.load %arg1[%c18] : memref<36xf32, #tpu.memory_space<smem>>
    %14 = vector.broadcast %13 : f32 to vector<2x16x16xf32>
    %15 = arith.mulf %14, %4 : vector<2x16x16xf32>
    %16 = arith.addf %2, %15 : vector<2x16x16xf32>
    %c27 = arith.constant 27 : index
    %17 = memref.load %arg1[%c27] : memref<36xf32, #tpu.memory_space<smem>>
    %18 = vector.broadcast %17 : f32 to vector<2x16x16xf32>
    %19 = arith.mulf %18, %4 : vector<2x16x16xf32>
    %20 = arith.addf %3, %19 : vector<2x16x16xf32>
    %c0_6 = arith.constant 0 : index
    %c0_7 = arith.constant 0 : index
    %c1 = arith.constant 1 : index
    %21 = vector.load %arg0[%c0_6, %c0_7, %c1] : memref<2x18x18xf32, #tpu.memory_space<vmem>>, vector<2x16x16xf32>
    %c1_8 = arith.constant 1 : index
    %22 = memref.load %arg1[%c1_8] : memref<36xf32, #tpu.memory_space<smem>>
    %23 = vector.broadcast %22 : f32 to vector<2x16x16xf32>
    %24 = arith.mulf %23, %21 : vector<2x16x16xf32>
    %25 = arith.addf %8, %24 : vector<2x16x16xf32>
    %c10 = arith.constant 10 : index
    %26 = memref.load %arg1[%c10] : memref<36xf32, #tpu.memory_space<smem>>
    %27 = vector.broadcast %26 : f32 to vector<2x16x16xf32>
    %28 = arith.mulf %27, %21 : vector<2x16x16xf32>
    %29 = arith.addf %12, %28 : vector<2x16x16xf32>
    %c19 = arith.constant 19 : index
    %30 = memref.load %arg1[%c19] : memref<36xf32, #tpu.memory_space<smem>>
    %31 = vector.broadcast %30 : f32 to vector<2x16x16xf32>
    %32 = arith.mulf %31, %21 : vector<2x16x16xf32>
    %33 = arith.addf %16, %32 : vector<2x16x16xf32>
    %c28 = arith.constant 28 : index
    %34 = memref.load %arg1[%c28] : memref<36xf32, #tpu.memory_space<smem>>
    %35 = vector.broadcast %34 : f32 to vector<2x16x16xf32>
    %36 = arith.mulf %35, %21 : vector<2x16x16xf32>
    %37 = arith.addf %20, %36 : vector<2x16x16xf32>
    %c0_9 = arith.constant 0 : index
    %c0_10 = arith.constant 0 : index
    %c2 = arith.constant 2 : index
    %38 = vector.load %arg0[%c0_9, %c0_10, %c2] : memref<2x18x18xf32, #tpu.memory_space<vmem>>, vector<2x16x16xf32>
    %c2_11 = arith.constant 2 : index
    %39 = memref.load %arg1[%c2_11] : memref<36xf32, #tpu.memory_space<smem>>
    %40 = vector.broadcast %39 : f32 to vector<2x16x16xf32>
    %41 = arith.mulf %40, %38 : vector<2x16x16xf32>
    %42 = arith.addf %25, %41 : vector<2x16x16xf32>
    %c11 = arith.constant 11 : index
    %43 = memref.load %arg1[%c11] : memref<36xf32, #tpu.memory_space<smem>>
    %44 = vector.broadcast %43 : f32 to vector<2x16x16xf32>
    %45 = arith.mulf %44, %38 : vector<2x16x16xf32>
    %46 = arith.addf %29, %45 : vector<2x16x16xf32>
    %c20 = arith.constant 20 : index
    %47 = memref.load %arg1[%c20] : memref<36xf32, #tpu.memory_space<smem>>
    %48 = vector.broadcast %47 : f32 to vector<2x16x16xf32>
    %49 = arith.mulf %48, %38 : vector<2x16x16xf32>
    %50 = arith.addf %33, %49 : vector<2x16x16xf32>
    %c29 = arith.constant 29 : index
    %51 = memref.load %arg1[%c29] : memref<36xf32, #tpu.memory_space<smem>>
    %52 = vector.broadcast %51 : f32 to vector<2x16x16xf32>
    %53 = arith.mulf %52, %38 : vector<2x16x16xf32>
    %54 = arith.addf %37, %53 : vector<2x16x16xf32>
    %c0_12 = arith.constant 0 : index
    %c1_13 = arith.constant 1 : index
    %c0_14 = arith.constant 0 : index
    %55 = vector.load %arg0[%c0_12, %c1_13, %c0_14] : memref<2x18x18xf32, #tpu.memory_space<vmem>>, vector<2x16x16xf32>
    %c3 = arith.constant 3 : index
    %56 = memref.load %arg1[%c3] : memref<36xf32, #tpu.memory_space<smem>>
    %57 = vector.broadcast %56 : f32 to vector<2x16x16xf32>
    %58 = arith.mulf %57, %55 : vector<2x16x16xf32>
    %59 = arith.addf %42, %58 : vector<2x16x16xf32>
    %c12 = arith.constant 12 : index
    %60 = memref.load %arg1[%c12] : memref<36xf32, #tpu.memory_space<smem>>
    %61 = vector.broadcast %60 : f32 to vector<2x16x16xf32>
    %62 = arith.mulf %61, %55 : vector<2x16x16xf32>
    %63 = arith.addf %46, %62 : vector<2x16x16xf32>
    %c21 = arith.constant 21 : index
    %64 = memref.load %arg1[%c21] : memref<36xf32, #tpu.memory_space<smem>>
    %65 = vector.broadcast %64 : f32 to vector<2x16x16xf32>
    %66 = arith.mulf %65, %55 : vector<2x16x16xf32>
    %67 = arith.addf %50, %66 : vector<2x16x16xf32>
    %c30 = arith.constant 30 : index
    %68 = memref.load %arg1[%c30] : memref<36xf32, #tpu.memory_space<smem>>
    %69 = vector.broadcast %68 : f32 to vector<2x16x16xf32>
    %70 = arith.mulf %69, %55 : vector<2x16x16xf32>
    %71 = arith.addf %54, %70 : vector<2x16x16xf32>
    %c0_15 = arith.constant 0 : index
    %c1_16 = arith.constant 1 : index
    %c1_17 = arith.constant 1 : index
    %72 = vector.load %arg0[%c0_15, %c1_16, %c1_17] : memref<2x18x18xf32, #tpu.memory_space<vmem>>, vector<2x16x16xf32>
    %c4 = arith.constant 4 : index
    %73 = memref.load %arg1[%c4] : memref<36xf32, #tpu.memory_space<smem>>
    %74 = vector.broadcast %73 : f32 to vector<2x16x16xf32>
    %75 = arith.mulf %74, %72 : vector<2x16x16xf32>
    %76 = arith.addf %59, %75 : vector<2x16x16xf32>
    %c13 = arith.constant 13 : index
    %77 = memref.load %arg1[%c13] : memref<36xf32, #tpu.memory_space<smem>>
    %78 = vector.broadcast %77 : f32 to vector<2x16x16xf32>
    %79 = arith.mulf %78, %72 : vector<2x16x16xf32>
    %80 = arith.addf %63, %79 : vector<2x16x16xf32>
    %c22 = arith.constant 22 : index
    %81 = memref.load %arg1[%c22] : memref<36xf32, #tpu.memory_space<smem>>
    %82 = vector.broadcast %81 : f32 to vector<2x16x16xf32>
    %83 = arith.mulf %82, %72 : vector<2x16x16xf32>
    %84 = arith.addf %67, %83 : vector<2x16x16xf32>
    %c31 = arith.constant 31 : index
    %85 = memref.load %arg1[%c31] : memref<36xf32, #tpu.memory_space<smem>>
    %86 = vector.broadcast %85 : f32 to vector<2x16x16xf32>
    %87 = arith.mulf %86, %72 : vector<2x16x16xf32>
    %88 = arith.addf %71, %87 : vector<2x16x16xf32>
    %c0_18 = arith.constant 0 : index
    %c1_19 = arith.constant 1 : index
    %c2_20 = arith.constant 2 : index
    %89 = vector.load %arg0[%c0_18, %c1_19, %c2_20] : memref<2x18x18xf32, #tpu.memory_space<vmem>>, vector<2x16x16xf32>
    %c5 = arith.constant 5 : index
    %90 = memref.load %arg1[%c5] : memref<36xf32, #tpu.memory_space<smem>>
    %91 = vector.broadcast %90 : f32 to vector<2x16x16xf32>
    %92 = arith.mulf %91, %89 : vector<2x16x16xf32>
    %93 = arith.addf %76, %92 : vector<2x16x16xf32>
    %c14 = arith.constant 14 : index
    %94 = memref.load %arg1[%c14] : memref<36xf32, #tpu.memory_space<smem>>
    %95 = vector.broadcast %94 : f32 to vector<2x16x16xf32>
    %96 = arith.mulf %95, %89 : vector<2x16x16xf32>
    %97 = arith.addf %80, %96 : vector<2x16x16xf32>
    %c23 = arith.constant 23 : index
    %98 = memref.load %arg1[%c23] : memref<36xf32, #tpu.memory_space<smem>>
    %99 = vector.broadcast %98 : f32 to vector<2x16x16xf32>
    %100 = arith.mulf %99, %89 : vector<2x16x16xf32>
    %101 = arith.addf %84, %100 : vector<2x16x16xf32>
    %c32 = arith.constant 32 : index
    %102 = memref.load %arg1[%c32] : memref<36xf32, #tpu.memory_space<smem>>
    %103 = vector.broadcast %102 : f32 to vector<2x16x16xf32>
    %104 = arith.mulf %103, %89 : vector<2x16x16xf32>
    %105 = arith.addf %88, %104 : vector<2x16x16xf32>
    %c0_21 = arith.constant 0 : index
    %c2_22 = arith.constant 2 : index
    %c0_23 = arith.constant 0 : index
    %106 = vector.load %arg0[%c0_21, %c2_22, %c0_23] : memref<2x18x18xf32, #tpu.memory_space<vmem>>, vector<2x16x16xf32>
    %c6 = arith.constant 6 : index
    %107 = memref.load %arg1[%c6] : memref<36xf32, #tpu.memory_space<smem>>
    %108 = vector.broadcast %107 : f32 to vector<2x16x16xf32>
    %109 = arith.mulf %108, %106 : vector<2x16x16xf32>
    %110 = arith.addf %93, %109 : vector<2x16x16xf32>
    %c15 = arith.constant 15 : index
    %111 = memref.load %arg1[%c15] : memref<36xf32, #tpu.memory_space<smem>>
    %112 = vector.broadcast %111 : f32 to vector<2x16x16xf32>
    %113 = arith.mulf %112, %106 : vector<2x16x16xf32>
    %114 = arith.addf %97, %113 : vector<2x16x16xf32>
    %c24 = arith.constant 24 : index
    %115 = memref.load %arg1[%c24] : memref<36xf32, #tpu.memory_space<smem>>
    %116 = vector.broadcast %115 : f32 to vector<2x16x16xf32>
    %117 = arith.mulf %116, %106 : vector<2x16x16xf32>
    %118 = arith.addf %101, %117 : vector<2x16x16xf32>
    %c33 = arith.constant 33 : index
    %119 = memref.load %arg1[%c33] : memref<36xf32, #tpu.memory_space<smem>>
    %120 = vector.broadcast %119 : f32 to vector<2x16x16xf32>
    %121 = arith.mulf %120, %106 : vector<2x16x16xf32>
    %122 = arith.addf %105, %121 : vector<2x16x16xf32>
    %c0_24 = arith.constant 0 : index
    %c2_25 = arith.constant 2 : index
    %c1_26 = arith.constant 1 : index
    %123 = vector.load %arg0[%c0_24, %c2_25, %c1_26] : memref<2x18x18xf32, #tpu.memory_space<vmem>>, vector<2x16x16xf32>
    %c7 = arith.constant 7 : index
    %124 = memref.load %arg1[%c7] : memref<36xf32, #tpu.memory_space<smem>>
    %125 = vector.broadcast %124 : f32 to vector<2x16x16xf32>
    %126 = arith.mulf %125, %123 : vector<2x16x16xf32>
    %127 = arith.addf %110, %126 : vector<2x16x16xf32>
    %c16 = arith.constant 16 : index
    %128 = memref.load %arg1[%c16] : memref<36xf32, #tpu.memory_space<smem>>
    %129 = vector.broadcast %128 : f32 to vector<2x16x16xf32>
    %130 = arith.mulf %129, %123 : vector<2x16x16xf32>
    %131 = arith.addf %114, %130 : vector<2x16x16xf32>
    %c25 = arith.constant 25 : index
    %132 = memref.load %arg1[%c25] : memref<36xf32, #tpu.memory_space<smem>>
    %133 = vector.broadcast %132 : f32 to vector<2x16x16xf32>
    %134 = arith.mulf %133, %123 : vector<2x16x16xf32>
    %135 = arith.addf %118, %134 : vector<2x16x16xf32>
    %c34 = arith.constant 34 : index
    %136 = memref.load %arg1[%c34] : memref<36xf32, #tpu.memory_space<smem>>
    %137 = vector.broadcast %136 : f32 to vector<2x16x16xf32>
    %138 = arith.mulf %137, %123 : vector<2x16x16xf32>
    %139 = arith.addf %122, %138 : vector<2x16x16xf32>
    %c0_27 = arith.constant 0 : index
    %c2_28 = arith.constant 2 : index
    %c2_29 = arith.constant 2 : index
    %140 = vector.load %arg0[%c0_27, %c2_28, %c2_29] : memref<2x18x18xf32, #tpu.memory_space<vmem>>, vector<2x16x16xf32>
    %c8 = arith.constant 8 : index
    %141 = memref.load %arg1[%c8] : memref<36xf32, #tpu.memory_space<smem>>
    %142 = vector.broadcast %141 : f32 to vector<2x16x16xf32>
    %143 = arith.mulf %142, %140 : vector<2x16x16xf32>
    %144 = arith.addf %127, %143 : vector<2x16x16xf32>
    %c17 = arith.constant 17 : index
    %145 = memref.load %arg1[%c17] : memref<36xf32, #tpu.memory_space<smem>>
    %146 = vector.broadcast %145 : f32 to vector<2x16x16xf32>
    %147 = arith.mulf %146, %140 : vector<2x16x16xf32>
    %148 = arith.addf %131, %147 : vector<2x16x16xf32>
    %c26 = arith.constant 26 : index
    %149 = memref.load %arg1[%c26] : memref<36xf32, #tpu.memory_space<smem>>
    %150 = vector.broadcast %149 : f32 to vector<2x16x16xf32>
    %151 = arith.mulf %150, %140 : vector<2x16x16xf32>
    %152 = arith.addf %135, %151 : vector<2x16x16xf32>
    %c35 = arith.constant 35 : index
    %153 = memref.load %arg1[%c35] : memref<36xf32, #tpu.memory_space<smem>>
    %154 = vector.broadcast %153 : f32 to vector<2x16x16xf32>
    %155 = arith.mulf %154, %140 : vector<2x16x16xf32>
    %156 = arith.addf %139, %155 : vector<2x16x16xf32>
    %c0_30 = arith.constant 0 : index
    %157 = memref.load %arg2[%c0_30] : memref<4xf32, #tpu.memory_space<smem>>
    %158 = vector.broadcast %157 : f32 to vector<2x16x16xf32>
    %159 = arith.addf %144, %158 : vector<2x16x16xf32>
    %cst_31 = arith.constant 0.000000e+00 : f32
    %160 = vector.broadcast %cst_31 : f32 to vector<2x16x16xf32>
    %161 = arith.maximumf %159, %160 : vector<2x16x16xf32>
    %c0_32 = arith.constant 0 : index
    %c0_33 = arith.constant 0 : index
    %c0_34 = arith.constant 0 : index
    %162 = vector.load %arg6[%c0_32, %c0_33, %c0_34] : memref<2x64x16xf32, #tpu.memory_space<vmem>>, vector<2x16x16xf32>
    tpu.vector_store %arg6[%c0_32, %c0_33, %c0_34], %161 {strides = array<i32>} : memref<2x64x16xf32, #tpu.memory_space<vmem>>, vector<2x16x16xf32>,
    %c1_35 = arith.constant 1 : index
    %163 = memref.load %arg2[%c1_35] : memref<4xf32, #tpu.memory_space<smem>>
    %164 = vector.broadcast %163 : f32 to vector<2x16x16xf32>
    %165 = arith.addf %148, %164 : vector<2x16x16xf32>
    %cst_36 = arith.constant 0.000000e+00 : f32
    %166 = vector.broadcast %cst_36 : f32 to vector<2x16x16xf32>
    %167 = arith.maximumf %165, %166 : vector<2x16x16xf32>
    %c0_37 = arith.constant 0 : index
    %c16_38 = arith.constant 16 : index
    %c0_39 = arith.constant 0 : index
    %168 = vector.load %arg6[%c0_37, %c16_38, %c0_39] : memref<2x64x16xf32, #tpu.memory_space<vmem>>, vector<2x16x16xf32>
    tpu.vector_store %arg6[%c0_37, %c16_38, %c0_39], %167 {strides = array<i32>} : memref<2x64x16xf32, #tpu.memory_space<vmem>>, vector<2x16x16xf32>,
    %c2_40 = arith.constant 2 : index
    %169 = memref.load %arg2[%c2_40] : memref<4xf32, #tpu.memory_space<smem>>
    %170 = vector.broadcast %169 : f32 to vector<2x16x16xf32>
    %171 = arith.addf %152, %170 : vector<2x16x16xf32>
    %cst_41 = arith.constant 0.000000e+00 : f32
    %172 = vector.broadcast %cst_41 : f32 to vector<2x16x16xf32>
    %173 = arith.maximumf %171, %172 : vector<2x16x16xf32>
    %c0_42 = arith.constant 0 : index
    %c32_43 = arith.constant 32 : index
    %c0_44 = arith.constant 0 : index
    %174 = vector.load %arg6[%c0_42, %c32_43, %c0_44] : memref<2x64x16xf32, #tpu.memory_space<vmem>>, vector<2x16x16xf32>
    tpu.vector_store %arg6[%c0_42, %c32_43, %c0_44], %173 {strides = array<i32>} : memref<2x64x16xf32, #tpu.memory_space<vmem>>, vector<2x16x16xf32>,
    %c3_45 = arith.constant 3 : index
    %175 = memref.load %arg2[%c3_45] : memref<4xf32, #tpu.memory_space<smem>>
    %176 = vector.broadcast %175 : f32 to vector<2x16x16xf32>
    %177 = arith.addf %156, %176 : vector<2x16x16xf32>
    %cst_46 = arith.constant 0.000000e+00 : f32
    %178 = vector.broadcast %cst_46 : f32 to vector<2x16x16xf32>
    %179 = arith.maximumf %177, %178 : vector<2x16x16xf32>
    %c0_47 = arith.constant 0 : index
    %c48 = arith.constant 48 : index
    %c0_48 = arith.constant 0 : index
    %180 = vector.load %arg6[%c0_47, %c48, %c0_48] : memref<2x64x16xf32, #tpu.memory_space<vmem>>, vector<2x16x16xf32>
    tpu.vector_store %arg6[%c0_47, %c48, %c0_48], %179 {strides = array<i32>} : memref<2x64x16xf32, #tpu.memory_space<vmem>>, vector<2x16x16xf32>,
    %cst_49 = arith.constant 0.000000e+00 : f32
    %181 = vector.broadcast %cst_49 : f32 to vector<2x32xf32>
    %cst_50 = arith.constant 0.000000e+00 : f32
    %182 = vector.broadcast %cst_50 : f32 to vector<2x32xf32>
    %cst_51 = arith.constant 0.000000e+00 : f32
    %183 = vector.broadcast %cst_51 : f32 to vector<2x32xf32>
    %cst_52 = arith.constant 0.000000e+00 : f32
    %184 = vector.broadcast %cst_52 : f32 to vector<2x32xf32>
    %cst_53 = arith.constant 0.000000e+00 : f32
    %185 = vector.broadcast %cst_53 : f32 to vector<2x32xf32>
    %cst_54 = arith.constant 0.000000e+00 : f32
    %186 = vector.broadcast %cst_54 : f32 to vector<2x32xf32>
    %cst_55 = arith.constant 0.000000e+00 : f32
    %187 = vector.broadcast %cst_55 : f32 to vector<2x32xf32>
    %cst_56 = arith.constant 0.000000e+00 : f32
    %188 = vector.broadcast %cst_56 : f32 to vector<2x32xf32>
    %c0_57 = arith.constant 0 : index
    %c0_58 = arith.constant 0 : index
    %c0_59 = arith.constant 0 : index
    %189 = vector.load %arg6[%c0_57, %c0_58, %c0_59] : memref<2x64x16xf32, #tpu.memory_space<vmem>>, vector<2x1x16xf32>
    %190 = vector.shape_cast %189 : vector<2x1x16xf32> to vector<2x16xf32>
    %c0_60 = arith.constant 0 : index
    %c0_61 = arith.constant 0 : index
    %c0_62 = arith.constant 0 : index
    %191 = vector.load %arg3[%c0_60, %c0_61, %c0_62] : memref<64x16x32xf32, #tpu.memory_space<vmem>>, vector<1x16x32xf32>
    %192 = vector.shape_cast %191 : vector<1x16x32xf32> to vector<16x32xf32>
    %cst_63 = arith.constant dense<0.000000e+00> : vector<2x32xf32>
    %193 = tpu.matmul %190, %192, %cst_63 {dimension_numbers = #tpu.dot_dimension_numbers<[1], [0], [0], [1], [0, 0, 1, 1], [], []>} : vector<2x16xf32>, vector<16x32xf32>, vector<2x32xf32> -> vector<2x32xf32>
    %194 = arith.addf %181, %193 : vector<2x32xf32>
    %c0_64 = arith.constant 0 : index
    %c1_65 = arith.constant 1 : index
    %c0_66 = arith.constant 0 : index
    %195 = vector.load %arg6[%c0_64, %c1_65, %c0_66] : memref<2x64x16xf32, #tpu.memory_space<vmem>>, vector<2x1x16xf32>
    %196 = vector.shape_cast %195 : vector<2x1x16xf32> to vector<2x16xf32>
    %c1_67 = arith.constant 1 : index
    %c0_68 = arith.constant 0 : index
    %c0_69 = arith.constant 0 : index
    %197 = vector.load %arg3[%c1_67, %c0_68, %c0_69] : memref<64x16x32xf32, #tpu.memory_space<vmem>>, vector<1x16x32xf32>
    %198 = vector.shape_cast %197 : vector<1x16x32xf32> to vector<16x32xf32>
    %cst_70 = arith.constant dense<0.000000e+00> : vector<2x32xf32>
    %199 = tpu.matmul %196, %198, %cst_70 {dimension_numbers = #tpu.dot_dimension_numbers<[1], [0], [0], [1], [0, 0, 1, 1], [], []>} : vector<2x16xf32>, vector<16x32xf32>, vector<2x32xf32> -> vector<2x32xf32>
    %200 = arith.addf %182, %199 : vector<2x32xf32>
    %c0_71 = arith.constant 0 : index
    %c2_72 = arith.constant 2 : index
    %c0_73 = arith.constant 0 : index
    %201 = vector.load %arg6[%c0_71, %c2_72, %c0_73] : memref<2x64x16xf32, #tpu.memory_space<vmem>>, vector<2x1x16xf32>
    %202 = vector.shape_cast %201 : vector<2x1x16xf32> to vector<2x16xf32>
    %c2_74 = arith.constant 2 : index
    %c0_75 = arith.constant 0 : index
    %c0_76 = arith.constant 0 : index
    %203 = vector.load %arg3[%c2_74, %c0_75, %c0_76] : memref<64x16x32xf32, #tpu.memory_space<vmem>>, vector<1x16x32xf32>
    %204 = vector.shape_cast %203 : vector<1x16x32xf32> to vector<16x32xf32>
    %cst_77 = arith.constant dense<0.000000e+00> : vector<2x32xf32>
    %205 = tpu.matmul %202, %204, %cst_77 {dimension_numbers = #tpu.dot_dimension_numbers<[1], [0], [0], [1], [0, 0, 1, 1], [], []>} : vector<2x16xf32>, vector<16x32xf32>, vector<2x32xf32> -> vector<2x32xf32>
    %206 = arith.addf %183, %205 : vector<2x32xf32>
    %c0_78 = arith.constant 0 : index
    %c3_79 = arith.constant 3 : index
    %c0_80 = arith.constant 0 : index
    %207 = vector.load %arg6[%c0_78, %c3_79, %c0_80] : memref<2x64x16xf32, #tpu.memory_space<vmem>>, vector<2x1x16xf32>
    %208 = vector.shape_cast %207 : vector<2x1x16xf32> to vector<2x16xf32>
    %c3_81 = arith.constant 3 : index
    %c0_82 = arith.constant 0 : index
    %c0_83 = arith.constant 0 : index
    %209 = vector.load %arg3[%c3_81, %c0_82, %c0_83] : memref<64x16x32xf32, #tpu.memory_space<vmem>>, vector<1x16x32xf32>
    %210 = vector.shape_cast %209 : vector<1x16x32xf32> to vector<16x32xf32>
    %cst_84 = arith.constant dense<0.000000e+00> : vector<2x32xf32>
    %211 = tpu.matmul %208, %210, %cst_84 {dimension_numbers = #tpu.dot_dimension_numbers<[1], [0], [0], [1], [0, 0, 1, 1], [], []>} : vector<2x16xf32>, vector<16x32xf32>, vector<2x32xf32> -> vector<2x32xf32>
    %212 = arith.addf %184, %211 : vector<2x32xf32>
    %c0_85 = arith.constant 0 : index
    %c4_86 = arith.constant 4 : index
    %c0_87 = arith.constant 0 : index
    %213 = vector.load %arg6[%c0_85, %c4_86, %c0_87] : memref<2x64x16xf32, #tpu.memory_space<vmem>>, vector<2x1x16xf32>
    %214 = vector.shape_cast %213 : vector<2x1x16xf32> to vector<2x16xf32>
    %c4_88 = arith.constant 4 : index
    %c0_89 = arith.constant 0 : index
    %c0_90 = arith.constant 0 : index
    %215 = vector.load %arg3[%c4_88, %c0_89, %c0_90] : memref<64x16x32xf32, #tpu.memory_space<vmem>>, vector<1x16x32xf32>
    %216 = vector.shape_cast %215 : vector<1x16x32xf32> to vector<16x32xf32>
    %cst_91 = arith.constant dense<0.000000e+00> : vector<2x32xf32>
    %217 = tpu.matmul %214, %216, %cst_91 {dimension_numbers = #tpu.dot_dimension_numbers<[1], [0], [0], [1], [0, 0, 1, 1], [], []>} : vector<2x16xf32>, vector<16x32xf32>, vector<2x32xf32> -> vector<2x32xf32>
    %218 = arith.addf %185, %217 : vector<2x32xf32>
    %c0_92 = arith.constant 0 : index
    %c5_93 = arith.constant 5 : index
    %c0_94 = arith.constant 0 : index
    %219 = vector.load %arg6[%c0_92, %c5_93, %c0_94] : memref<2x64x16xf32, #tpu.memory_space<vmem>>, vector<2x1x16xf32>
    %220 = vector.shape_cast %219 : vector<2x1x16xf32> to vector<2x16xf32>
    %c5_95 = arith.constant 5 : index
    %c0_96 = arith.constant 0 : index
    %c0_97 = arith.constant 0 : index
    %221 = vector.load %arg3[%c5_95, %c0_96, %c0_97] : memref<64x16x32xf32, #tpu.memory_space<vmem>>, vector<1x16x32xf32>
    %222 = vector.shape_cast %221 : vector<1x16x32xf32> to vector<16x32xf32>
    %cst_98 = arith.constant dense<0.000000e+00> : vector<2x32xf32>
    %223 = tpu.matmul %220, %222, %cst_98 {dimension_numbers = #tpu.dot_dimension_numbers<[1], [0], [0], [1], [0, 0, 1, 1], [], []>} : vector<2x16xf32>, vector<16x32xf32>, vector<2x32xf32> -> vector<2x32xf32>
    %224 = arith.addf %186, %223 : vector<2x32xf32>
    %c0_99 = arith.constant 0 : index
    %c6_100 = arith.constant 6 : index
    %c0_101 = arith.constant 0 : index
    %225 = vector.load %arg6[%c0_99, %c6_100, %c0_101] : memref<2x64x16xf32, #tpu.memory_space<vmem>>, vector<2x1x16xf32>
    %226 = vector.shape_cast %225 : vector<2x1x16xf32> to vector<2x16xf32>
    %c6_102 = arith.constant 6 : index
    %c0_103 = arith.constant 0 : index
    %c0_104 = arith.constant 0 : index
    %227 = vector.load %arg3[%c6_102, %c0_103, %c0_104] : memref<64x16x32xf32, #tpu.memory_space<vmem>>, vector<1x16x32xf32>
    %228 = vector.shape_cast %227 : vector<1x16x32xf32> to vector<16x32xf32>
    %cst_105 = arith.constant dense<0.000000e+00> : vector<2x32xf32>
    %229 = tpu.matmul %226, %228, %cst_105 {dimension_numbers = #tpu.dot_dimension_numbers<[1], [0], [0], [1], [0, 0, 1, 1], [], []>} : vector<2x16xf32>, vector<16x32xf32>, vector<2x32xf32> -> vector<2x32xf32>
    %230 = arith.addf %187, %229 : vector<2x32xf32>
    %c0_106 = arith.constant 0 : index
    %c7_107 = arith.constant 7 : index
    %c0_108 = arith.constant 0 : index
    %231 = vector.load %arg6[%c0_106, %c7_107, %c0_108] : memref<2x64x16xf32, #tpu.memory_space<vmem>>, vector<2x1x16xf32>
    %232 = vector.shape_cast %231 : vector<2x1x16xf32> to vector<2x16xf32>
    %c7_109 = arith.constant 7 : index
    %c0_110 = arith.constant 0 : index
    %c0_111 = arith.constant 0 : index
    %233 = vector.load %arg3[%c7_109, %c0_110, %c0_111] : memref<64x16x32xf32, #tpu.memory_space<vmem>>, vector<1x16x32xf32>
    %234 = vector.shape_cast %233 : vector<1x16x32xf32> to vector<16x32xf32>
    %cst_112 = arith.constant dense<0.000000e+00> : vector<2x32xf32>
    %235 = tpu.matmul %232, %234, %cst_112 {dimension_numbers = #tpu.dot_dimension_numbers<[1], [0], [0], [1], [0, 0, 1, 1], [], []>} : vector<2x16xf32>, vector<16x32xf32>, vector<2x32xf32> -> vector<2x32xf32>
    %236 = arith.addf %188, %235 : vector<2x32xf32>
    %c0_113 = arith.constant 0 : index
    %c8_114 = arith.constant 8 : index
    %c0_115 = arith.constant 0 : index
    %237 = vector.load %arg6[%c0_113, %c8_114, %c0_115] : memref<2x64x16xf32, #tpu.memory_space<vmem>>, vector<2x1x16xf32>
    %238 = vector.shape_cast %237 : vector<2x1x16xf32> to vector<2x16xf32>
    %c8_116 = arith.constant 8 : index
    %c0_117 = arith.constant 0 : index
    %c0_118 = arith.constant 0 : index
    %239 = vector.load %arg3[%c8_116, %c0_117, %c0_118] : memref<64x16x32xf32, #tpu.memory_space<vmem>>, vector<1x16x32xf32>
    %240 = vector.shape_cast %239 : vector<1x16x32xf32> to vector<16x32xf32>
    %cst_119 = arith.constant dense<0.000000e+00> : vector<2x32xf32>
    %241 = tpu.matmul %238, %240, %cst_119 {dimension_numbers = #tpu.dot_dimension_numbers<[1], [0], [0], [1], [0, 0, 1, 1], [], []>} : vector<2x16xf32>, vector<16x32xf32>, vector<2x32xf32> -> vector<2x32xf32>
    %242 = arith.addf %194, %241 : vector<2x32xf32>
    %c0_120 = arith.constant 0 : index
    %c9_121 = arith.constant 9 : index
    %c0_122 = arith.constant 0 : index
    %243 = vector.load %arg6[%c0_120, %c9_121, %c0_122] : memref<2x64x16xf32, #tpu.memory_space<vmem>>, vector<2x1x16xf32>
    %244 = vector.shape_cast %243 : vector<2x1x16xf32> to vector<2x16xf32>
    %c9_123 = arith.constant 9 : index
    %c0_124 = arith.constant 0 : index
    %c0_125 = arith.constant 0 : index
    %245 = vector.load %arg3[%c9_123, %c0_124, %c0_125] : memref<64x16x32xf32, #tpu.memory_space<vmem>>, vector<1x16x32xf32>
    %246 = vector.shape_cast %245 : vector<1x16x32xf32> to vector<16x32xf32>
    %cst_126 = arith.constant dense<0.000000e+00> : vector<2x32xf32>
    %247 = tpu.matmul %244, %246, %cst_126 {dimension_numbers = #tpu.dot_dimension_numbers<[1], [0], [0], [1], [0, 0, 1, 1], [], []>} : vector<2x16xf32>, vector<16x32xf32>, vector<2x32xf32> -> vector<2x32xf32>
    %248 = arith.addf %200, %247 : vector<2x32xf32>
    %c0_127 = arith.constant 0 : index
    %c10_128 = arith.constant 10 : index
    %c0_129 = arith.constant 0 : index
    %249 = vector.load %arg6[%c0_127, %c10_128, %c0_129] : memref<2x64x16xf32, #tpu.memory_space<vmem>>, vector<2x1x16xf32>
    %250 = vector.shape_cast %249 : vector<2x1x16xf32> to vector<2x16xf32>
    %c10_130 = arith.constant 10 : index
    %c0_131 = arith.constant 0 : index
    %c0_132 = arith.constant 0 : index
    %251 = vector.load %arg3[%c10_130, %c0_131, %c0_132] : memref<64x16x32xf32, #tpu.memory_space<vmem>>, vector<1x16x32xf32>
    %252 = vector.shape_cast %251 : vector<1x16x32xf32> to vector<16x32xf32>
    %cst_133 = arith.constant dense<0.000000e+00> : vector<2x32xf32>
    %253 = tpu.matmul %250, %252, %cst_133 {dimension_numbers = #tpu.dot_dimension_numbers<[1], [0], [0], [1], [0, 0, 1, 1], [], []>} : vector<2x16xf32>, vector<16x32xf32>, vector<2x32xf32> -> vector<2x32xf32>
    %254 = arith.addf %206, %253 : vector<2x32xf32>
    %c0_134 = arith.constant 0 : index
    %c11_135 = arith.constant 11 : index
    %c0_136 = arith.constant 0 : index
    %255 = vector.load %arg6[%c0_134, %c11_135, %c0_136] : memref<2x64x16xf32, #tpu.memory_space<vmem>>, vector<2x1x16xf32>
    %256 = vector.shape_cast %255 : vector<2x1x16xf32> to vector<2x16xf32>
    %c11_137 = arith.constant 11 : index
    %c0_138 = arith.constant 0 : index
    %c0_139 = arith.constant 0 : index
    %257 = vector.load %arg3[%c11_137, %c0_138, %c0_139] : memref<64x16x32xf32, #tpu.memory_space<vmem>>, vector<1x16x32xf32>
    %258 = vector.shape_cast %257 : vector<1x16x32xf32> to vector<16x32xf32>
    %cst_140 = arith.constant dense<0.000000e+00> : vector<2x32xf32>
    %259 = tpu.matmul %256, %258, %cst_140 {dimension_numbers = #tpu.dot_dimension_numbers<[1], [0], [0], [1], [0, 0, 1, 1], [], []>} : vector<2x16xf32>, vector<16x32xf32>, vector<2x32xf32> -> vector<2x32xf32>
    %260 = arith.addf %212, %259 : vector<2x32xf32>
    %c0_141 = arith.constant 0 : index
    %c12_142 = arith.constant 12 : index
    %c0_143 = arith.constant 0 : index
    %261 = vector.load %arg6[%c0_141, %c12_142, %c0_143] : memref<2x64x16xf32, #tpu.memory_space<vmem>>, vector<2x1x16xf32>
    %262 = vector.shape_cast %261 : vector<2x1x16xf32> to vector<2x16xf32>
    %c12_144 = arith.constant 12 : index
    %c0_145 = arith.constant 0 : index
    %c0_146 = arith.constant 0 : index
    %263 = vector.load %arg3[%c12_144, %c0_145, %c0_146] : memref<64x16x32xf32, #tpu.memory_space<vmem>>, vector<1x16x32xf32>
    %264 = vector.shape_cast %263 : vector<1x16x32xf32> to vector<16x32xf32>
    %cst_147 = arith.constant dense<0.000000e+00> : vector<2x32xf32>
    %265 = tpu.matmul %262, %264, %cst_147 {dimension_numbers = #tpu.dot_dimension_numbers<[1], [0], [0], [1], [0, 0, 1, 1], [], []>} : vector<2x16xf32>, vector<16x32xf32>, vector<2x32xf32> -> vector<2x32xf32>
    %266 = arith.addf %218, %265 : vector<2x32xf32>
    %c0_148 = arith.constant 0 : index
    %c13_149 = arith.constant 13 : index
    %c0_150 = arith.constant 0 : index
    %267 = vector.load %arg6[%c0_148, %c13_149, %c0_150] : memref<2x64x16xf32, #tpu.memory_space<vmem>>, vector<2x1x16xf32>
    %268 = vector.shape_cast %267 : vector<2x1x16xf32> to vector<2x16xf32>
    %c13_151 = arith.constant 13 : index
    %c0_152 = arith.constant 0 : index
    %c0_153 = arith.constant 0 : index
    %269 = vector.load %arg3[%c13_151, %c0_152, %c0_153] : memref<64x16x32xf32, #tpu.memory_space<vmem>>, vector<1x16x32xf32>
    %270 = vector.shape_cast %269 : vector<1x16x32xf32> to vector<16x32xf32>
    %cst_154 = arith.constant dense<0.000000e+00> : vector<2x32xf32>
    %271 = tpu.matmul %268, %270, %cst_154 {dimension_numbers = #tpu.dot_dimension_numbers<[1], [0], [0], [1], [0, 0, 1, 1], [], []>} : vector<2x16xf32>, vector<16x32xf32>, vector<2x32xf32> -> vector<2x32xf32>
    %272 = arith.addf %224, %271 : vector<2x32xf32>
    %c0_155 = arith.constant 0 : index
    %c14_156 = arith.constant 14 : index
    %c0_157 = arith.constant 0 : index
    %273 = vector.load %arg6[%c0_155, %c14_156, %c0_157] : memref<2x64x16xf32, #tpu.memory_space<vmem>>, vector<2x1x16xf32>
    %274 = vector.shape_cast %273 : vector<2x1x16xf32> to vector<2x16xf32>
    %c14_158 = arith.constant 14 : index
    %c0_159 = arith.constant 0 : index
    %c0_160 = arith.constant 0 : index
    %275 = vector.load %arg3[%c14_158, %c0_159, %c0_160] : memref<64x16x32xf32, #tpu.memory_space<vmem>>, vector<1x16x32xf32>
    %276 = vector.shape_cast %275 : vector<1x16x32xf32> to vector<16x32xf32>
    %cst_161 = arith.constant dense<0.000000e+00> : vector<2x32xf32>
    %277 = tpu.matmul %274, %276, %cst_161 {dimension_numbers = #tpu.dot_dimension_numbers<[1], [0], [0], [1], [0, 0, 1, 1], [], []>} : vector<2x16xf32>, vector<16x32xf32>, vector<2x32xf32> -> vector<2x32xf32>
    %278 = arith.addf %230, %277 : vector<2x32xf32>
    %c0_162 = arith.constant 0 : index
    %c15_163 = arith.constant 15 : index
    %c0_164 = arith.constant 0 : index
    %279 = vector.load %arg6[%c0_162, %c15_163, %c0_164] : memref<2x64x16xf32, #tpu.memory_space<vmem>>, vector<2x1x16xf32>
    %280 = vector.shape_cast %279 : vector<2x1x16xf32> to vector<2x16xf32>
    %c15_165 = arith.constant 15 : index
    %c0_166 = arith.constant 0 : index
    %c0_167 = arith.constant 0 : index
    %281 = vector.load %arg3[%c15_165, %c0_166, %c0_167] : memref<64x16x32xf32, #tpu.memory_space<vmem>>, vector<1x16x32xf32>
    %282 = vector.shape_cast %281 : vector<1x16x32xf32> to vector<16x32xf32>
    %cst_168 = arith.constant dense<0.000000e+00> : vector<2x32xf32>
    %283 = tpu.matmul %280, %282, %cst_168 {dimension_numbers = #tpu.dot_dimension_numbers<[1], [0], [0], [1], [0, 0, 1, 1], [], []>} : vector<2x16xf32>, vector<16x32xf32>, vector<2x32xf32> -> vector<2x32xf32>
    %284 = arith.addf %236, %283 : vector<2x32xf32>
    %c0_169 = arith.constant 0 : index
    %c16_170 = arith.constant 16 : index
    %c0_171 = arith.constant 0 : index
    %285 = vector.load %arg6[%c0_169, %c16_170, %c0_171] : memref<2x64x16xf32, #tpu.memory_space<vmem>>, vector<2x1x16xf32>
    %286 = vector.shape_cast %285 : vector<2x1x16xf32> to vector<2x16xf32>
    %c16_172 = arith.constant 16 : index
    %c0_173 = arith.constant 0 : index
    %c0_174 = arith.constant 0 : index
    %287 = vector.load %arg3[%c16_172, %c0_173, %c0_174] : memref<64x16x32xf32, #tpu.memory_space<vmem>>, vector<1x16x32xf32>
    %288 = vector.shape_cast %287 : vector<1x16x32xf32> to vector<16x32xf32>
    %cst_175 = arith.constant dense<0.000000e+00> : vector<2x32xf32>
    %289 = tpu.matmul %286, %288, %cst_175 {dimension_numbers = #tpu.dot_dimension_numbers<[1], [0], [0], [1], [0, 0, 1, 1], [], []>} : vector<2x16xf32>, vector<16x32xf32>, vector<2x32xf32> -> vector<2x32xf32>
    %290 = arith.addf %242, %289 : vector<2x32xf32>
    %c0_176 = arith.constant 0 : index
    %c17_177 = arith.constant 17 : index
    %c0_178 = arith.constant 0 : index
    %291 = vector.load %arg6[%c0_176, %c17_177, %c0_178] : memref<2x64x16xf32, #tpu.memory_space<vmem>>, vector<2x1x16xf32>
    %292 = vector.shape_cast %291 : vector<2x1x16xf32> to vector<2x16xf32>
    %c17_179 = arith.constant 17 : index
    %c0_180 = arith.constant 0 : index
    %c0_181 = arith.constant 0 : index
    %293 = vector.load %arg3[%c17_179, %c0_180, %c0_181] : memref<64x16x32xf32, #tpu.memory_space<vmem>>, vector<1x16x32xf32>
    %294 = vector.shape_cast %293 : vector<1x16x32xf32> to vector<16x32xf32>
    %cst_182 = arith.constant dense<0.000000e+00> : vector<2x32xf32>
    %295 = tpu.matmul %292, %294, %cst_182 {dimension_numbers = #tpu.dot_dimension_numbers<[1], [0], [0], [1], [0, 0, 1, 1], [], []>} : vector<2x16xf32>, vector<16x32xf32>, vector<2x32xf32> -> vector<2x32xf32>
    %296 = arith.addf %248, %295 : vector<2x32xf32>
    %c0_183 = arith.constant 0 : index
    %c18_184 = arith.constant 18 : index
    %c0_185 = arith.constant 0 : index
    %297 = vector.load %arg6[%c0_183, %c18_184, %c0_185] : memref<2x64x16xf32, #tpu.memory_space<vmem>>, vector<2x1x16xf32>
    %298 = vector.shape_cast %297 : vector<2x1x16xf32> to vector<2x16xf32>
    %c18_186 = arith.constant 18 : index
    %c0_187 = arith.constant 0 : index
    %c0_188 = arith.constant 0 : index
    %299 = vector.load %arg3[%c18_186, %c0_187, %c0_188] : memref<64x16x32xf32, #tpu.memory_space<vmem>>, vector<1x16x32xf32>
    %300 = vector.shape_cast %299 : vector<1x16x32xf32> to vector<16x32xf32>
    %cst_189 = arith.constant dense<0.000000e+00> : vector<2x32xf32>
    %301 = tpu.matmul %298, %300, %cst_189 {dimension_numbers = #tpu.dot_dimension_numbers<[1], [0], [0], [1], [0, 0, 1, 1], [], []>} : vector<2x16xf32>, vector<16x32xf32>, vector<2x32xf32> -> vector<2x32xf32>
    %302 = arith.addf %254, %301 : vector<2x32xf32>
    %c0_190 = arith.constant 0 : index
    %c19_191 = arith.constant 19 : index
    %c0_192 = arith.constant 0 : index
    %303 = vector.load %arg6[%c0_190, %c19_191, %c0_192] : memref<2x64x16xf32, #tpu.memory_space<vmem>>, vector<2x1x16xf32>
    %304 = vector.shape_cast %303 : vector<2x1x16xf32> to vector<2x16xf32>
    %c19_193 = arith.constant 19 : index
    %c0_194 = arith.constant 0 : index
    %c0_195 = arith.constant 0 : index
    %305 = vector.load %arg3[%c19_193, %c0_194, %c0_195] : memref<64x16x32xf32, #tpu.memory_space<vmem>>, vector<1x16x32xf32>
    %306 = vector.shape_cast %305 : vector<1x16x32xf32> to vector<16x32xf32>
    %cst_196 = arith.constant dense<0.000000e+00> : vector<2x32xf32>
    %307 = tpu.matmul %304, %306, %cst_196 {dimension_numbers = #tpu.dot_dimension_numbers<[1], [0], [0], [1], [0, 0, 1, 1], [], []>} : vector<2x16xf32>, vector<16x32xf32>, vector<2x32xf32> -> vector<2x32xf32>
    %308 = arith.addf %260, %307 : vector<2x32xf32>
    %c0_197 = arith.constant 0 : index
    %c20_198 = arith.constant 20 : index
    %c0_199 = arith.constant 0 : index
    %309 = vector.load %arg6[%c0_197, %c20_198, %c0_199] : memref<2x64x16xf32, #tpu.memory_space<vmem>>, vector<2x1x16xf32>
    %310 = vector.shape_cast %309 : vector<2x1x16xf32> to vector<2x16xf32>
    %c20_200 = arith.constant 20 : index
    %c0_201 = arith.constant 0 : index
    %c0_202 = arith.constant 0 : index
    %311 = vector.load %arg3[%c20_200, %c0_201, %c0_202] : memref<64x16x32xf32, #tpu.memory_space<vmem>>, vector<1x16x32xf32>
    %312 = vector.shape_cast %311 : vector<1x16x32xf32> to vector<16x32xf32>
    %cst_203 = arith.constant dense<0.000000e+00> : vector<2x32xf32>
    %313 = tpu.matmul %310, %312, %cst_203 {dimension_numbers = #tpu.dot_dimension_numbers<[1], [0], [0], [1], [0, 0, 1, 1], [], []>} : vector<2x16xf32>, vector<16x32xf32>, vector<2x32xf32> -> vector<2x32xf32>
    %314 = arith.addf %266, %313 : vector<2x32xf32>
    %c0_204 = arith.constant 0 : index
    %c21_205 = arith.constant 21 : index
    %c0_206 = arith.constant 0 : index
    %315 = vector.load %arg6[%c0_204, %c21_205, %c0_206] : memref<2x64x16xf32, #tpu.memory_space<vmem>>, vector<2x1x16xf32>
    %316 = vector.shape_cast %315 : vector<2x1x16xf32> to vector<2x16xf32>
    %c21_207 = arith.constant 21 : index
    %c0_208 = arith.constant 0 : index
    %c0_209 = arith.constant 0 : index
    %317 = vector.load %arg3[%c21_207, %c0_208, %c0_209] : memref<64x16x32xf32, #tpu.memory_space<vmem>>, vector<1x16x32xf32>
    %318 = vector.shape_cast %317 : vector<1x16x32xf32> to vector<16x32xf32>
    %cst_210 = arith.constant dense<0.000000e+00> : vector<2x32xf32>
    %319 = tpu.matmul %316, %318, %cst_210 {dimension_numbers = #tpu.dot_dimension_numbers<[1], [0], [0], [1], [0, 0, 1, 1], [], []>} : vector<2x16xf32>, vector<16x32xf32>, vector<2x32xf32> -> vector<2x32xf32>
    %320 = arith.addf %272, %319 : vector<2x32xf32>
    %c0_211 = arith.constant 0 : index
    %c22_212 = arith.constant 22 : index
    %c0_213 = arith.constant 0 : index
    %321 = vector.load %arg6[%c0_211, %c22_212, %c0_213] : memref<2x64x16xf32, #tpu.memory_space<vmem>>, vector<2x1x16xf32>
    %322 = vector.shape_cast %321 : vector<2x1x16xf32> to vector<2x16xf32>
    %c22_214 = arith.constant 22 : index
    %c0_215 = arith.constant 0 : index
    %c0_216 = arith.constant 0 : index
    %323 = vector.load %arg3[%c22_214, %c0_215, %c0_216] : memref<64x16x32xf32, #tpu.memory_space<vmem>>, vector<1x16x32xf32>
    %324 = vector.shape_cast %323 : vector<1x16x32xf32> to vector<16x32xf32>
    %cst_217 = arith.constant dense<0.000000e+00> : vector<2x32xf32>
    %325 = tpu.matmul %322, %324, %cst_217 {dimension_numbers = #tpu.dot_dimension_numbers<[1], [0], [0], [1], [0, 0, 1, 1], [], []>} : vector<2x16xf32>, vector<16x32xf32>, vector<2x32xf32> -> vector<2x32xf32>
    %326 = arith.addf %278, %325 : vector<2x32xf32>
    %c0_218 = arith.constant 0 : index
    %c23_219 = arith.constant 23 : index
    %c0_220 = arith.constant 0 : index
    %327 = vector.load %arg6[%c0_218, %c23_219, %c0_220] : memref<2x64x16xf32, #tpu.memory_space<vmem>>, vector<2x1x16xf32>
    %328 = vector.shape_cast %327 : vector<2x1x16xf32> to vector<2x16xf32>
    %c23_221 = arith.constant 23 : index
    %c0_222 = arith.constant 0 : index
    %c0_223 = arith.constant 0 : index
    %329 = vector.load %arg3[%c23_221, %c0_222, %c0_223] : memref<64x16x32xf32, #tpu.memory_space<vmem>>, vector<1x16x32xf32>
    %330 = vector.shape_cast %329 : vector<1x16x32xf32> to vector<16x32xf32>
    %cst_224 = arith.constant dense<0.000000e+00> : vector<2x32xf32>
    %331 = tpu.matmul %328, %330, %cst_224 {dimension_numbers = #tpu.dot_dimension_numbers<[1], [0], [0], [1], [0, 0, 1, 1], [], []>} : vector<2x16xf32>, vector<16x32xf32>, vector<2x32xf32> -> vector<2x32xf32>
    %332 = arith.addf %284, %331 : vector<2x32xf32>
    %c0_225 = arith.constant 0 : index
    %c24_226 = arith.constant 24 : index
    %c0_227 = arith.constant 0 : index
    %333 = vector.load %arg6[%c0_225, %c24_226, %c0_227] : memref<2x64x16xf32, #tpu.memory_space<vmem>>, vector<2x1x16xf32>
    %334 = vector.shape_cast %333 : vector<2x1x16xf32> to vector<2x16xf32>
    %c24_228 = arith.constant 24 : index
    %c0_229 = arith.constant 0 : index
    %c0_230 = arith.constant 0 : index
    %335 = vector.load %arg3[%c24_228, %c0_229, %c0_230] : memref<64x16x32xf32, #tpu.memory_space<vmem>>, vector<1x16x32xf32>
    %336 = vector.shape_cast %335 : vector<1x16x32xf32> to vector<16x32xf32>
    %cst_231 = arith.constant dense<0.000000e+00> : vector<2x32xf32>
    %337 = tpu.matmul %334, %336, %cst_231 {dimension_numbers = #tpu.dot_dimension_numbers<[1], [0], [0], [1], [0, 0, 1, 1], [], []>} : vector<2x16xf32>, vector<16x32xf32>, vector<2x32xf32> -> vector<2x32xf32>
    %338 = arith.addf %290, %337 : vector<2x32xf32>
    %c0_232 = arith.constant 0 : index
    %c25_233 = arith.constant 25 : index
    %c0_234 = arith.constant 0 : index
    %339 = vector.load %arg6[%c0_232, %c25_233, %c0_234] : memref<2x64x16xf32, #tpu.memory_space<vmem>>, vector<2x1x16xf32>
    %340 = vector.shape_cast %339 : vector<2x1x16xf32> to vector<2x16xf32>
    %c25_235 = arith.constant 25 : index
    %c0_236 = arith.constant 0 : index
    %c0_237 = arith.constant 0 : index
    %341 = vector.load %arg3[%c25_235, %c0_236, %c0_237] : memref<64x16x32xf32, #tpu.memory_space<vmem>>, vector<1x16x32xf32>
    %342 = vector.shape_cast %341 : vector<1x16x32xf32> to vector<16x32xf32>
    %cst_238 = arith.constant dense<0.000000e+00> : vector<2x32xf32>
    %343 = tpu.matmul %340, %342, %cst_238 {dimension_numbers = #tpu.dot_dimension_numbers<[1], [0], [0], [1], [0, 0, 1, 1], [], []>} : vector<2x16xf32>, vector<16x32xf32>, vector<2x32xf32> -> vector<2x32xf32>
    %344 = arith.addf %296, %343 : vector<2x32xf32>
    %c0_239 = arith.constant 0 : index
    %c26_240 = arith.constant 26 : index
    %c0_241 = arith.constant 0 : index
    %345 = vector.load %arg6[%c0_239, %c26_240, %c0_241] : memref<2x64x16xf32, #tpu.memory_space<vmem>>, vector<2x1x16xf32>
    %346 = vector.shape_cast %345 : vector<2x1x16xf32> to vector<2x16xf32>
    %c26_242 = arith.constant 26 : index
    %c0_243 = arith.constant 0 : index
    %c0_244 = arith.constant 0 : index
    %347 = vector.load %arg3[%c26_242, %c0_243, %c0_244] : memref<64x16x32xf32, #tpu.memory_space<vmem>>, vector<1x16x32xf32>
    %348 = vector.shape_cast %347 : vector<1x16x32xf32> to vector<16x32xf32>
    %cst_245 = arith.constant dense<0.000000e+00> : vector<2x32xf32>
    %349 = tpu.matmul %346, %348, %cst_245 {dimension_numbers = #tpu.dot_dimension_numbers<[1], [0], [0], [1], [0, 0, 1, 1], [], []>} : vector<2x16xf32>, vector<16x32xf32>, vector<2x32xf32> -> vector<2x32xf32>
    %350 = arith.addf %302, %349 : vector<2x32xf32>
    %c0_246 = arith.constant 0 : index
    %c27_247 = arith.constant 27 : index
    %c0_248 = arith.constant 0 : index
    %351 = vector.load %arg6[%c0_246, %c27_247, %c0_248] : memref<2x64x16xf32, #tpu.memory_space<vmem>>, vector<2x1x16xf32>
    %352 = vector.shape_cast %351 : vector<2x1x16xf32> to vector<2x16xf32>
    %c27_249 = arith.constant 27 : index
    %c0_250 = arith.constant 0 : index
    %c0_251 = arith.constant 0 : index
    %353 = vector.load %arg3[%c27_249, %c0_250, %c0_251] : memref<64x16x32xf32, #tpu.memory_space<vmem>>, vector<1x16x32xf32>
    %354 = vector.shape_cast %353 : vector<1x16x32xf32> to vector<16x32xf32>
    %cst_252 = arith.constant dense<0.000000e+00> : vector<2x32xf32>
    %355 = tpu.matmul %352, %354, %cst_252 {dimension_numbers = #tpu.dot_dimension_numbers<[1], [0], [0], [1], [0, 0, 1, 1], [], []>} : vector<2x16xf32>, vector<16x32xf32>, vector<2x32xf32> -> vector<2x32xf32>
    %356 = arith.addf %308, %355 : vector<2x32xf32>
    %c0_253 = arith.constant 0 : index
    %c28_254 = arith.constant 28 : index
    %c0_255 = arith.constant 0 : index
    %357 = vector.load %arg6[%c0_253, %c28_254, %c0_255] : memref<2x64x16xf32, #tpu.memory_space<vmem>>, vector<2x1x16xf32>
    %358 = vector.shape_cast %357 : vector<2x1x16xf32> to vector<2x16xf32>
    %c28_256 = arith.constant 28 : index
    %c0_257 = arith.constant 0 : index
    %c0_258 = arith.constant 0 : index
    %359 = vector.load %arg3[%c28_256, %c0_257, %c0_258] : memref<64x16x32xf32, #tpu.memory_space<vmem>>, vector<1x16x32xf32>
    %360 = vector.shape_cast %359 : vector<1x16x32xf32> to vector<16x32xf32>
    %cst_259 = arith.constant dense<0.000000e+00> : vector<2x32xf32>
    %361 = tpu.matmul %358, %360, %cst_259 {dimension_numbers = #tpu.dot_dimension_numbers<[1], [0], [0], [1], [0, 0, 1, 1], [], []>} : vector<2x16xf32>, vector<16x32xf32>, vector<2x32xf32> -> vector<2x32xf32>
    %362 = arith.addf %314, %361 : vector<2x32xf32>
    %c0_260 = arith.constant 0 : index
    %c29_261 = arith.constant 29 : index
    %c0_262 = arith.constant 0 : index
    %363 = vector.load %arg6[%c0_260, %c29_261, %c0_262] : memref<2x64x16xf32, #tpu.memory_space<vmem>>, vector<2x1x16xf32>
    %364 = vector.shape_cast %363 : vector<2x1x16xf32> to vector<2x16xf32>
    %c29_263 = arith.constant 29 : index
    %c0_264 = arith.constant 0 : index
    %c0_265 = arith.constant 0 : index
    %365 = vector.load %arg3[%c29_263, %c0_264, %c0_265] : memref<64x16x32xf32, #tpu.memory_space<vmem>>, vector<1x16x32xf32>
    %366 = vector.shape_cast %365 : vector<1x16x32xf32> to vector<16x32xf32>
    %cst_266 = arith.constant dense<0.000000e+00> : vector<2x32xf32>
    %367 = tpu.matmul %364, %366, %cst_266 {dimension_numbers = #tpu.dot_dimension_numbers<[1], [0], [0], [1], [0, 0, 1, 1], [], []>} : vector<2x16xf32>, vector<16x32xf32>, vector<2x32xf32> -> vector<2x32xf32>
    %368 = arith.addf %320, %367 : vector<2x32xf32>
    %c0_267 = arith.constant 0 : index
    %c30_268 = arith.constant 30 : index
    %c0_269 = arith.constant 0 : index
    %369 = vector.load %arg6[%c0_267, %c30_268, %c0_269] : memref<2x64x16xf32, #tpu.memory_space<vmem>>, vector<2x1x16xf32>
    %370 = vector.shape_cast %369 : vector<2x1x16xf32> to vector<2x16xf32>
    %c30_270 = arith.constant 30 : index
    %c0_271 = arith.constant 0 : index
    %c0_272 = arith.constant 0 : index
    %371 = vector.load %arg3[%c30_270, %c0_271, %c0_272] : memref<64x16x32xf32, #tpu.memory_space<vmem>>, vector<1x16x32xf32>
    %372 = vector.shape_cast %371 : vector<1x16x32xf32> to vector<16x32xf32>
    %cst_273 = arith.constant dense<0.000000e+00> : vector<2x32xf32>
    %373 = tpu.matmul %370, %372, %cst_273 {dimension_numbers = #tpu.dot_dimension_numbers<[1], [0], [0], [1], [0, 0, 1, 1], [], []>} : vector<2x16xf32>, vector<16x32xf32>, vector<2x32xf32> -> vector<2x32xf32>
    %374 = arith.addf %326, %373 : vector<2x32xf32>
    %c0_274 = arith.constant 0 : index
    %c31_275 = arith.constant 31 : index
    %c0_276 = arith.constant 0 : index
    %375 = vector.load %arg6[%c0_274, %c31_275, %c0_276] : memref<2x64x16xf32, #tpu.memory_space<vmem>>, vector<2x1x16xf32>
    %376 = vector.shape_cast %375 : vector<2x1x16xf32> to vector<2x16xf32>
    %c31_277 = arith.constant 31 : index
    %c0_278 = arith.constant 0 : index
    %c0_279 = arith.constant 0 : index
    %377 = vector.load %arg3[%c31_277, %c0_278, %c0_279] : memref<64x16x32xf32, #tpu.memory_space<vmem>>, vector<1x16x32xf32>
    %378 = vector.shape_cast %377 : vector<1x16x32xf32> to vector<16x32xf32>
    %cst_280 = arith.constant dense<0.000000e+00> : vector<2x32xf32>
    %379 = tpu.matmul %376, %378, %cst_280 {dimension_numbers = #tpu.dot_dimension_numbers<[1], [0], [0], [1], [0, 0, 1, 1], [], []>} : vector<2x16xf32>, vector<16x32xf32>, vector<2x32xf32> -> vector<2x32xf32>
    %380 = arith.addf %332, %379 : vector<2x32xf32>
    %c0_281 = arith.constant 0 : index
    %c32_282 = arith.constant 32 : index
    %c0_283 = arith.constant 0 : index
    %381 = vector.load %arg6[%c0_281, %c32_282, %c0_283] : memref<2x64x16xf32, #tpu.memory_space<vmem>>, vector<2x1x16xf32>
    %382 = vector.shape_cast %381 : vector<2x1x16xf32> to vector<2x16xf32>
    %c32_284 = arith.constant 32 : index
    %c0_285 = arith.constant 0 : index
    %c0_286 = arith.constant 0 : index
    %383 = vector.load %arg3[%c32_284, %c0_285, %c0_286] : memref<64x16x32xf32, #tpu.memory_space<vmem>>, vector<1x16x32xf32>
    %384 = vector.shape_cast %383 : vector<1x16x32xf32> to vector<16x32xf32>
    %cst_287 = arith.constant dense<0.000000e+00> : vector<2x32xf32>
    %385 = tpu.matmul %382, %384, %cst_287 {dimension_numbers = #tpu.dot_dimension_numbers<[1], [0], [0], [1], [0, 0, 1, 1], [], []>} : vector<2x16xf32>, vector<16x32xf32>, vector<2x32xf32> -> vector<2x32xf32>
    %386 = arith.addf %338, %385 : vector<2x32xf32>
    %c0_288 = arith.constant 0 : index
    %c33_289 = arith.constant 33 : index
    %c0_290 = arith.constant 0 : index
    %387 = vector.load %arg6[%c0_288, %c33_289, %c0_290] : memref<2x64x16xf32, #tpu.memory_space<vmem>>, vector<2x1x16xf32>
    %388 = vector.shape_cast %387 : vector<2x1x16xf32> to vector<2x16xf32>
    %c33_291 = arith.constant 33 : index
    %c0_292 = arith.constant 0 : index
    %c0_293 = arith.constant 0 : index
    %389 = vector.load %arg3[%c33_291, %c0_292, %c0_293] : memref<64x16x32xf32, #tpu.memory_space<vmem>>, vector<1x16x32xf32>
    %390 = vector.shape_cast %389 : vector<1x16x32xf32> to vector<16x32xf32>
    %cst_294 = arith.constant dense<0.000000e+00> : vector<2x32xf32>
    %391 = tpu.matmul %388, %390, %cst_294 {dimension_numbers = #tpu.dot_dimension_numbers<[1], [0], [0], [1], [0, 0, 1, 1], [], []>} : vector<2x16xf32>, vector<16x32xf32>, vector<2x32xf32> -> vector<2x32xf32>
    %392 = arith.addf %344, %391 : vector<2x32xf32>
    %c0_295 = arith.constant 0 : index
    %c34_296 = arith.constant 34 : index
    %c0_297 = arith.constant 0 : index
    %393 = vector.load %arg6[%c0_295, %c34_296, %c0_297] : memref<2x64x16xf32, #tpu.memory_space<vmem>>, vector<2x1x16xf32>
    %394 = vector.shape_cast %393 : vector<2x1x16xf32> to vector<2x16xf32>
    %c34_298 = arith.constant 34 : index
    %c0_299 = arith.constant 0 : index
    %c0_300 = arith.constant 0 : index
    %395 = vector.load %arg3[%c34_298, %c0_299, %c0_300] : memref<64x16x32xf32, #tpu.memory_space<vmem>>, vector<1x16x32xf32>
    %396 = vector.shape_cast %395 : vector<1x16x32xf32> to vector<16x32xf32>
    %cst_301 = arith.constant dense<0.000000e+00> : vector<2x32xf32>
    %397 = tpu.matmul %394, %396, %cst_301 {dimension_numbers = #tpu.dot_dimension_numbers<[1], [0], [0], [1], [0, 0, 1, 1], [], []>} : vector<2x16xf32>, vector<16x32xf32>, vector<2x32xf32> -> vector<2x32xf32>
    %398 = arith.addf %350, %397 : vector<2x32xf32>
    %c0_302 = arith.constant 0 : index
    %c35_303 = arith.constant 35 : index
    %c0_304 = arith.constant 0 : index
    %399 = vector.load %arg6[%c0_302, %c35_303, %c0_304] : memref<2x64x16xf32, #tpu.memory_space<vmem>>, vector<2x1x16xf32>
    %400 = vector.shape_cast %399 : vector<2x1x16xf32> to vector<2x16xf32>
    %c35_305 = arith.constant 35 : index
    %c0_306 = arith.constant 0 : index
    %c0_307 = arith.constant 0 : index
    %401 = vector.load %arg3[%c35_305, %c0_306, %c0_307] : memref<64x16x32xf32, #tpu.memory_space<vmem>>, vector<1x16x32xf32>
    %402 = vector.shape_cast %401 : vector<1x16x32xf32> to vector<16x32xf32>
    %cst_308 = arith.constant dense<0.000000e+00> : vector<2x32xf32>
    %403 = tpu.matmul %400, %402, %cst_308 {dimension_numbers = #tpu.dot_dimension_numbers<[1], [0], [0], [1], [0, 0, 1, 1], [], []>} : vector<2x16xf32>, vector<16x32xf32>, vector<2x32xf32> -> vector<2x32xf32>
    %404 = arith.addf %356, %403 : vector<2x32xf32>
    %c0_309 = arith.constant 0 : index
    %c36 = arith.constant 36 : index
    %c0_310 = arith.constant 0 : index
    %405 = vector.load %arg6[%c0_309, %c36, %c0_310] : memref<2x64x16xf32, #tpu.memory_space<vmem>>, vector<2x1x16xf32>
    %406 = vector.shape_cast %405 : vector<2x1x16xf32> to vector<2x16xf32>
    %c36_311 = arith.constant 36 : index
    %c0_312 = arith.constant 0 : index
    %c0_313 = arith.constant 0 : index
    %407 = vector.load %arg3[%c36_311, %c0_312, %c0_313] : memref<64x16x32xf32, #tpu.memory_space<vmem>>, vector<1x16x32xf32>
    %408 = vector.shape_cast %407 : vector<1x16x32xf32> to vector<16x32xf32>
    %cst_314 = arith.constant dense<0.000000e+00> : vector<2x32xf32>
    %409 = tpu.matmul %406, %408, %cst_314 {dimension_numbers = #tpu.dot_dimension_numbers<[1], [0], [0], [1], [0, 0, 1, 1], [], []>} : vector<2x16xf32>, vector<16x32xf32>, vector<2x32xf32> -> vector<2x32xf32>
    %410 = arith.addf %362, %409 : vector<2x32xf32>
    %c0_315 = arith.constant 0 : index
    %c37 = arith.constant 37 : index
    %c0_316 = arith.constant 0 : index
    %411 = vector.load %arg6[%c0_315, %c37, %c0_316] : memref<2x64x16xf32, #tpu.memory_space<vmem>>, vector<2x1x16xf32>
    %412 = vector.shape_cast %411 : vector<2x1x16xf32> to vector<2x16xf32>
    %c37_317 = arith.constant 37 : index
    %c0_318 = arith.constant 0 : index
    %c0_319 = arith.constant 0 : index
    %413 = vector.load %arg3[%c37_317, %c0_318, %c0_319] : memref<64x16x32xf32, #tpu.memory_space<vmem>>, vector<1x16x32xf32>
    %414 = vector.shape_cast %413 : vector<1x16x32xf32> to vector<16x32xf32>
    %cst_320 = arith.constant dense<0.000000e+00> : vector<2x32xf32>
    %415 = tpu.matmul %412, %414, %cst_320 {dimension_numbers = #tpu.dot_dimension_numbers<[1], [0], [0], [1], [0, 0, 1, 1], [], []>} : vector<2x16xf32>, vector<16x32xf32>, vector<2x32xf32> -> vector<2x32xf32>
    %416 = arith.addf %368, %415 : vector<2x32xf32>
    %c0_321 = arith.constant 0 : index
    %c38 = arith.constant 38 : index
    %c0_322 = arith.constant 0 : index
    %417 = vector.load %arg6[%c0_321, %c38, %c0_322] : memref<2x64x16xf32, #tpu.memory_space<vmem>>, vector<2x1x16xf32>
    %418 = vector.shape_cast %417 : vector<2x1x16xf32> to vector<2x16xf32>
    %c38_323 = arith.constant 38 : index
    %c0_324 = arith.constant 0 : index
    %c0_325 = arith.constant 0 : index
    %419 = vector.load %arg3[%c38_323, %c0_324, %c0_325] : memref<64x16x32xf32, #tpu.memory_space<vmem>>, vector<1x16x32xf32>
    %420 = vector.shape_cast %419 : vector<1x16x32xf32> to vector<16x32xf32>
    %cst_326 = arith.constant dense<0.000000e+00> : vector<2x32xf32>
    %421 = tpu.matmul %418, %420, %cst_326 {dimension_numbers = #tpu.dot_dimension_numbers<[1], [0], [0], [1], [0, 0, 1, 1], [], []>} : vector<2x16xf32>, vector<16x32xf32>, vector<2x32xf32> -> vector<2x32xf32>
    %422 = arith.addf %374, %421 : vector<2x32xf32>
    %c0_327 = arith.constant 0 : index
    %c39 = arith.constant 39 : index
    %c0_328 = arith.constant 0 : index
    %423 = vector.load %arg6[%c0_327, %c39, %c0_328] : memref<2x64x16xf32, #tpu.memory_space<vmem>>, vector<2x1x16xf32>
    %424 = vector.shape_cast %423 : vector<2x1x16xf32> to vector<2x16xf32>
    %c39_329 = arith.constant 39 : index
    %c0_330 = arith.constant 0 : index
    %c0_331 = arith.constant 0 : index
    %425 = vector.load %arg3[%c39_329, %c0_330, %c0_331] : memref<64x16x32xf32, #tpu.memory_space<vmem>>, vector<1x16x32xf32>
    %426 = vector.shape_cast %425 : vector<1x16x32xf32> to vector<16x32xf32>
    %cst_332 = arith.constant dense<0.000000e+00> : vector<2x32xf32>
    %427 = tpu.matmul %424, %426, %cst_332 {dimension_numbers = #tpu.dot_dimension_numbers<[1], [0], [0], [1], [0, 0, 1, 1], [], []>} : vector<2x16xf32>, vector<16x32xf32>, vector<2x32xf32> -> vector<2x32xf32>
    %428 = arith.addf %380, %427 : vector<2x32xf32>
    %c0_333 = arith.constant 0 : index
    %c40 = arith.constant 40 : index
    %c0_334 = arith.constant 0 : index
    %429 = vector.load %arg6[%c0_333, %c40, %c0_334] : memref<2x64x16xf32, #tpu.memory_space<vmem>>, vector<2x1x16xf32>
    %430 = vector.shape_cast %429 : vector<2x1x16xf32> to vector<2x16xf32>
    %c40_335 = arith.constant 40 : index
    %c0_336 = arith.constant 0 : index
    %c0_337 = arith.constant 0 : index
    %431 = vector.load %arg3[%c40_335, %c0_336, %c0_337] : memref<64x16x32xf32, #tpu.memory_space<vmem>>, vector<1x16x32xf32>
    %432 = vector.shape_cast %431 : vector<1x16x32xf32> to vector<16x32xf32>
    %cst_338 = arith.constant dense<0.000000e+00> : vector<2x32xf32>
    %433 = tpu.matmul %430, %432, %cst_338 {dimension_numbers = #tpu.dot_dimension_numbers<[1], [0], [0], [1], [0, 0, 1, 1], [], []>} : vector<2x16xf32>, vector<16x32xf32>, vector<2x32xf32> -> vector<2x32xf32>
    %434 = arith.addf %386, %433 : vector<2x32xf32>
    %c0_339 = arith.constant 0 : index
    %c41 = arith.constant 41 : index
    %c0_340 = arith.constant 0 : index
    %435 = vector.load %arg6[%c0_339, %c41, %c0_340] : memref<2x64x16xf32, #tpu.memory_space<vmem>>, vector<2x1x16xf32>
    %436 = vector.shape_cast %435 : vector<2x1x16xf32> to vector<2x16xf32>
    %c41_341 = arith.constant 41 : index
    %c0_342 = arith.constant 0 : index
    %c0_343 = arith.constant 0 : index
    %437 = vector.load %arg3[%c41_341, %c0_342, %c0_343] : memref<64x16x32xf32, #tpu.memory_space<vmem>>, vector<1x16x32xf32>
    %438 = vector.shape_cast %437 : vector<1x16x32xf32> to vector<16x32xf32>
    %cst_344 = arith.constant dense<0.000000e+00> : vector<2x32xf32>
    %439 = tpu.matmul %436, %438, %cst_344 {dimension_numbers = #tpu.dot_dimension_numbers<[1], [0], [0], [1], [0, 0, 1, 1], [], []>} : vector<2x16xf32>, vector<16x32xf32>, vector<2x32xf32> -> vector<2x32xf32>
    %440 = arith.addf %392, %439 : vector<2x32xf32>
    %c0_345 = arith.constant 0 : index
    %c42 = arith.constant 42 : index
    %c0_346 = arith.constant 0 : index
    %441 = vector.load %arg6[%c0_345, %c42, %c0_346] : memref<2x64x16xf32, #tpu.memory_space<vmem>>, vector<2x1x16xf32>
    %442 = vector.shape_cast %441 : vector<2x1x16xf32> to vector<2x16xf32>
    %c42_347 = arith.constant 42 : index
    %c0_348 = arith.constant 0 : index
    %c0_349 = arith.constant 0 : index
    %443 = vector.load %arg3[%c42_347, %c0_348, %c0_349] : memref<64x16x32xf32, #tpu.memory_space<vmem>>, vector<1x16x32xf32>
    %444 = vector.shape_cast %443 : vector<1x16x32xf32> to vector<16x32xf32>
    %cst_350 = arith.constant dense<0.000000e+00> : vector<2x32xf32>
    %445 = tpu.matmul %442, %444, %cst_350 {dimension_numbers = #tpu.dot_dimension_numbers<[1], [0], [0], [1], [0, 0, 1, 1], [], []>} : vector<2x16xf32>, vector<16x32xf32>, vector<2x32xf32> -> vector<2x32xf32>
    %446 = arith.addf %398, %445 : vector<2x32xf32>
    %c0_351 = arith.constant 0 : index
    %c43 = arith.constant 43 : index
    %c0_352 = arith.constant 0 : index
    %447 = vector.load %arg6[%c0_351, %c43, %c0_352] : memref<2x64x16xf32, #tpu.memory_space<vmem>>, vector<2x1x16xf32>
    %448 = vector.shape_cast %447 : vector<2x1x16xf32> to vector<2x16xf32>
    %c43_353 = arith.constant 43 : index
    %c0_354 = arith.constant 0 : index
    %c0_355 = arith.constant 0 : index
    %449 = vector.load %arg3[%c43_353, %c0_354, %c0_355] : memref<64x16x32xf32, #tpu.memory_space<vmem>>, vector<1x16x32xf32>
    %450 = vector.shape_cast %449 : vector<1x16x32xf32> to vector<16x32xf32>
    %cst_356 = arith.constant dense<0.000000e+00> : vector<2x32xf32>
    %451 = tpu.matmul %448, %450, %cst_356 {dimension_numbers = #tpu.dot_dimension_numbers<[1], [0], [0], [1], [0, 0, 1, 1], [], []>} : vector<2x16xf32>, vector<16x32xf32>, vector<2x32xf32> -> vector<2x32xf32>
    %452 = arith.addf %404, %451 : vector<2x32xf32>
    %c0_357 = arith.constant 0 : index
    %c44 = arith.constant 44 : index
    %c0_358 = arith.constant 0 : index
    %453 = vector.load %arg6[%c0_357, %c44, %c0_358] : memref<2x64x16xf32, #tpu.memory_space<vmem>>, vector<2x1x16xf32>
    %454 = vector.shape_cast %453 : vector<2x1x16xf32> to vector<2x16xf32>
    %c44_359 = arith.constant 44 : index
    %c0_360 = arith.constant 0 : index
    %c0_361 = arith.constant 0 : index
    %455 = vector.load %arg3[%c44_359, %c0_360, %c0_361] : memref<64x16x32xf32, #tpu.memory_space<vmem>>, vector<1x16x32xf32>
    %456 = vector.shape_cast %455 : vector<1x16x32xf32> to vector<16x32xf32>
    %cst_362 = arith.constant dense<0.000000e+00> : vector<2x32xf32>
    %457 = tpu.matmul %454, %456, %cst_362 {dimension_numbers = #tpu.dot_dimension_numbers<[1], [0], [0], [1], [0, 0, 1, 1], [], []>} : vector<2x16xf32>, vector<16x32xf32>, vector<2x32xf32> -> vector<2x32xf32>
    %458 = arith.addf %410, %457 : vector<2x32xf32>
    %c0_363 = arith.constant 0 : index
    %c45 = arith.constant 45 : index
    %c0_364 = arith.constant 0 : index
    %459 = vector.load %arg6[%c0_363, %c45, %c0_364] : memref<2x64x16xf32, #tpu.memory_space<vmem>>, vector<2x1x16xf32>
    %460 = vector.shape_cast %459 : vector<2x1x16xf32> to vector<2x16xf32>
    %c45_365 = arith.constant 45 : index
    %c0_366 = arith.constant 0 : index
    %c0_367 = arith.constant 0 : index
    %461 = vector.load %arg3[%c45_365, %c0_366, %c0_367] : memref<64x16x32xf32, #tpu.memory_space<vmem>>, vector<1x16x32xf32>
    %462 = vector.shape_cast %461 : vector<1x16x32xf32> to vector<16x32xf32>
    %cst_368 = arith.constant dense<0.000000e+00> : vector<2x32xf32>
    %463 = tpu.matmul %460, %462, %cst_368 {dimension_numbers = #tpu.dot_dimension_numbers<[1], [0], [0], [1], [0, 0, 1, 1], [], []>} : vector<2x16xf32>, vector<16x32xf32>, vector<2x32xf32> -> vector<2x32xf32>
    %464 = arith.addf %416, %463 : vector<2x32xf32>
    %c0_369 = arith.constant 0 : index
    %c46 = arith.constant 46 : index
    %c0_370 = arith.constant 0 : index
    %465 = vector.load %arg6[%c0_369, %c46, %c0_370] : memref<2x64x16xf32, #tpu.memory_space<vmem>>, vector<2x1x16xf32>
    %466 = vector.shape_cast %465 : vector<2x1x16xf32> to vector<2x16xf32>
    %c46_371 = arith.constant 46 : index
    %c0_372 = arith.constant 0 : index
    %c0_373 = arith.constant 0 : index
    %467 = vector.load %arg3[%c46_371, %c0_372, %c0_373] : memref<64x16x32xf32, #tpu.memory_space<vmem>>, vector<1x16x32xf32>
    %468 = vector.shape_cast %467 : vector<1x16x32xf32> to vector<16x32xf32>
    %cst_374 = arith.constant dense<0.000000e+00> : vector<2x32xf32>
    %469 = tpu.matmul %466, %468, %cst_374 {dimension_numbers = #tpu.dot_dimension_numbers<[1], [0], [0], [1], [0, 0, 1, 1], [], []>} : vector<2x16xf32>, vector<16x32xf32>, vector<2x32xf32> -> vector<2x32xf32>
    %470 = arith.addf %422, %469 : vector<2x32xf32>
    %c0_375 = arith.constant 0 : index
    %c47 = arith.constant 47 : index
    %c0_376 = arith.constant 0 : index
    %471 = vector.load %arg6[%c0_375, %c47, %c0_376] : memref<2x64x16xf32, #tpu.memory_space<vmem>>, vector<2x1x16xf32>
    %472 = vector.shape_cast %471 : vector<2x1x16xf32> to vector<2x16xf32>
    %c47_377 = arith.constant 47 : index
    %c0_378 = arith.constant 0 : index
    %c0_379 = arith.constant 0 : index
    %473 = vector.load %arg3[%c47_377, %c0_378, %c0_379] : memref<64x16x32xf32, #tpu.memory_space<vmem>>, vector<1x16x32xf32>
    %474 = vector.shape_cast %473 : vector<1x16x32xf32> to vector<16x32xf32>
    %cst_380 = arith.constant dense<0.000000e+00> : vector<2x32xf32>
    %475 = tpu.matmul %472, %474, %cst_380 {dimension_numbers = #tpu.dot_dimension_numbers<[1], [0], [0], [1], [0, 0, 1, 1], [], []>} : vector<2x16xf32>, vector<16x32xf32>, vector<2x32xf32> -> vector<2x32xf32>
    %476 = arith.addf %428, %475 : vector<2x32xf32>
    %c0_381 = arith.constant 0 : index
    %c48_382 = arith.constant 48 : index
    %c0_383 = arith.constant 0 : index
    %477 = vector.load %arg6[%c0_381, %c48_382, %c0_383] : memref<2x64x16xf32, #tpu.memory_space<vmem>>, vector<2x1x16xf32>
    %478 = vector.shape_cast %477 : vector<2x1x16xf32> to vector<2x16xf32>
    %c48_384 = arith.constant 48 : index
    %c0_385 = arith.constant 0 : index
    %c0_386 = arith.constant 0 : index
    %479 = vector.load %arg3[%c48_384, %c0_385, %c0_386] : memref<64x16x32xf32, #tpu.memory_space<vmem>>, vector<1x16x32xf32>
    %480 = vector.shape_cast %479 : vector<1x16x32xf32> to vector<16x32xf32>
    %cst_387 = arith.constant dense<0.000000e+00> : vector<2x32xf32>
    %481 = tpu.matmul %478, %480, %cst_387 {dimension_numbers = #tpu.dot_dimension_numbers<[1], [0], [0], [1], [0, 0, 1, 1], [], []>} : vector<2x16xf32>, vector<16x32xf32>, vector<2x32xf32> -> vector<2x32xf32>
    %482 = arith.addf %434, %481 : vector<2x32xf32>
    %c0_388 = arith.constant 0 : index
    %c49 = arith.constant 49 : index
    %c0_389 = arith.constant 0 : index
    %483 = vector.load %arg6[%c0_388, %c49, %c0_389] : memref<2x64x16xf32, #tpu.memory_space<vmem>>, vector<2x1x16xf32>
    %484 = vector.shape_cast %483 : vector<2x1x16xf32> to vector<2x16xf32>
    %c49_390 = arith.constant 49 : index
    %c0_391 = arith.constant 0 : index
    %c0_392 = arith.constant 0 : index
    %485 = vector.load %arg3[%c49_390, %c0_391, %c0_392] : memref<64x16x32xf32, #tpu.memory_space<vmem>>, vector<1x16x32xf32>
    %486 = vector.shape_cast %485 : vector<1x16x32xf32> to vector<16x32xf32>
    %cst_393 = arith.constant dense<0.000000e+00> : vector<2x32xf32>
    %487 = tpu.matmul %484, %486, %cst_393 {dimension_numbers = #tpu.dot_dimension_numbers<[1], [0], [0], [1], [0, 0, 1, 1], [], []>} : vector<2x16xf32>, vector<16x32xf32>, vector<2x32xf32> -> vector<2x32xf32>
    %488 = arith.addf %440, %487 : vector<2x32xf32>
    %c0_394 = arith.constant 0 : index
    %c50 = arith.constant 50 : index
    %c0_395 = arith.constant 0 : index
    %489 = vector.load %arg6[%c0_394, %c50, %c0_395] : memref<2x64x16xf32, #tpu.memory_space<vmem>>, vector<2x1x16xf32>
    %490 = vector.shape_cast %489 : vector<2x1x16xf32> to vector<2x16xf32>
    %c50_396 = arith.constant 50 : index
    %c0_397 = arith.constant 0 : index
    %c0_398 = arith.constant 0 : index
    %491 = vector.load %arg3[%c50_396, %c0_397, %c0_398] : memref<64x16x32xf32, #tpu.memory_space<vmem>>, vector<1x16x32xf32>
    %492 = vector.shape_cast %491 : vector<1x16x32xf32> to vector<16x32xf32>
    %cst_399 = arith.constant dense<0.000000e+00> : vector<2x32xf32>
    %493 = tpu.matmul %490, %492, %cst_399 {dimension_numbers = #tpu.dot_dimension_numbers<[1], [0], [0], [1], [0, 0, 1, 1], [], []>} : vector<2x16xf32>, vector<16x32xf32>, vector<2x32xf32> -> vector<2x32xf32>
    %494 = arith.addf %446, %493 : vector<2x32xf32>
    %c0_400 = arith.constant 0 : index
    %c51 = arith.constant 51 : index
    %c0_401 = arith.constant 0 : index
    %495 = vector.load %arg6[%c0_400, %c51, %c0_401] : memref<2x64x16xf32, #tpu.memory_space<vmem>>, vector<2x1x16xf32>
    %496 = vector.shape_cast %495 : vector<2x1x16xf32> to vector<2x16xf32>
    %c51_402 = arith.constant 51 : index
    %c0_403 = arith.constant 0 : index
    %c0_404 = arith.constant 0 : index
    %497 = vector.load %arg3[%c51_402, %c0_403, %c0_404] : memref<64x16x32xf32, #tpu.memory_space<vmem>>, vector<1x16x32xf32>
    %498 = vector.shape_cast %497 : vector<1x16x32xf32> to vector<16x32xf32>
    %cst_405 = arith.constant dense<0.000000e+00> : vector<2x32xf32>
    %499 = tpu.matmul %496, %498, %cst_405 {dimension_numbers = #tpu.dot_dimension_numbers<[1], [0], [0], [1], [0, 0, 1, 1], [], []>} : vector<2x16xf32>, vector<16x32xf32>, vector<2x32xf32> -> vector<2x32xf32>
    %500 = arith.addf %452, %499 : vector<2x32xf32>
    %c0_406 = arith.constant 0 : index
    %c52 = arith.constant 52 : index
    %c0_407 = arith.constant 0 : index
    %501 = vector.load %arg6[%c0_406, %c52, %c0_407] : memref<2x64x16xf32, #tpu.memory_space<vmem>>, vector<2x1x16xf32>
    %502 = vector.shape_cast %501 : vector<2x1x16xf32> to vector<2x16xf32>
    %c52_408 = arith.constant 52 : index
    %c0_409 = arith.constant 0 : index
    %c0_410 = arith.constant 0 : index
    %503 = vector.load %arg3[%c52_408, %c0_409, %c0_410] : memref<64x16x32xf32, #tpu.memory_space<vmem>>, vector<1x16x32xf32>
    %504 = vector.shape_cast %503 : vector<1x16x32xf32> to vector<16x32xf32>
    %cst_411 = arith.constant dense<0.000000e+00> : vector<2x32xf32>
    %505 = tpu.matmul %502, %504, %cst_411 {dimension_numbers = #tpu.dot_dimension_numbers<[1], [0], [0], [1], [0, 0, 1, 1], [], []>} : vector<2x16xf32>, vector<16x32xf32>, vector<2x32xf32> -> vector<2x32xf32>
    %506 = arith.addf %458, %505 : vector<2x32xf32>
    %c0_412 = arith.constant 0 : index
    %c53 = arith.constant 53 : index
    %c0_413 = arith.constant 0 : index
    %507 = vector.load %arg6[%c0_412, %c53, %c0_413] : memref<2x64x16xf32, #tpu.memory_space<vmem>>, vector<2x1x16xf32>
    %508 = vector.shape_cast %507 : vector<2x1x16xf32> to vector<2x16xf32>
    %c53_414 = arith.constant 53 : index
    %c0_415 = arith.constant 0 : index
    %c0_416 = arith.constant 0 : index
    %509 = vector.load %arg3[%c53_414, %c0_415, %c0_416] : memref<64x16x32xf32, #tpu.memory_space<vmem>>, vector<1x16x32xf32>
    %510 = vector.shape_cast %509 : vector<1x16x32xf32> to vector<16x32xf32>
    %cst_417 = arith.constant dense<0.000000e+00> : vector<2x32xf32>
    %511 = tpu.matmul %508, %510, %cst_417 {dimension_numbers = #tpu.dot_dimension_numbers<[1], [0], [0], [1], [0, 0, 1, 1], [], []>} : vector<2x16xf32>, vector<16x32xf32>, vector<2x32xf32> -> vector<2x32xf32>
    %512 = arith.addf %464, %511 : vector<2x32xf32>
    %c0_418 = arith.constant 0 : index
    %c54 = arith.constant 54 : index
    %c0_419 = arith.constant 0 : index
    %513 = vector.load %arg6[%c0_418, %c54, %c0_419] : memref<2x64x16xf32, #tpu.memory_space<vmem>>, vector<2x1x16xf32>
    %514 = vector.shape_cast %513 : vector<2x1x16xf32> to vector<2x16xf32>
    %c54_420 = arith.constant 54 : index
    %c0_421 = arith.constant 0 : index
    %c0_422 = arith.constant 0 : index
    %515 = vector.load %arg3[%c54_420, %c0_421, %c0_422] : memref<64x16x32xf32, #tpu.memory_space<vmem>>, vector<1x16x32xf32>
    %516 = vector.shape_cast %515 : vector<1x16x32xf32> to vector<16x32xf32>
    %cst_423 = arith.constant dense<0.000000e+00> : vector<2x32xf32>
    %517 = tpu.matmul %514, %516, %cst_423 {dimension_numbers = #tpu.dot_dimension_numbers<[1], [0], [0], [1], [0, 0, 1, 1], [], []>} : vector<2x16xf32>, vector<16x32xf32>, vector<2x32xf32> -> vector<2x32xf32>
    %518 = arith.addf %470, %517 : vector<2x32xf32>
    %c0_424 = arith.constant 0 : index
    %c55 = arith.constant 55 : index
    %c0_425 = arith.constant 0 : index
    %519 = vector.load %arg6[%c0_424, %c55, %c0_425] : memref<2x64x16xf32, #tpu.memory_space<vmem>>, vector<2x1x16xf32>
    %520 = vector.shape_cast %519 : vector<2x1x16xf32> to vector<2x16xf32>
    %c55_426 = arith.constant 55 : index
    %c0_427 = arith.constant 0 : index
    %c0_428 = arith.constant 0 : index
    %521 = vector.load %arg3[%c55_426, %c0_427, %c0_428] : memref<64x16x32xf32, #tpu.memory_space<vmem>>, vector<1x16x32xf32>
    %522 = vector.shape_cast %521 : vector<1x16x32xf32> to vector<16x32xf32>
    %cst_429 = arith.constant dense<0.000000e+00> : vector<2x32xf32>
    %523 = tpu.matmul %520, %522, %cst_429 {dimension_numbers = #tpu.dot_dimension_numbers<[1], [0], [0], [1], [0, 0, 1, 1], [], []>} : vector<2x16xf32>, vector<16x32xf32>, vector<2x32xf32> -> vector<2x32xf32>
    %524 = arith.addf %476, %523 : vector<2x32xf32>
    %c0_430 = arith.constant 0 : index
    %c56 = arith.constant 56 : index
    %c0_431 = arith.constant 0 : index
    %525 = vector.load %arg6[%c0_430, %c56, %c0_431] : memref<2x64x16xf32, #tpu.memory_space<vmem>>, vector<2x1x16xf32>
    %526 = vector.shape_cast %525 : vector<2x1x16xf32> to vector<2x16xf32>
    %c56_432 = arith.constant 56 : index
    %c0_433 = arith.constant 0 : index
    %c0_434 = arith.constant 0 : index
    %527 = vector.load %arg3[%c56_432, %c0_433, %c0_434] : memref<64x16x32xf32, #tpu.memory_space<vmem>>, vector<1x16x32xf32>
    %528 = vector.shape_cast %527 : vector<1x16x32xf32> to vector<16x32xf32>
    %cst_435 = arith.constant dense<0.000000e+00> : vector<2x32xf32>
    %529 = tpu.matmul %526, %528, %cst_435 {dimension_numbers = #tpu.dot_dimension_numbers<[1], [0], [0], [1], [0, 0, 1, 1], [], []>} : vector<2x16xf32>, vector<16x32xf32>, vector<2x32xf32> -> vector<2x32xf32>
    %530 = arith.addf %482, %529 : vector<2x32xf32>
    %c0_436 = arith.constant 0 : index
    %c57 = arith.constant 57 : index
    %c0_437 = arith.constant 0 : index
    %531 = vector.load %arg6[%c0_436, %c57, %c0_437] : memref<2x64x16xf32, #tpu.memory_space<vmem>>, vector<2x1x16xf32>
    %532 = vector.shape_cast %531 : vector<2x1x16xf32> to vector<2x16xf32>
    %c57_438 = arith.constant 57 : index
    %c0_439 = arith.constant 0 : index
    %c0_440 = arith.constant 0 : index
    %533 = vector.load %arg3[%c57_438, %c0_439, %c0_440] : memref<64x16x32xf32, #tpu.memory_space<vmem>>, vector<1x16x32xf32>
    %534 = vector.shape_cast %533 : vector<1x16x32xf32> to vector<16x32xf32>
    %cst_441 = arith.constant dense<0.000000e+00> : vector<2x32xf32>
    %535 = tpu.matmul %532, %534, %cst_441 {dimension_numbers = #tpu.dot_dimension_numbers<[1], [0], [0], [1], [0, 0, 1, 1], [], []>} : vector<2x16xf32>, vector<16x32xf32>, vector<2x32xf32> -> vector<2x32xf32>
    %536 = arith.addf %488, %535 : vector<2x32xf32>
    %c0_442 = arith.constant 0 : index
    %c58 = arith.constant 58 : index
    %c0_443 = arith.constant 0 : index
    %537 = vector.load %arg6[%c0_442, %c58, %c0_443] : memref<2x64x16xf32, #tpu.memory_space<vmem>>, vector<2x1x16xf32>
    %538 = vector.shape_cast %537 : vector<2x1x16xf32> to vector<2x16xf32>
    %c58_444 = arith.constant 58 : index
    %c0_445 = arith.constant 0 : index
    %c0_446 = arith.constant 0 : index
    %539 = vector.load %arg3[%c58_444, %c0_445, %c0_446] : memref<64x16x32xf32, #tpu.memory_space<vmem>>, vector<1x16x32xf32>
    %540 = vector.shape_cast %539 : vector<1x16x32xf32> to vector<16x32xf32>
    %cst_447 = arith.constant dense<0.000000e+00> : vector<2x32xf32>
    %541 = tpu.matmul %538, %540, %cst_447 {dimension_numbers = #tpu.dot_dimension_numbers<[1], [0], [0], [1], [0, 0, 1, 1], [], []>} : vector<2x16xf32>, vector<16x32xf32>, vector<2x32xf32> -> vector<2x32xf32>
    %542 = arith.addf %494, %541 : vector<2x32xf32>
    %c0_448 = arith.constant 0 : index
    %c59 = arith.constant 59 : index
    %c0_449 = arith.constant 0 : index
    %543 = vector.load %arg6[%c0_448, %c59, %c0_449] : memref<2x64x16xf32, #tpu.memory_space<vmem>>, vector<2x1x16xf32>
    %544 = vector.shape_cast %543 : vector<2x1x16xf32> to vector<2x16xf32>
    %c59_450 = arith.constant 59 : index
    %c0_451 = arith.constant 0 : index
    %c0_452 = arith.constant 0 : index
    %545 = vector.load %arg3[%c59_450, %c0_451, %c0_452] : memref<64x16x32xf32, #tpu.memory_space<vmem>>, vector<1x16x32xf32>
    %546 = vector.shape_cast %545 : vector<1x16x32xf32> to vector<16x32xf32>
    %cst_453 = arith.constant dense<0.000000e+00> : vector<2x32xf32>
    %547 = tpu.matmul %544, %546, %cst_453 {dimension_numbers = #tpu.dot_dimension_numbers<[1], [0], [0], [1], [0, 0, 1, 1], [], []>} : vector<2x16xf32>, vector<16x32xf32>, vector<2x32xf32> -> vector<2x32xf32>
    %548 = arith.addf %500, %547 : vector<2x32xf32>
    %c0_454 = arith.constant 0 : index
    %c60 = arith.constant 60 : index
    %c0_455 = arith.constant 0 : index
    %549 = vector.load %arg6[%c0_454, %c60, %c0_455] : memref<2x64x16xf32, #tpu.memory_space<vmem>>, vector<2x1x16xf32>
    %550 = vector.shape_cast %549 : vector<2x1x16xf32> to vector<2x16xf32>
    %c60_456 = arith.constant 60 : index
    %c0_457 = arith.constant 0 : index
    %c0_458 = arith.constant 0 : index
    %551 = vector.load %arg3[%c60_456, %c0_457, %c0_458] : memref<64x16x32xf32, #tpu.memory_space<vmem>>, vector<1x16x32xf32>
    %552 = vector.shape_cast %551 : vector<1x16x32xf32> to vector<16x32xf32>
    %cst_459 = arith.constant dense<0.000000e+00> : vector<2x32xf32>
    %553 = tpu.matmul %550, %552, %cst_459 {dimension_numbers = #tpu.dot_dimension_numbers<[1], [0], [0], [1], [0, 0, 1, 1], [], []>} : vector<2x16xf32>, vector<16x32xf32>, vector<2x32xf32> -> vector<2x32xf32>
    %554 = arith.addf %506, %553 : vector<2x32xf32>
    %c0_460 = arith.constant 0 : index
    %c61 = arith.constant 61 : index
    %c0_461 = arith.constant 0 : index
    %555 = vector.load %arg6[%c0_460, %c61, %c0_461] : memref<2x64x16xf32, #tpu.memory_space<vmem>>, vector<2x1x16xf32>
    %556 = vector.shape_cast %555 : vector<2x1x16xf32> to vector<2x16xf32>
    %c61_462 = arith.constant 61 : index
    %c0_463 = arith.constant 0 : index
    %c0_464 = arith.constant 0 : index
    %557 = vector.load %arg3[%c61_462, %c0_463, %c0_464] : memref<64x16x32xf32, #tpu.memory_space<vmem>>, vector<1x16x32xf32>
    %558 = vector.shape_cast %557 : vector<1x16x32xf32> to vector<16x32xf32>
    %cst_465 = arith.constant dense<0.000000e+00> : vector<2x32xf32>
    %559 = tpu.matmul %556, %558, %cst_465 {dimension_numbers = #tpu.dot_dimension_numbers<[1], [0], [0], [1], [0, 0, 1, 1], [], []>} : vector<2x16xf32>, vector<16x32xf32>, vector<2x32xf32> -> vector<2x32xf32>
    %560 = arith.addf %512, %559 : vector<2x32xf32>
    %c0_466 = arith.constant 0 : index
    %c62 = arith.constant 62 : index
    %c0_467 = arith.constant 0 : index
    %561 = vector.load %arg6[%c0_466, %c62, %c0_467] : memref<2x64x16xf32, #tpu.memory_space<vmem>>, vector<2x1x16xf32>
    %562 = vector.shape_cast %561 : vector<2x1x16xf32> to vector<2x16xf32>
    %c62_468 = arith.constant 62 : index
    %c0_469 = arith.constant 0 : index
    %c0_470 = arith.constant 0 : index
    %563 = vector.load %arg3[%c62_468, %c0_469, %c0_470] : memref<64x16x32xf32, #tpu.memory_space<vmem>>, vector<1x16x32xf32>
    %564 = vector.shape_cast %563 : vector<1x16x32xf32> to vector<16x32xf32>
    %cst_471 = arith.constant dense<0.000000e+00> : vector<2x32xf32>
    %565 = tpu.matmul %562, %564, %cst_471 {dimension_numbers = #tpu.dot_dimension_numbers<[1], [0], [0], [1], [0, 0, 1, 1], [], []>} : vector<2x16xf32>, vector<16x32xf32>, vector<2x32xf32> -> vector<2x32xf32>
    %566 = arith.addf %518, %565 : vector<2x32xf32>
    %c0_472 = arith.constant 0 : index
    %c63 = arith.constant 63 : index
    %c0_473 = arith.constant 0 : index
    %567 = vector.load %arg6[%c0_472, %c63, %c0_473] : memref<2x64x16xf32, #tpu.memory_space<vmem>>, vector<2x1x16xf32>
    %568 = vector.shape_cast %567 : vector<2x1x16xf32> to vector<2x16xf32>
    %c63_474 = arith.constant 63 : index
    %c0_475 = arith.constant 0 : index
    %c0_476 = arith.constant 0 : index
    %569 = vector.load %arg3[%c63_474, %c0_475, %c0_476] : memref<64x16x32xf32, #tpu.memory_space<vmem>>, vector<1x16x32xf32>
    %570 = vector.shape_cast %569 : vector<1x16x32xf32> to vector<16x32xf32>
    %cst_477 = arith.constant dense<0.000000e+00> : vector<2x32xf32>
    %571 = tpu.matmul %568, %570, %cst_477 {dimension_numbers = #tpu.dot_dimension_numbers<[1], [0], [0], [1], [0, 0, 1, 1], [], []>} : vector<2x16xf32>, vector<16x32xf32>, vector<2x32xf32> -> vector<2x32xf32>
    %572 = arith.addf %524, %571 : vector<2x32xf32>
    %573 = arith.addf %530, %536 : vector<2x32xf32>
    %574 = arith.addf %542, %548 : vector<2x32xf32>
    %575 = arith.addf %554, %560 : vector<2x32xf32>
    %576 = arith.addf %566, %572 : vector<2x32xf32>
    %577 = arith.addf %573, %574 : vector<2x32xf32>
    %578 = arith.addf %575, %576 : vector<2x32xf32>
    %579 = arith.addf %577, %578 : vector<2x32xf32>
    %c0_478 = arith.constant 0 : index
    %c0_479 = arith.constant 0 : index
    %580 = vector.load %arg4[%c0_478, %c0_479] : memref<1x32xf32, #tpu.memory_space<vmem>>, vector<1x32xf32>
    %581 = vector.broadcast %580 : vector<1x32xf32> to vector<2x32xf32>
    %582 = arith.addf %579, %581 : vector<2x32xf32>
    %c0_480 = arith.constant 0 : index
    %c0_481 = arith.constant 0 : index
    %583 = vector.load %arg5[%c0_480, %c0_481] : memref<2x32xf32, #tpu.memory_space<vmem>>, vector<2x32xf32>
    tpu.vector_store %arg5[%c0_480, %c0_481], %582 {strides = array<i32>} : memref<2x32xf32, #tpu.memory_space<vmem>>, vector<2x32xf32>,
    return
  }
}

</mosaic_0001>

<llo_original>
// kernel: encoder_forward.1
$region0: #{encoder_forward.1}
  #allocation0 [shape = 'u32[]', space=smem, size = 0x4, offset = 0x4, fixed_abs, tag = 'smem constant byte address 0x4 - core index']
  #allocation1 [shape = 'u32[144,128]{1,0:T(1,128)}', space=vmem, size = 0x12000, scoped, tag = 'internal scratch']
  #allocation2 [shape = 'f32[2,64,16]{2,1,0:T(8,128)}', space=vmem, size = 0x10000, scoped, tag = 'scratch operand']
  %s0 = inlined_call_operand.vmem [shape: f32[2,18,18], index: 0, kind: input, shape index: {}]
  %s1 = inlined_call_operand.vmem [shape: f32[36], index: 1, kind: input, shape index: {}]
  %s2 = inlined_call_operand.vmem [shape: f32[4], index: 2, kind: input, shape index: {}]
  %s3 = inlined_call_operand.vmem [shape: f32[64,16,32], index: 3, kind: input, shape index: {}]
  %s4 = inlined_call_operand.vmem [shape: f32[1,32], index: 4, kind: input, shape index: {}]
  %s5 = inlined_call_operand.hbm [shape: f32[2,32], index: 5, kind: output, shape index: {}]
  %s6 = sld [smem:[#allocation0]]
  $region38: #{encoder_forward.1} parent=0
    _
  %s8 = ssub.s32 1, %s6
  %s9 = scalar_select 0, %s8, %s6
  $region1: #{encoder_forward.1} parent=0
    #allocation3 [shape = 'u8[512]{0}', space=smem, size = 0x200, scoped, tag = 'input window, operand 1, single buffered']
    #allocation4 [shape = 's32[1]{0}', space=sflag, size = 0x4, scoped, tag = 'scoped memory for encoder_forward.1']
    #allocation5 [shape = 's32[1]{0}', space=sflag, size = 0x4, scoped, tag = 'scoped memory for encoder_forward.1']
    #allocation6 [shape = 'u8[512]{0}', space=smem, size = 0x200, scoped, tag = 'input window, operand 2, single buffered']
    #allocation7 [shape = 's32[1]{0}', space=sflag, size = 0x4, scoped, tag = 'scoped memory for encoder_forward.1']
    #allocation8 [shape = 'u8[1024]{0}', space=vmem, size = 0x400, scoped, tag = 'output window, operand 0, single buffered']
    %10 = vsyncpa [#allocation5], 0
    %11 = vsyncpa [#allocation7], 0
    %12 = vsyncpa [#allocation4], 0
    // Predicated region
    $region2: #{encoder_forward.1} parent=1 // pred_check
      _
    $region3: #{encoder_forward.1} parent=1 // pred_check_branch
      %14 = sbr.rel (0) target = $region5
    $region4: #{encoder_forward.1} parent=1 // pred_region
      _
    $region5: #{encoder_forward.1} parent=1 // pred_fallthru
      _
    // Predicated region
    $region6: #{encoder_forward.1} parent=1 // pred_check
      _
    $region7: #{encoder_forward.1} parent=1 // pred_check_branch
      %16 = sbr.rel (0) target = $region9
    $region8: #{encoder_forward.1} parent=1 // pred_region
      %s18 = ssub.s32 16, 16
      %19 = vsyncadd [#allocation5], %s18
      %s21 = sshll.u32 %s1, 4
      %s22 = int_to_ptr.vmem [resolvable:$true] %s21
      %24 = dma.vmem_to_smem %s22, 16, [#allocation3], [#allocation5]
    $region9: #{encoder_forward.1} parent=1 // pred_fallthru
      _
    // Predicated region
    $region10: #{encoder_forward.1} parent=1 // pred_check
      _
    $region11: #{encoder_forward.1} parent=1 // pred_check_branch
      %26 = sbr.rel (0) target = $region13
    $region12: #{encoder_forward.1} parent=1 // pred_region
      %s28 = ssub.s32 16, 16
      %29 = vsyncadd [#allocation7], %s28
      %s31 = sshll.u32 %s2, 4
      %s32 = int_to_ptr.vmem [resolvable:$true] %s31
      %34 = dma.vmem_to_smem %s32, 16, [#allocation6], [#allocation7]
    $region13: #{encoder_forward.1} parent=1 // pred_fallthru
      _
    // Predicated region
    $region14: #{encoder_forward.1} parent=1 // pred_check
      _
    $region15: #{encoder_forward.1} parent=1 // pred_check_branch
      %36 = sbr.rel (0) target = $region17
    $region16: #{encoder_forward.1} parent=1 // pred_region
      _
    $region17: #{encoder_forward.1} parent=1 // pred_fallthru
      _
    // Predicated region
    $region18: #{encoder_forward.1} parent=1 // pred_check
      _
    $region19: #{encoder_forward.1} parent=1 // pred_check_branch
      %38 = sbr.rel (0) target = $region21
    $region20: #{encoder_forward.1} parent=1 // pred_region
      _
    $region21: #{encoder_forward.1} parent=1 // pred_fallthru
      _
    // Predicated region
    $region22: #{encoder_forward.1} parent=1 // pred_check
      _
    $region23: #{encoder_forward.1} parent=1 // pred_check_branch
      %40 = sbr.rel (0) target = $region25
    $region24: #{encoder_forward.1} parent=1 // pred_region
      %41 = dma.done [#allocation5], 16
    $region25: #{encoder_forward.1} parent=1 // pred_fallthru
      _
    // Predicated region
    $region26: #{encoder_forward.1} parent=1 // pred_check
      _
    $region27: #{encoder_forward.1} parent=1 // pred_check_branch
      %43 = sbr.rel (0) target = $region29
    $region28: #{encoder_forward.1} parent=1 // pred_region
      %44 = dma.done [#allocation7], 16
    $region29: #{encoder_forward.1} parent=1 // pred_fallthru
      _
    %45 = sfence
    %v46 = vld [vmem:[%s0] sm:$0xff]
    %v47 = vld [vmem:[%s0 + $0x8] sm:$0xff]
    %v48 = vld [vmem:[%s0 + $0x18] sm:$0xff]
    %v49 = vld [vmem:[%s0 + $0x20] sm:$0xff]
    %s50 = sld [smem:[#allocation3]]
    %v51 = vstv %s50
    %v52 = vmul.f32 %v51, %v46
    %v53 = vmul.f32 %v51, %v47
    %v54 = vmul.f32 %v51, %v48
    %v55 = vmul.f32 %v51, %v49
    %v56 = vadd.f32 %v52, 0.0
    %v57 = vadd.f32 %v53, 0.0
    %v58 = vadd.f32 %v54, 0.0
    %v59 = vadd.f32 %v55, 0.0
    %s60 = sld [smem:[#allocation3 + $0x9]]
    %v61 = vstv %s60
    %v62 = vmul.f32 %v61, %v46
    %v63 = vmul.f32 %v61, %v47
    %v64 = vmul.f32 %v61, %v48
    %v65 = vmul.f32 %v61, %v49
    %v66 = vadd.f32 %v62, 0.0
    %v67 = vadd.f32 %v63, 0.0
    %v68 = vadd.f32 %v64, 0.0
    %v69 = vadd.f32 %v65, 0.0
    %s70 = sld [smem:[#allocation3 + $0x12]]
    %v71 = vstv %s70
    %v72 = vmul.f32 %v71, %v46
    %v73 = vmul.f32 %v71, %v47
    %v74 = vmul.f32 %v71, %v48
    %v75 = vmul.f32 %v71, %v49
    %v76 = vadd.f32 %v72, 0.0
    %v77 = vadd.f32 %v73, 0.0
    %v78 = vadd.f32 %v74, 0.0
    %v79 = vadd.f32 %v75, 0.0
    %s80 = sld [smem:[#allocation3 + $0x1b]]
    %v81 = vstv %s80
    %v82 = vmul.f32 %v81, %v46
    %v83 = vmul.f32 %v81, %v47
    %v84 = vmul.f32 %v81, %v48
    %v85 = vmul.f32 %v81, %v49
    %v86 = vadd.f32 %v82, 0.0
    %v87 = vadd.f32 %v83, 0.0
    %v88 = vadd.f32 %v84, 0.0
    %v89 = vadd.f32 %v85, 0.0
    %s90 = sld [smem:[#allocation3 + $0x1]]
    %v91 = vstv %s90
    %v92 = vmul.f32 %v91, %v46
    %v93 = vmul.f32 %v91, %v47
    %v94 = vmul.f32 %v91, %v48
    %v95 = vmul.f32 %v91, %v49
    %100 = vrot.lane.b32.xlu0 %v92, 127
    %v101 = vpop.permute.xlu0 %100
    %102 = vrot.lane.b32.xlu0 %v93, 127
    %v103 = vpop.permute.xlu0 %102
    %104 = vrot.lane.b32.xlu0 %v94, 127
    %v105 = vpop.permute.xlu0 %104
    %106 = vrot.lane.b32.xlu0 %v95, 127
    %v107 = vpop.permute.xlu0 %106
    %v112 = vadd.f32 %v56, %v101
    %v113 = vadd.f32 %v57, %v103
    %v114 = vadd.f32 %v58, %v105
    %v115 = vadd.f32 %v59, %v107
    %s116 = sld [smem:[#allocation3 + $0xa]]
    %v117 = vstv %s116
    %v118 = vmul.f32 %v117, %v46
    %v119 = vmul.f32 %v117, %v47
    %v120 = vmul.f32 %v117, %v48
    %v121 = vmul.f32 %v117, %v49
    %126 = vrot.lane.b32.xlu0 %v118, 127
    %v127 = vpop.permute.xlu0 %126
    %128 = vrot.lane.b32.xlu0 %v119, 127
    %v129 = vpop.permute.xlu0 %128
    %130 = vrot.lane.b32.xlu0 %v120, 127
    %v131 = vpop.permute.xlu0 %130
    %132 = vrot.lane.b32.xlu0 %v121, 127
    %v133 = vpop.permute.xlu0 %132
    %v138 = vadd.f32 %v66, %v127
    %v139 = vadd.f32 %v67, %v129
    %v140 = vadd.f32 %v68, %v131
    %v141 = vadd.f32 %v69, %v133
    %s142 = sld [smem:[#allocation3 + $0x13]]
    %v143 = vstv %s142
    %v144 = vmul.f32 %v143, %v46
    %v145 = vmul.f32 %v143, %v47
    %v146 = vmul.f32 %v143, %v48
    %v147 = vmul.f32 %v143, %v49
    %152 = vrot.lane.b32.xlu0 %v144, 127
    %v153 = vpop.permute.xlu0 %152
    %154 = vrot.lane.b32.xlu0 %v145, 127
    %v155 = vpop.permute.xlu0 %154
    %156 = vrot.lane.b32.xlu0 %v146, 127
    %v157 = vpop.permute.xlu0 %156
    %158 = vrot.lane.b32.xlu0 %v147, 127
    %v159 = vpop.permute.xlu0 %158
    %v164 = vadd.f32 %v76, %v153
    %v165 = vadd.f32 %v77, %v155
    %v166 = vadd.f32 %v78, %v157
    %v167 = vadd.f32 %v79, %v159
    %s168 = sld [smem:[#allocation3 + $0x1c]]
    %v169 = vstv %s168
    %v170 = vmul.f32 %v169, %v46
    %v171 = vmul.f32 %v169, %v47
    %v172 = vmul.f32 %v169, %v48
    %v173 = vmul.f32 %v169, %v49
    %178 = vrot.lane.b32.xlu0 %v170, 127
    %v179 = vpop.permute.xlu0 %178
    %180 = vrot.lane.b32.xlu0 %v171, 127
    %v181 = vpop.permute.xlu0 %180
    %182 = vrot.lane.b32.xlu0 %v172, 127
    %v183 = vpop.permute.xlu0 %182
    %184 = vrot.lane.b32.xlu0 %v173, 127
    %v185 = vpop.permute.xlu0 %184
    %v190 = vadd.f32 %v86, %v179
    %v191 = vadd.f32 %v87, %v181
    %v192 = vadd.f32 %v88, %v183
    %v193 = vadd.f32 %v89, %v185
    %s194 = sld [smem:[#allocation3 + $0x2]]
    %v195 = vstv %s194
    %v196 = vmul.f32 %v195, %v46
    %v197 = vmul.f32 %v195, %v47
    %v198 = vmul.f32 %v195, %v48
    %v199 = vmul.f32 %v195, %v49
    %204 = vrot.lane.b32.xlu0 %v196, 126
    %v205 = vpop.permute.xlu0 %204
    %206 = vrot.lane.b32.xlu0 %v197, 126
    %v207 = vpop.permute.xlu0 %206
    %208 = vrot.lane.b32.xlu0 %v198, 126
    %v209 = vpop.permute.xlu0 %208
    %210 = vrot.lane.b32.xlu0 %v199, 126
    %v211 = vpop.permute.xlu0 %210
    %v216 = vadd.f32 %v112, %v205
    %v217 = vadd.f32 %v113, %v207
    %v218 = vadd.f32 %v114, %v209
    %v219 = vadd.f32 %v115, %v211
    %s220 = sld [smem:[#allocation3 + $0xb]]
    %v221 = vstv %s220
    %v222 = vmul.f32 %v221, %v46
    %v223 = vmul.f32 %v221, %v47
    %v224 = vmul.f32 %v221, %v48
    %v225 = vmul.f32 %v221, %v49
    %230 = vrot.lane.b32.xlu0 %v222, 126
    %v231 = vpop.permute.xlu0 %230
    %232 = vrot.lane.b32.xlu0 %v223, 126
    %v233 = vpop.permute.xlu0 %232
    %234 = vrot.lane.b32.xlu0 %v224, 126
    %v235 = vpop.permute.xlu0 %234
    %236 = vrot.lane.b32.xlu0 %v225, 126
    %v237 = vpop.permute.xlu0 %236
    %v242 = vadd.f32 %v138, %v231
    %v243 = vadd.f32 %v139, %v233
    %v244 = vadd.f32 %v140, %v235
    %v245 = vadd.f32 %v141, %v237
    %s246 = sld [smem:[#allocation3 + $0x14]]
    %v247 = vstv %s246
    %v248 = vmul.f32 %v247, %v46
    %v249 = vmul.f32 %v247, %v47
    %v250 = vmul.f32 %v247, %v48
    %v251 = vmul.f32 %v247, %v49
    %256 = vrot.lane.b32.xlu0 %v248, 126
    %v257 = vpop.permute.xlu0 %256
    %258 = vrot.lane.b32.xlu0 %v249, 126
    %v259 = vpop.permute.xlu0 %258
    %260 = vrot.lane.b32.xlu0 %v250, 126
    %v261 = vpop.permute.xlu0 %260
    %262 = vrot.lane.b32.xlu0 %v251, 126
    %v263 = vpop.permute.xlu0 %262
    %v268 = vadd.f32 %v164, %v257
    %v269 = vadd.f32 %v165, %v259
    %v270 = vadd.f32 %v166, %v261
    %v271 = vadd.f32 %v167, %v263
    %s272 = sld [smem:[#allocation3 + $0x1d]]
    %v273 = vstv %s272
    %v274 = vmul.f32 %v273, %v46
    %v275 = vmul.f32 %v273, %v47
    %v276 = vmul.f32 %v273, %v48
    %v277 = vmul.f32 %v273, %v49
    %282 = vrot.lane.b32.xlu0 %v274, 126
    %v283 = vpop.permute.xlu0 %282
    %284 = vrot.lane.b32.xlu0 %v275, 126
    %v285 = vpop.permute.xlu0 %284
    %286 = vrot.lane.b32.xlu0 %v276, 126
    %v287 = vpop.permute.xlu0 %286
    %288 = vrot.lane.b32.xlu0 %v277, 126
    %v289 = vpop.permute.xlu0 %288
    %v294 = vadd.f32 %v190, %v283
    %v295 = vadd.f32 %v191, %v285
    %v296 = vadd.f32 %v192, %v287
    %v297 = vadd.f32 %v193, %v289
    %v298 = vld [vmem:[%s0 + $0x1] sm:$0xff]
    %v299 = vld [vmem:[%s0 + $0x9] sm:$0xff]
    %v300 = vld [vmem:[%s0 + $0x19] sm:$0xff]
    %v301 = vld [vmem:[%s0 + $0x21] sm:$0xff]
    %s302 = sld [smem:[#allocation3 + $0x3]]
    %v303 = vstv %s302
    %v304 = vmul.f32 %v303, %v298
    %v305 = vmul.f32 %v303, %v299
    %v306 = vmul.f32 %v303, %v300
    %v307 = vmul.f32 %v303, %v301
    %v308 = vadd.f32 %v216, %v304
    %v309 = vadd.f32 %v217, %v305
    %v310 = vadd.f32 %v218, %v306
    %v311 = vadd.f32 %v219, %v307
    %s312 = sld [smem:[#allocation3 + $0xc]]
    %v313 = vstv %s312
    %v314 = vmul.f32 %v313, %v298
    %v315 = vmul.f32 %v313, %v299
    %v316 = vmul.f32 %v313, %v300
    %v317 = vmul.f32 %v313, %v301
    %v318 = vadd.f32 %v242, %v314
    %v319 = vadd.f32 %v243, %v315
    %v320 = vadd.f32 %v244, %v316
    %v321 = vadd.f32 %v245, %v317
    %s322 = sld [smem:[#allocation3 + $0x15]]
    %v323 = vstv %s322
    %v324 = vmul.f32 %v323, %v298
    %v325 = vmul.f32 %v323, %v299
    %v326 = vmul.f32 %v323, %v300
    %v327 = vmul.f32 %v323, %v301
    %v328 = vadd.f32 %v268, %v324
    %v329 = vadd.f32 %v269, %v325
    %v330 = vadd.f32 %v270, %v326
    %v331 = vadd.f32 %v271, %v327
    %s332 = sld [smem:[#allocation3 + $0x1e]]
    %v333 = vstv %s332
    %v334 = vmul.f32 %v333, %v298
    %v335 = vmul.f32 %v333, %v299
    %v336 = vmul.f32 %v333, %v300
    %v337 = vmul.f32 %v333, %v301
    %v338 = vadd.f32 %v294, %v334
    %v339 = vadd.f32 %v295, %v335
    %v340 = vadd.f32 %v296, %v336
    %v341 = vadd.f32 %v297, %v337
    %s342 = sld [smem:[#allocation3 + $0x4]]
    %v343 = vstv %s342
    %v344 = vmul.f32 %v343, %v298
    %v345 = vmul.f32 %v343, %v299
    %v346 = vmul.f32 %v343, %v300
    %v347 = vmul.f32 %v343, %v301
    %352 = vrot.lane.b32.xlu0 %v344, 127
    %v353 = vpop.permute.xlu0 %352
    %354 = vrot.lane.b32.xlu0 %v345, 127
    %v355 = vpop.permute.xlu0 %354
    %356 = vrot.lane.b32.xlu0 %v346, 127
    %v357 = vpop.permute.xlu0 %356
    %358 = vrot.lane.b32.xlu0 %v347, 127
    %v359 = vpop.permute.xlu0 %358
    %v364 = vadd.f32 %v308, %v353
    %v365 = vadd.f32 %v309, %v355
    %v366 = vadd.f32 %v310, %v357
    %v367 = vadd.f32 %v311, %v359
    %s368 = sld [smem:[#allocation3 + $0xd]]
    %v369 = vstv %s368
    %v370 = vmul.f32 %v369, %v298
    %v371 = vmul.f32 %v369, %v299
    %v372 = vmul.f32 %v369, %v300
    %v373 = vmul.f32 %v369, %v301
    %378 = vrot.lane.b32.xlu0 %v370, 127
    %v379 = vpop.permute.xlu0 %378
    %380 = vrot.lane.b32.xlu0 %v371, 127
    %v381 = vpop.permute.xlu0 %380
    %382 = vrot.lane.b32.xlu0 %v372, 127
    %v383 = vpop.permute.xlu0 %382
    %384 = vrot.lane.b32.xlu0 %v373, 127
    %v385 = vpop.permute.xlu0 %384
    %v390 = vadd.f32 %v318, %v379
    %v391 = vadd.f32 %v319, %v381
    %v392 = vadd.f32 %v320, %v383
    %v393 = vadd.f32 %v321, %v385
    %s394 = sld [smem:[#allocation3 + $0x16]]
    %v395 = vstv %s394
    %v396 = vmul.f32 %v395, %v298
    %v397 = vmul.f32 %v395, %v299
    %v398 = vmul.f32 %v395, %v300
    %v399 = vmul.f32 %v395, %v301
    %404 = vrot.lane.b32.xlu0 %v396, 127
    %v405 = vpop.permute.xlu0 %404
    %406 = vrot.lane.b32.xlu0 %v397, 127
    %v407 = vpop.permute.xlu0 %406
    %408 = vrot.lane.b32.xlu0 %v398, 127
    %v409 = vpop.permute.xlu0 %408
    %410 = vrot.lane.b32.xlu0 %v399, 127
    %v411 = vpop.permute.xlu0 %410
    %v416 = vadd.f32 %v328, %v405
    %v417 = vadd.f32 %v329, %v407
    %v418 = vadd.f32 %v330, %v409
    %v419 = vadd.f32 %v331, %v411
    %s420 = sld [smem:[#allocation3 + $0x1f]]
    %v421 = vstv %s420
    %v422 = vmul.f32 %v421, %v298
    %v423 = vmul.f32 %v421, %v299
    %v424 = vmul.f32 %v421, %v300
    %v425 = vmul.f32 %v421, %v301
    %430 = vrot.lane.b32.xlu0 %v422, 127
    %v431 = vpop.permute.xlu0 %430
    %432 = vrot.lane.b32.xlu0 %v423, 127
    %v433 = vpop.permute.xlu0 %432
    %434 = vrot.lane.b32.xlu0 %v424, 127
    %v435 = vpop.permute.xlu0 %434
    %436 = vrot.lane.b32.xlu0 %v425, 127
    %v437 = vpop.permute.xlu0 %436
    %v442 = vadd.f32 %v338, %v431
    %v443 = vadd.f32 %v339, %v433
    %v444 = vadd.f32 %v340, %v435
    %v445 = vadd.f32 %v341, %v437
    %s446 = sld [smem:[#allocation3 + $0x5]]
    %v447 = vstv %s446
    %v448 = vmul.f32 %v447, %v298
    %v449 = vmul.f32 %v447, %v299
    %v450 = vmul.f32 %v447, %v300
    %v451 = vmul.f32 %v447, %v301
    %456 = vrot.lane.b32.xlu0 %v448, 126
    %v457 = vpop.permute.xlu0 %456
    %458 = vrot.lane.b32.xlu0 %v449, 126
    %v459 = vpop.permute.xlu0 %458
    %460 = vrot.lane.b32.xlu0 %v450, 126
    %v461 = vpop.permute.xlu0 %460
    %462 = vrot.lane.b32.xlu0 %v451, 126
    %v463 = vpop.permute.xlu0 %462
    %v468 = vadd.f32 %v364, %v457
    %v469 = vadd.f32 %v365, %v459
    %v470 = vadd.f32 %v366, %v461
    %v471 = vadd.f32 %v367, %v463
    %s472 = sld [smem:[#allocation3 + $0xe]]
    %v473 = vstv %s472
    %v474 = vmul.f32 %v473, %v298
    %v475 = vmul.f32 %v473, %v299
    %v476 = vmul.f32 %v473, %v300
    %v477 = vmul.f32 %v473, %v301
    %482 = vrot.lane.b32.xlu0 %v474, 126
    %v483 = vpop.permute.xlu0 %482
    %484 = vrot.lane.b32.xlu0 %v475, 126
    %v485 = vpop.permute.xlu0 %484
    %486 = vrot.lane.b32.xlu0 %v476, 126
    %v487 = vpop.permute.xlu0 %486
    %488 = vrot.lane.b32.xlu0 %v477, 126
    %v489 = vpop.permute.xlu0 %488
    %v494 = vadd.f32 %v390, %v483
    %v495 = vadd.f32 %v391, %v485
    %v496 = vadd.f32 %v392, %v487
    %v497 = vadd.f32 %v393, %v489
    %s498 = sld [smem:[#allocation3 + $0x17]]
    %v499 = vstv %s498
    %v500 = vmul.f32 %v499, %v298
    %v501 = vmul.f32 %v499, %v299
    %v502 = vmul.f32 %v499, %v300
    %v503 = vmul.f32 %v499, %v301
    %508 = vrot.lane.b32.xlu0 %v500, 126
    %v509 = vpop.permute.xlu0 %508
    %510 = vrot.lane.b32.xlu0 %v501, 126
    %v511 = vpop.permute.xlu0 %510
    %512 = vrot.lane.b32.xlu0 %v502, 126
    %v513 = vpop.permute.xlu0 %512
    %514 = vrot.lane.b32.xlu0 %v503, 126
    %v515 = vpop.permute.xlu0 %514
    %v520 = vadd.f32 %v416, %v509
    %v521 = vadd.f32 %v417, %v511
    %v522 = vadd.f32 %v418, %v513
    %v523 = vadd.f32 %v419, %v515
    %s524 = sld [smem:[#allocation3 + $0x20]]
    %v525 = vstv %s524
    %v526 = vmul.f32 %v525, %v298
    %v527 = vmul.f32 %v525, %v299
    %v528 = vmul.f32 %v525, %v300
    %v529 = vmul.f32 %v525, %v301
    %534 = vrot.lane.b32.xlu0 %v526, 126
    %v535 = vpop.permute.xlu0 %534
    %536 = vrot.lane.b32.xlu0 %v527, 126
    %v537 = vpop.permute.xlu0 %536
    %538 = vrot.lane.b32.xlu0 %v528, 126
    %v539 = vpop.permute.xlu0 %538
    %540 = vrot.lane.b32.xlu0 %v529, 126
    %v541 = vpop.permute.xlu0 %540
    %v546 = vadd.f32 %v442, %v535
    %v547 = vadd.f32 %v443, %v537
    %v548 = vadd.f32 %v444, %v539
    %v549 = vadd.f32 %v445, %v541
    %v550 = vld [vmem:[%s0 + $0x2] sm:$0xff]
    %v551 = vld [vmem:[%s0 + $0xa] sm:$0xff]
    %v552 = vld [vmem:[%s0 + $0x1a] sm:$0xff]
    %v553 = vld [vmem:[%s0 + $0x22] sm:$0xff]
    %s554 = sld [smem:[#allocation3 + $0x6]]
    %v555 = vstv %s554
    %v556 = vmul.f32 %v555, %v550
    %v557 = vmul.f32 %v555, %v551
    %v558 = vmul.f32 %v555, %v552
    %v559 = vmul.f32 %v555, %v553
    %v560 = vadd.f32 %v468, %v556
    %v561 = vadd.f32 %v469, %v557
    %v562 = vadd.f32 %v470, %v558
    %v563 = vadd.f32 %v471, %v559
    %s564 = sld [smem:[#allocation3 + $0xf]]
    %v565 = vstv %s564
    %v566 = vmul.f32 %v565, %v550
    %v567 = vmul.f32 %v565, %v551
    %v568 = vmul.f32 %v565, %v552
    %v569 = vmul.f32 %v565, %v553
    %v570 = vadd.f32 %v494, %v566
    %v571 = vadd.f32 %v495, %v567
    %v572 = vadd.f32 %v496, %v568
    %v573 = vadd.f32 %v497, %v569
    %s574 = sld [smem:[#allocation3 + $0x18]]
    %v575 = vstv %s574
    %v576 = vmul.f32 %v575, %v550
    %v577 = vmul.f32 %v575, %v551
    %v578 = vmul.f32 %v575, %v552
    %v579 = vmul.f32 %v575, %v553
    %v580 = vadd.f32 %v520, %v576
    %v581 = vadd.f32 %v521, %v577
    %v582 = vadd.f32 %v522, %v578
    %v583 = vadd.f32 %v523, %v579
    %s584 = sld [smem:[#allocation3 + $0x21]]
    %v585 = vstv %s584
    %v586 = vmul.f32 %v585, %v550
    %v587 = vmul.f32 %v585, %v551
    %v588 = vmul.f32 %v585, %v552
    %v589 = vmul.f32 %v585, %v553
    %v590 = vadd.f32 %v546, %v586
    %v591 = vadd.f32 %v547, %v587
    %v592 = vadd.f32 %v548, %v588
    %v593 = vadd.f32 %v549, %v589
    %s594 = sld [smem:[#allocation3 + $0x7]]
    %v595 = vstv %s594
    %v596 = vmul.f32 %v595, %v550
    %v597 = vmul.f32 %v595, %v551
    %v598 = vmul.f32 %v595, %v552
    %v599 = vmul.f32 %v595, %v553
    %604 = vrot.lane.b32.xlu0 %v596, 127
    %v605 = vpop.permute.xlu0 %604
    %606 = vrot.lane.b32.xlu0 %v597, 127
    %v607 = vpop.permute.xlu0 %606
    %608 = vrot.lane.b32.xlu0 %v598, 127
    %v609 = vpop.permute.xlu0 %608
    %610 = vrot.lane.b32.xlu0 %v599, 127
    %v611 = vpop.permute.xlu0 %610
    %v616 = vadd.f32 %v560, %v605
    %v617 = vadd.f32 %v561, %v607
    %v618 = vadd.f32 %v562, %v609
    %v619 = vadd.f32 %v563, %v611
    %s620 = sld [smem:[#allocation3 + $0x10]]
    %v621 = vstv %s620
    %v622 = vmul.f32 %v621, %v550
    %v623 = vmul.f32 %v621, %v551
    %v624 = vmul.f32 %v621, %v552
    %v625 = vmul.f32 %v621, %v553
    %630 = vrot.lane.b32.xlu0 %v622, 127
    %v631 = vpop.permute.xlu0 %630
    %632 = vrot.lane.b32.xlu0 %v623, 127
    %v633 = vpop.permute.xlu0 %632
    %634 = vrot.lane.b32.xlu0 %v624, 127
    %v635 = vpop.permute.xlu0 %634
    %636 = vrot.lane.b32.xlu0 %v625, 127
    %v637 = vpop.permute.xlu0 %636
    %v642 = vadd.f32 %v570, %v631
    %v643 = vadd.f32 %v571, %v633
    %v644 = vadd.f32 %v572, %v635
    %v645 = vadd.f32 %v573, %v637
    %s646 = sld [smem:[#allocation3 + $0x19]]
    %v647 = vstv %s646
    %v648 = vmul.f32 %v647, %v550
    %v649 = vmul.f32 %v647, %v551
    %v650 = vmul.f32 %v647, %v552
    %v651 = vmul.f32 %v647, %v553
    %656 = vrot.lane.b32.xlu0 %v648, 127
    %v657 = vpop.permute.xlu0 %656
    %658 = vrot.lane.b32.xlu0 %v649, 127
    %v659 = vpop.permute.xlu0 %658
    %660 = vrot.lane.b32.xlu0 %v650, 127
    %v661 = vpop.permute.xlu0 %660
    %662 = vrot.lane.b32.xlu0 %v651, 127
    %v663 = vpop.permute.xlu0 %662
    %v668 = vadd.f32 %v580, %v657
    %v669 = vadd.f32 %v581, %v659
    %v670 = vadd.f32 %v582, %v661
    %v671 = vadd.f32 %v583, %v663
    %s672 = sld [smem:[#allocation3 + $0x22]]
    %v673 = vstv %s672
    %v674 = vmul.f32 %v673, %v550
    %v675 = vmul.f32 %v673, %v551
    %v676 = vmul.f32 %v673, %v552
    %v677 = vmul.f32 %v673, %v553
    %682 = vrot.lane.b32.xlu0 %v674, 127
    %v683 = vpop.permute.xlu0 %682
    %684 = vrot.lane.b32.xlu0 %v675, 127
    %v685 = vpop.permute.xlu0 %684
    %686 = vrot.lane.b32.xlu0 %v676, 127
    %v687 = vpop.permute.xlu0 %686
    %688 = vrot.lane.b32.xlu0 %v677, 127
    %v689 = vpop.permute.xlu0 %688
    %v694 = vadd.f32 %v590, %v683
    %v695 = vadd.f32 %v591, %v685
    %v696 = vadd.f32 %v592, %v687
    %v697 = vadd.f32 %v593, %v689
    %s698 = sld [smem:[#allocation3 + $0x8]]
    %v699 = vstv %s698
    %v700 = vmul.f32 %v699, %v550
    %v701 = vmul.f32 %v699, %v551
    %v702 = vmul.f32 %v699, %v552
    %v703 = vmul.f32 %v699, %v553
    %708 = vrot.lane.b32.xlu0 %v700, 126
    %v709 = vpop.permute.xlu0 %708
    %710 = vrot.lane.b32.xlu0 %v701, 126
    %v711 = vpop.permute.xlu0 %710
    %712 = vrot.lane.b32.xlu0 %v702, 126
    %v713 = vpop.permute.xlu0 %712
    %714 = vrot.lane.b32.xlu0 %v703, 126
    %v715 = vpop.permute.xlu0 %714
    %v720 = vadd.f32 %v616, %v709
    %v721 = vadd.f32 %v617, %v711
    %v722 = vadd.f32 %v618, %v713
    %v723 = vadd.f32 %v619, %v715
    %s724 = sld [smem:[#allocation3 + $0x11]]
    %v725 = vstv %s724
    %v726 = vmul.f32 %v725, %v550
    %v727 = vmul.f32 %v725, %v551
    %v728 = vmul.f32 %v725, %v552
    %v729 = vmul.f32 %v725, %v553
    %734 = vrot.lane.b32.xlu0 %v726, 126
    %v735 = vpop.permute.xlu0 %734
    %736 = vrot.lane.b32.xlu0 %v727, 126
    %v737 = vpop.permute.xlu0 %736
    %738 = vrot.lane.b32.xlu0 %v728, 126
    %v739 = vpop.permute.xlu0 %738
    %740 = vrot.lane.b32.xlu0 %v729, 126
    %v741 = vpop.permute.xlu0 %740
    %v746 = vadd.f32 %v642, %v735
    %v747 = vadd.f32 %v643, %v737
    %v748 = vadd.f32 %v644, %v739
    %v749 = vadd.f32 %v645, %v741
    %s750 = sld [smem:[#allocation3 + $0x1a]]
    %v751 = vstv %s750
    %v752 = vmul.f32 %v751, %v550
    %v753 = vmul.f32 %v751, %v551
    %v754 = vmul.f32 %v751, %v552
    %v755 = vmul.f32 %v751, %v553
    %760 = vrot.lane.b32.xlu0 %v752, 126
    %v761 = vpop.permute.xlu0 %760
    %762 = vrot.lane.b32.xlu0 %v753, 126
    %v763 = vpop.permute.xlu0 %762
    %764 = vrot.lane.b32.xlu0 %v754, 126
    %v765 = vpop.permute.xlu0 %764
    %766 = vrot.lane.b32.xlu0 %v755, 126
    %v767 = vpop.permute.xlu0 %766
    %v772 = vadd.f32 %v668, %v761
    %v773 = vadd.f32 %v669, %v763
    %v774 = vadd.f32 %v670, %v765
    %v775 = vadd.f32 %v671, %v767
    %s776 = sld [smem:[#allocation3 + $0x23]]
    %v777 = vstv %s776
    %v778 = vmul.f32 %v777, %v550
    %v779 = vmul.f32 %v777, %v551
    %v780 = vmul.f32 %v777, %v552
    %v781 = vmul.f32 %v777, %v553
    %786 = vrot.lane.b32.xlu0 %v778, 126
    %v787 = vpop.permute.xlu0 %786
    %788 = vrot.lane.b32.xlu0 %v779, 126
    %v789 = vpop.permute.xlu0 %788
    %790 = vrot.lane.b32.xlu0 %v780, 126
    %v791 = vpop.permute.xlu0 %790
    %792 = vrot.lane.b32.xlu0 %v781, 126
    %v793 = vpop.permute.xlu0 %792
    %v798 = vadd.f32 %v694, %v787
    %v799 = vadd.f32 %v695, %v789
    %v800 = vadd.f32 %v696, %v791
    %v801 = vadd.f32 %v697, %v793
    %s802 = sld [smem:[#allocation6]]
    %v803 = vstv %s802
    %v804 = vadd.f32 %v720, %v803
    %v805 = vadd.f32 %v721, %v803
    %v806 = vadd.f32 %v722, %v803
    %v807 = vadd.f32 %v723, %v803
    %v808 = vmax.f32 %v804, 0.0
    %v809 = vmax.f32 %v805, 0.0
    %v810 = vmax.f32 %v806, 0.0
    %v811 = vmax.f32 %v807, 0.0
    %vm812 = vcmask 130048
    %813 = vst.msk [vmem:[#allocation2] sm:$0xff] %vm812, %v808
    %814 = vst.msk [vmem:[#allocation2 + $0x8] sm:$0xff] %vm812, %v809
    %815 = vst.msk [vmem:[#allocation2 + $0x40] sm:$0xff] %vm812, %v810
    %816 = vst.msk [vmem:[#allocation2 + $0x48] sm:$0xff] %vm812, %v811
    %s817 = sld [smem:[#allocation6 + $0x1]]
    %v818 = vstv %s817
    %v819 = vadd.f32 %v746, %v818
    %v820 = vadd.f32 %v747, %v818
    %v821 = vadd.f32 %v748, %v818
    %v822 = vadd.f32 %v749, %v818
    %v823 = vmax.f32 %v819, 0.0
    %v824 = vmax.f32 %v820, 0.0
    %v825 = vmax.f32 %v821, 0.0
    %v826 = vmax.f32 %v822, 0.0
    %827 = vst.msk [vmem:[#allocation2 + $0x10] sm:$0xff] %vm812, %v823
    %828 = vst.msk [vmem:[#allocation2 + $0x18] sm:$0xff] %vm812, %v824
    %829 = vst.msk [vmem:[#allocation2 + $0x50] sm:$0xff] %vm812, %v825
    %830 = vst.msk [vmem:[#allocation2 + $0x58] sm:$0xff] %vm812, %v826
    %s831 = sld [smem:[#allocation6 + $0x2]]
    %v832 = vstv %s831
    %v833 = vadd.f32 %v772, %v832
    %v834 = vadd.f32 %v773, %v832
    %v835 = vadd.f32 %v774, %v832
    %v836 = vadd.f32 %v775, %v832
    %v837 = vmax.f32 %v833, 0.0
    %v838 = vmax.f32 %v834, 0.0
    %v839 = vmax.f32 %v835, 0.0
    %v840 = vmax.f32 %v836, 0.0
    %841 = vst.msk [vmem:[#allocation2 + $0x20] sm:$0xff] %vm812, %v837
    %842 = vst.msk [vmem:[#allocation2 + $0x28] sm:$0xff] %vm812, %v838
    %843 = vst.msk [vmem:[#allocation2 + $0x60] sm:$0xff] %vm812, %v839
    %844 = vst.msk [vmem:[#allocation2 + $0x68] sm:$0xff] %vm812, %v840
    %s845 = sld [smem:[#allocation6 + $0x3]]
    %v846 = vstv %s845
    %v847 = vadd.f32 %v798, %v846
    %v848 = vadd.f32 %v799, %v846
    %v849 = vadd.f32 %v800, %v846
    %v850 = vadd.f32 %v801, %v846
    %v851 = vmax.f32 %v847, 0.0
    %v852 = vmax.f32 %v848, 0.0
    %v853 = vmax.f32 %v849, 0.0
    %v854 = vmax.f32 %v850, 0.0
    %855 = vst.msk [vmem:[#allocation2 + $0x30] sm:$0xff] %vm812, %v851
    %856 = vst.msk [vmem:[#allocation2 + $0x38] sm:$0xff] %vm812, %v852
    %857 = vst.msk [vmem:[#allocation2 + $0x70] sm:$0xff] %vm812, %v853
    %858 = vst.msk [vmem:[#allocation2 + $0x78] sm:$0xff] %vm812, %v854
    %v859 = vld [vmem:[#allocation2] sm:$0x1]
    %v860 = vld [vmem:[#allocation2 + $0x40] sm:$0x1]
    %v861 = vld [vmem:[%s3] sm:$0xff]
    %v862 = vld [vmem:[%s3 + $0x8] sm:$0xff]
    %v863 = vld [vmem:[#allocation2 + $0x1] sm:$0x1]
    %v864 = vld [vmem:[#allocation2 + $0x41] sm:$0x1]
    %s865 = scalar_lea.vmem %s3, 16
    %v866 = vld [vmem:[%s865] sm:$0xff]
    %v867 = vld [vmem:[%s865 + $0x8] sm:$0xff]
    %v868 = vld [vmem:[#allocation2 + $0x2] sm:$0x1]
    %v869 = vld [vmem:[#allocation2 + $0x42] sm:$0x1]
    %s870 = scalar_lea.vmem %s3, 32
    %v871 = vld [vmem:[%s870] sm:$0xff]
    %v872 = vld [vmem:[%s870 + $0x8] sm:$0xff]
    %v873 = vld [vmem:[#allocation2 + $0x3] sm:$0x1]
    %v874 = vld [vmem:[#allocation2 + $0x43] sm:$0x1]
    %s875 = scalar_lea.vmem %s3, 48
    %v876 = vld [vmem:[%s875] sm:$0xff]
    %v877 = vld [vmem:[%s875 + $0x8] sm:$0xff]
    %v878 = vld [vmem:[#allocation2 + $0x4] sm:$0x1]
    %v879 = vld [vmem:[#allocation2 + $0x44] sm:$0x1]
    %s880 = scalar_lea.vmem %s3, 64
    %v881 = vld [vmem:[%s880] sm:$0xff]
    %v882 = vld [vmem:[%s880 + $0x8] sm:$0xff]
    %v883 = vld [vmem:[#allocation2 + $0x5] sm:$0x1]
    %v884 = vld [vmem:[#allocation2 + $0x45] sm:$0x1]
    %s885 = scalar_lea.vmem %s3, 80
    %v886 = vld [vmem:[%s885] sm:$0xff]
    %v887 = vld [vmem:[%s885 + $0x8] sm:$0xff]
    %v888 = vld [vmem:[#allocation2 + $0x6] sm:$0x1]
    %v889 = vld [vmem:[#allocation2 + $0x46] sm:$0x1]
    %s890 = scalar_lea.vmem %s3, 96
    %v891 = vld [vmem:[%s890] sm:$0xff]
    %v892 = vld [vmem:[%s890 + $0x8] sm:$0xff]
    %v893 = vld [vmem:[#allocation2 + $0x7] sm:$0x1]
    %v894 = vld [vmem:[#allocation2 + $0x47] sm:$0x1]
    %s895 = scalar_lea.vmem %s3, 112
    %v896 = vld [vmem:[%s895] sm:$0xff]
    %v897 = vld [vmem:[%s895 + $0x8] sm:$0xff]
    %v898 = vld [vmem:[#allocation2 + $0x8] sm:$0x1]
    %v899 = vld [vmem:[#allocation2 + $0x48] sm:$0x1]
    %s900 = scalar_lea.vmem %s3, 128
    %v901 = vld [vmem:[%s900] sm:$0xff]
    %v902 = vld [vmem:[%s900 + $0x8] sm:$0xff]
    %v905 = vrot.slane %v899, 7
    %vm906 = vcmask 1041409
    %v907 = vsel %vm906, %v905, %v898
    %v908 = vsel %vm812, %v907, 0
    %910 = vmatprep.subr.mxu0 0.0
    %911 = vmatpush1.msra.mxu0 %v901
    %912 = vmatprep.subr.mxu0 0.0
    %913 = vmatpush1.msra.mxu0 %v902
    %914 = vmatprep.subr.mxu0 0.0
    %915 = vmatpush1.msra.mxu0 0.0
    %916 = vmatprep.subr.mxu0 0.0
    %917 = vmatpush1.msra.mxu0 0.0
    %918 = vmatprep.subr.mxu0 0.0
    %919 = vmatpush1.msra.mxu0 0.0
    %920 = vmatprep.subr.mxu0 0.0
    %921 = vmatpush1.msra.mxu0 0.0
    %922 = vmatprep.subr.mxu0 0.0
    %923 = vmatpush1.msra.mxu0 0.0
    %924 = vmatprep.subr.mxu0 0.0
    %925 = vmatpush1.msra.mxu0 0.0
    %926 = vmatprep.subr.mxu0 0.0
    %927 = vmatpush1.msra.mxu0 0.0
    %928 = vmatprep.subr.mxu0 0.0
    %929 = vmatpush1.msra.mxu0 0.0
    %930 = vmatprep.subr.mxu0 0.0
    %931 = vmatpush1.msra.mxu0 0.0
    %932 = vmatprep.subr.mxu0 0.0
    %933 = vmatpush1.msra.mxu0 0.0
    %934 = vmatprep.subr.mxu0 0.0
    %935 = vmatpush1.msra.mxu0 0.0
    %936 = vmatprep.subr.mxu0 0.0
    %937 = vmatpush1.msra.mxu0 0.0
    %938 = vmatprep.subr.mxu0 0.0
    %939 = vmatpush1.msra.mxu0 0.0
    %940 = vmatprep.subr.mxu0 0.0
    %941 = vmatpush1.msra.mxu0 0.0
    %942 = vmatprep.subr.mxu0 0.0
    %943 = vmatpush1.msra.mxu0 0.0
    %944 = vmatprep.subr.mxu0 0.0
    %945 = vmatpush1.msra.mxu0 0.0
    %946 = vmatprep.subr.mxu0 0.0
    %947 = vmatpush1.msra.mxu0 0.0
    %948 = vmatprep.subr.mxu0 0.0
    %949 = vmatpush1.msra.mxu0 0.0
    %950 = vmatprep.subr.mxu0 0.0
    %951 = vmatpush1.msra.mxu0 0.0
    %952 = vmatprep.subr.mxu0 0.0
    %953 = vmatpush1.msra.mxu0 0.0
    %954 = vmatprep.subr.mxu0 0.0
    %955 = vmatpush1.msra.mxu0 0.0
    %956 = vmatprep.subr.mxu0 0.0
    %957 = vmatpush1.msra.mxu0 0.0
    %958 = vmatprep.subr.mxu0 0.0
    %959 = vmatpush1.msra.mxu0 0.0
    %960 = vmatprep.subr.mxu0 0.0
    %961 = vmatpush1.msra.mxu0 0.0
    %962 = vmatprep.subr.mxu0 0.0
    %963 = vmatpush1.msra.mxu0 0.0
    %964 = vmatprep.subr.mxu0 0.0
    %965 = vmatpush1.msra.mxu0 0.0
    %966 = vmatprep.subr.mxu0 0.0
    %967 = vmatpush1.msra.mxu0 0.0
    %968 = vmatprep.subr.mxu0 0.0
    %969 = vmatpush1.msra.mxu0 0.0
    %970 = vmatprep.subr.mxu0 0.0
    %971 = vmatpush1.msra.mxu0 0.0
    %972 = vmatprep.subr.mxu0 0.0
    %973 = vmatpush1.msra.mxu0 0.0
    %974 = vmatprep.mubr.f32.mxu0 0.0
    %975 = vmatmul.mubr.f32.gmra.mrb[0].mxu0 %v908
    %v976 = vpop.f32.mrb[0].mxu0
    %v977 = vadd.f32 0.0, %v976
    %v978 = vpop.f32.mrb[0].mxu0
    %979 = vdwg.mxu0
    %v982 = vrot.slane %v860, 7
    %v983 = vsel %vm906, %v982, %v859
    %v984 = vsel %vm812, %v983, 0
    %986 = vmatprep.subr.mxu0 0.0
    %987 = vmatpush1.msra.mxu0 %v861
    %988 = vmatprep.subr.mxu0 0.0
    %989 = vmatpush1.msra.mxu0 %v862
    %990 = vmatprep.subr.mxu0 0.0
    %991 = vmatpush1.msra.mxu0 0.0
    %992 = vmatprep.subr.mxu0 0.0
    %993 = vmatpush1.msra.mxu0 0.0
    %994 = vmatprep.subr.mxu0 0.0
    %995 = vmatpush1.msra.mxu0 0.0
    %996 = vmatprep.subr.mxu0 0.0
    %997 = vmatpush1.msra.mxu0 0.0
    %998 = vmatprep.subr.mxu0 0.0
    %999 = vmatpush1.msra.mxu0 0.0
    %1000 = vmatprep.subr.mxu0 0.0
    %1001 = vmatpush1.msra.mxu0 0.0
    %1002 = vmatprep.subr.mxu0 0.0
    %1003 = vmatpush1.msra.mxu0 0.0
    %1004 = vmatprep.subr.mxu0 0.0
    %1005 = vmatpush1.msra.mxu0 0.0
    %1006 = vmatprep.subr.mxu0 0.0
    %1007 = vmatpush1.msra.mxu0 0.0
    %1008 = vmatprep.subr.mxu0 0.0
    %1009 = vmatpush1.msra.mxu0 0.0
    %1010 = vmatprep.subr.mxu0 0.0
    %1011 = vmatpush1.msra.mxu0 0.0
    %1012 = vmatprep.subr.mxu0 0.0
    %1013 = vmatpush1.msra.mxu0 0.0
    %1014 = vmatprep.subr.mxu0 0.0
    %1015 = vmatpush1.msra.mxu0 0.0
    %1016 = vmatprep.subr.mxu0 0.0
    %1017 = vmatpush1.msra.mxu0 0.0
    %1018 = vmatprep.subr.mxu0 0.0
    %1019 = vmatpush1.msra.mxu0 0.0
    %1020 = vmatprep.subr.mxu0 0.0
    %1021 = vmatpush1.msra.mxu0 0.0
    %1022 = vmatprep.subr.mxu0 0.0
    %1023 = vmatpush1.msra.mxu0 0.0
    %1024 = vmatprep.subr.mxu0 0.0
    %1025 = vmatpush1.msra.mxu0 0.0
    %1026 = vmatprep.subr.mxu0 0.0
    %1027 = vmatpush1.msra.mxu0 0.0
    %1028 = vmatprep.subr.mxu0 0.0
    %1029 = vmatpush1.msra.mxu0 0.0
    %1030 = vmatprep.subr.mxu0 0.0
    %1031 = vmatpush1.msra.mxu0 0.0
    %1032 = vmatprep.subr.mxu0 0.0
    %1033 = vmatpush1.msra.mxu0 0.0
    %1034 = vmatprep.subr.mxu0 0.0
    %1035 = vmatpush1.msra.mxu0 0.0
    %1036 = vmatprep.subr.mxu0 0.0
    %1037 = vmatpush1.msra.mxu0 0.0
    %1038 = vmatprep.subr.mxu0 0.0
    %1039 = vmatpush1.msra.mxu0 0.0
    %1040 = vmatprep.subr.mxu0 0.0
    %1041 = vmatpush1.msra.mxu0 0.0
    %1042 = vmatprep.subr.mxu0 0.0
    %1043 = vmatpush1.msra.mxu0 0.0
    %1044 = vmatprep.subr.mxu0 0.0
    %1045 = vmatpush1.msra.mxu0 0.0
    %1046 = vmatprep.subr.mxu0 0.0
    %1047 = vmatpush1.msra.mxu0 0.0
    %1048 = vmatprep.subr.mxu0 0.0
    %1049 = vmatpush1.msra.mxu0 0.0
    %1050 = vmatprep.mubr.f32.mxu0 0.0
    %1051 = vmatmul.mubr.f32.gmra.mrb[0].mxu0 %v984
    %v1052 = vpop.f32.mrb[0].mxu0
    %v1053 = vadd.f32 %v977, %v1052
    %v1054 = vpop.f32.mrb[0].mxu0
    %1055 = vdwg.mxu0
    %v1056 = vld [vmem:[#allocation2 + $0x9] sm:$0x1]
    %v1057 = vld [vmem:[#allocation2 + $0x49] sm:$0x1]
    %s1058 = scalar_lea.vmem %s3, 144
    %v1059 = vld [vmem:[%s1058] sm:$0xff]
    %v1060 = vld [vmem:[%s1058 + $0x8] sm:$0xff]
    %v1063 = vrot.slane %v1057, 7
    %v1064 = vsel %vm906, %v1063, %v1056
    %v1065 = vsel %vm812, %v1064, 0
    %1067 = vmatprep.subr.mxu0 0.0
    %1068 = vmatpush1.msra.mxu0 %v1059
    %1069 = vmatprep.subr.mxu0 0.0
    %1070 = vmatpush1.msra.mxu0 %v1060
    %1071 = vmatprep.subr.mxu0 0.0
    %1072 = vmatpush1.msra.mxu0 0.0
    %1073 = vmatprep.subr.mxu0 0.0
    %1074 = vmatpush1.msra.mxu0 0.0
    %1075 = vmatprep.subr.mxu0 0.0
    %1076 = vmatpush1.msra.mxu0 0.0
    %1077 = vmatprep.subr.mxu0 0.0
    %1078 = vmatpush1.msra.mxu0 0.0
    %1079 = vmatprep.subr.mxu0 0.0
    %1080 = vmatpush1.msra.mxu0 0.0
    %1081 = vmatprep.subr.mxu0 0.0
    %1082 = vmatpush1.msra.mxu0 0.0
    %1083 = vmatprep.subr.mxu0 0.0
    %1084 = vmatpush1.msra.mxu0 0.0
    %1085 = vmatprep.subr.mxu0 0.0
    %1086 = vmatpush1.msra.mxu0 0.0
    %1087 = vmatprep.subr.mxu0 0.0
    %1088 = vmatpush1.msra.mxu0 0.0
    %1089 = vmatprep.subr.mxu0 0.0
    %1090 = vmatpush1.msra.mxu0 0.0
    %1091 = vmatprep.subr.mxu0 0.0
    %1092 = vmatpush1.msra.mxu0 0.0
    %1093 = vmatprep.subr.mxu0 0.0
    %1094 = vmatpush1.msra.mxu0 0.0
    %1095 = vmatprep.subr.mxu0 0.0
    %1096 = vmatpush1.msra.mxu0 0.0
    %1097 = vmatprep.subr.mxu0 0.0
    %1098 = vmatpush1.msra.mxu0 0.0
    %1099 = vmatprep.subr.mxu0 0.0
    %1100 = vmatpush1.msra.mxu0 0.0
    %1101 = vmatprep.subr.mxu0 0.0
    %1102 = vmatpush1.msra.mxu0 0.0
    %1103 = vmatprep.subr.mxu0 0.0
    %1104 = vmatpush1.msra.mxu0 0.0
    %1105 = vmatprep.subr.mxu0 0.0
    %1106 = vmatpush1.msra.mxu0 0.0
    %1107 = vmatprep.subr.mxu0 0.0
    %1108 = vmatpush1.msra.mxu0 0.0
    %1109 = vmatprep.subr.mxu0 0.0
    %1110 = vmatpush1.msra.mxu0 0.0
    %1111 = vmatprep.subr.mxu0 0.0
    %1112 = vmatpush1.msra.mxu0 0.0
    %1113 = vmatprep.subr.mxu0 0.0
    %1114 = vmatpush1.msra.mxu0 0.0
    %1115 = vmatprep.subr.mxu0 0.0
    %1116 = vmatpush1.msra.mxu0 0.0
    %1117 = vmatprep.subr.mxu0 0.0
    %1118 = vmatpush1.msra.mxu0 0.0
    %1119 = vmatprep.subr.mxu0 0.0
    %1120 = vmatpush1.msra.mxu0 0.0
    %1121 = vmatprep.subr.mxu0 0.0
    %1122 = vmatpush1.msra.mxu0 0.0
    %1123 = vmatprep.subr.mxu0 0.0
    %1124 = vmatpush1.msra.mxu0 0.0
    %1125 = vmatprep.subr.mxu0 0.0
    %1126 = vmatpush1.msra.mxu0 0.0
    %1127 = vmatprep.subr.mxu0 0.0
    %1128 = vmatpush1.msra.mxu0 0.0
    %1129 = vmatprep.subr.mxu0 0.0
    %1130 = vmatpush1.msra.mxu0 0.0
    %1131 = vmatprep.mubr.f32.mxu0 0.0
    %1132 = vmatmul.mubr.f32.gmra.mrb[0].mxu0 %v1065
    %v1133 = vpop.f32.mrb[0].mxu0
    %v1134 = vadd.f32 0.0, %v1133
    %v1135 = vpop.f32.mrb[0].mxu0
    %1136 = vdwg.mxu0
    %v1139 = vrot.slane %v864, 7
    %v1140 = vsel %vm906, %v1139, %v863
    %v1141 = vsel %vm812, %v1140, 0
    %1143 = vmatprep.subr.mxu0 0.0
    %1144 = vmatpush1.msra.mxu0 %v866
    %1145 = vmatprep.subr.mxu0 0.0
    %1146 = vmatpush1.msra.mxu0 %v867
    %1147 = vmatprep.subr.mxu0 0.0
    %1148 = vmatpush1.msra.mxu0 0.0
    %1149 = vmatprep.subr.mxu0 0.0
    %1150 = vmatpush1.msra.mxu0 0.0
    %1151 = vmatprep.subr.mxu0 0.0
    %1152 = vmatpush1.msra.mxu0 0.0
    %1153 = vmatprep.subr.mxu0 0.0
    %1154 = vmatpush1.msra.mxu0 0.0
    %1155 = vmatprep.subr.mxu0 0.0
    %1156 = vmatpush1.msra.mxu0 0.0
    %1157 = vmatprep.subr.mxu0 0.0
    %1158 = vmatpush1.msra.mxu0 0.0
    %1159 = vmatprep.subr.mxu0 0.0
    %1160 = vmatpush1.msra.mxu0 0.0
    %1161 = vmatprep.subr.mxu0 0.0
    %1162 = vmatpush1.msra.mxu0 0.0
    %1163 = vmatprep.subr.mxu0 0.0
    %1164 = vmatpush1.msra.mxu0 0.0
    %1165 = vmatprep.subr.mxu0 0.0
    %1166 = vmatpush1.msra.mxu0 0.0
    %1167 = vmatprep.subr.mxu0 0.0
    %1168 = vmatpush1.msra.mxu0 0.0
    %1169 = vmatprep.subr.mxu0 0.0
    %1170 = vmatpush1.msra.mxu0 0.0
    %1171 = vmatprep.subr.mxu0 0.0
    %1172 = vmatpush1.msra.mxu0 0.0
    %1173 = vmatprep.subr.mxu0 0.0
    %1174 = vmatpush1.msra.mxu0 0.0
    %1175 = vmatprep.subr.mxu0 0.0
    %1176 = vmatpush1.msra.mxu0 0.0
    %1177 = vmatprep.subr.mxu0 0.0
    %1178 = vmatpush1.msra.mxu0 0.0
    %1179 = vmatprep.subr.mxu0 0.0
    %1180 = vmatpush1.msra.mxu0 0.0
    %1181 = vmatprep.subr.mxu0 0.0
    %1182 = vmatpush1.msra.mxu0 0.0
    %1183 = vmatprep.subr.mxu0 0.0
    %1184 = vmatpush1.msra.mxu0 0.0
    %1185 = vmatprep.subr.mxu0 0.0
    %1186 = vmatpush1.msra.mxu0 0.0
    %1187 = vmatprep.subr.mxu0 0.0
    %1188 = vmatpush1.msra.mxu0 0.0
    %1189 = vmatprep.subr.mxu0 0.0
    %1190 = vmatpush1.msra.mxu0 0.0
    %1191 = vmatprep.subr.mxu0 0.0
    %1192 = vmatpush1.msra.mxu0 0.0
    %1193 = vmatprep.subr.mxu0 0.0
    %1194 = vmatpush1.msra.mxu0 0.0
    %1195 = vmatprep.subr.mxu0 0.0
    %1196 = vmatpush1.msra.mxu0 0.0
    %1197 = vmatprep.subr.mxu0 0.0
    %1198 = vmatpush1.msra.mxu0 0.0
    %1199 = vmatprep.subr.mxu0 0.0
    %1200 = vmatpush1.msra.mxu0 0.0
    %1201 = vmatprep.subr.mxu0 0.0
    %1202 = vmatpush1.msra.mxu0 0.0
    %1203 = vmatprep.subr.mxu0 0.0
    %1204 = vmatpush1.msra.mxu0 0.0
    %1205 = vmatprep.subr.mxu0 0.0
    %1206 = vmatpush1.msra.mxu0 0.0
    %1207 = vmatprep.mubr.f32.mxu0 0.0
    %1208 = vmatmul.mubr.f32.gmra.mrb[0].mxu0 %v1141
    %v1209 = vpop.f32.mrb[0].mxu0
    %v1210 = vadd.f32 %v1134, %v1209
    %v1211 = vpop.f32.mrb[0].mxu0
    %1212 = vdwg.mxu0
    %v1213 = vld [vmem:[#allocation2 + $0xa] sm:$0x1]
    %v1214 = vld [vmem:[#allocation2 + $0x4a] sm:$0x1]
    %s1215 = scalar_lea.vmem %s3, 160
    %v1216 = vld [vmem:[%s1215] sm:$0xff]
    %v1217 = vld [vmem:[%s1215 + $0x8] sm:$0xff]
    %v1220 = vrot.slane %v1214, 7
    %v1221 = vsel %vm906, %v1220, %v1213
    %v1222 = vsel %vm812, %v1221, 0
    %1224 = vmatprep.subr.mxu0 0.0
    %1225 = vmatpush1.msra.mxu0 %v1216
    %1226 = vmatprep.subr.mxu0 0.0
    %1227 = vmatpush1.msra.mxu0 %v1217
    %1228 = vmatprep.subr.mxu0 0.0
    %1229 = vmatpush1.msra.mxu0 0.0
    %1230 = vmatprep.subr.mxu0 0.0
    %1231 = vmatpush1.msra.mxu0 0.0
    %1232 = vmatprep.subr.mxu0 0.0
    %1233 = vmatpush1.msra.mxu0 0.0
    %1234 = vmatprep.subr.mxu0 0.0
    %1235 = vmatpush1.msra.mxu0 0.0
    %1236 = vmatprep.subr.mxu0 0.0
    %1237 = vmatpush1.msra.mxu0 0.0
    %1238 = vmatprep.subr.mxu0 0.0
    %1239 = vmatpush1.msra.mxu0 0.0
    %1240 = vmatprep.subr.mxu0 0.0
    %1241 = vmatpush1.msra.mxu0 0.0
    %1242 = vmatprep.subr.mxu0 0.0
    %1243 = vmatpush1.msra.mxu0 0.0
    %1244 = vmatprep.subr.mxu0 0.0
    %1245 = vmatpush1.msra.mxu0 0.0
    %1246 = vmatprep.subr.mxu0 0.0
    %1247 = vmatpush1.msra.mxu0 0.0
    %1248 = vmatprep.subr.mxu0 0.0
    %1249 = vmatpush1.msra.mxu0 0.0
    %1250 = vmatprep.subr.mxu0 0.0
    %1251 = vmatpush1.msra.mxu0 0.0
    %1252 = vmatprep.subr.mxu0 0.0
    %1253 = vmatpush1.msra.mxu0 0.0
    %1254 = vmatprep.subr.mxu0 0.0
    %1255 = vmatpush1.msra.mxu0 0.0
    %1256 = vmatprep.subr.mxu0 0.0
    %1257 = vmatpush1.msra.mxu0 0.0
    %1258 = vmatprep.subr.mxu0 0.0
    %1259 = vmatpush1.msra.mxu0 0.0
    %1260 = vmatprep.subr.mxu0 0.0
    %1261 = vmatpush1.msra.mxu0 0.0
    %1262 = vmatprep.subr.mxu0 0.0
    %1263 = vmatpush1.msra.mxu0 0.0
    %1264 = vmatprep.subr.mxu0 0.0
    %1265 = vmatpush1.msra.mxu0 0.0
    %1266 = vmatprep.subr.mxu0 0.0
    %1267 = vmatpush1.msra.mxu0 0.0
    %1268 = vmatprep.subr.mxu0 0.0
    %1269 = vmatpush1.msra.mxu0 0.0
    %1270 = vmatprep.subr.mxu0 0.0
    %1271 = vmatpush1.msra.mxu0 0.0
    %1272 = vmatprep.subr.mxu0 0.0
    %1273 = vmatpush1.msra.mxu0 0.0
    %1274 = vmatprep.subr.mxu0 0.0
    %1275 = vmatpush1.msra.mxu0 0.0
    %1276 = vmatprep.subr.mxu0 0.0
    %1277 = vmatpush1.msra.mxu0 0.0
    %1278 = vmatprep.subr.mxu0 0.0
    %1279 = vmatpush1.msra.mxu0 0.0
    %1280 = vmatprep.subr.mxu0 0.0
    %1281 = vmatpush1.msra.mxu0 0.0
    %1282 = vmatprep.subr.mxu0 0.0
    %1283 = vmatpush1.msra.mxu0 0.0
    %1284 = vmatprep.subr.mxu0 0.0
    %1285 = vmatpush1.msra.mxu0 0.0
    %1286 = vmatprep.subr.mxu0 0.0
    %1287 = vmatpush1.msra.mxu0 0.0
    %1288 = vmatprep.mubr.f32.mxu0 0.0
    %1289 = vmatmul.mubr.f32.gmra.mrb[0].mxu0 %v1222
    %v1290 = vpop.f32.mrb[0].mxu0
    %v1291 = vadd.f32 0.0, %v1290
    %v1292 = vpop.f32.mrb[0].mxu0
    %1293 = vdwg.mxu0
    %v1296 = vrot.slane %v869, 7
    %v1297 = vsel %vm906, %v1296, %v868
    %v1298 = vsel %vm812, %v1297, 0
    %1300 = vmatprep.subr.mxu0 0.0
    %1301 = vmatpush1.msra.mxu0 %v871
    %1302 = vmatprep.subr.mxu0 0.0
    %1303 = vmatpush1.msra.mxu0 %v872
    %1304 = vmatprep.subr.mxu0 0.0
    %1305 = vmatpush1.msra.mxu0 0.0
    %1306 = vmatprep.subr.mxu0 0.0
    %1307 = vmatpush1.msra.mxu0 0.0
    %1308 = vmatprep.subr.mxu0 0.0
    %1309 = vmatpush1.msra.mxu0 0.0
    %1310 = vmatprep.subr.mxu0 0.0
    %1311 = vmatpush1.msra.mxu0 0.0
    %1312 = vmatprep.subr.mxu0 0.0
    %1313 = vmatpush1.msra.mxu0 0.0
    %1314 = vmatprep.subr.mxu0 0.0
    %1315 = vmatpush1.msra.mxu0 0.0
    %1316 = vmatprep.subr.mxu0 0.0
    %1317 = vmatpush1.msra.mxu0 0.0
    %1318 = vmatprep.subr.mxu0 0.0
    %1319 = vmatpush1.msra.mxu0 0.0
    %1320 = vmatprep.subr.mxu0 0.0
    %1321 = vmatpush1.msra.mxu0 0.0
    %1322 = vmatprep.subr.mxu0 0.0
    %1323 = vmatpush1.msra.mxu0 0.0
    %1324 = vmatprep.subr.mxu0 0.0
    %1325 = vmatpush1.msra.mxu0 0.0
    %1326 = vmatprep.subr.mxu0 0.0
    %1327 = vmatpush1.msra.mxu0 0.0
    %1328 = vmatprep.subr.mxu0 0.0
    %1329 = vmatpush1.msra.mxu0 0.0
    %1330 = vmatprep.subr.mxu0 0.0
    %1331 = vmatpush1.msra.mxu0 0.0
    %1332 = vmatprep.subr.mxu0 0.0
    %1333 = vmatpush1.msra.mxu0 0.0
    %1334 = vmatprep.subr.mxu0 0.0
    %1335 = vmatpush1.msra.mxu0 0.0
    %1336 = vmatprep.subr.mxu0 0.0
    %1337 = vmatpush1.msra.mxu0 0.0
    %1338 = vmatprep.subr.mxu0 0.0
    %1339 = vmatpush1.msra.mxu0 0.0
    %1340 = vmatprep.subr.mxu0 0.0
    %1341 = vmatpush1.msra.mxu0 0.0
    %1342 = vmatprep.subr.mxu0 0.0
    %1343 = vmatpush1.msra.mxu0 0.0
    %1344 = vmatprep.subr.mxu0 0.0
    %1345 = vmatpush1.msra.mxu0 0.0
    %1346 = vmatprep.subr.mxu0 0.0
    %1347 = vmatpush1.msra.mxu0 0.0
    %1348 = vmatprep.subr.mxu0 0.0
    %1349 = vmatpush1.msra.mxu0 0.0
    %1350 = vmatprep.subr.mxu0 0.0
    %1351 = vmatpush1.msra.mxu0 0.0
    %1352 = vmatprep.subr.mxu0 0.0
    %1353 = vmatpush1.msra.mxu0 0.0
    %1354 = vmatprep.subr.mxu0 0.0
    %1355 = vmatpush1.msra.mxu0 0.0
    %1356 = vmatprep.subr.mxu0 0.0
    %1357 = vmatpush1.msra.mxu0 0.0
    %1358 = vmatprep.subr.mxu0 0.0
    %1359 = vmatpush1.msra.mxu0 0.0
    %1360 = vmatprep.subr.mxu0 0.0
    %1361 = vmatpush1.msra.mxu0 0.0
    %1362 = vmatprep.subr.mxu0 0.0
    %1363 = vmatpush1.msra.mxu0 0.0
    %1364 = vmatprep.mubr.f32.mxu0 0.0
    %1365 = vmatmul.mubr.f32.gmra.mrb[0].mxu0 %v1298
    %v1366 = vpop.f32.mrb[0].mxu0
    %v1367 = vadd.f32 %v1291, %v1366
    %v1368 = vpop.f32.mrb[0].mxu0
    %1369 = vdwg.mxu0
    %v1370 = vld [vmem:[#allocation2 + $0xb] sm:$0x1]
    %v1371 = vld [vmem:[#allocation2 + $0x4b] sm:$0x1]
    %s1372 = scalar_lea.vmem %s3, 176
    %v1373 = vld [vmem:[%s1372] sm:$0xff]
    %v1374 = vld [vmem:[%s1372 + $0x8] sm:$0xff]
    %v1377 = vrot.slane %v1371, 7
    %v1378 = vsel %vm906, %v1377, %v1370
    %v1379 = vsel %vm812, %v1378, 0
    %1381 = vmatprep.subr.mxu0 0.0
    %1382 = vmatpush1.msra.mxu0 %v1373
    %1383 = vmatprep.subr.mxu0 0.0
    %1384 = vmatpush1.msra.mxu0 %v1374
    %1385 = vmatprep.subr.mxu0 0.0
    %1386 = vmatpush1.msra.mxu0 0.0
    %1387 = vmatprep.subr.mxu0 0.0
    %1388 = vmatpush1.msra.mxu0 0.0
    %1389 = vmatprep.subr.mxu0 0.0
    %1390 = vmatpush1.msra.mxu0 0.0
    %1391 = vmatprep.subr.mxu0 0.0
    %1392 = vmatpush1.msra.mxu0 0.0
    %1393 = vmatprep.subr.mxu0 0.0
    %1394 = vmatpush1.msra.mxu0 0.0
    %1395 = vmatprep.subr.mxu0 0.0
    %1396 = vmatpush1.msra.mxu0 0.0
    %1397 = vmatprep.subr.mxu0 0.0
    %1398 = vmatpush1.msra.mxu0 0.0
    %1399 = vmatprep.subr.mxu0 0.0
    %1400 = vmatpush1.msra.mxu0 0.0
    %1401 = vmatprep.subr.mxu0 0.0
    %1402 = vmatpush1.msra.mxu0 0.0
    %1403 = vmatprep.subr.mxu0 0.0
    %1404 = vmatpush1.msra.mxu0 0.0
    %1405 = vmatprep.subr.mxu0 0.0
    %1406 = vmatpush1.msra.mxu0 0.0
    %1407 = vmatprep.subr.mxu0 0.0
    %1408 = vmatpush1.msra.mxu0 0.0
    %1409 = vmatprep.subr.mxu0 0.0
    %1410 = vmatpush1.msra.mxu0 0.0
    %1411 = vmatprep.subr.mxu0 0.0
    %1412 = vmatpush1.msra.mxu0 0.0
    %1413 = vmatprep.subr.mxu0 0.0
    %1414 = vmatpush1.msra.mxu0 0.0
    %1415 = vmatprep.subr.mxu0 0.0
    %1416 = vmatpush1.msra.mxu0 0.0
    %1417 = vmatprep.subr.mxu0 0.0
    %1418 = vmatpush1.msra.mxu0 0.0
    %1419 = vmatprep.subr.mxu0 0.0
    %1420 = vmatpush1.msra.mxu0 0.0
    %1421 = vmatprep.subr.mxu0 0.0
    %1422 = vmatpush1.msra.mxu0 0.0
    %1423 = vmatprep.subr.mxu0 0.0
    %1424 = vmatpush1.msra.mxu0 0.0
    %1425 = vmatprep.subr.mxu0 0.0
    %1426 = vmatpush1.msra.mxu0 0.0
    %1427 = vmatprep.subr.mxu0 0.0
    %1428 = vmatpush1.msra.mxu0 0.0
    %1429 = vmatprep.subr.mxu0 0.0
    %1430 = vmatpush1.msra.mxu0 0.0
    %1431 = vmatprep.subr.mxu0 0.0
    %1432 = vmatpush1.msra.mxu0 0.0
    %1433 = vmatprep.subr.mxu0 0.0
    %1434 = vmatpush1.msra.mxu0 0.0
    %1435 = vmatprep.subr.mxu0 0.0
    %1436 = vmatpush1.msra.mxu0 0.0
    %1437 = vmatprep.subr.mxu0 0.0
    %1438 = vmatpush1.msra.mxu0 0.0
    %1439 = vmatprep.subr.mxu0 0.0
    %1440 = vmatpush1.msra.mxu0 0.0
    %1441 = vmatprep.subr.mxu0 0.0
    %1442 = vmatpush1.msra.mxu0 0.0
    %1443 = vmatprep.subr.mxu0 0.0
    %1444 = vmatpush1.msra.mxu0 0.0
    %1445 = vmatprep.mubr.f32.mxu0 0.0
    %1446 = vmatmul.mubr.f32.gmra.mrb[0].mxu0 %v1379
    %v1447 = vpop.f32.mrb[0].mxu0
    %v1448 = vadd.f32 0.0, %v1447
    %v1449 = vpop.f32.mrb[0].mxu0
    %1450 = vdwg.mxu0
    %v1453 = vrot.slane %v874, 7
    %v1454 = vsel %vm906, %v1453, %v873
    %v1455 = vsel %vm812, %v1454, 0
    %1457 = vmatprep.subr.mxu0 0.0
    %1458 = vmatpush1.msra.mxu0 %v876
    %1459 = vmatprep.subr.mxu0 0.0
    %1460 = vmatpush1.msra.mxu0 %v877
    %1461 = vmatprep.subr.mxu0 0.0
    %1462 = vmatpush1.msra.mxu0 0.0
    %1463 = vmatprep.subr.mxu0 0.0
    %1464 = vmatpush1.msra.mxu0 0.0
    %1465 = vmatprep.subr.mxu0 0.0
    %1466 = vmatpush1.msra.mxu0 0.0
    %1467 = vmatprep.subr.mxu0 0.0
    %1468 = vmatpush1.msra.mxu0 0.0
    %1469 = vmatprep.subr.mxu0 0.0
    %1470 = vmatpush1.msra.mxu0 0.0
    %1471 = vmatprep.subr.mxu0 0.0
    %1472 = vmatpush1.msra.mxu0 0.0
    %1473 = vmatprep.subr.mxu0 0.0
    %1474 = vmatpush1.msra.mxu0 0.0
    %1475 = vmatprep.subr.mxu0 0.0
    %1476 = vmatpush1.msra.mxu0 0.0
    %1477 = vmatprep.subr.mxu0 0.0
    %1478 = vmatpush1.msra.mxu0 0.0
    %1479 = vmatprep.subr.mxu0 0.0
    %1480 = vmatpush1.msra.mxu0 0.0
    %1481 = vmatprep.subr.mxu0 0.0
    %1482 = vmatpush1.msra.mxu0 0.0
    %1483 = vmatprep.subr.mxu0 0.0
    %1484 = vmatpush1.msra.mxu0 0.0
    %1485 = vmatprep.subr.mxu0 0.0
    %1486 = vmatpush1.msra.mxu0 0.0
    %1487 = vmatprep.subr.mxu0 0.0
    %1488 = vmatpush1.msra.mxu0 0.0
    %1489 = vmatprep.subr.mxu0 0.0
    %1490 = vmatpush1.msra.mxu0 0.0
    %1491 = vmatprep.subr.mxu0 0.0
    %1492 = vmatpush1.msra.mxu0 0.0
    %1493 = vmatprep.subr.mxu0 0.0
    %1494 = vmatpush1.msra.mxu0 0.0
    %1495 = vmatprep.subr.mxu0 0.0
    %1496 = vmatpush1.msra.mxu0 0.0
    %1497 = vmatprep.subr.mxu0 0.0
    %1498 = vmatpush1.msra.mxu0 0.0
    %1499 = vmatprep.subr.mxu0 0.0
    %1500 = vmatpush1.msra.mxu0 0.0
    %1501 = vmatprep.subr.mxu0 0.0
    %1502 = vmatpush1.msra.mxu0 0.0
    %1503 = vmatprep.subr.mxu0 0.0
    %1504 = vmatpush1.msra.mxu0 0.0
    %1505 = vmatprep.subr.mxu0 0.0
    %1506 = vmatpush1.msra.mxu0 0.0
    %1507 = vmatprep.subr.mxu0 0.0
    %1508 = vmatpush1.msra.mxu0 0.0
    %1509 = vmatprep.subr.mxu0 0.0
    %1510 = vmatpush1.msra.mxu0 0.0
    %1511 = vmatprep.subr.mxu0 0.0
    %1512 = vmatpush1.msra.mxu0 0.0
    %1513 = vmatprep.subr.mxu0 0.0
    %1514 = vmatpush1.msra.mxu0 0.0
    %1515 = vmatprep.subr.mxu0 0.0
    %1516 = vmatpush1.msra.mxu0 0.0
    %1517 = vmatprep.subr.mxu0 0.0
    %1518 = vmatpush1.msra.mxu0 0.0
    %1519 = vmatprep.subr.mxu0 0.0
    %1520 = vmatpush1.msra.mxu0 0.0
    %1521 = vmatprep.mubr.f32.mxu0 0.0
    %1522 = vmatmul.mubr.f32.gmra.mrb[0].mxu0 %v1455
    %v1523 = vpop.f32.mrb[0].mxu0
    %v1524 = vadd.f32 %v1448, %v1523
    %v1525 = vpop.f32.mrb[0].mxu0
    %1526 = vdwg.mxu0
    %v1527 = vld [vmem:[#allocation2 + $0xc] sm:$0x1]
    %v1528 = vld [vmem:[#allocation2 + $0x4c] sm:$0x1]
    %s1529 = scalar_lea.vmem %s3, 192
    %v1530 = vld [vmem:[%s1529] sm:$0xff]
    %v1531 = vld [vmem:[%s1529 + $0x8] sm:$0xff]
    %v1534 = vrot.slane %v1528, 7
    %v1535 = vsel %vm906, %v1534, %v1527
    %v1536 = vsel %vm812, %v1535, 0
    %1538 = vmatprep.subr.mxu0 0.0
    %1539 = vmatpush1.msra.mxu0 %v1530
    %1540 = vmatprep.subr.mxu0 0.0
    %1541 = vmatpush1.msra.mxu0 %v1531
    %1542 = vmatprep.subr.mxu0 0.0
    %1543 = vmatpush1.msra.mxu0 0.0
    %1544 = vmatprep.subr.mxu0 0.0
    %1545 = vmatpush1.msra.mxu0 0.0
    %1546 = vmatprep.subr.mxu0 0.0
    %1547 = vmatpush1.msra.mxu0 0.0
    %1548 = vmatprep.subr.mxu0 0.0
    %1549 = vmatpush1.msra.mxu0 0.0
    %1550 = vmatprep.subr.mxu0 0.0
    %1551 = vmatpush1.msra.mxu0 0.0
    %1552 = vmatprep.subr.mxu0 0.0
    %1553 = vmatpush1.msra.mxu0 0.0
    %1554 = vmatprep.subr.mxu0 0.0
    %1555 = vmatpush1.msra.mxu0 0.0
    %1556 = vmatprep.subr.mxu0 0.0
    %1557 = vmatpush1.msra.mxu0 0.0
    %1558 = vmatprep.subr.mxu0 0.0
    %1559 = vmatpush1.msra.mxu0 0.0
    %1560 = vmatprep.subr.mxu0 0.0
    %1561 = vmatpush1.msra.mxu0 0.0
    %1562 = vmatprep.subr.mxu0 0.0
    %1563 = vmatpush1.msra.mxu0 0.0
    %1564 = vmatprep.subr.mxu0 0.0
    %1565 = vmatpush1.msra.mxu0 0.0
    %1566 = vmatprep.subr.mxu0 0.0
    %1567 = vmatpush1.msra.mxu0 0.0
    %1568 = vmatprep.subr.mxu0 0.0
    %1569 = vmatpush1.msra.mxu0 0.0
    %1570 = vmatprep.subr.mxu0 0.0
    %1571 = vmatpush1.msra.mxu0 0.0
    %1572 = vmatprep.subr.mxu0 0.0
    %1573 = vmatpush1.msra.mxu0 0.0
    %1574 = vmatprep.subr.mxu0 0.0
    %1575 = vmatpush1.msra.mxu0 0.0
    %1576 = vmatprep.subr.mxu0 0.0
    %1577 = vmatpush1.msra.mxu0 0.0
    %1578 = vmatprep.subr.mxu0 0.0
    %1579 = vmatpush1.msra.mxu0 0.0
    %1580 = vmatprep.subr.mxu0 0.0
    %1581 = vmatpush1.msra.mxu0 0.0
    %1582 = vmatprep.subr.mxu0 0.0
    %1583 = vmatpush1.msra.mxu0 0.0
    %1584 = vmatprep.subr.mxu0 0.0
    %1585 = vmatpush1.msra.mxu0 0.0
    %1586 = vmatprep.subr.mxu0 0.0
    %1587 = vmatpush1.msra.mxu0 0.0
    %1588 = vmatprep.subr.mxu0 0.0
    %1589 = vmatpush1.msra.mxu0 0.0
    %1590 = vmatprep.subr.mxu0 0.0
    %1591 = vmatpush1.msra.mxu0 0.0
    %1592 = vmatprep.subr.mxu0 0.0
    %1593 = vmatpush1.msra.mxu0 0.0
    %1594 = vmatprep.subr.mxu0 0.0
    %1595 = vmatpush1.msra.mxu0 0.0
    %1596 = vmatprep.subr.mxu0 0.0
    %1597 = vmatpush1.msra.mxu0 0.0
    %1598 = vmatprep.subr.mxu0 0.0
    %1599 = vmatpush1.msra.mxu0 0.0
    %1600 = vmatprep.subr.mxu0 0.0
    %1601 = vmatpush1.msra.mxu0 0.0
    %1602 = vmatprep.mubr.f32.mxu0 0.0
    %1603 = vmatmul.mubr.f32.gmra.mrb[0].mxu0 %v1536
    %v1604 = vpop.f32.mrb[0].mxu0
    %v1605 = vadd.f32 0.0, %v1604
    %v1606 = vpop.f32.mrb[0].mxu0
    %1607 = vdwg.mxu0
    %v1610 = vrot.slane %v879, 7
    %v1611 = vsel %vm906, %v1610, %v878
    %v1612 = vsel %vm812, %v1611, 0
    %1614 = vmatprep.subr.mxu0 0.0
    %1615 = vmatpush1.msra.mxu0 %v881
    %1616 = vmatprep.subr.mxu0 0.0
    %1617 = vmatpush1.msra.mxu0 %v882
    %1618 = vmatprep.subr.mxu0 0.0
    %1619 = vmatpush1.msra.mxu0 0.0
    %1620 = vmatprep.subr.mxu0 0.0
    %1621 = vmatpush1.msra.mxu0 0.0
    %1622 = vmatprep.subr.mxu0 0.0
    %1623 = vmatpush1.msra.mxu0 0.0
    %1624 = vmatprep.subr.mxu0 0.0
    %1625 = vmatpush1.msra.mxu0 0.0
    %1626 = vmatprep.subr.mxu0 0.0
    %1627 = vmatpush1.msra.mxu0 0.0
    %1628 = vmatprep.subr.mxu0 0.0
    %1629 = vmatpush1.msra.mxu0 0.0
    %1630 = vmatprep.subr.mxu0 0.0
    %1631 = vmatpush1.msra.mxu0 0.0
    %1632 = vmatprep.subr.mxu0 0.0
    %1633 = vmatpush1.msra.mxu0 0.0
    %1634 = vmatprep.subr.mxu0 0.0
    %1635 = vmatpush1.msra.mxu0 0.0
    %1636 = vmatprep.subr.mxu0 0.0
    %1637 = vmatpush1.msra.mxu0 0.0
    %1638 = vmatprep.subr.mxu0 0.0
    %1639 = vmatpush1.msra.mxu0 0.0
    %1640 = vmatprep.subr.mxu0 0.0
    %1641 = vmatpush1.msra.mxu0 0.0
    %1642 = vmatprep.subr.mxu0 0.0
    %1643 = vmatpush1.msra.mxu0 0.0
    %1644 = vmatprep.subr.mxu0 0.0
    %1645 = vmatpush1.msra.mxu0 0.0
    %1646 = vmatprep.subr.mxu0 0.0
    %1647 = vmatpush1.msra.mxu0 0.0
    %1648 = vmatprep.subr.mxu0 0.0
    %1649 = vmatpush1.msra.mxu0 0.0
    %1650 = vmatprep.subr.mxu0 0.0
    %1651 = vmatpush1.msra.mxu0 0.0
    %1652 = vmatprep.subr.mxu0 0.0
    %1653 = vmatpush1.msra.mxu0 0.0
    %1654 = vmatprep.subr.mxu0 0.0
    %1655 = vmatpush1.msra.mxu0 0.0
    %1656 = vmatprep.subr.mxu0 0.0
    %1657 = vmatpush1.msra.mxu0 0.0
    %1658 = vmatprep.subr.mxu0 0.0
    %1659 = vmatpush1.msra.mxu0 0.0
    %1660 = vmatprep.subr.mxu0 0.0
    %1661 = vmatpush1.msra.mxu0 0.0
    %1662 = vmatprep.subr.mxu0 0.0
    %1663 = vmatpush1.msra.mxu0 0.0
    %1664 = vmatprep.subr.mxu0 0.0
    %1665 = vmatpush1.msra.mxu0 0.0
    %1666 = vmatprep.subr.mxu0 0.0
    %1667 = vmatpush1.msra.mxu0 0.0
    %1668 = vmatprep.subr.mxu0 0.0
    %1669 = vmatpush1.msra.mxu0 0.0
    %1670 = vmatprep.subr.mxu0 0.0
    %1671 = vmatpush1.msra.mxu0 0.0
    %1672 = vmatprep.subr.mxu0 0.0
    %1673 = vmatpush1.msra.mxu0 0.0
    %1674 = vmatprep.subr.mxu0 0.0
    %1675 = vmatpush1.msra.mxu0 0.0
    %1676 = vmatprep.subr.mxu0 0.0
    %1677 = vmatpush1.msra.mxu0 0.0
    %1678 = vmatprep.mubr.f32.mxu0 0.0
    %1679 = vmatmul.mubr.f32.gmra.mrb[0].mxu0 %v1612
    %v1680 = vpop.f32.mrb[0].mxu0
    %v1681 = vadd.f32 %v1605, %v1680
    %v1682 = vpop.f32.mrb[0].mxu0
    %1683 = vdwg.mxu0
    %v1684 = vld [vmem:[#allocation2 + $0xd] sm:$0x1]
    %v1685 = vld [vmem:[#allocation2 + $0x4d] sm:$0x1]
    %s1686 = scalar_lea.vmem %s3, 208
    %v1687 = vld [vmem:[%s1686] sm:$0xff]
    %v1688 = vld [vmem:[%s1686 + $0x8] sm:$0xff]
    %v1691 = vrot.slane %v1685, 7
    %v1692 = vsel %vm906, %v1691, %v1684
    %v1693 = vsel %vm812, %v1692, 0
    %1695 = vmatprep.subr.mxu0 0.0
    %1696 = vmatpush1.msra.mxu0 %v1687
    %1697 = vmatprep.subr.mxu0 0.0
    %1698 = vmatpush1.msra.mxu0 %v1688
    %1699 = vmatprep.subr.mxu0 0.0
    %1700 = vmatpush1.msra.mxu0 0.0
    %1701 = vmatprep.subr.mxu0 0.0
    %1702 = vmatpush1.msra.mxu0 0.0
    %1703 = vmatprep.subr.mxu0 0.0
    %1704 = vmatpush1.msra.mxu0 0.0
    %1705 = vmatprep.subr.mxu0 0.0
    %1706 = vmatpush1.msra.mxu0 0.0
    %1707 = vmatprep.subr.mxu0 0.0
    %1708 = vmatpush1.msra.mxu0 0.0
    %1709 = vmatprep.subr.mxu0 0.0
    %1710 = vmatpush1.msra.mxu0 0.0
    %1711 = vmatprep.subr.mxu0 0.0
    %1712 = vmatpush1.msra.mxu0 0.0
    %1713 = vmatprep.subr.mxu0 0.0
    %1714 = vmatpush1.msra.mxu0 0.0
    %1715 = vmatprep.subr.mxu0 0.0
    %1716 = vmatpush1.msra.mxu0 0.0
    %1717 = vmatprep.subr.mxu0 0.0
    %1718 = vmatpush1.msra.mxu0 0.0
    %1719 = vmatprep.subr.mxu0 0.0
    %1720 = vmatpush1.msra.mxu0 0.0
    %1721 = vmatprep.subr.mxu0 0.0
    %1722 = vmatpush1.msra.mxu0 0.0
    %1723 = vmatprep.subr.mxu0 0.0
    %1724 = vmatpush1.msra.mxu0 0.0
    %1725 = vmatprep.subr.mxu0 0.0
    %1726 = vmatpush1.msra.mxu0 0.0
    %1727 = vmatprep.subr.mxu0 0.0
    %1728 = vmatpush1.msra.mxu0 0.0
    %1729 = vmatprep.subr.mxu0 0.0
    %1730 = vmatpush1.msra.mxu0 0.0
    %1731 = vmatprep.subr.mxu0 0.0
    %1732 = vmatpush1.msra.mxu0 0.0
    %1733 = vmatprep.subr.mxu0 0.0
    %1734 = vmatpush1.msra.mxu0 0.0
    %1735 = vmatprep.subr.mxu0 0.0
    %1736 = vmatpush1.msra.mxu0 0.0
    %1737 = vmatprep.subr.mxu0 0.0
    %1738 = vmatpush1.msra.mxu0 0.0
    %1739 = vmatprep.subr.mxu0 0.0
    %1740 = vmatpush1.msra.mxu0 0.0
    %1741 = vmatprep.subr.mxu0 0.0
    %1742 = vmatpush1.msra.mxu0 0.0
    %1743 = vmatprep.subr.mxu0 0.0
    %1744 = vmatpush1.msra.mxu0 0.0
    %1745 = vmatprep.subr.mxu0 0.0
    %1746 = vmatpush1.msra.mxu0 0.0
    %1747 = vmatprep.subr.mxu0 0.0
    %1748 = vmatpush1.msra.mxu0 0.0
    %1749 = vmatprep.subr.mxu0 0.0
    %1750 = vmatpush1.msra.mxu0 0.0
    %1751 = vmatprep.subr.mxu0 0.0
    %1752 = vmatpush1.msra.mxu0 0.0
    %1753 = vmatprep.subr.mxu0 0.0
    %1754 = vmatpush1.msra.mxu0 0.0
    %1755 = vmatprep.subr.mxu0 0.0
    %1756 = vmatpush1.msra.mxu0 0.0
    %1757 = vmatprep.subr.mxu0 0.0
    %1758 = vmatpush1.msra.mxu0 0.0
    %1759 = vmatprep.mubr.f32.mxu0 0.0
    %1760 = vmatmul.mubr.f32.gmra.mrb[0].mxu0 %v1693
    %v1761 = vpop.f32.mrb[0].mxu0
    %v1762 = vadd.f32 0.0, %v1761
    %v1763 = vpop.f32.mrb[0].mxu0
    %1764 = vdwg.mxu0
    %v1767 = vrot.slane %v884, 7
    %v1768 = vsel %vm906, %v1767, %v883
    %v1769 = vsel %vm812, %v1768, 0
    %1771 = vmatprep.subr.mxu0 0.0
    %1772 = vmatpush1.msra.mxu0 %v886
    %1773 = vmatprep.subr.mxu0 0.0
    %1774 = vmatpush1.msra.mxu0 %v887
    %1775 = vmatprep.subr.mxu0 0.0
    %1776 = vmatpush1.msra.mxu0 0.0
    %1777 = vmatprep.subr.mxu0 0.0
    %1778 = vmatpush1.msra.mxu0 0.0
    %1779 = vmatprep.subr.mxu0 0.0
    %1780 = vmatpush1.msra.mxu0 0.0
    %1781 = vmatprep.subr.mxu0 0.0
    %1782 = vmatpush1.msra.mxu0 0.0
    %1783 = vmatprep.subr.mxu0 0.0
    %1784 = vmatpush1.msra.mxu0 0.0
    %1785 = vmatprep.subr.mxu0 0.0
    %1786 = vmatpush1.msra.mxu0 0.0
    %1787 = vmatprep.subr.mxu0 0.0
    %1788 = vmatpush1.msra.mxu0 0.0
    %1789 = vmatprep.subr.mxu0 0.0
    %1790 = vmatpush1.msra.mxu0 0.0
    %1791 = vmatprep.subr.mxu0 0.0
    %1792 = vmatpush1.msra.mxu0 0.0
    %1793 = vmatprep.subr.mxu0 0.0
    %1794 = vmatpush1.msra.mxu0 0.0
    %1795 = vmatprep.subr.mxu0 0.0
    %1796 = vmatpush1.msra.mxu0 0.0
    %1797 = vmatprep.subr.mxu0 0.0
    %1798 = vmatpush1.msra.mxu0 0.0
    %1799 = vmatprep.subr.mxu0 0.0
    %1800 = vmatpush1.msra.mxu0 0.0
    %1801 = vmatprep.subr.mxu0 0.0
    %1802 = vmatpush1.msra.mxu0 0.0
    %1803 = vmatprep.subr.mxu0 0.0
    %1804 = vmatpush1.msra.mxu0 0.0
    %1805 = vmatprep.subr.mxu0 0.0
    %1806 = vmatpush1.msra.mxu0 0.0
    %1807 = vmatprep.subr.mxu0 0.0
    %1808 = vmatpush1.msra.mxu0 0.0
    %1809 = vmatprep.subr.mxu0 0.0
    %1810 = vmatpush1.msra.mxu0 0.0
    %1811 = vmatprep.subr.mxu0 0.0
    %1812 = vmatpush1.msra.mxu0 0.0
    %1813 = vmatprep.subr.mxu0 0.0
    %1814 = vmatpush1.msra.mxu0 0.0
    %1815 = vmatprep.subr.mxu0 0.0
    %1816 = vmatpush1.msra.mxu0 0.0
    %1817 = vmatprep.subr.mxu0 0.0
    %1818 = vmatpush1.msra.mxu0 0.0
    %1819 = vmatprep.subr.mxu0 0.0
    %1820 = vmatpush1.msra.mxu0 0.0
    %1821 = vmatprep.subr.mxu0 0.0
    %1822 = vmatpush1.msra.mxu0 0.0
    %1823 = vmatprep.subr.mxu0 0.0
    %1824 = vmatpush1.msra.mxu0 0.0
    %1825 = vmatprep.subr.mxu0 0.0
    %1826 = vmatpush1.msra.mxu0 0.0
    %1827 = vmatprep.subr.mxu0 0.0
    %1828 = vmatpush1.msra.mxu0 0.0
    %1829 = vmatprep.subr.mxu0 0.0
    %1830 = vmatpush1.msra.mxu0 0.0
    %1831 = vmatprep.subr.mxu0 0.0
    %1832 = vmatpush1.msra.mxu0 0.0
    %1833 = vmatprep.subr.mxu0 0.0
    %1834 = vmatpush1.msra.mxu0 0.0
    %1835 = vmatprep.mubr.f32.mxu0 0.0
    %1836 = vmatmul.mubr.f32.gmra.mrb[0].mxu0 %v1769
    %v1837 = vpop.f32.mrb[0].mxu0
    %v1838 = vadd.f32 %v1762, %v1837
    %v1839 = vpop.f32.mrb[0].mxu0
    %1840 = vdwg.mxu0
    %v1841 = vld [vmem:[#allocation2 + $0xe] sm:$0x1]
    %v1842 = vld [vmem:[#allocation2 + $0x4e] sm:$0x1]
    %s1843 = scalar_lea.vmem %s3, 224
    %v1844 = vld [vmem:[%s1843] sm:$0xff]
    %v1845 = vld [vmem:[%s1843 + $0x8] sm:$0xff]
    %v1848 = vrot.slane %v1842, 7
    %v1849 = vsel %vm906, %v1848, %v1841
    %v1850 = vsel %vm812, %v1849, 0
    %1852 = vmatprep.subr.mxu0 0.0
    %1853 = vmatpush1.msra.mxu0 %v1844
    %1854 = vmatprep.subr.mxu0 0.0
    %1855 = vmatpush1.msra.mxu0 %v1845
    %1856 = vmatprep.subr.mxu0 0.0
    %1857 = vmatpush1.msra.mxu0 0.0
    %1858 = vmatprep.subr.mxu0 0.0
    %1859 = vmatpush1.msra.mxu0 0.0
    %1860 = vmatprep.subr.mxu0 0.0
    %1861 = vmatpush1.msra.mxu0 0.0
    %1862 = vmatprep.subr.mxu0 0.0
    %1863 = vmatpush1.msra.mxu0 0.0
    %1864 = vmatprep.subr.mxu0 0.0
    %1865 = vmatpush1.msra.mxu0 0.0
    %1866 = vmatprep.subr.mxu0 0.0
    %1867 = vmatpush1.msra.mxu0 0.0
    %1868 = vmatprep.subr.mxu0 0.0
    %1869 = vmatpush1.msra.mxu0 0.0
    %1870 = vmatprep.subr.mxu0 0.0
    %1871 = vmatpush1.msra.mxu0 0.0
    %1872 = vmatprep.subr.mxu0 0.0
    %1873 = vmatpush1.msra.mxu0 0.0
    %1874 = vmatprep.subr.mxu0 0.0
    %1875 = vmatpush1.msra.mxu0 0.0
    %1876 = vmatprep.subr.mxu0 0.0
    %1877 = vmatpush1.msra.mxu0 0.0
    %1878 = vmatprep.subr.mxu0 0.0
    %1879 = vmatpush1.msra.mxu0 0.0
    %1880 = vmatprep.subr.mxu0 0.0
    %1881 = vmatpush1.msra.mxu0 0.0
    %1882 = vmatprep.subr.mxu0 0.0
    %1883 = vmatpush1.msra.mxu0 0.0
    %1884 = vmatprep.subr.mxu0 0.0
    %1885 = vmatpush1.msra.mxu0 0.0
    %1886 = vmatprep.subr.mxu0 0.0
    %1887 = vmatpush1.msra.mxu0 0.0
    %1888 = vmatprep.subr.mxu0 0.0
    %1889 = vmatpush1.msra.mxu0 0.0
    %1890 = vmatprep.subr.mxu0 0.0
    %1891 = vmatpush1.msra.mxu0 0.0
    %1892 = vmatprep.subr.mxu0 0.0
    %1893 = vmatpush1.msra.mxu0 0.0
    %1894 = vmatprep.subr.mxu0 0.0
    %1895 = vmatpush1.msra.mxu0 0.0
    %1896 = vmatprep.subr.mxu0 0.0
    %1897 = vmatpush1.msra.mxu0 0.0
    %1898 = vmatprep.subr.mxu0 0.0
    %1899 = vmatpush1.msra.mxu0 0.0
    %1900 = vmatprep.subr.mxu0 0.0
    %1901 = vmatpush1.msra.mxu0 0.0
    %1902 = vmatprep.subr.mxu0 0.0
    %1903 = vmatpush1.msra.mxu0 0.0
    %1904 = vmatprep.subr.mxu0 0.0
    %1905 = vmatpush1.msra.mxu0 0.0
    %1906 = vmatprep.subr.mxu0 0.0
    %1907 = vmatpush1.msra.mxu0 0.0
    %1908 = vmatprep.subr.mxu0 0.0
    %1909 = vmatpush1.msra.mxu0 0.0
    %1910 = vmatprep.subr.mxu0 0.0
    %1911 = vmatpush1.msra.mxu0 0.0
    %1912 = vmatprep.subr.mxu0 0.0
    %1913 = vmatpush1.msra.mxu0 0.0
    %1914 = vmatprep.subr.mxu0 0.0
    %1915 = vmatpush1.msra.mxu0 0.0
    %1916 = vmatprep.mubr.f32.mxu0 0.0
    %1917 = vmatmul.mubr.f32.gmra.mrb[0].mxu0 %v1850
    %v1918 = vpop.f32.mrb[0].mxu0
    %v1919 = vadd.f32 0.0, %v1918
    %v1920 = vpop.f32.mrb[0].mxu0
    %1921 = vdwg.mxu0
    %v1924 = vrot.slane %v889, 7
    %v1925 = vsel %vm906, %v1924, %v888
    %v1926 = vsel %vm812, %v1925, 0
    %1928 = vmatprep.subr.mxu0 0.0
    %1929 = vmatpush1.msra.mxu0 %v891
    %1930 = vmatprep.subr.mxu0 0.0
    %1931 = vmatpush1.msra.mxu0 %v892
    %1932 = vmatprep.subr.mxu0 0.0
    %1933 = vmatpush1.msra.mxu0 0.0
    %1934 = vmatprep.subr.mxu0 0.0
    %1935 = vmatpush1.msra.mxu0 0.0
    %1936 = vmatprep.subr.mxu0 0.0
    %1937 = vmatpush1.msra.mxu0 0.0
    %1938 = vmatprep.subr.mxu0 0.0
    %1939 = vmatpush1.msra.mxu0 0.0
    %1940 = vmatprep.subr.mxu0 0.0
    %1941 = vmatpush1.msra.mxu0 0.0
    %1942 = vmatprep.subr.mxu0 0.0
    %1943 = vmatpush1.msra.mxu0 0.0
    %1944 = vmatprep.subr.mxu0 0.0
    %1945 = vmatpush1.msra.mxu0 0.0
    %1946 = vmatprep.subr.mxu0 0.0
    %1947 = vmatpush1.msra.mxu0 0.0
    %1948 = vmatprep.subr.mxu0 0.0
    %1949 = vmatpush1.msra.mxu0 0.0
    %1950 = vmatprep.subr.mxu0 0.0
    %1951 = vmatpush1.msra.mxu0 0.0
    %1952 = vmatprep.subr.mxu0 0.0
    %1953 = vmatpush1.msra.mxu0 0.0
    %1954 = vmatprep.subr.mxu0 0.0
    %1955 = vmatpush1.msra.mxu0 0.0
    %1956 = vmatprep.subr.mxu0 0.0
    %1957 = vmatpush1.msra.mxu0 0.0
    %1958 = vmatprep.subr.mxu0 0.0
    %1959 = vmatpush1.msra.mxu0 0.0
    %1960 = vmatprep.subr.mxu0 0.0
    %1961 = vmatpush1.msra.mxu0 0.0
    %1962 = vmatprep.subr.mxu0 0.0
    %1963 = vmatpush1.msra.mxu0 0.0
    %1964 = vmatprep.subr.mxu0 0.0
    %1965 = vmatpush1.msra.mxu0 0.0
    %1966 = vmatprep.subr.mxu0 0.0
    %1967 = vmatpush1.msra.mxu0 0.0
    %1968 = vmatprep.subr.mxu0 0.0
    %1969 = vmatpush1.msra.mxu0 0.0
    %1970 = vmatprep.subr.mxu0 0.0
    %1971 = vmatpush1.msra.mxu0 0.0
    %1972 = vmatprep.subr.mxu0 0.0
    %1973 = vmatpush1.msra.mxu0 0.0
    %1974 = vmatprep.subr.mxu0 0.0
    %1975 = vmatpush1.msra.mxu0 0.0
    %1976 = vmatprep.subr.mxu0 0.0
    %1977 = vmatpush1.msra.mxu0 0.0
    %1978 = vmatprep.subr.mxu0 0.0
    %1979 = vmatpush1.msra.mxu0 0.0
    %1980 = vmatprep.subr.mxu0 0.0
    %1981 = vmatpush1.msra.mxu0 0.0
    %1982 = vmatprep.subr.mxu0 0.0
    %1983 = vmatpush1.msra.mxu0 0.0
    %1984 = vmatprep.subr.mxu0 0.0
    %1985 = vmatpush1.msra.mxu0 0.0
    %1986 = vmatprep.subr.mxu0 0.0
    %1987 = vmatpush1.msra.mxu0 0.0
    %1988 = vmatprep.subr.mxu0 0.0
    %1989 = vmatpush1.msra.mxu0 0.0
    %1990 = vmatprep.subr.mxu0 0.0
    %1991 = vmatpush1.msra.mxu0 0.0
    %1992 = vmatprep.mubr.f32.mxu0 0.0
    %1993 = vmatmul.mubr.f32.gmra.mrb[0].mxu0 %v1926
    %v1994 = vpop.f32.mrb[0].mxu0
    %v1995 = vadd.f32 %v1919, %v1994
    %v1996 = vpop.f32.mrb[0].mxu0
    %1997 = vdwg.mxu0
    %v1998 = vld [vmem:[#allocation2 + $0xf] sm:$0x1]
    %v1999 = vld [vmem:[#allocation2 + $0x4f] sm:$0x1]
    %s2000 = scalar_lea.vmem %s3, 240
    %v2001 = vld [vmem:[%s2000] sm:$0xff]
    %v2002 = vld [vmem:[%s2000 + $0x8] sm:$0xff]
    %v2005 = vrot.slane %v1999, 7
    %v2006 = vsel %vm906, %v2005, %v1998
    %v2007 = vsel %vm812, %v2006, 0
    %2009 = vmatprep.subr.mxu0 0.0
    %2010 = vmatpush1.msra.mxu0 %v2001
    %2011 = vmatprep.subr.mxu0 0.0
    %2012 = vmatpush1.msra.mxu0 %v2002
    %2013 = vmatprep.subr.mxu0 0.0
    %2014 = vmatpush1.msra.mxu0 0.0
    %2015 = vmatprep.subr.mxu0 0.0
    %2016 = vmatpush1.msra.mxu0 0.0
    %2017 = vmatprep.subr.mxu0 0.0
    %2018 = vmatpush1.msra.mxu0 0.0
    %2019 = vmatprep.subr.mxu0 0.0
    %2020 = vmatpush1.msra.mxu0 0.0
    %2021 = vmatprep.subr.mxu0 0.0
    %2022 = vmatpush1.msra.mxu0 0.0
    %2023 = vmatprep.subr.mxu0 0.0
    %2024 = vmatpush1.msra.mxu0 0.0
    %2025 = vmatprep.subr.mxu0 0.0
    %2026 = vmatpush1.msra.mxu0 0.0
    %2027 = vmatprep.subr.mxu0 0.0
    %2028 = vmatpush1.msra.mxu0 0.0
    %2029 = vmatprep.subr.mxu0 0.0
    %2030 = vmatpush1.msra.mxu0 0.0
    %2031 = vmatprep.subr.mxu0 0.0
    %2032 = vmatpush1.msra.mxu0 0.0
    %2033 = vmatprep.subr.mxu0 0.0
    %2034 = vmatpush1.msra.mxu0 0.0
    %2035 = vmatprep.subr.mxu0 0.0
    %2036 = vmatpush1.msra.mxu0 0.0
    %2037 = vmatprep.subr.mxu0 0.0
    %2038 = vmatpush1.msra.mxu0 0.0
    %2039 = vmatprep.subr.mxu0 0.0
    %2040 = vmatpush1.msra.mxu0 0.0
    %2041 = vmatprep.subr.mxu0 0.0
    %2042 = vmatpush1.msra.mxu0 0.0
    %2043 = vmatprep.subr.mxu0 0.0
    %2044 = vmatpush1.msra.mxu0 0.0
    %2045 = vmatprep.subr.mxu0 0.0
    %2046 = vmatpush1.msra.mxu0 0.0
    %2047 = vmatprep.subr.mxu0 0.0
    %2048 = vmatpush1.msra.mxu0 0.0
    %2049 = vmatprep.subr.mxu0 0.0
    %2050 = vmatpush1.msra.mxu0 0.0
    %2051 = vmatprep.subr.mxu0 0.0
    %2052 = vmatpush1.msra.mxu0 0.0
    %2053 = vmatprep.subr.mxu0 0.0
    %2054 = vmatpush1.msra.mxu0 0.0
    %2055 = vmatprep.subr.mxu0 0.0
    %2056 = vmatpush1.msra.mxu0 0.0
    %2057 = vmatprep.subr.mxu0 0.0
    %2058 = vmatpush1.msra.mxu0 0.0
    %2059 = vmatprep.subr.mxu0 0.0
    %2060 = vmatpush1.msra.mxu0 0.0
    %2061 = vmatprep.subr.mxu0 0.0
    %2062 = vmatpush1.msra.mxu0 0.0
    %2063 = vmatprep.subr.mxu0 0.0
    %2064 = vmatpush1.msra.mxu0 0.0
    %2065 = vmatprep.subr.mxu0 0.0
    %2066 = vmatpush1.msra.mxu0 0.0
    %2067 = vmatprep.subr.mxu0 0.0
    %2068 = vmatpush1.msra.mxu0 0.0
    %2069 = vmatprep.subr.mxu0 0.0
    %2070 = vmatpush1.msra.mxu0 0.0
    %2071 = vmatprep.subr.mxu0 0.0
    %2072 = vmatpush1.msra.mxu0 0.0
    %2073 = vmatprep.mubr.f32.mxu0 0.0
    %2074 = vmatmul.mubr.f32.gmra.mrb[0].mxu0 %v2007
    %v2075 = vpop.f32.mrb[0].mxu0
    %v2076 = vadd.f32 0.0, %v2075
    %v2077 = vpop.f32.mrb[0].mxu0
    %2078 = vdwg.mxu0
    %v2081 = vrot.slane %v894, 7
    %v2082 = vsel %vm906, %v2081, %v893
    %v2083 = vsel %vm812, %v2082, 0
    %2085 = vmatprep.subr.mxu0 0.0
    %2086 = vmatpush1.msra.mxu0 %v896
    %2087 = vmatprep.subr.mxu0 0.0
    %2088 = vmatpush1.msra.mxu0 %v897
    %2089 = vmatprep.subr.mxu0 0.0
    %2090 = vmatpush1.msra.mxu0 0.0
    %2091 = vmatprep.subr.mxu0 0.0
    %2092 = vmatpush1.msra.mxu0 0.0
    %2093 = vmatprep.subr.mxu0 0.0
    %2094 = vmatpush1.msra.mxu0 0.0
    %2095 = vmatprep.subr.mxu0 0.0
    %2096 = vmatpush1.msra.mxu0 0.0
    %2097 = vmatprep.subr.mxu0 0.0
    %2098 = vmatpush1.msra.mxu0 0.0
    %2099 = vmatprep.subr.mxu0 0.0
    %2100 = vmatpush1.msra.mxu0 0.0
    %2101 = vmatprep.subr.mxu0 0.0
    %2102 = vmatpush1.msra.mxu0 0.0
    %2103 = vmatprep.subr.mxu0 0.0
    %2104 = vmatpush1.msra.mxu0 0.0
    %2105 = vmatprep.subr.mxu0 0.0
    %2106 = vmatpush1.msra.mxu0 0.0
    %2107 = vmatprep.subr.mxu0 0.0
    %2108 = vmatpush1.msra.mxu0 0.0
    %2109 = vmatprep.subr.mxu0 0.0
    %2110 = vmatpush1.msra.mxu0 0.0
    %2111 = vmatprep.subr.mxu0 0.0
    %2112 = vmatpush1.msra.mxu0 0.0
    %2113 = vmatprep.subr.mxu0 0.0
    %2114 = vmatpush1.msra.mxu0 0.0
    %2115 = vmatprep.subr.mxu0 0.0
    %2116 = vmatpush1.msra.mxu0 0.0
    %2117 = vmatprep.subr.mxu0 0.0
    %2118 = vmatpush1.msra.mxu0 0.0
    %2119 = vmatprep.subr.mxu0 0.0
    %2120 = vmatpush1.msra.mxu0 0.0
    %2121 = vmatprep.subr.mxu0 0.0
    %2122 = vmatpush1.msra.mxu0 0.0
    %2123 = vmatprep.subr.mxu0 0.0
    %2124 = vmatpush1.msra.mxu0 0.0
    %2125 = vmatprep.subr.mxu0 0.0
    %2126 = vmatpush1.msra.mxu0 0.0
    %2127 = vmatprep.subr.mxu0 0.0
    %2128 = vmatpush1.msra.mxu0 0.0
    %2129 = vmatprep.subr.mxu0 0.0
    %2130 = vmatpush1.msra.mxu0 0.0
    %2131 = vmatprep.subr.mxu0 0.0
    %2132 = vmatpush1.msra.mxu0 0.0
    %2133 = vmatprep.subr.mxu0 0.0
    %2134 = vmatpush1.msra.mxu0 0.0
    %2135 = vmatprep.subr.mxu0 0.0
    %2136 = vmatpush1.msra.mxu0 0.0
    %2137 = vmatprep.subr.mxu0 0.0
    %2138 = vmatpush1.msra.mxu0 0.0
    %2139 = vmatprep.subr.mxu0 0.0
    %2140 = vmatpush1.msra.mxu0 0.0
    %2141 = vmatprep.subr.mxu0 0.0
    %2142 = vmatpush1.msra.mxu0 0.0
    %2143 = vmatprep.subr.mxu0 0.0
    %2144 = vmatpush1.msra.mxu0 0.0
    %2145 = vmatprep.subr.mxu0 0.0
    %2146 = vmatpush1.msra.mxu0 0.0
    %2147 = vmatprep.subr.mxu0 0.0
    %2148 = vmatpush1.msra.mxu0 0.0
    %2149 = vmatprep.mubr.f32.mxu0 0.0
    %2150 = vmatmul.mubr.f32.gmra.mrb[0].mxu0 %v2083
    %v2151 = vpop.f32.mrb[0].mxu0
    %v2152 = vadd.f32 %v2076, %v2151
    %v2153 = vpop.f32.mrb[0].mxu0
    %2154 = vdwg.mxu0
    %v2155 = vld [vmem:[#allocation2 + $0x10] sm:$0x1]
    %v2156 = vld [vmem:[#allocation2 + $0x50] sm:$0x1]
    %s2157 = scalar_lea.vmem %s3, 256
    %v2158 = vld [vmem:[%s2157] sm:$0xff]
    %v2159 = vld [vmem:[%s2157 + $0x8] sm:$0xff]
    %v2162 = vrot.slane %v2156, 7
    %v2163 = vsel %vm906, %v2162, %v2155
    %v2164 = vsel %vm812, %v2163, 0
    %2166 = vmatprep.subr.mxu0 0.0
    %2167 = vmatpush1.msra.mxu0 %v2158
    %2168 = vmatprep.subr.mxu0 0.0
    %2169 = vmatpush1.msra.mxu0 %v2159
    %2170 = vmatprep.subr.mxu0 0.0
    %2171 = vmatpush1.msra.mxu0 0.0
    %2172 = vmatprep.subr.mxu0 0.0
    %2173 = vmatpush1.msra.mxu0 0.0
    %2174 = vmatprep.subr.mxu0 0.0
    %2175 = vmatpush1.msra.mxu0 0.0
    %2176 = vmatprep.subr.mxu0 0.0
    %2177 = vmatpush1.msra.mxu0 0.0
    %2178 = vmatprep.subr.mxu0 0.0
    %2179 = vmatpush1.msra.mxu0 0.0
    %2180 = vmatprep.subr.mxu0 0.0
    %2181 = vmatpush1.msra.mxu0 0.0
    %2182 = vmatprep.subr.mxu0 0.0
    %2183 = vmatpush1.msra.mxu0 0.0
    %2184 = vmatprep.subr.mxu0 0.0
    %2185 = vmatpush1.msra.mxu0 0.0
    %2186 = vmatprep.subr.mxu0 0.0
    %2187 = vmatpush1.msra.mxu0 0.0
    %2188 = vmatprep.subr.mxu0 0.0
    %2189 = vmatpush1.msra.mxu0 0.0
    %2190 = vmatprep.subr.mxu0 0.0
    %2191 = vmatpush1.msra.mxu0 0.0
    %2192 = vmatprep.subr.mxu0 0.0
    %2193 = vmatpush1.msra.mxu0 0.0
    %2194 = vmatprep.subr.mxu0 0.0
    %2195 = vmatpush1.msra.mxu0 0.0
    %2196 = vmatprep.subr.mxu0 0.0
    %2197 = vmatpush1.msra.mxu0 0.0
    %2198 = vmatprep.subr.mxu0 0.0
    %2199 = vmatpush1.msra.mxu0 0.0
    %2200 = vmatprep.subr.mxu0 0.0
    %2201 = vmatpush1.msra.mxu0 0.0
    %2202 = vmatprep.subr.mxu0 0.0
    %2203 = vmatpush1.msra.mxu0 0.0
    %2204 = vmatprep.subr.mxu0 0.0
    %2205 = vmatpush1.msra.mxu0 0.0
    %2206 = vmatprep.subr.mxu0 0.0
    %2207 = vmatpush1.msra.mxu0 0.0
    %2208 = vmatprep.subr.mxu0 0.0
    %2209 = vmatpush1.msra.mxu0 0.0
    %2210 = vmatprep.subr.mxu0 0.0
    %2211 = vmatpush1.msra.mxu0 0.0
    %2212 = vmatprep.subr.mxu0 0.0
    %2213 = vmatpush1.msra.mxu0 0.0
    %2214 = vmatprep.subr.mxu0 0.0
    %2215 = vmatpush1.msra.mxu0 0.0
    %2216 = vmatprep.subr.mxu0 0.0
    %2217 = vmatpush1.msra.mxu0 0.0
    %2218 = vmatprep.subr.mxu0 0.0
    %2219 = vmatpush1.msra.mxu0 0.0
    %2220 = vmatprep.subr.mxu0 0.0
    %2221 = vmatpush1.msra.mxu0 0.0
    %2222 = vmatprep.subr.mxu0 0.0
    %2223 = vmatpush1.msra.mxu0 0.0
    %2224 = vmatprep.subr.mxu0 0.0
    %2225 = vmatpush1.msra.mxu0 0.0
    %2226 = vmatprep.subr.mxu0 0.0
    %2227 = vmatpush1.msra.mxu0 0.0
    %2228 = vmatprep.subr.mxu0 0.0
    %2229 = vmatpush1.msra.mxu0 0.0
    %2230 = vmatprep.mubr.f32.mxu0 0.0
    %2231 = vmatmul.mubr.f32.gmra.mrb[0].mxu0 %v2164
    %v2232 = vpop.f32.mrb[0].mxu0
    %v2233 = vadd.f32 0.0, %v2232
    %v2234 = vpop.f32.mrb[0].mxu0
    %2235 = vdwg.mxu0
    %v2236 = vadd.f32 %v1053, %v2233
    %v2237 = vld [vmem:[#allocation2 + $0x11] sm:$0x1]
    %v2238 = vld [vmem:[#allocation2 + $0x51] sm:$0x1]
    %s2239 = scalar_lea.vmem %s3, 272
    %v2240 = vld [vmem:[%s2239] sm:$0xff]
    %v2241 = vld [vmem:[%s2239 + $0x8] sm:$0xff]
    %v2244 = vrot.slane %v2238, 7
    %v2245 = vsel %vm906, %v2244, %v2237
    %v2246 = vsel %vm812, %v2245, 0
    %2248 = vmatprep.subr.mxu0 0.0
    %2249 = vmatpush1.msra.mxu0 %v2240
    %2250 = vmatprep.subr.mxu0 0.0
    %2251 = vmatpush1.msra.mxu0 %v2241
    %2252 = vmatprep.subr.mxu0 0.0
    %2253 = vmatpush1.msra.mxu0 0.0
    %2254 = vmatprep.subr.mxu0 0.0
    %2255 = vmatpush1.msra.mxu0 0.0
    %2256 = vmatprep.subr.mxu0 0.0
    %2257 = vmatpush1.msra.mxu0 0.0
    %2258 = vmatprep.subr.mxu0 0.0
    %2259 = vmatpush1.msra.mxu0 0.0
    %2260 = vmatprep.subr.mxu0 0.0
    %2261 = vmatpush1.msra.mxu0 0.0
    %2262 = vmatprep.subr.mxu0 0.0
    %2263 = vmatpush1.msra.mxu0 0.0
    %2264 = vmatprep.subr.mxu0 0.0
    %2265 = vmatpush1.msra.mxu0 0.0
    %2266 = vmatprep.subr.mxu0 0.0
    %2267 = vmatpush1.msra.mxu0 0.0
    %2268 = vmatprep.subr.mxu0 0.0
    %2269 = vmatpush1.msra.mxu0 0.0
    %2270 = vmatprep.subr.mxu0 0.0
    %2271 = vmatpush1.msra.mxu0 0.0
    %2272 = vmatprep.subr.mxu0 0.0
    %2273 = vmatpush1.msra.mxu0 0.0
    %2274 = vmatprep.subr.mxu0 0.0
    %2275 = vmatpush1.msra.mxu0 0.0
    %2276 = vmatprep.subr.mxu0 0.0
    %2277 = vmatpush1.msra.mxu0 0.0
    %2278 = vmatprep.subr.mxu0 0.0
    %2279 = vmatpush1.msra.mxu0 0.0
    %2280 = vmatprep.subr.mxu0 0.0
    %2281 = vmatpush1.msra.mxu0 0.0
    %2282 = vmatprep.subr.mxu0 0.0
    %2283 = vmatpush1.msra.mxu0 0.0
    %2284 = vmatprep.subr.mxu0 0.0
    %2285 = vmatpush1.msra.mxu0 0.0
    %2286 = vmatprep.subr.mxu0 0.0
    %2287 = vmatpush1.msra.mxu0 0.0
    %2288 = vmatprep.subr.mxu0 0.0
    %2289 = vmatpush1.msra.mxu0 0.0
    %2290 = vmatprep.subr.mxu0 0.0
    %2291 = vmatpush1.msra.mxu0 0.0
    %2292 = vmatprep.subr.mxu0 0.0
    %2293 = vmatpush1.msra.mxu0 0.0
    %2294 = vmatprep.subr.mxu0 0.0
    %2295 = vmatpush1.msra.mxu0 0.0
    %2296 = vmatprep.subr.mxu0 0.0
    %2297 = vmatpush1.msra.mxu0 0.0
    %2298 = vmatprep.subr.mxu0 0.0
    %2299 = vmatpush1.msra.mxu0 0.0
    %2300 = vmatprep.subr.mxu0 0.0
    %2301 = vmatpush1.msra.mxu0 0.0
    %2302 = vmatprep.subr.mxu0 0.0
    %2303 = vmatpush1.msra.mxu0 0.0
    %2304 = vmatprep.subr.mxu0 0.0
    %2305 = vmatpush1.msra.mxu0 0.0
    %2306 = vmatprep.subr.mxu0 0.0
    %2307 = vmatpush1.msra.mxu0 0.0
    %2308 = vmatprep.subr.mxu0 0.0
    %2309 = vmatpush1.msra.mxu0 0.0
    %2310 = vmatprep.subr.mxu0 0.0
    %2311 = vmatpush1.msra.mxu0 0.0
    %2312 = vmatprep.mubr.f32.mxu0 0.0
    %2313 = vmatmul.mubr.f32.gmra.mrb[0].mxu0 %v2246
    %v2314 = vpop.f32.mrb[0].mxu0
    %v2315 = vadd.f32 0.0, %v2314
    %v2316 = vpop.f32.mrb[0].mxu0
    %2317 = vdwg.mxu0
    %v2318 = vadd.f32 %v1210, %v2315
    %v2319 = vld [vmem:[#allocation2 + $0x12] sm:$0x1]
    %v2320 = vld [vmem:[#allocation2 + $0x52] sm:$0x1]
    %s2321 = scalar_lea.vmem %s3, 288
    %v2322 = vld [vmem:[%s2321] sm:$0xff]
    %v2323 = vld [vmem:[%s2321 + $0x8] sm:$0xff]
    %v2326 = vrot.slane %v2320, 7
    %v2327 = vsel %vm906, %v2326, %v2319
    %v2328 = vsel %vm812, %v2327, 0
    %2330 = vmatprep.subr.mxu0 0.0
    %2331 = vmatpush1.msra.mxu0 %v2322
    %2332 = vmatprep.subr.mxu0 0.0
    %2333 = vmatpush1.msra.mxu0 %v2323
    %2334 = vmatprep.subr.mxu0 0.0
    %2335 = vmatpush1.msra.mxu0 0.0
    %2336 = vmatprep.subr.mxu0 0.0
    %2337 = vmatpush1.msra.mxu0 0.0
    %2338 = vmatprep.subr.mxu0 0.0
    %2339 = vmatpush1.msra.mxu0 0.0
    %2340 = vmatprep.subr.mxu0 0.0
    %2341 = vmatpush1.msra.mxu0 0.0
    %2342 = vmatprep.subr.mxu0 0.0
    %2343 = vmatpush1.msra.mxu0 0.0
    %2344 = vmatprep.subr.mxu0 0.0
    %2345 = vmatpush1.msra.mxu0 0.0
    %2346 = vmatprep.subr.mxu0 0.0
    %2347 = vmatpush1.msra.mxu0 0.0
    %2348 = vmatprep.subr.mxu0 0.0
    %2349 = vmatpush1.msra.mxu0 0.0
    %2350 = vmatprep.subr.mxu0 0.0
    %2351 = vmatpush1.msra.mxu0 0.0
    %2352 = vmatprep.subr.mxu0 0.0
    %2353 = vmatpush1.msra.mxu0 0.0
    %2354 = vmatprep.subr.mxu0 0.0
    %2355 = vmatpush1.msra.mxu0 0.0
    %2356 = vmatprep.subr.mxu0 0.0
    %2357 = vmatpush1.msra.mxu0 0.0
    %2358 = vmatprep.subr.mxu0 0.0
    %2359 = vmatpush1.msra.mxu0 0.0
    %2360 = vmatprep.subr.mxu0 0.0
    %2361 = vmatpush1.msra.mxu0 0.0
    %2362 = vmatprep.subr.mxu0 0.0
    %2363 = vmatpush1.msra.mxu0 0.0
    %2364 = vmatprep.subr.mxu0 0.0
    %2365 = vmatpush1.msra.mxu0 0.0
    %2366 = vmatprep.subr.mxu0 0.0
    %2367 = vmatpush1.msra.mxu0 0.0
    %2368 = vmatprep.subr.mxu0 0.0
    %2369 = vmatpush1.msra.mxu0 0.0
    %2370 = vmatprep.subr.mxu0 0.0
    %2371 = vmatpush1.msra.mxu0 0.0
    %2372 = vmatprep.subr.mxu0 0.0
    %2373 = vmatpush1.msra.mxu0 0.0
    %2374 = vmatprep.subr.mxu0 0.0
    %2375 = vmatpush1.msra.mxu0 0.0
    %2376 = vmatprep.subr.mxu0 0.0
    %2377 = vmatpush1.msra.mxu0 0.0
    %2378 = vmatprep.subr.mxu0 0.0
    %2379 = vmatpush1.msra.mxu0 0.0
    %2380 = vmatprep.subr.mxu0 0.0
    %2381 = vmatpush1.msra.mxu0 0.0
    %2382 = vmatprep.subr.mxu0 0.0
    %2383 = vmatpush1.msra.mxu0 0.0
    %2384 = vmatprep.subr.mxu0 0.0
    %2385 = vmatpush1.msra.mxu0 0.0
    %2386 = vmatprep.subr.mxu0 0.0
    %2387 = vmatpush1.msra.mxu0 0.0
    %2388 = vmatprep.subr.mxu0 0.0
    %2389 = vmatpush1.msra.mxu0 0.0
    %2390 = vmatprep.subr.mxu0 0.0
    %2391 = vmatpush1.msra.mxu0 0.0
    %2392 = vmatprep.subr.mxu0 0.0
    %2393 = vmatpush1.msra.mxu0 0.0
    %2394 = vmatprep.mubr.f32.mxu0 0.0
    %2395 = vmatmul.mubr.f32.gmra.mrb[0].mxu0 %v2328
    %v2396 = vpop.f32.mrb[0].mxu0
    %v2397 = vadd.f32 0.0, %v2396
    %v2398 = vpop.f32.mrb[0].mxu0
    %2399 = vdwg.mxu0
    %v2400 = vadd.f32 %v1367, %v2397
    %v2401 = vld [vmem:[#allocation2 + $0x13] sm:$0x1]
    %v2402 = vld [vmem:[#allocation2 + $0x53] sm:$0x1]
    %s2403 = scalar_lea.vmem %s3, 304
    %v2404 = vld [vmem:[%s2403] sm:$0xff]
    %v2405 = vld [vmem:[%s2403 + $0x8] sm:$0xff]
    %v2408 = vrot.slane %v2402, 7
    %v2409 = vsel %vm906, %v2408, %v2401
    %v2410 = vsel %vm812, %v2409, 0
    %2412 = vmatprep.subr.mxu0 0.0
    %2413 = vmatpush1.msra.mxu0 %v2404
    %2414 = vmatprep.subr.mxu0 0.0
    %2415 = vmatpush1.msra.mxu0 %v2405
    %2416 = vmatprep.subr.mxu0 0.0
    %2417 = vmatpush1.msra.mxu0 0.0
    %2418 = vmatprep.subr.mxu0 0.0
    %2419 = vmatpush1.msra.mxu0 0.0
    %2420 = vmatprep.subr.mxu0 0.0
    %2421 = vmatpush1.msra.mxu0 0.0
    %2422 = vmatprep.subr.mxu0 0.0
    %2423 = vmatpush1.msra.mxu0 0.0
    %2424 = vmatprep.subr.mxu0 0.0
    %2425 = vmatpush1.msra.mxu0 0.0
    %2426 = vmatprep.subr.mxu0 0.0
    %2427 = vmatpush1.msra.mxu0 0.0
    %2428 = vmatprep.subr.mxu0 0.0
    %2429 = vmatpush1.msra.mxu0 0.0
    %2430 = vmatprep.subr.mxu0 0.0
    %2431 = vmatpush1.msra.mxu0 0.0
    %2432 = vmatprep.subr.mxu0 0.0
    %2433 = vmatpush1.msra.mxu0 0.0
    %2434 = vmatprep.subr.mxu0 0.0
    %2435 = vmatpush1.msra.mxu0 0.0
    %2436 = vmatprep.subr.mxu0 0.0
    %2437 = vmatpush1.msra.mxu0 0.0
    %2438 = vmatprep.subr.mxu0 0.0
    %2439 = vmatpush1.msra.mxu0 0.0
    %2440 = vmatprep.subr.mxu0 0.0
    %2441 = vmatpush1.msra.mxu0 0.0
    %2442 = vmatprep.subr.mxu0 0.0
    %2443 = vmatpush1.msra.mxu0 0.0
    %2444 = vmatprep.subr.mxu0 0.0
    %2445 = vmatpush1.msra.mxu0 0.0
    %2446 = vmatprep.subr.mxu0 0.0
    %2447 = vmatpush1.msra.mxu0 0.0
    %2448 = vmatprep.subr.mxu0 0.0
    %2449 = vmatpush1.msra.mxu0 0.0
    %2450 = vmatprep.subr.mxu0 0.0
    %2451 = vmatpush1.msra.mxu0 0.0
    %2452 = vmatprep.subr.mxu0 0.0
    %2453 = vmatpush1.msra.mxu0 0.0
    %2454 = vmatprep.subr.mxu0 0.0
    %2455 = vmatpush1.msra.mxu0 0.0
    %2456 = vmatprep.subr.mxu0 0.0
    %2457 = vmatpush1.msra.mxu0 0.0
    %2458 = vmatprep.subr.mxu0 0.0
    %2459 = vmatpush1.msra.mxu0 0.0
    %2460 = vmatprep.subr.mxu0 0.0
    %2461 = vmatpush1.msra.mxu0 0.0
    %2462 = vmatprep.subr.mxu0 0.0
    %2463 = vmatpush1.msra.mxu0 0.0
    %2464 = vmatprep.subr.mxu0 0.0
    %2465 = vmatpush1.msra.mxu0 0.0
    %2466 = vmatprep.subr.mxu0 0.0
    %2467 = vmatpush1.msra.mxu0 0.0
    %2468 = vmatprep.subr.mxu0 0.0
    %2469 = vmatpush1.msra.mxu0 0.0
    %2470 = vmatprep.subr.mxu0 0.0
    %2471 = vmatpush1.msra.mxu0 0.0
    %2472 = vmatprep.subr.mxu0 0.0
    %2473 = vmatpush1.msra.mxu0 0.0
    %2474 = vmatprep.subr.mxu0 0.0
    %2475 = vmatpush1.msra.mxu0 0.0
    %2476 = vmatprep.mubr.f32.mxu0 0.0
    %2477 = vmatmul.mubr.f32.gmra.mrb[0].mxu0 %v2410
    %v2478 = vpop.f32.mrb[0].mxu0
    %v2479 = vadd.f32 0.0, %v2478
    %v2480 = vpop.f32.mrb[0].mxu0
    %2481 = vdwg.mxu0
    %v2482 = vadd.f32 %v1524, %v2479
    %v2483 = vld [vmem:[#allocation2 + $0x14] sm:$0x1]
    %v2484 = vld [vmem:[#allocation2 + $0x54] sm:$0x1]
    %s2485 = scalar_lea.vmem %s3, 320
    %v2486 = vld [vmem:[%s2485] sm:$0xff]
    %v2487 = vld [vmem:[%s2485 + $0x8] sm:$0xff]
    %v2490 = vrot.slane %v2484, 7
    %v2491 = vsel %vm906, %v2490, %v2483
    %v2492 = vsel %vm812, %v2491, 0
    %2494 = vmatprep.subr.mxu0 0.0
    %2495 = vmatpush1.msra.mxu0 %v2486
    %2496 = vmatprep.subr.mxu0 0.0
    %2497 = vmatpush1.msra.mxu0 %v2487
    %2498 = vmatprep.subr.mxu0 0.0
    %2499 = vmatpush1.msra.mxu0 0.0
    %2500 = vmatprep.subr.mxu0 0.0
    %2501 = vmatpush1.msra.mxu0 0.0
    %2502 = vmatprep.subr.mxu0 0.0
    %2503 = vmatpush1.msra.mxu0 0.0
    %2504 = vmatprep.subr.mxu0 0.0
    %2505 = vmatpush1.msra.mxu0 0.0
    %2506 = vmatprep.subr.mxu0 0.0
    %2507 = vmatpush1.msra.mxu0 0.0
    %2508 = vmatprep.subr.mxu0 0.0
    %2509 = vmatpush1.msra.mxu0 0.0
    %2510 = vmatprep.subr.mxu0 0.0
    %2511 = vmatpush1.msra.mxu0 0.0
    %2512 = vmatprep.subr.mxu0 0.0
    %2513 = vmatpush1.msra.mxu0 0.0
    %2514 = vmatprep.subr.mxu0 0.0
    %2515 = vmatpush1.msra.mxu0 0.0
    %2516 = vmatprep.subr.mxu0 0.0
    %2517 = vmatpush1.msra.mxu0 0.0
    %2518 = vmatprep.subr.mxu0 0.0
    %2519 = vmatpush1.msra.mxu0 0.0
    %2520 = vmatprep.subr.mxu0 0.0
    %2521 = vmatpush1.msra.mxu0 0.0
    %2522 = vmatprep.subr.mxu0 0.0
    %2523 = vmatpush1.msra.mxu0 0.0
    %2524 = vmatprep.subr.mxu0 0.0
    %2525 = vmatpush1.msra.mxu0 0.0
    %2526 = vmatprep.subr.mxu0 0.0
    %2527 = vmatpush1.msra.mxu0 0.0
    %2528 = vmatprep.subr.mxu0 0.0
    %2529 = vmatpush1.msra.mxu0 0.0
    %2530 = vmatprep.subr.mxu0 0.0
    %2531 = vmatpush1.msra.mxu0 0.0
    %2532 = vmatprep.subr.mxu0 0.0
    %2533 = vmatpush1.msra.mxu0 0.0
    %2534 = vmatprep.subr.mxu0 0.0
    %2535 = vmatpush1.msra.mxu0 0.0
    %2536 = vmatprep.subr.mxu0 0.0
    %2537 = vmatpush1.msra.mxu0 0.0
    %2538 = vmatprep.subr.mxu0 0.0
    %2539 = vmatpush1.msra.mxu0 0.0
    %2540 = vmatprep.subr.mxu0 0.0
    %2541 = vmatpush1.msra.mxu0 0.0
    %2542 = vmatprep.subr.mxu0 0.0
    %2543 = vmatpush1.msra.mxu0 0.0
    %2544 = vmatprep.subr.mxu0 0.0
    %2545 = vmatpush1.msra.mxu0 0.0
    %2546 = vmatprep.subr.mxu0 0.0
    %2547 = vmatpush1.msra.mxu0 0.0
    %2548 = vmatprep.subr.mxu0 0.0
    %2549 = vmatpush1.msra.mxu0 0.0
    %2550 = vmatprep.subr.mxu0 0.0
    %2551 = vmatpush1.msra.mxu0 0.0
    %2552 = vmatprep.subr.mxu0 0.0
    %2553 = vmatpush1.msra.mxu0 0.0
    %2554 = vmatprep.subr.mxu0 0.0
    %2555 = vmatpush1.msra.mxu0 0.0
    %2556 = vmatprep.subr.mxu0 0.0
    %2557 = vmatpush1.msra.mxu0 0.0
    %2558 = vmatprep.mubr.f32.mxu0 0.0
    %2559 = vmatmul.mubr.f32.gmra.mrb[0].mxu0 %v2492
    %v2560 = vpop.f32.mrb[0].mxu0
    %v2561 = vadd.f32 0.0, %v2560
    %v2562 = vpop.f32.mrb[0].mxu0
    %2563 = vdwg.mxu0
    %v2564 = vadd.f32 %v1681, %v2561
    %v2565 = vld [vmem:[#allocation2 + $0x15] sm:$0x1]
    %v2566 = vld [vmem:[#allocation2 + $0x55] sm:$0x1]
    %s2567 = scalar_lea.vmem %s3, 336
    %v2568 = vld [vmem:[%s2567] sm:$0xff]
    %v2569 = vld [vmem:[%s2567 + $0x8] sm:$0xff]
    %v2572 = vrot.slane %v2566, 7
    %v2573 = vsel %vm906, %v2572, %v2565
    %v2574 = vsel %vm812, %v2573, 0
    %2576 = vmatprep.subr.mxu0 0.0
    %2577 = vmatpush1.msra.mxu0 %v2568
    %2578 = vmatprep.subr.mxu0 0.0
    %2579 = vmatpush1.msra.mxu0 %v2569
    %2580 = vmatprep.subr.mxu0 0.0
    %2581 = vmatpush1.msra.mxu0 0.0
    %2582 = vmatprep.subr.mxu0 0.0
    %2583 = vmatpush1.msra.mxu0 0.0
    %2584 = vmatprep.subr.mxu0 0.0
    %2585 = vmatpush1.msra.mxu0 0.0
    %2586 = vmatprep.subr.mxu0 0.0
    %2587 = vmatpush1.msra.mxu0 0.0
    %2588 = vmatprep.subr.mxu0 0.0
    %2589 = vmatpush1.msra.mxu0 0.0
    %2590 = vmatprep.subr.mxu0 0.0
    %2591 = vmatpush1.msra.mxu0 0.0
    %2592 = vmatprep.subr.mxu0 0.0
    %2593 = vmatpush1.msra.mxu0 0.0
    %2594 = vmatprep.subr.mxu0 0.0
    %2595 = vmatpush1.msra.mxu0 0.0
    %2596 = vmatprep.subr.mxu0 0.0
    %2597 = vmatpush1.msra.mxu0 0.0
    %2598 = vmatprep.subr.mxu0 0.0
    %2599 = vmatpush1.msra.mxu0 0.0
    %2600 = vmatprep.subr.mxu0 0.0
    %2601 = vmatpush1.msra.mxu0 0.0
    %2602 = vmatprep.subr.mxu0 0.0
    %2603 = vmatpush1.msra.mxu0 0.0
    %2604 = vmatprep.subr.mxu0 0.0
    %2605 = vmatpush1.msra.mxu0 0.0
    %2606 = vmatprep.subr.mxu0 0.0
    %2607 = vmatpush1.msra.mxu0 0.0
    %2608 = vmatprep.subr.mxu0 0.0
    %2609 = vmatpush1.msra.mxu0 0.0
    %2610 = vmatprep.subr.mxu0 0.0
    %2611 = vmatpush1.msra.mxu0 0.0
    %2612 = vmatprep.subr.mxu0 0.0
    %2613 = vmatpush1.msra.mxu0 0.0
    %2614 = vmatprep.subr.mxu0 0.0
    %2615 = vmatpush1.msra.mxu0 0.0
    %2616 = vmatprep.subr.mxu0 0.0
    %2617 = vmatpush1.msra.mxu0 0.0
    %2618 = vmatprep.subr.mxu0 0.0
    %2619 = vmatpush1.msra.mxu0 0.0
    %2620 = vmatprep.subr.mxu0 0.0
    %2621 = vmatpush1.msra.mxu0 0.0
    %2622 = vmatprep.subr.mxu0 0.0
    %2623 = vmatpush1.msra.mxu0 0.0
    %2624 = vmatprep.subr.mxu0 0.0
    %2625 = vmatpush1.msra.mxu0 0.0
    %2626 = vmatprep.subr.mxu0 0.0
    %2627 = vmatpush1.msra.mxu0 0.0
    %2628 = vmatprep.subr.mxu0 0.0
    %2629 = vmatpush1.msra.mxu0 0.0
    %2630 = vmatprep.subr.mxu0 0.0
    %2631 = vmatpush1.msra.mxu0 0.0
    %2632 = vmatprep.subr.mxu0 0.0
    %2633 = vmatpush1.msra.mxu0 0.0
    %2634 = vmatprep.subr.mxu0 0.0
    %2635 = vmatpush1.msra.mxu0 0.0
    %2636 = vmatprep.subr.mxu0 0.0
    %2637 = vmatpush1.msra.mxu0 0.0
    %2638 = vmatprep.subr.mxu0 0.0
    %2639 = vmatpush1.msra.mxu0 0.0
    %2640 = vmatprep.mubr.f32.mxu0 0.0
    %2641 = vmatmul.mubr.f32.gmra.mrb[0].mxu0 %v2574
    %v2642 = vpop.f32.mrb[0].mxu0
    %v2643 = vadd.f32 0.0, %v2642
    %v2644 = vpop.f32.mrb[0].mxu0
    %2645 = vdwg.mxu0
    %v2646 = vadd.f32 %v1838, %v2643
    %v2647 = vld [vmem:[#allocation2 + $0x16] sm:$0x1]
    %v2648 = vld [vmem:[#allocation2 + $0x56] sm:$0x1]
    %s2649 = scalar_lea.vmem %s3, 352
    %v2650 = vld [vmem:[%s2649] sm:$0xff]
    %v2651 = vld [vmem:[%s2649 + $0x8] sm:$0xff]
    %v2654 = vrot.slane %v2648, 7
    %v2655 = vsel %vm906, %v2654, %v2647
    %v2656 = vsel %vm812, %v2655, 0
    %2658 = vmatprep.subr.mxu0 0.0
    %2659 = vmatpush1.msra.mxu0 %v2650
    %2660 = vmatprep.subr.mxu0 0.0
    %2661 = vmatpush1.msra.mxu0 %v2651
    %2662 = vmatprep.subr.mxu0 0.0
    %2663 = vmatpush1.msra.mxu0 0.0
    %2664 = vmatprep.subr.mxu0 0.0
    %2665 = vmatpush1.msra.mxu0 0.0
    %2666 = vmatprep.subr.mxu0 0.0
    %2667 = vmatpush1.msra.mxu0 0.0
    %2668 = vmatprep.subr.mxu0 0.0
    %2669 = vmatpush1.msra.mxu0 0.0
    %2670 = vmatprep.subr.mxu0 0.0
    %2671 = vmatpush1.msra.mxu0 0.0
    %2672 = vmatprep.subr.mxu0 0.0
    %2673 = vmatpush1.msra.mxu0 0.0
    %2674 = vmatprep.subr.mxu0 0.0
    %2675 = vmatpush1.msra.mxu0 0.0
    %2676 = vmatprep.subr.mxu0 0.0
    %2677 = vmatpush1.msra.mxu0 0.0
    %2678 = vmatprep.subr.mxu0 0.0
    %2679 = vmatpush1.msra.mxu0 0.0
    %2680 = vmatprep.subr.mxu0 0.0
    %2681 = vmatpush1.msra.mxu0 0.0
    %2682 = vmatprep.subr.mxu0 0.0
    %2683 = vmatpush1.msra.mxu0 0.0
    %2684 = vmatprep.subr.mxu0 0.0
    %2685 = vmatpush1.msra.mxu0 0.0
    %2686 = vmatprep.subr.mxu0 0.0
    %2687 = vmatpush1.msra.mxu0 0.0
    %2688 = vmatprep.subr.mxu0 0.0
    %2689 = vmatpush1.msra.mxu0 0.0
    %2690 = vmatprep.subr.mxu0 0.0
    %2691 = vmatpush1.msra.mxu0 0.0
    %2692 = vmatprep.subr.mxu0 0.0
    %2693 = vmatpush1.msra.mxu0 0.0
    %2694 = vmatprep.subr.mxu0 0.0
    %2695 = vmatpush1.msra.mxu0 0.0
    %2696 = vmatprep.subr.mxu0 0.0
    %2697 = vmatpush1.msra.mxu0 0.0
    %2698 = vmatprep.subr.mxu0 0.0
    %2699 = vmatpush1.msra.mxu0 0.0
    %2700 = vmatprep.subr.mxu0 0.0
    %2701 = vmatpush1.msra.mxu0 0.0
    %2702 = vmatprep.subr.mxu0 0.0
    %2703 = vmatpush1.msra.mxu0 0.0
    %2704 = vmatprep.subr.mxu0 0.0
    %2705 = vmatpush1.msra.mxu0 0.0
    %2706 = vmatprep.subr.mxu0 0.0
    %2707 = vmatpush1.msra.mxu0 0.0
    %2708 = vmatprep.subr.mxu0 0.0
    %2709 = vmatpush1.msra.mxu0 0.0
    %2710 = vmatprep.subr.mxu0 0.0
    %2711 = vmatpush1.msra.mxu0 0.0
    %2712 = vmatprep.subr.mxu0 0.0
    %2713 = vmatpush1.msra.mxu0 0.0
    %2714 = vmatprep.subr.mxu0 0.0
    %2715 = vmatpush1.msra.mxu0 0.0
    %2716 = vmatprep.subr.mxu0 0.0
    %2717 = vmatpush1.msra.mxu0 0.0
    %2718 = vmatprep.subr.mxu0 0.0
    %2719 = vmatpush1.msra.mxu0 0.0
    %2720 = vmatprep.subr.mxu0 0.0
    %2721 = vmatpush1.msra.mxu0 0.0
    %2722 = vmatprep.mubr.f32.mxu0 0.0
    %2723 = vmatmul.mubr.f32.gmra.mrb[0].mxu0 %v2656
    %v2724 = vpop.f32.mrb[0].mxu0
    %v2725 = vadd.f32 0.0, %v2724
    %v2726 = vpop.f32.mrb[0].mxu0
    %2727 = vdwg.mxu0
    %v2728 = vadd.f32 %v1995, %v2725
    %v2729 = vld [vmem:[#allocation2 + $0x17] sm:$0x1]
    %v2730 = vld [vmem:[#allocation2 + $0x57] sm:$0x1]
    %s2731 = scalar_lea.vmem %s3, 368
    %v2732 = vld [vmem:[%s2731] sm:$0xff]
    %v2733 = vld [vmem:[%s2731 + $0x8] sm:$0xff]
    %v2736 = vrot.slane %v2730, 7
    %v2737 = vsel %vm906, %v2736, %v2729
    %v2738 = vsel %vm812, %v2737, 0
    %2740 = vmatprep.subr.mxu0 0.0
    %2741 = vmatpush1.msra.mxu0 %v2732
    %2742 = vmatprep.subr.mxu0 0.0
    %2743 = vmatpush1.msra.mxu0 %v2733
    %2744 = vmatprep.subr.mxu0 0.0
    %2745 = vmatpush1.msra.mxu0 0.0
    %2746 = vmatprep.subr.mxu0 0.0
    %2747 = vmatpush1.msra.mxu0 0.0
    %2748 = vmatprep.subr.mxu0 0.0
    %2749 = vmatpush1.msra.mxu0 0.0
    %2750 = vmatprep.subr.mxu0 0.0
    %2751 = vmatpush1.msra.mxu0 0.0
    %2752 = vmatprep.subr.mxu0 0.0
    %2753 = vmatpush1.msra.mxu0 0.0
    %2754 = vmatprep.subr.mxu0 0.0
    %2755 = vmatpush1.msra.mxu0 0.0
    %2756 = vmatprep.subr.mxu0 0.0
    %2757 = vmatpush1.msra.mxu0 0.0
    %2758 = vmatprep.subr.mxu0 0.0
    %2759 = vmatpush1.msra.mxu0 0.0
    %2760 = vmatprep.subr.mxu0 0.0
    %2761 = vmatpush1.msra.mxu0 0.0
    %2762 = vmatprep.subr.mxu0 0.0
    %2763 = vmatpush1.msra.mxu0 0.0
    %2764 = vmatprep.subr.mxu0 0.0
    %2765 = vmatpush1.msra.mxu0 0.0
    %2766 = vmatprep.subr.mxu0 0.0
    %2767 = vmatpush1.msra.mxu0 0.0
    %2768 = vmatprep.subr.mxu0 0.0
    %2769 = vmatpush1.msra.mxu0 0.0
    %2770 = vmatprep.subr.mxu0 0.0
    %2771 = vmatpush1.msra.mxu0 0.0
    %2772 = vmatprep.subr.mxu0 0.0
    %2773 = vmatpush1.msra.mxu0 0.0
    %2774 = vmatprep.subr.mxu0 0.0
    %2775 = vmatpush1.msra.mxu0 0.0
    %2776 = vmatprep.subr.mxu0 0.0
    %2777 = vmatpush1.msra.mxu0 0.0
    %2778 = vmatprep.subr.mxu0 0.0
    %2779 = vmatpush1.msra.mxu0 0.0
    %2780 = vmatprep.subr.mxu0 0.0
    %2781 = vmatpush1.msra.mxu0 0.0
    %2782 = vmatprep.subr.mxu0 0.0
    %2783 = vmatpush1.msra.mxu0 0.0
    %2784 = vmatprep.subr.mxu0 0.0
    %2785 = vmatpush1.msra.mxu0 0.0
    %2786 = vmatprep.subr.mxu0 0.0
    %2787 = vmatpush1.msra.mxu0 0.0
    %2788 = vmatprep.subr.mxu0 0.0
    %2789 = vmatpush1.msra.mxu0 0.0
    %2790 = vmatprep.subr.mxu0 0.0
    %2791 = vmatpush1.msra.mxu0 0.0
    %2792 = vmatprep.subr.mxu0 0.0
    %2793 = vmatpush1.msra.mxu0 0.0
    %2794 = vmatprep.subr.mxu0 0.0
    %2795 = vmatpush1.msra.mxu0 0.0
    %2796 = vmatprep.subr.mxu0 0.0
    %2797 = vmatpush1.msra.mxu0 0.0
    %2798 = vmatprep.subr.mxu0 0.0
    %2799 = vmatpush1.msra.mxu0 0.0
    %2800 = vmatprep.subr.mxu0 0.0
    %2801 = vmatpush1.msra.mxu0 0.0
    %2802 = vmatprep.subr.mxu0 0.0
    %2803 = vmatpush1.msra.mxu0 0.0
    %2804 = vmatprep.mubr.f32.mxu0 0.0
    %2805 = vmatmul.mubr.f32.gmra.mrb[0].mxu0 %v2738
    %v2806 = vpop.f32.mrb[0].mxu0
    %v2807 = vadd.f32 0.0, %v2806
    %v2808 = vpop.f32.mrb[0].mxu0
    %2809 = vdwg.mxu0
    %v2810 = vadd.f32 %v2152, %v2807
    %v2811 = vld [vmem:[#allocation2 + $0x18] sm:$0x1]
    %v2812 = vld [vmem:[#allocation2 + $0x58] sm:$0x1]
    %s2813 = scalar_lea.vmem %s3, 384
    %v2814 = vld [vmem:[%s2813] sm:$0xff]
    %v2815 = vld [vmem:[%s2813 + $0x8] sm:$0xff]
    %v2818 = vrot.slane %v2812, 7
    %v2819 = vsel %vm906, %v2818, %v2811
    %v2820 = vsel %vm812, %v2819, 0
    %2822 = vmatprep.subr.mxu0 0.0
    %2823 = vmatpush1.msra.mxu0 %v2814
    %2824 = vmatprep.subr.mxu0 0.0
    %2825 = vmatpush1.msra.mxu0 %v2815
    %2826 = vmatprep.subr.mxu0 0.0
    %2827 = vmatpush1.msra.mxu0 0.0
    %2828 = vmatprep.subr.mxu0 0.0
    %2829 = vmatpush1.msra.mxu0 0.0
    %2830 = vmatprep.subr.mxu0 0.0
    %2831 = vmatpush1.msra.mxu0 0.0
    %2832 = vmatprep.subr.mxu0 0.0
    %2833 = vmatpush1.msra.mxu0 0.0
    %2834 = vmatprep.subr.mxu0 0.0
    %2835 = vmatpush1.msra.mxu0 0.0
    %2836 = vmatprep.subr.mxu0 0.0
    %2837 = vmatpush1.msra.mxu0 0.0
    %2838 = vmatprep.subr.mxu0 0.0
    %2839 = vmatpush1.msra.mxu0 0.0
    %2840 = vmatprep.subr.mxu0 0.0
    %2841 = vmatpush1.msra.mxu0 0.0
    %2842 = vmatprep.subr.mxu0 0.0
    %2843 = vmatpush1.msra.mxu0 0.0
    %2844 = vmatprep.subr.mxu0 0.0
    %2845 = vmatpush1.msra.mxu0 0.0
    %2846 = vmatprep.subr.mxu0 0.0
    %2847 = vmatpush1.msra.mxu0 0.0
    %2848 = vmatprep.subr.mxu0 0.0
    %2849 = vmatpush1.msra.mxu0 0.0
    %2850 = vmatprep.subr.mxu0 0.0
    %2851 = vmatpush1.msra.mxu0 0.0
    %2852 = vmatprep.subr.mxu0 0.0
    %2853 = vmatpush1.msra.mxu0 0.0
    %2854 = vmatprep.subr.mxu0 0.0
    %2855 = vmatpush1.msra.mxu0 0.0
    %2856 = vmatprep.subr.mxu0 0.0
    %2857 = vmatpush1.msra.mxu0 0.0
    %2858 = vmatprep.subr.mxu0 0.0
    %2859 = vmatpush1.msra.mxu0 0.0
    %2860 = vmatprep.subr.mxu0 0.0
    %2861 = vmatpush1.msra.mxu0 0.0
    %2862 = vmatprep.subr.mxu0 0.0
    %2863 = vmatpush1.msra.mxu0 0.0
    %2864 = vmatprep.subr.mxu0 0.0
    %2865 = vmatpush1.msra.mxu0 0.0
    %2866 = vmatprep.subr.mxu0 0.0
    %2867 = vmatpush1.msra.mxu0 0.0
    %2868 = vmatprep.subr.mxu0 0.0
    %2869 = vmatpush1.msra.mxu0 0.0
    %2870 = vmatprep.subr.mxu0 0.0
    %2871 = vmatpush1.msra.mxu0 0.0
    %2872 = vmatprep.subr.mxu0 0.0
    %2873 = vmatpush1.msra.mxu0 0.0
    %2874 = vmatprep.subr.mxu0 0.0
    %2875 = vmatpush1.msra.mxu0 0.0
    %2876 = vmatprep.subr.mxu0 0.0
    %2877 = vmatpush1.msra.mxu0 0.0
    %2878 = vmatprep.subr.mxu0 0.0
    %2879 = vmatpush1.msra.mxu0 0.0
    %2880 = vmatprep.subr.mxu0 0.0
    %2881 = vmatpush1.msra.mxu0 0.0
    %2882 = vmatprep.subr.mxu0 0.0
    %2883 = vmatpush1.msra.mxu0 0.0
    %2884 = vmatprep.subr.mxu0 0.0
    %2885 = vmatpush1.msra.mxu0 0.0
    %2886 = vmatprep.mubr.f32.mxu0 0.0
    %2887 = vmatmul.mubr.f32.gmra.mrb[0].mxu0 %v2820
    %v2888 = vpop.f32.mrb[0].mxu0
    %v2889 = vadd.f32 0.0, %v2888
    %v2890 = vpop.f32.mrb[0].mxu0
    %2891 = vdwg.mxu0
    %v2892 = vadd.f32 %v2236, %v2889
    %v2893 = vld [vmem:[#allocation2 + $0x19] sm:$0x1]
    %v2894 = vld [vmem:[#allocation2 + $0x59] sm:$0x1]
    %s2895 = scalar_lea.vmem %s3, 400
    %v2896 = vld [vmem:[%s2895] sm:$0xff]
    %v2897 = vld [vmem:[%s2895 + $0x8] sm:$0xff]
    %v2900 = vrot.slane %v2894, 7
    %v2901 = vsel %vm906, %v2900, %v2893
    %v2902 = vsel %vm812, %v2901, 0
    %2904 = vmatprep.subr.mxu0 0.0
    %2905 = vmatpush1.msra.mxu0 %v2896
    %2906 = vmatprep.subr.mxu0 0.0
    %2907 = vmatpush1.msra.mxu0 %v2897
    %2908 = vmatprep.subr.mxu0 0.0
    %2909 = vmatpush1.msra.mxu0 0.0
    %2910 = vmatprep.subr.mxu0 0.0
    %2911 = vmatpush1.msra.mxu0 0.0
    %2912 = vmatprep.subr.mxu0 0.0
    %2913 = vmatpush1.msra.mxu0 0.0
    %2914 = vmatprep.subr.mxu0 0.0
    %2915 = vmatpush1.msra.mxu0 0.0
    %2916 = vmatprep.subr.mxu0 0.0
    %2917 = vmatpush1.msra.mxu0 0.0
    %2918 = vmatprep.subr.mxu0 0.0
    %2919 = vmatpush1.msra.mxu0 0.0
    %2920 = vmatprep.subr.mxu0 0.0
    %2921 = vmatpush1.msra.mxu0 0.0
    %2922 = vmatprep.subr.mxu0 0.0
    %2923 = vmatpush1.msra.mxu0 0.0
    %2924 = vmatprep.subr.mxu0 0.0
    %2925 = vmatpush1.msra.mxu0 0.0
    %2926 = vmatprep.subr.mxu0 0.0
    %2927 = vmatpush1.msra.mxu0 0.0
    %2928 = vmatprep.subr.mxu0 0.0
    %2929 = vmatpush1.msra.mxu0 0.0
    %2930 = vmatprep.subr.mxu0 0.0
    %2931 = vmatpush1.msra.mxu0 0.0
    %2932 = vmatprep.subr.mxu0 0.0
    %2933 = vmatpush1.msra.mxu0 0.0
    %2934 = vmatprep.subr.mxu0 0.0
    %2935 = vmatpush1.msra.mxu0 0.0
    %2936 = vmatprep.subr.mxu0 0.0
    %2937 = vmatpush1.msra.mxu0 0.0
    %2938 = vmatprep.subr.mxu0 0.0
    %2939 = vmatpush1.msra.mxu0 0.0
    %2940 = vmatprep.subr.mxu0 0.0
    %2941 = vmatpush1.msra.mxu0 0.0
    %2942 = vmatprep.subr.mxu0 0.0
    %2943 = vmatpush1.msra.mxu0 0.0
    %2944 = vmatprep.subr.mxu0 0.0
    %2945 = vmatpush1.msra.mxu0 0.0
    %2946 = vmatprep.subr.mxu0 0.0
    %2947 = vmatpush1.msra.mxu0 0.0
    %2948 = vmatprep.subr.mxu0 0.0
    %2949 = vmatpush1.msra.mxu0 0.0
    %2950 = vmatprep.subr.mxu0 0.0
    %2951 = vmatpush1.msra.mxu0 0.0
    %2952 = vmatprep.subr.mxu0 0.0
    %2953 = vmatpush1.msra.mxu0 0.0
    %2954 = vmatprep.subr.mxu0 0.0
    %2955 = vmatpush1.msra.mxu0 0.0
    %2956 = vmatprep.subr.mxu0 0.0
    %2957 = vmatpush1.msra.mxu0 0.0
    %2958 = vmatprep.subr.mxu0 0.0
    %2959 = vmatpush1.msra.mxu0 0.0
    %2960 = vmatprep.subr.mxu0 0.0
    %2961 = vmatpush1.msra.mxu0 0.0
    %2962 = vmatprep.subr.mxu0 0.0
    %2963 = vmatpush1.msra.mxu0 0.0
    %2964 = vmatprep.subr.mxu0 0.0
    %2965 = vmatpush1.msra.mxu0 0.0
    %2966 = vmatprep.subr.mxu0 0.0
    %2967 = vmatpush1.msra.mxu0 0.0
    %2968 = vmatprep.mubr.f32.mxu0 0.0
    %2969 = vmatmul.mubr.f32.gmra.mrb[0].mxu0 %v2902
    %v2970 = vpop.f32.mrb[0].mxu0
    %v2971 = vadd.f32 0.0, %v2970
    %v2972 = vpop.f32.mrb[0].mxu0
    %2973 = vdwg.mxu0
    %v2974 = vadd.f32 %v2318, %v2971
    %v2975 = vld [vmem:[#allocation2 + $0x1a] sm:$0x1]
    %v2976 = vld [vmem:[#allocation2 + $0x5a] sm:$0x1]
    %s2977 = scalar_lea.vmem %s3, 416
    %v2978 = vld [vmem:[%s2977] sm:$0xff]
    %v2979 = vld [vmem:[%s2977 + $0x8] sm:$0xff]
    %v2982 = vrot.slane %v2976, 7
    %v2983 = vsel %vm906, %v2982, %v2975
    %v2984 = vsel %vm812, %v2983, 0
    %2986 = vmatprep.subr.mxu0 0.0
    %2987 = vmatpush1.msra.mxu0 %v2978
    %2988 = vmatprep.subr.mxu0 0.0
    %2989 = vmatpush1.msra.mxu0 %v2979
    %2990 = vmatprep.subr.mxu0 0.0
    %2991 = vmatpush1.msra.mxu0 0.0
    %2992 = vmatprep.subr.mxu0 0.0
    %2993 = vmatpush1.msra.mxu0 0.0
    %2994 = vmatprep.subr.mxu0 0.0
    %2995 = vmatpush1.msra.mxu0 0.0
    %2996 = vmatprep.subr.mxu0 0.0
    %2997 = vmatpush1.msra.mxu0 0.0
    %2998 = vmatprep.subr.mxu0 0.0
    %2999 = vmatpush1.msra.mxu0 0.0
    %3000 = vmatprep.subr.mxu0 0.0
    %3001 = vmatpush1.msra.mxu0 0.0
    %3002 = vmatprep.subr.mxu0 0.0
    %3003 = vmatpush1.msra.mxu0 0.0
    %3004 = vmatprep.subr.mxu0 0.0
    %3005 = vmatpush1.msra.mxu0 0.0
    %3006 = vmatprep.subr.mxu0 0.0
    %3007 = vmatpush1.msra.mxu0 0.0
    %3008 = vmatprep.subr.mxu0 0.0
    %3009 = vmatpush1.msra.mxu0 0.0
    %3010 = vmatprep.subr.mxu0 0.0
    %3011 = vmatpush1.msra.mxu0 0.0
    %3012 = vmatprep.subr.mxu0 0.0
    %3013 = vmatpush1.msra.mxu0 0.0
    %3014 = vmatprep.subr.mxu0 0.0
    %3015 = vmatpush1.msra.mxu0 0.0
    %3016 = vmatprep.subr.mxu0 0.0
    %3017 = vmatpush1.msra.mxu0 0.0
    %3018 = vmatprep.subr.mxu0 0.0
    %3019 = vmatpush1.msra.mxu0 0.0
    %3020 = vmatprep.subr.mxu0 0.0
    %3021 = vmatpush1.msra.mxu0 0.0
    %3022 = vmatprep.subr.mxu0 0.0
    %3023 = vmatpush1.msra.mxu0 0.0
    %3024 = vmatprep.subr.mxu0 0.0
    %3025 = vmatpush1.msra.mxu0 0.0
    %3026 = vmatprep.subr.mxu0 0.0
    %3027 = vmatpush1.msra.mxu0 0.0
    %3028 = vmatprep.subr.mxu0 0.0
    %3029 = vmatpush1.msra.mxu0 0.0
    %3030 = vmatprep.subr.mxu0 0.0
    %3031 = vmatpush1.msra.mxu0 0.0
    %3032 = vmatprep.subr.mxu0 0.0
    %3033 = vmatpush1.msra.mxu0 0.0
    %3034 = vmatprep.subr.mxu0 0.0
    %3035 = vmatpush1.msra.mxu0 0.0
    %3036 = vmatprep.subr.mxu0 0.0
    %3037 = vmatpush1.msra.mxu0 0.0
    %3038 = vmatprep.subr.mxu0 0.0
    %3039 = vmatpush1.msra.mxu0 0.0
    %3040 = vmatprep.subr.mxu0 0.0
    %3041 = vmatpush1.msra.mxu0 0.0
    %3042 = vmatprep.subr.mxu0 0.0
    %3043 = vmatpush1.msra.mxu0 0.0
    %3044 = vmatprep.subr.mxu0 0.0
    %3045 = vmatpush1.msra.mxu0 0.0
    %3046 = vmatprep.subr.mxu0 0.0
    %3047 = vmatpush1.msra.mxu0 0.0
    %3048 = vmatprep.subr.mxu0 0.0
    %3049 = vmatpush1.msra.mxu0 0.0
    %3050 = vmatprep.mubr.f32.mxu0 0.0
    %3051 = vmatmul.mubr.f32.gmra.mrb[0].mxu0 %v2984
    %v3052 = vpop.f32.mrb[0].mxu0
    %v3053 = vadd.f32 0.0, %v3052
    %v3054 = vpop.f32.mrb[0].mxu0
    %3055 = vdwg.mxu0
    %v3056 = vadd.f32 %v2400, %v3053
    %v3057 = vld [vmem:[#allocation2 + $0x1b] sm:$0x1]
    %v3058 = vld [vmem:[#allocation2 + $0x5b] sm:$0x1]
    %s3059 = scalar_lea.vmem %s3, 432
    %v3060 = vld [vmem:[%s3059] sm:$0xff]
    %v3061 = vld [vmem:[%s3059 + $0x8] sm:$0xff]
    %v3064 = vrot.slane %v3058, 7
    %v3065 = vsel %vm906, %v3064, %v3057
    %v3066 = vsel %vm812, %v3065, 0
    %3068 = vmatprep.subr.mxu0 0.0
    %3069 = vmatpush1.msra.mxu0 %v3060
    %3070 = vmatprep.subr.mxu0 0.0
    %3071 = vmatpush1.msra.mxu0 %v3061
    %3072 = vmatprep.subr.mxu0 0.0
    %3073 = vmatpush1.msra.mxu0 0.0
    %3074 = vmatprep.subr.mxu0 0.0
    %3075 = vmatpush1.msra.mxu0 0.0
    %3076 = vmatprep.subr.mxu0 0.0
    %3077 = vmatpush1.msra.mxu0 0.0
    %3078 = vmatprep.subr.mxu0 0.0
    %3079 = vmatpush1.msra.mxu0 0.0
    %3080 = vmatprep.subr.mxu0 0.0
    %3081 = vmatpush1.msra.mxu0 0.0
    %3082 = vmatprep.subr.mxu0 0.0
    %3083 = vmatpush1.msra.mxu0 0.0
    %3084 = vmatprep.subr.mxu0 0.0
    %3085 = vmatpush1.msra.mxu0 0.0
    %3086 = vmatprep.subr.mxu0 0.0
    %3087 = vmatpush1.msra.mxu0 0.0
    %3088 = vmatprep.subr.mxu0 0.0
    %3089 = vmatpush1.msra.mxu0 0.0
    %3090 = vmatprep.subr.mxu0 0.0
    %3091 = vmatpush1.msra.mxu0 0.0
    %3092 = vmatprep.subr.mxu0 0.0
    %3093 = vmatpush1.msra.mxu0 0.0
    %3094 = vmatprep.subr.mxu0 0.0
    %3095 = vmatpush1.msra.mxu0 0.0
    %3096 = vmatprep.subr.mxu0 0.0
    %3097 = vmatpush1.msra.mxu0 0.0
    %3098 = vmatprep.subr.mxu0 0.0
    %3099 = vmatpush1.msra.mxu0 0.0
    %3100 = vmatprep.subr.mxu0 0.0
    %3101 = vmatpush1.msra.mxu0 0.0
    %3102 = vmatprep.subr.mxu0 0.0
    %3103 = vmatpush1.msra.mxu0 0.0
    %3104 = vmatprep.subr.mxu0 0.0
    %3105 = vmatpush1.msra.mxu0 0.0
    %3106 = vmatprep.subr.mxu0 0.0
    %3107 = vmatpush1.msra.mxu0 0.0
    %3108 = vmatprep.subr.mxu0 0.0
    %3109 = vmatpush1.msra.mxu0 0.0
    %3110 = vmatprep.subr.mxu0 0.0
    %3111 = vmatpush1.msra.mxu0 0.0
    %3112 = vmatprep.subr.mxu0 0.0
    %3113 = vmatpush1.msra.mxu0 0.0
    %3114 = vmatprep.subr.mxu0 0.0
    %3115 = vmatpush1.msra.mxu0 0.0
    %3116 = vmatprep.subr.mxu0 0.0
    %3117 = vmatpush1.msra.mxu0 0.0
    %3118 = vmatprep.subr.mxu0 0.0
    %3119 = vmatpush1.msra.mxu0 0.0
    %3120 = vmatprep.subr.mxu0 0.0
    %3121 = vmatpush1.msra.mxu0 0.0
    %3122 = vmatprep.subr.mxu0 0.0
    %3123 = vmatpush1.msra.mxu0 0.0
    %3124 = vmatprep.subr.mxu0 0.0
    %3125 = vmatpush1.msra.mxu0 0.0
    %3126 = vmatprep.subr.mxu0 0.0
    %3127 = vmatpush1.msra.mxu0 0.0
    %3128 = vmatprep.subr.mxu0 0.0
    %3129 = vmatpush1.msra.mxu0 0.0
    %3130 = vmatprep.subr.mxu0 0.0
    %3131 = vmatpush1.msra.mxu0 0.0
    %3132 = vmatprep.mubr.f32.mxu0 0.0
    %3133 = vmatmul.mubr.f32.gmra.mrb[0].mxu0 %v3066
    %v3134 = vpop.f32.mrb[0].mxu0
    %v3135 = vadd.f32 0.0, %v3134
    %v3136 = vpop.f32.mrb[0].mxu0
    %3137 = vdwg.mxu0
    %v3138 = vadd.f32 %v2482, %v3135
    %v3139 = vld [vmem:[#allocation2 + $0x1c] sm:$0x1]
    %v3140 = vld [vmem:[#allocation2 + $0x5c] sm:$0x1]
    %s3141 = scalar_lea.vmem %s3, 448
    %v3142 = vld [vmem:[%s3141] sm:$0xff]
    %v3143 = vld [vmem:[%s3141 + $0x8] sm:$0xff]
    %v3146 = vrot.slane %v3140, 7
    %v3147 = vsel %vm906, %v3146, %v3139
    %v3148 = vsel %vm812, %v3147, 0
    %3150 = vmatprep.subr.mxu0 0.0
    %3151 = vmatpush1.msra.mxu0 %v3142
    %3152 = vmatprep.subr.mxu0 0.0
    %3153 = vmatpush1.msra.mxu0 %v3143
    %3154 = vmatprep.subr.mxu0 0.0
    %3155 = vmatpush1.msra.mxu0 0.0
    %3156 = vmatprep.subr.mxu0 0.0
    %3157 = vmatpush1.msra.mxu0 0.0
    %3158 = vmatprep.subr.mxu0 0.0
    %3159 = vmatpush1.msra.mxu0 0.0
    %3160 = vmatprep.subr.mxu0 0.0
    %3161 = vmatpush1.msra.mxu0 0.0
    %3162 = vmatprep.subr.mxu0 0.0
    %3163 = vmatpush1.msra.mxu0 0.0
    %3164 = vmatprep.subr.mxu0 0.0
    %3165 = vmatpush1.msra.mxu0 0.0
    %3166 = vmatprep.subr.mxu0 0.0
    %3167 = vmatpush1.msra.mxu0 0.0
    %3168 = vmatprep.subr.mxu0 0.0
    %3169 = vmatpush1.msra.mxu0 0.0
    %3170 = vmatprep.subr.mxu0 0.0
    %3171 = vmatpush1.msra.mxu0 0.0
    %3172 = vmatprep.subr.mxu0 0.0
    %3173 = vmatpush1.msra.mxu0 0.0
    %3174 = vmatprep.subr.mxu0 0.0
    %3175 = vmatpush1.msra.mxu0 0.0
    %3176 = vmatprep.subr.mxu0 0.0
    %3177 = vmatpush1.msra.mxu0 0.0
    %3178 = vmatprep.subr.mxu0 0.0
    %3179 = vmatpush1.msra.mxu0 0.0
    %3180 = vmatprep.subr.mxu0 0.0
    %3181 = vmatpush1.msra.mxu0 0.0
    %3182 = vmatprep.subr.mxu0 0.0
    %3183 = vmatpush1.msra.mxu0 0.0
    %3184 = vmatprep.subr.mxu0 0.0
    %3185 = vmatpush1.msra.mxu0 0.0
    %3186 = vmatprep.subr.mxu0 0.0
    %3187 = vmatpush1.msra.mxu0 0.0
    %3188 = vmatprep.subr.mxu0 0.0
    %3189 = vmatpush1.msra.mxu0 0.0
    %3190 = vmatprep.subr.mxu0 0.0
    %3191 = vmatpush1.msra.mxu0 0.0
    %3192 = vmatprep.subr.mxu0 0.0
    %3193 = vmatpush1.msra.mxu0 0.0
    %3194 = vmatprep.subr.mxu0 0.0
    %3195 = vmatpush1.msra.mxu0 0.0
    %3196 = vmatprep.subr.mxu0 0.0
    %3197 = vmatpush1.msra.mxu0 0.0
    %3198 = vmatprep.subr.mxu0 0.0
    %3199 = vmatpush1.msra.mxu0 0.0
    %3200 = vmatprep.subr.mxu0 0.0
    %3201 = vmatpush1.msra.mxu0 0.0
    %3202 = vmatprep.subr.mxu0 0.0
    %3203 = vmatpush1.msra.mxu0 0.0
    %3204 = vmatprep.subr.mxu0 0.0
    %3205 = vmatpush1.msra.mxu0 0.0
    %3206 = vmatprep.subr.mxu0 0.0
    %3207 = vmatpush1.msra.mxu0 0.0
    %3208 = vmatprep.subr.mxu0 0.0
    %3209 = vmatpush1.msra.mxu0 0.0
    %3210 = vmatprep.subr.mxu0 0.0
    %3211 = vmatpush1.msra.mxu0 0.0
    %3212 = vmatprep.subr.mxu0 0.0
    %3213 = vmatpush1.msra.mxu0 0.0
    %3214 = vmatprep.mubr.f32.mxu0 0.0
    %3215 = vmatmul.mubr.f32.gmra.mrb[0].mxu0 %v3148
    %v3216 = vpop.f32.mrb[0].mxu0
    %v3217 = vadd.f32 0.0, %v3216
    %v3218 = vpop.f32.mrb[0].mxu0
    %3219 = vdwg.mxu0
    %v3220 = vadd.f32 %v2564, %v3217
    %v3221 = vld [vmem:[#allocation2 + $0x1d] sm:$0x1]
    %v3222 = vld [vmem:[#allocation2 + $0x5d] sm:$0x1]
    %s3223 = scalar_lea.vmem %s3, 464
    %v3224 = vld [vmem:[%s3223] sm:$0xff]
    %v3225 = vld [vmem:[%s3223 + $0x8] sm:$0xff]
    %v3228 = vrot.slane %v3222, 7
    %v3229 = vsel %vm906, %v3228, %v3221
    %v3230 = vsel %vm812, %v3229, 0
    %3232 = vmatprep.subr.mxu0 0.0
    %3233 = vmatpush1.msra.mxu0 %v3224
    %3234 = vmatprep.subr.mxu0 0.0
    %3235 = vmatpush1.msra.mxu0 %v3225
    %3236 = vmatprep.subr.mxu0 0.0
    %3237 = vmatpush1.msra.mxu0 0.0
    %3238 = vmatprep.subr.mxu0 0.0
    %3239 = vmatpush1.msra.mxu0 0.0
    %3240 = vmatprep.subr.mxu0 0.0
    %3241 = vmatpush1.msra.mxu0 0.0
    %3242 = vmatprep.subr.mxu0 0.0
    %3243 = vmatpush1.msra.mxu0 0.0
    %3244 = vmatprep.subr.mxu0 0.0
    %3245 = vmatpush1.msra.mxu0 0.0
    %3246 = vmatprep.subr.mxu0 0.0
    %3247 = vmatpush1.msra.mxu0 0.0
    %3248 = vmatprep.subr.mxu0 0.0
    %3249 = vmatpush1.msra.mxu0 0.0
    %3250 = vmatprep.subr.mxu0 0.0
    %3251 = vmatpush1.msra.mxu0 0.0
    %3252 = vmatprep.subr.mxu0 0.0
    %3253 = vmatpush1.msra.mxu0 0.0
    %3254 = vmatprep.subr.mxu0 0.0
    %3255 = vmatpush1.msra.mxu0 0.0
    %3256 = vmatprep.subr.mxu0 0.0
    %3257 = vmatpush1.msra.mxu0 0.0
    %3258 = vmatprep.subr.mxu0 0.0
    %3259 = vmatpush1.msra.mxu0 0.0
    %3260 = vmatprep.subr.mxu0 0.0
    %3261 = vmatpush1.msra.mxu0 0.0
    %3262 = vmatprep.subr.mxu0 0.0
    %3263 = vmatpush1.msra.mxu0 0.0
    %3264 = vmatprep.subr.mxu0 0.0
    %3265 = vmatpush1.msra.mxu0 0.0
    %3266 = vmatprep.subr.mxu0 0.0
    %3267 = vmatpush1.msra.mxu0 0.0
    %3268 = vmatprep.subr.mxu0 0.0
    %3269 = vmatpush1.msra.mxu0 0.0
    %3270 = vmatprep.subr.mxu0 0.0
    %3271 = vmatpush1.msra.mxu0 0.0
    %3272 = vmatprep.subr.mxu0 0.0
    %3273 = vmatpush1.msra.mxu0 0.0
    %3274 = vmatprep.subr.mxu0 0.0
    %3275 = vmatpush1.msra.mxu0 0.0
    %3276 = vmatprep.subr.mxu0 0.0
    %3277 = vmatpush1.msra.mxu0 0.0
    %3278 = vmatprep.subr.mxu0 0.0
    %3279 = vmatpush1.msra.mxu0 0.0
    %3280 = vmatprep.subr.mxu0 0.0
    %3281 = vmatpush1.msra.mxu0 0.0
    %3282 = vmatprep.subr.mxu0 0.0
    %3283 = vmatpush1.msra.mxu0 0.0
    %3284 = vmatprep.subr.mxu0 0.0
    %3285 = vmatpush1.msra.mxu0 0.0
    %3286 = vmatprep.subr.mxu0 0.0
    %3287 = vmatpush1.msra.mxu0 0.0
    %3288 = vmatprep.subr.mxu0 0.0
    %3289 = vmatpush1.msra.mxu0 0.0
    %3290 = vmatprep.subr.mxu0 0.0
    %3291 = vmatpush1.msra.mxu0 0.0
    %3292 = vmatprep.subr.mxu0 0.0
    %3293 = vmatpush1.msra.mxu0 0.0
    %3294 = vmatprep.subr.mxu0 0.0
    %3295 = vmatpush1.msra.mxu0 0.0
    %3296 = vmatprep.mubr.f32.mxu0 0.0
    %3297 = vmatmul.mubr.f32.gmra.mrb[0].mxu0 %v3230
    %v3298 = vpop.f32.mrb[0].mxu0
    %v3299 = vadd.f32 0.0, %v3298
    %v3300 = vpop.f32.mrb[0].mxu0
    %3301 = vdwg.mxu0
    %v3302 = vadd.f32 %v2646, %v3299
    %v3303 = vld [vmem:[#allocation2 + $0x1e] sm:$0x1]
    %v3304 = vld [vmem:[#allocation2 + $0x5e] sm:$0x1]
    %s3305 = scalar_lea.vmem %s3, 480
    %v3306 = vld [vmem:[%s3305] sm:$0xff]
    %v3307 = vld [vmem:[%s3305 + $0x8] sm:$0xff]
    %v3310 = vrot.slane %v3304, 7
    %v3311 = vsel %vm906, %v3310, %v3303
    %v3312 = vsel %vm812, %v3311, 0
    %3314 = vmatprep.subr.mxu0 0.0
    %3315 = vmatpush1.msra.mxu0 %v3306
    %3316 = vmatprep.subr.mxu0 0.0
    %3317 = vmatpush1.msra.mxu0 %v3307
    %3318 = vmatprep.subr.mxu0 0.0
    %3319 = vmatpush1.msra.mxu0 0.0
    %3320 = vmatprep.subr.mxu0 0.0
    %3321 = vmatpush1.msra.mxu0 0.0
    %3322 = vmatprep.subr.mxu0 0.0
    %3323 = vmatpush1.msra.mxu0 0.0
    %3324 = vmatprep.subr.mxu0 0.0
    %3325 = vmatpush1.msra.mxu0 0.0
    %3326 = vmatprep.subr.mxu0 0.0
    %3327 = vmatpush1.msra.mxu0 0.0
    %3328 = vmatprep.subr.mxu0 0.0
    %3329 = vmatpush1.msra.mxu0 0.0
    %3330 = vmatprep.subr.mxu0 0.0
    %3331 = vmatpush1.msra.mxu0 0.0
    %3332 = vmatprep.subr.mxu0 0.0
    %3333 = vmatpush1.msra.mxu0 0.0
    %3334 = vmatprep.subr.mxu0 0.0
    %3335 = vmatpush1.msra.mxu0 0.0
    %3336 = vmatprep.subr.mxu0 0.0
    %3337 = vmatpush1.msra.mxu0 0.0
    %3338 = vmatprep.subr.mxu0 0.0
    %3339 = vmatpush1.msra.mxu0 0.0
    %3340 = vmatprep.subr.mxu0 0.0
    %3341 = vmatpush1.msra.mxu0 0.0
    %3342 = vmatprep.subr.mxu0 0.0
    %3343 = vmatpush1.msra.mxu0 0.0
    %3344 = vmatprep.subr.mxu0 0.0
    %3345 = vmatpush1.msra.mxu0 0.0
    %3346 = vmatprep.subr.mxu0 0.0
    %3347 = vmatpush1.msra.mxu0 0.0
    %3348 = vmatprep.subr.mxu0 0.0
    %3349 = vmatpush1.msra.mxu0 0.0
    %3350 = vmatprep.subr.mxu0 0.0
    %3351 = vmatpush1.msra.mxu0 0.0
    %3352 = vmatprep.subr.mxu0 0.0
    %3353 = vmatpush1.msra.mxu0 0.0
    %3354 = vmatprep.subr.mxu0 0.0
    %3355 = vmatpush1.msra.mxu0 0.0
    %3356 = vmatprep.subr.mxu0 0.0
    %3357 = vmatpush1.msra.mxu0 0.0
    %3358 = vmatprep.subr.mxu0 0.0
    %3359 = vmatpush1.msra.mxu0 0.0
    %3360 = vmatprep.subr.mxu0 0.0
    %3361 = vmatpush1.msra.mxu0 0.0
    %3362 = vmatprep.subr.mxu0 0.0
    %3363 = vmatpush1.msra.mxu0 0.0
    %3364 = vmatprep.subr.mxu0 0.0
    %3365 = vmatpush1.msra.mxu0 0.0
    %3366 = vmatprep.subr.mxu0 0.0
    %3367 = vmatpush1.msra.mxu0 0.0
    %3368 = vmatprep.subr.mxu0 0.0
    %3369 = vmatpush1.msra.mxu0 0.0
    %3370 = vmatprep.subr.mxu0 0.0
    %3371 = vmatpush1.msra.mxu0 0.0
    %3372 = vmatprep.subr.mxu0 0.0
    %3373 = vmatpush1.msra.mxu0 0.0
    %3374 = vmatprep.subr.mxu0 0.0
    %3375 = vmatpush1.msra.mxu0 0.0
    %3376 = vmatprep.subr.mxu0 0.0
    %3377 = vmatpush1.msra.mxu0 0.0
    %3378 = vmatprep.mubr.f32.mxu0 0.0
    %3379 = vmatmul.mubr.f32.gmra.mrb[0].mxu0 %v3312
    %v3380 = vpop.f32.mrb[0].mxu0
    %v3381 = vadd.f32 0.0, %v3380
    %v3382 = vpop.f32.mrb[0].mxu0
    %3383 = vdwg.mxu0
    %v3384 = vadd.f32 %v2728, %v3381
    %v3385 = vld [vmem:[#allocation2 + $0x1f] sm:$0x1]
    %v3386 = vld [vmem:[#allocation2 + $0x5f] sm:$0x1]
    %s3387 = scalar_lea.vmem %s3, 496
    %v3388 = vld [vmem:[%s3387] sm:$0xff]
    %v3389 = vld [vmem:[%s3387 + $0x8] sm:$0xff]
    %v3392 = vrot.slane %v3386, 7
    %v3393 = vsel %vm906, %v3392, %v3385
    %v3394 = vsel %vm812, %v3393, 0
    %3396 = vmatprep.subr.mxu0 0.0
    %3397 = vmatpush1.msra.mxu0 %v3388
    %3398 = vmatprep.subr.mxu0 0.0
    %3399 = vmatpush1.msra.mxu0 %v3389
    %3400 = vmatprep.subr.mxu0 0.0
    %3401 = vmatpush1.msra.mxu0 0.0
    %3402 = vmatprep.subr.mxu0 0.0
    %3403 = vmatpush1.msra.mxu0 0.0
    %3404 = vmatprep.subr.mxu0 0.0
    %3405 = vmatpush1.msra.mxu0 0.0
    %3406 = vmatprep.subr.mxu0 0.0
    %3407 = vmatpush1.msra.mxu0 0.0
    %3408 = vmatprep.subr.mxu0 0.0
    %3409 = vmatpush1.msra.mxu0 0.0
    %3410 = vmatprep.subr.mxu0 0.0
    %3411 = vmatpush1.msra.mxu0 0.0
    %3412 = vmatprep.subr.mxu0 0.0
    %3413 = vmatpush1.msra.mxu0 0.0
    %3414 = vmatprep.subr.mxu0 0.0
    %3415 = vmatpush1.msra.mxu0 0.0
    %3416 = vmatprep.subr.mxu0 0.0
    %3417 = vmatpush1.msra.mxu0 0.0
    %3418 = vmatprep.subr.mxu0 0.0
    %3419 = vmatpush1.msra.mxu0 0.0
    %3420 = vmatprep.subr.mxu0 0.0
    %3421 = vmatpush1.msra.mxu0 0.0
    %3422 = vmatprep.subr.mxu0 0.0
    %3423 = vmatpush1.msra.mxu0 0.0
    %3424 = vmatprep.subr.mxu0 0.0
    %3425 = vmatpush1.msra.mxu0 0.0
    %3426 = vmatprep.subr.mxu0 0.0
    %3427 = vmatpush1.msra.mxu0 0.0
    %3428 = vmatprep.subr.mxu0 0.0
    %3429 = vmatpush1.msra.mxu0 0.0
    %3430 = vmatprep.subr.mxu0 0.0
    %3431 = vmatpush1.msra.mxu0 0.0
    %3432 = vmatprep.subr.mxu0 0.0
    %3433 = vmatpush1.msra.mxu0 0.0
    %3434 = vmatprep.subr.mxu0 0.0
    %3435 = vmatpush1.msra.mxu0 0.0
    %3436 = vmatprep.subr.mxu0 0.0
    %3437 = vmatpush1.msra.mxu0 0.0
    %3438 = vmatprep.subr.mxu0 0.0
    %3439 = vmatpush1.msra.mxu0 0.0
    %3440 = vmatprep.subr.mxu0 0.0
    %3441 = vmatpush1.msra.mxu0 0.0
    %3442 = vmatprep.subr.mxu0 0.0
    %3443 = vmatpush1.msra.mxu0 0.0
    %3444 = vmatprep.subr.mxu0 0.0
    %3445 = vmatpush1.msra.mxu0 0.0
    %3446 = vmatprep.subr.mxu0 0.0
    %3447 = vmatpush1.msra.mxu0 0.0
    %3448 = vmatprep.subr.mxu0 0.0
    %3449 = vmatpush1.msra.mxu0 0.0
    %3450 = vmatprep.subr.mxu0 0.0
    %3451 = vmatpush1.msra.mxu0 0.0
    %3452 = vmatprep.subr.mxu0 0.0
    %3453 = vmatpush1.msra.mxu0 0.0
    %3454 = vmatprep.subr.mxu0 0.0
    %3455 = vmatpush1.msra.mxu0 0.0
    %3456 = vmatprep.subr.mxu0 0.0
    %3457 = vmatpush1.msra.mxu0 0.0
    %3458 = vmatprep.subr.mxu0 0.0
    %3459 = vmatpush1.msra.mxu0 0.0
    %3460 = vmatprep.mubr.f32.mxu0 0.0
    %3461 = vmatmul.mubr.f32.gmra.mrb[0].mxu0 %v3394
    %v3462 = vpop.f32.mrb[0].mxu0
    %v3463 = vadd.f32 0.0, %v3462
    %v3464 = vpop.f32.mrb[0].mxu0
    %3465 = vdwg.mxu0
    %v3466 = vadd.f32 %v2810, %v3463
    %v3467 = vld [vmem:[#allocation2 + $0x20] sm:$0x1]
    %v3468 = vld [vmem:[#allocation2 + $0x60] sm:$0x1]
    %s3469 = scalar_lea.vmem %s3, 512
    %v3470 = vld [vmem:[%s3469] sm:$0xff]
    %v3471 = vld [vmem:[%s3469 + $0x8] sm:$0xff]
    %v3474 = vrot.slane %v3468, 7
    %v3475 = vsel %vm906, %v3474, %v3467
    %v3476 = vsel %vm812, %v3475, 0
    %3478 = vmatprep.subr.mxu0 0.0
    %3479 = vmatpush1.msra.mxu0 %v3470
    %3480 = vmatprep.subr.mxu0 0.0
    %3481 = vmatpush1.msra.mxu0 %v3471
    %3482 = vmatprep.subr.mxu0 0.0
    %3483 = vmatpush1.msra.mxu0 0.0
    %3484 = vmatprep.subr.mxu0 0.0
    %3485 = vmatpush1.msra.mxu0 0.0
    %3486 = vmatprep.subr.mxu0 0.0
    %3487 = vmatpush1.msra.mxu0 0.0
    %3488 = vmatprep.subr.mxu0 0.0
    %3489 = vmatpush1.msra.mxu0 0.0
    %3490 = vmatprep.subr.mxu0 0.0
    %3491 = vmatpush1.msra.mxu0 0.0
    %3492 = vmatprep.subr.mxu0 0.0
    %3493 = vmatpush1.msra.mxu0 0.0
    %3494 = vmatprep.subr.mxu0 0.0
    %3495 = vmatpush1.msra.mxu0 0.0
    %3496 = vmatprep.subr.mxu0 0.0
    %3497 = vmatpush1.msra.mxu0 0.0
    %3498 = vmatprep.subr.mxu0 0.0
    %3499 = vmatpush1.msra.mxu0 0.0
    %3500 = vmatprep.subr.mxu0 0.0
    %3501 = vmatpush1.msra.mxu0 0.0
    %3502 = vmatprep.subr.mxu0 0.0
    %3503 = vmatpush1.msra.mxu0 0.0
    %3504 = vmatprep.subr.mxu0 0.0
    %3505 = vmatpush1.msra.mxu0 0.0
    %3506 = vmatprep.subr.mxu0 0.0
    %3507 = vmatpush1.msra.mxu0 0.0
    %3508 = vmatprep.subr.mxu0 0.0
    %3509 = vmatpush1.msra.mxu0 0.0
    %3510 = vmatprep.subr.mxu0 0.0
    %3511 = vmatpush1.msra.mxu0 0.0
    %3512 = vmatprep.subr.mxu0 0.0
    %3513 = vmatpush1.msra.mxu0 0.0
    %3514 = vmatprep.subr.mxu0 0.0
    %3515 = vmatpush1.msra.mxu0 0.0
    %3516 = vmatprep.subr.mxu0 0.0
    %3517 = vmatpush1.msra.mxu0 0.0
    %3518 = vmatprep.subr.mxu0 0.0
    %3519 = vmatpush1.msra.mxu0 0.0
    %3520 = vmatprep.subr.mxu0 0.0
    %3521 = vmatpush1.msra.mxu0 0.0
    %3522 = vmatprep.subr.mxu0 0.0
    %3523 = vmatpush1.msra.mxu0 0.0
    %3524 = vmatprep.subr.mxu0 0.0
    %3525 = vmatpush1.msra.mxu0 0.0
    %3526 = vmatprep.subr.mxu0 0.0
    %3527 = vmatpush1.msra.mxu0 0.0
    %3528 = vmatprep.subr.mxu0 0.0
    %3529 = vmatpush1.msra.mxu0 0.0
    %3530 = vmatprep.subr.mxu0 0.0
    %3531 = vmatpush1.msra.mxu0 0.0
    %3532 = vmatprep.subr.mxu0 0.0
    %3533 = vmatpush1.msra.mxu0 0.0
    %3534 = vmatprep.subr.mxu0 0.0
    %3535 = vmatpush1.msra.mxu0 0.0
    %3536 = vmatprep.subr.mxu0 0.0
    %3537 = vmatpush1.msra.mxu0 0.0
    %3538 = vmatprep.subr.mxu0 0.0
    %3539 = vmatpush1.msra.mxu0 0.0
    %3540 = vmatprep.subr.mxu0 0.0
    %3541 = vmatpush1.msra.mxu0 0.0
    %3542 = vmatprep.mubr.f32.mxu0 0.0
    %3543 = vmatmul.mubr.f32.gmra.mrb[0].mxu0 %v3476
    %v3544 = vpop.f32.mrb[0].mxu0
    %v3545 = vadd.f32 0.0, %v3544
    %v3546 = vpop.f32.mrb[0].mxu0
    %3547 = vdwg.mxu0
    %v3548 = vadd.f32 %v2892, %v3545
    %v3549 = vld [vmem:[#allocation2 + $0x21] sm:$0x1]
    %v3550 = vld [vmem:[#allocation2 + $0x61] sm:$0x1]
    %s3551 = scalar_lea.vmem %s3, 528
    %v3552 = vld [vmem:[%s3551] sm:$0xff]
    %v3553 = vld [vmem:[%s3551 + $0x8] sm:$0xff]
    %v3556 = vrot.slane %v3550, 7
    %v3557 = vsel %vm906, %v3556, %v3549
    %v3558 = vsel %vm812, %v3557, 0
    %3560 = vmatprep.subr.mxu0 0.0
    %3561 = vmatpush1.msra.mxu0 %v3552
    %3562 = vmatprep.subr.mxu0 0.0
    %3563 = vmatpush1.msra.mxu0 %v3553
    %3564 = vmatprep.subr.mxu0 0.0
    %3565 = vmatpush1.msra.mxu0 0.0
    %3566 = vmatprep.subr.mxu0 0.0
    %3567 = vmatpush1.msra.mxu0 0.0
    %3568 = vmatprep.subr.mxu0 0.0
    %3569 = vmatpush1.msra.mxu0 0.0
    %3570 = vmatprep.subr.mxu0 0.0
    %3571 = vmatpush1.msra.mxu0 0.0
    %3572 = vmatprep.subr.mxu0 0.0
    %3573 = vmatpush1.msra.mxu0 0.0
    %3574 = vmatprep.subr.mxu0 0.0
    %3575 = vmatpush1.msra.mxu0 0.0
    %3576 = vmatprep.subr.mxu0 0.0
    %3577 = vmatpush1.msra.mxu0 0.0
    %3578 = vmatprep.subr.mxu0 0.0
    %3579 = vmatpush1.msra.mxu0 0.0
    %3580 = vmatprep.subr.mxu0 0.0
    %3581 = vmatpush1.msra.mxu0 0.0
    %3582 = vmatprep.subr.mxu0 0.0
    %3583 = vmatpush1.msra.mxu0 0.0
    %3584 = vmatprep.subr.mxu0 0.0
    %3585 = vmatpush1.msra.mxu0 0.0
    %3586 = vmatprep.subr.mxu0 0.0
    %3587 = vmatpush1.msra.mxu0 0.0
    %3588 = vmatprep.subr.mxu0 0.0
    %3589 = vmatpush1.msra.mxu0 0.0
    %3590 = vmatprep.subr.mxu0 0.0
    %3591 = vmatpush1.msra.mxu0 0.0
    %3592 = vmatprep.subr.mxu0 0.0
    %3593 = vmatpush1.msra.mxu0 0.0
    %3594 = vmatprep.subr.mxu0 0.0
    %3595 = vmatpush1.msra.mxu0 0.0
    %3596 = vmatprep.subr.mxu0 0.0
    %3597 = vmatpush1.msra.mxu0 0.0
    %3598 = vmatprep.subr.mxu0 0.0
    %3599 = vmatpush1.msra.mxu0 0.0
    %3600 = vmatprep.subr.mxu0 0.0
    %3601 = vmatpush1.msra.mxu0 0.0
    %3602 = vmatprep.subr.mxu0 0.0
    %3603 = vmatpush1.msra.mxu0 0.0
    %3604 = vmatprep.subr.mxu0 0.0
    %3605 = vmatpush1.msra.mxu0 0.0
    %3606 = vmatprep.subr.mxu0 0.0
    %3607 = vmatpush1.msra.mxu0 0.0
    %3608 = vmatprep.subr.mxu0 0.0
    %3609 = vmatpush1.msra.mxu0 0.0
    %3610 = vmatprep.subr.mxu0 0.0
    %3611 = vmatpush1.msra.mxu0 0.0
    %3612 = vmatprep.subr.mxu0 0.0
    %3613 = vmatpush1.msra.mxu0 0.0
    %3614 = vmatprep.subr.mxu0 0.0
    %3615 = vmatpush1.msra.mxu0 0.0
    %3616 = vmatprep.subr.mxu0 0.0
    %3617 = vmatpush1.msra.mxu0 0.0
    %3618 = vmatprep.subr.mxu0 0.0
    %3619 = vmatpush1.msra.mxu0 0.0
    %3620 = vmatprep.subr.mxu0 0.0
    %3621 = vmatpush1.msra.mxu0 0.0
    %3622 = vmatprep.subr.mxu0 0.0
    %3623 = vmatpush1.msra.mxu0 0.0
    %3624 = vmatprep.mubr.f32.mxu0 0.0
    %3625 = vmatmul.mubr.f32.gmra.mrb[0].mxu0 %v3558
    %v3626 = vpop.f32.mrb[0].mxu0
    %v3627 = vadd.f32 0.0, %v3626
    %v3628 = vpop.f32.mrb[0].mxu0
    %3629 = vdwg.mxu0
    %v3630 = vadd.f32 %v2974, %v3627
    %v3631 = vld [vmem:[#allocation2 + $0x22] sm:$0x1]
    %v3632 = vld [vmem:[#allocation2 + $0x62] sm:$0x1]
    %s3633 = scalar_lea.vmem %s3, 544
    %v3634 = vld [vmem:[%s3633] sm:$0xff]
    %v3635 = vld [vmem:[%s3633 + $0x8] sm:$0xff]
    %v3638 = vrot.slane %v3632, 7
    %v3639 = vsel %vm906, %v3638, %v3631
    %v3640 = vsel %vm812, %v3639, 0
    %3642 = vmatprep.subr.mxu0 0.0
    %3643 = vmatpush1.msra.mxu0 %v3634
    %3644 = vmatprep.subr.mxu0 0.0
    %3645 = vmatpush1.msra.mxu0 %v3635
    %3646 = vmatprep.subr.mxu0 0.0
    %3647 = vmatpush1.msra.mxu0 0.0
    %3648 = vmatprep.subr.mxu0 0.0
    %3649 = vmatpush1.msra.mxu0 0.0
    %3650 = vmatprep.subr.mxu0 0.0
    %3651 = vmatpush1.msra.mxu0 0.0
    %3652 = vmatprep.subr.mxu0 0.0
    %3653 = vmatpush1.msra.mxu0 0.0
    %3654 = vmatprep.subr.mxu0 0.0
    %3655 = vmatpush1.msra.mxu0 0.0
    %3656 = vmatprep.subr.mxu0 0.0
    %3657 = vmatpush1.msra.mxu0 0.0
    %3658 = vmatprep.subr.mxu0 0.0
    %3659 = vmatpush1.msra.mxu0 0.0
    %3660 = vmatprep.subr.mxu0 0.0
    %3661 = vmatpush1.msra.mxu0 0.0
    %3662 = vmatprep.subr.mxu0 0.0
    %3663 = vmatpush1.msra.mxu0 0.0
    %3664 = vmatprep.subr.mxu0 0.0
    %3665 = vmatpush1.msra.mxu0 0.0
    %3666 = vmatprep.subr.mxu0 0.0
    %3667 = vmatpush1.msra.mxu0 0.0
    %3668 = vmatprep.subr.mxu0 0.0
    %3669 = vmatpush1.msra.mxu0 0.0
    %3670 = vmatprep.subr.mxu0 0.0
    %3671 = vmatpush1.msra.mxu0 0.0
    %3672 = vmatprep.subr.mxu0 0.0
    %3673 = vmatpush1.msra.mxu0 0.0
    %3674 = vmatprep.subr.mxu0 0.0
    %3675 = vmatpush1.msra.mxu0 0.0
    %3676 = vmatprep.subr.mxu0 0.0
    %3677 = vmatpush1.msra.mxu0 0.0
    %3678 = vmatprep.subr.mxu0 0.0
    %3679 = vmatpush1.msra.mxu0 0.0
    %3680 = vmatprep.subr.mxu0 0.0
    %3681 = vmatpush1.msra.mxu0 0.0
    %3682 = vmatprep.subr.mxu0 0.0
    %3683 = vmatpush1.msra.mxu0 0.0
    %3684 = vmatprep.subr.mxu0 0.0
    %3685 = vmatpush1.msra.mxu0 0.0
    %3686 = vmatprep.subr.mxu0 0.0
    %3687 = vmatpush1.msra.mxu0 0.0
    %3688 = vmatprep.subr.mxu0 0.0
    %3689 = vmatpush1.msra.mxu0 0.0
    %3690 = vmatprep.subr.mxu0 0.0
    %3691 = vmatpush1.msra.mxu0 0.0
    %3692 = vmatprep.subr.mxu0 0.0
    %3693 = vmatpush1.msra.mxu0 0.0
    %3694 = vmatprep.subr.mxu0 0.0
    %3695 = vmatpush1.msra.mxu0 0.0
    %3696 = vmatprep.subr.mxu0 0.0
    %3697 = vmatpush1.msra.mxu0 0.0
    %3698 = vmatprep.subr.mxu0 0.0
    %3699 = vmatpush1.msra.mxu0 0.0
    %3700 = vmatprep.subr.mxu0 0.0
    %3701 = vmatpush1.msra.mxu0 0.0
    %3702 = vmatprep.subr.mxu0 0.0
    %3703 = vmatpush1.msra.mxu0 0.0
    %3704 = vmatprep.subr.mxu0 0.0
    %3705 = vmatpush1.msra.mxu0 0.0
    %3706 = vmatprep.mubr.f32.mxu0 0.0
    %3707 = vmatmul.mubr.f32.gmra.mrb[0].mxu0 %v3640
    %v3708 = vpop.f32.mrb[0].mxu0
    %v3709 = vadd.f32 0.0, %v3708
    %v3710 = vpop.f32.mrb[0].mxu0
    %3711 = vdwg.mxu0
    %v3712 = vadd.f32 %v3056, %v3709
    %v3713 = vld [vmem:[#allocation2 + $0x23] sm:$0x1]
    %v3714 = vld [vmem:[#allocation2 + $0x63] sm:$0x1]
    %s3715 = scalar_lea.vmem %s3, 560
    %v3716 = vld [vmem:[%s3715] sm:$0xff]
    %v3717 = vld [vmem:[%s3715 + $0x8] sm:$0xff]
    %v3720 = vrot.slane %v3714, 7
    %v3721 = vsel %vm906, %v3720, %v3713
    %v3722 = vsel %vm812, %v3721, 0
    %3724 = vmatprep.subr.mxu0 0.0
    %3725 = vmatpush1.msra.mxu0 %v3716
    %3726 = vmatprep.subr.mxu0 0.0
    %3727 = vmatpush1.msra.mxu0 %v3717
    %3728 = vmatprep.subr.mxu0 0.0
    %3729 = vmatpush1.msra.mxu0 0.0
    %3730 = vmatprep.subr.mxu0 0.0
    %3731 = vmatpush1.msra.mxu0 0.0
    %3732 = vmatprep.subr.mxu0 0.0
    %3733 = vmatpush1.msra.mxu0 0.0
    %3734 = vmatprep.subr.mxu0 0.0
    %3735 = vmatpush1.msra.mxu0 0.0
    %3736 = vmatprep.subr.mxu0 0.0
    %3737 = vmatpush1.msra.mxu0 0.0
    %3738 = vmatprep.subr.mxu0 0.0
    %3739 = vmatpush1.msra.mxu0 0.0
    %3740 = vmatprep.subr.mxu0 0.0
    %3741 = vmatpush1.msra.mxu0 0.0
    %3742 = vmatprep.subr.mxu0 0.0
    %3743 = vmatpush1.msra.mxu0 0.0
    %3744 = vmatprep.subr.mxu0 0.0
    %3745 = vmatpush1.msra.mxu0 0.0
    %3746 = vmatprep.subr.mxu0 0.0
    %3747 = vmatpush1.msra.mxu0 0.0
    %3748 = vmatprep.subr.mxu0 0.0
    %3749 = vmatpush1.msra.mxu0 0.0
    %3750 = vmatprep.subr.mxu0 0.0
    %3751 = vmatpush1.msra.mxu0 0.0
    %3752 = vmatprep.subr.mxu0 0.0
    %3753 = vmatpush1.msra.mxu0 0.0
    %3754 = vmatprep.subr.mxu0 0.0
    %3755 = vmatpush1.msra.mxu0 0.0
    %3756 = vmatprep.subr.mxu0 0.0
    %3757 = vmatpush1.msra.mxu0 0.0
    %3758 = vmatprep.subr.mxu0 0.0
    %3759 = vmatpush1.msra.mxu0 0.0
    %3760 = vmatprep.subr.mxu0 0.0
    %3761 = vmatpush1.msra.mxu0 0.0
    %3762 = vmatprep.subr.mxu0 0.0
    %3763 = vmatpush1.msra.mxu0 0.0
    %3764 = vmatprep.subr.mxu0 0.0
    %3765 = vmatpush1.msra.mxu0 0.0
    %3766 = vmatprep.subr.mxu0 0.0
    %3767 = vmatpush1.msra.mxu0 0.0
    %3768 = vmatprep.subr.mxu0 0.0
    %3769 = vmatpush1.msra.mxu0 0.0
    %3770 = vmatprep.subr.mxu0 0.0
    %3771 = vmatpush1.msra.mxu0 0.0
    %3772 = vmatprep.subr.mxu0 0.0
    %3773 = vmatpush1.msra.mxu0 0.0
    %3774 = vmatprep.subr.mxu0 0.0
    %3775 = vmatpush1.msra.mxu0 0.0
    %3776 = vmatprep.subr.mxu0 0.0
    %3777 = vmatpush1.msra.mxu0 0.0
    %3778 = vmatprep.subr.mxu0 0.0
    %3779 = vmatpush1.msra.mxu0 0.0
    %3780 = vmatprep.subr.mxu0 0.0
    %3781 = vmatpush1.msra.mxu0 0.0
    %3782 = vmatprep.subr.mxu0 0.0
    %3783 = vmatpush1.msra.mxu0 0.0
    %3784 = vmatprep.subr.mxu0 0.0
    %3785 = vmatpush1.msra.mxu0 0.0
    %3786 = vmatprep.subr.mxu0 0.0
    %3787 = vmatpush1.msra.mxu0 0.0
    %3788 = vmatprep.mubr.f32.mxu0 0.0
    %3789 = vmatmul.mubr.f32.gmra.mrb[0].mxu0 %v3722
    %v3790 = vpop.f32.mrb[0].mxu0
    %v3791 = vadd.f32 0.0, %v3790
    %v3792 = vpop.f32.mrb[0].mxu0
    %3793 = vdwg.mxu0
    %v3794 = vadd.f32 %v3138, %v3791
    %v3795 = vld [vmem:[#allocation2 + $0x24] sm:$0x1]
    %v3796 = vld [vmem:[#allocation2 + $0x64] sm:$0x1]
    %s3797 = scalar_lea.vmem %s3, 576
    %v3798 = vld [vmem:[%s3797] sm:$0xff]
    %v3799 = vld [vmem:[%s3797 + $0x8] sm:$0xff]
    %v3802 = vrot.slane %v3796, 7
    %v3803 = vsel %vm906, %v3802, %v3795
    %v3804 = vsel %vm812, %v3803, 0
    %3806 = vmatprep.subr.mxu0 0.0
    %3807 = vmatpush1.msra.mxu0 %v3798
    %3808 = vmatprep.subr.mxu0 0.0
    %3809 = vmatpush1.msra.mxu0 %v3799
    %3810 = vmatprep.subr.mxu0 0.0
    %3811 = vmatpush1.msra.mxu0 0.0
    %3812 = vmatprep.subr.mxu0 0.0
    %3813 = vmatpush1.msra.mxu0 0.0
    %3814 = vmatprep.subr.mxu0 0.0
    %3815 = vmatpush1.msra.mxu0 0.0
    %3816 = vmatprep.subr.mxu0 0.0
    %3817 = vmatpush1.msra.mxu0 0.0
    %3818 = vmatprep.subr.mxu0 0.0
    %3819 = vmatpush1.msra.mxu0 0.0
    %3820 = vmatprep.subr.mxu0 0.0
    %3821 = vmatpush1.msra.mxu0 0.0
    %3822 = vmatprep.subr.mxu0 0.0
    %3823 = vmatpush1.msra.mxu0 0.0
    %3824 = vmatprep.subr.mxu0 0.0
    %3825 = vmatpush1.msra.mxu0 0.0
    %3826 = vmatprep.subr.mxu0 0.0
    %3827 = vmatpush1.msra.mxu0 0.0
    %3828 = vmatprep.subr.mxu0 0.0
    %3829 = vmatpush1.msra.mxu0 0.0
    %3830 = vmatprep.subr.mxu0 0.0
    %3831 = vmatpush1.msra.mxu0 0.0
    %3832 = vmatprep.subr.mxu0 0.0
    %3833 = vmatpush1.msra.mxu0 0.0
    %3834 = vmatprep.subr.mxu0 0.0
    %3835 = vmatpush1.msra.mxu0 0.0
    %3836 = vmatprep.subr.mxu0 0.0
    %3837 = vmatpush1.msra.mxu0 0.0
    %3838 = vmatprep.subr.mxu0 0.0
    %3839 = vmatpush1.msra.mxu0 0.0
    %3840 = vmatprep.subr.mxu0 0.0
    %3841 = vmatpush1.msra.mxu0 0.0
    %3842 = vmatprep.subr.mxu0 0.0
    %3843 = vmatpush1.msra.mxu0 0.0
    %3844 = vmatprep.subr.mxu0 0.0
    %3845 = vmatpush1.msra.mxu0 0.0
    %3846 = vmatprep.subr.mxu0 0.0
    %3847 = vmatpush1.msra.mxu0 0.0
    %3848 = vmatprep.subr.mxu0 0.0
    %3849 = vmatpush1.msra.mxu0 0.0
    %3850 = vmatprep.subr.mxu0 0.0
    %3851 = vmatpush1.msra.mxu0 0.0
    %3852 = vmatprep.subr.mxu0 0.0
    %3853 = vmatpush1.msra.mxu0 0.0
    %3854 = vmatprep.subr.mxu0 0.0
    %3855 = vmatpush1.msra.mxu0 0.0
    %3856 = vmatprep.subr.mxu0 0.0
    %3857 = vmatpush1.msra.mxu0 0.0
    %3858 = vmatprep.subr.mxu0 0.0
    %3859 = vmatpush1.msra.mxu0 0.0
    %3860 = vmatprep.subr.mxu0 0.0
    %3861 = vmatpush1.msra.mxu0 0.0
    %3862 = vmatprep.subr.mxu0 0.0
    %3863 = vmatpush1.msra.mxu0 0.0
    %3864 = vmatprep.subr.mxu0 0.0
    %3865 = vmatpush1.msra.mxu0 0.0
    %3866 = vmatprep.subr.mxu0 0.0
    %3867 = vmatpush1.msra.mxu0 0.0
    %3868 = vmatprep.subr.mxu0 0.0
    %3869 = vmatpush1.msra.mxu0 0.0
    %3870 = vmatprep.mubr.f32.mxu0 0.0
    %3871 = vmatmul.mubr.f32.gmra.mrb[0].mxu0 %v3804
    %v3872 = vpop.f32.mrb[0].mxu0
    %v3873 = vadd.f32 0.0, %v3872
    %v3874 = vpop.f32.mrb[0].mxu0
    %3875 = vdwg.mxu0
    %v3876 = vadd.f32 %v3220, %v3873
    %v3877 = vld [vmem:[#allocation2 + $0x25] sm:$0x1]
    %v3878 = vld [vmem:[#allocation2 + $0x65] sm:$0x1]
    %s3879 = scalar_lea.vmem %s3, 592
    %v3880 = vld [vmem:[%s3879] sm:$0xff]
    %v3881 = vld [vmem:[%s3879 + $0x8] sm:$0xff]
    %v3884 = vrot.slane %v3878, 7
    %v3885 = vsel %vm906, %v3884, %v3877
    %v3886 = vsel %vm812, %v3885, 0
    %3888 = vmatprep.subr.mxu0 0.0
    %3889 = vmatpush1.msra.mxu0 %v3880
    %3890 = vmatprep.subr.mxu0 0.0
    %3891 = vmatpush1.msra.mxu0 %v3881
    %3892 = vmatprep.subr.mxu0 0.0
    %3893 = vmatpush1.msra.mxu0 0.0
    %3894 = vmatprep.subr.mxu0 0.0
    %3895 = vmatpush1.msra.mxu0 0.0
    %3896 = vmatprep.subr.mxu0 0.0
    %3897 = vmatpush1.msra.mxu0 0.0
    %3898 = vmatprep.subr.mxu0 0.0
    %3899 = vmatpush1.msra.mxu0 0.0
    %3900 = vmatprep.subr.mxu0 0.0
    %3901 = vmatpush1.msra.mxu0 0.0
    %3902 = vmatprep.subr.mxu0 0.0
    %3903 = vmatpush1.msra.mxu0 0.0
    %3904 = vmatprep.subr.mxu0 0.0
    %3905 = vmatpush1.msra.mxu0 0.0
    %3906 = vmatprep.subr.mxu0 0.0
    %3907 = vmatpush1.msra.mxu0 0.0
    %3908 = vmatprep.subr.mxu0 0.0
    %3909 = vmatpush1.msra.mxu0 0.0
    %3910 = vmatprep.subr.mxu0 0.0
    %3911 = vmatpush1.msra.mxu0 0.0
    %3912 = vmatprep.subr.mxu0 0.0
    %3913 = vmatpush1.msra.mxu0 0.0
    %3914 = vmatprep.subr.mxu0 0.0
    %3915 = vmatpush1.msra.mxu0 0.0
    %3916 = vmatprep.subr.mxu0 0.0
    %3917 = vmatpush1.msra.mxu0 0.0
    %3918 = vmatprep.subr.mxu0 0.0
    %3919 = vmatpush1.msra.mxu0 0.0
    %3920 = vmatprep.subr.mxu0 0.0
    %3921 = vmatpush1.msra.mxu0 0.0
    %3922 = vmatprep.subr.mxu0 0.0
    %3923 = vmatpush1.msra.mxu0 0.0
    %3924 = vmatprep.subr.mxu0 0.0
    %3925 = vmatpush1.msra.mxu0 0.0
    %3926 = vmatprep.subr.mxu0 0.0
    %3927 = vmatpush1.msra.mxu0 0.0
    %3928 = vmatprep.subr.mxu0 0.0
    %3929 = vmatpush1.msra.mxu0 0.0
    %3930 = vmatprep.subr.mxu0 0.0
    %3931 = vmatpush1.msra.mxu0 0.0
    %3932 = vmatprep.subr.mxu0 0.0
    %3933 = vmatpush1.msra.mxu0 0.0
    %3934 = vmatprep.subr.mxu0 0.0
    %3935 = vmatpush1.msra.mxu0 0.0
    %3936 = vmatprep.subr.mxu0 0.0
    %3937 = vmatpush1.msra.mxu0 0.0
    %3938 = vmatprep.subr.mxu0 0.0
    %3939 = vmatpush1.msra.mxu0 0.0
    %3940 = vmatprep.subr.mxu0 0.0
    %3941 = vmatpush1.msra.mxu0 0.0
    %3942 = vmatprep.subr.mxu0 0.0
    %3943 = vmatpush1.msra.mxu0 0.0
    %3944 = vmatprep.subr.mxu0 0.0
    %3945 = vmatpush1.msra.mxu0 0.0
    %3946 = vmatprep.subr.mxu0 0.0
    %3947 = vmatpush1.msra.mxu0 0.0
    %3948 = vmatprep.subr.mxu0 0.0
    %3949 = vmatpush1.msra.mxu0 0.0
    %3950 = vmatprep.subr.mxu0 0.0
    %3951 = vmatpush1.msra.mxu0 0.0
    %3952 = vmatprep.mubr.f32.mxu0 0.0
    %3953 = vmatmul.mubr.f32.gmra.mrb[0].mxu0 %v3886
    %v3954 = vpop.f32.mrb[0].mxu0
    %v3955 = vadd.f32 0.0, %v3954
    %v3956 = vpop.f32.mrb[0].mxu0
    %3957 = vdwg.mxu0
    %v3958 = vadd.f32 %v3302, %v3955
    %v3959 = vld [vmem:[#allocation2 + $0x26] sm:$0x1]
    %v3960 = vld [vmem:[#allocation2 + $0x66] sm:$0x1]
    %s3961 = scalar_lea.vmem %s3, 608
    %v3962 = vld [vmem:[%s3961] sm:$0xff]
    %v3963 = vld [vmem:[%s3961 + $0x8] sm:$0xff]
    %v3966 = vrot.slane %v3960, 7
    %v3967 = vsel %vm906, %v3966, %v3959
    %v3968 = vsel %vm812, %v3967, 0
    %3970 = vmatprep.subr.mxu0 0.0
    %3971 = vmatpush1.msra.mxu0 %v3962
    %3972 = vmatprep.subr.mxu0 0.0
    %3973 = vmatpush1.msra.mxu0 %v3963
    %3974 = vmatprep.subr.mxu0 0.0
    %3975 = vmatpush1.msra.mxu0 0.0
    %3976 = vmatprep.subr.mxu0 0.0
    %3977 = vmatpush1.msra.mxu0 0.0
    %3978 = vmatprep.subr.mxu0 0.0
    %3979 = vmatpush1.msra.mxu0 0.0
    %3980 = vmatprep.subr.mxu0 0.0
    %3981 = vmatpush1.msra.mxu0 0.0
    %3982 = vmatprep.subr.mxu0 0.0
    %3983 = vmatpush1.msra.mxu0 0.0
    %3984 = vmatprep.subr.mxu0 0.0
    %3985 = vmatpush1.msra.mxu0 0.0
    %3986 = vmatprep.subr.mxu0 0.0
    %3987 = vmatpush1.msra.mxu0 0.0
    %3988 = vmatprep.subr.mxu0 0.0
    %3989 = vmatpush1.msra.mxu0 0.0
    %3990 = vmatprep.subr.mxu0 0.0
    %3991 = vmatpush1.msra.mxu0 0.0
    %3992 = vmatprep.subr.mxu0 0.0
    %3993 = vmatpush1.msra.mxu0 0.0
    %3994 = vmatprep.subr.mxu0 0.0
    %3995 = vmatpush1.msra.mxu0 0.0
    %3996 = vmatprep.subr.mxu0 0.0
    %3997 = vmatpush1.msra.mxu0 0.0
    %3998 = vmatprep.subr.mxu0 0.0
    %3999 = vmatpush1.msra.mxu0 0.0
    %4000 = vmatprep.subr.mxu0 0.0
    %4001 = vmatpush1.msra.mxu0 0.0
    %4002 = vmatprep.subr.mxu0 0.0
    %4003 = vmatpush1.msra.mxu0 0.0
    %4004 = vmatprep.subr.mxu0 0.0
    %4005 = vmatpush1.msra.mxu0 0.0
    %4006 = vmatprep.subr.mxu0 0.0
    %4007 = vmatpush1.msra.mxu0 0.0
    %4008 = vmatprep.subr.mxu0 0.0
    %4009 = vmatpush1.msra.mxu0 0.0
    %4010 = vmatprep.subr.mxu0 0.0
    %4011 = vmatpush1.msra.mxu0 0.0
    %4012 = vmatprep.subr.mxu0 0.0
    %4013 = vmatpush1.msra.mxu0 0.0
    %4014 = vmatprep.subr.mxu0 0.0
    %4015 = vmatpush1.msra.mxu0 0.0
    %4016 = vmatprep.subr.mxu0 0.0
    %4017 = vmatpush1.msra.mxu0 0.0
    %4018 = vmatprep.subr.mxu0 0.0
    %4019 = vmatpush1.msra.mxu0 0.0
    %4020 = vmatprep.subr.mxu0 0.0
    %4021 = vmatpush1.msra.mxu0 0.0
    %4022 = vmatprep.subr.mxu0 0.0
    %4023 = vmatpush1.msra.mxu0 0.0
    %4024 = vmatprep.subr.mxu0 0.0
    %4025 = vmatpush1.msra.mxu0 0.0
    %4026 = vmatprep.subr.mxu0 0.0
    %4027 = vmatpush1.msra.mxu0 0.0
    %4028 = vmatprep.subr.mxu0 0.0
    %4029 = vmatpush1.msra.mxu0 0.0
    %4030 = vmatprep.subr.mxu0 0.0
    %4031 = vmatpush1.msra.mxu0 0.0
    %4032 = vmatprep.subr.mxu0 0.0
    %4033 = vmatpush1.msra.mxu0 0.0
    %4034 = vmatprep.mubr.f32.mxu0 0.0
    %4035 = vmatmul.mubr.f32.gmra.mrb[0].mxu0 %v3968
    %v4036 = vpop.f32.mrb[0].mxu0
    %v4037 = vadd.f32 0.0, %v4036
    %v4038 = vpop.f32.mrb[0].mxu0
    %4039 = vdwg.mxu0
    %v4040 = vadd.f32 %v3384, %v4037
    %v4041 = vld [vmem:[#allocation2 + $0x27] sm:$0x1]
    %v4042 = vld [vmem:[#allocation2 + $0x67] sm:$0x1]
    %s4043 = scalar_lea.vmem %s3, 624
    %v4044 = vld [vmem:[%s4043] sm:$0xff]
    %v4045 = vld [vmem:[%s4043 + $0x8] sm:$0xff]
    %v4048 = vrot.slane %v4042, 7
    %v4049 = vsel %vm906, %v4048, %v4041
    %v4050 = vsel %vm812, %v4049, 0
    %4052 = vmatprep.subr.mxu0 0.0
    %4053 = vmatpush1.msra.mxu0 %v4044
    %4054 = vmatprep.subr.mxu0 0.0
    %4055 = vmatpush1.msra.mxu0 %v4045
    %4056 = vmatprep.subr.mxu0 0.0
    %4057 = vmatpush1.msra.mxu0 0.0
    %4058 = vmatprep.subr.mxu0 0.0
    %4059 = vmatpush1.msra.mxu0 0.0
    %4060 = vmatprep.subr.mxu0 0.0
    %4061 = vmatpush1.msra.mxu0 0.0
    %4062 = vmatprep.subr.mxu0 0.0
    %4063 = vmatpush1.msra.mxu0 0.0
    %4064 = vmatprep.subr.mxu0 0.0
    %4065 = vmatpush1.msra.mxu0 0.0
    %4066 = vmatprep.subr.mxu0 0.0
    %4067 = vmatpush1.msra.mxu0 0.0
    %4068 = vmatprep.subr.mxu0 0.0
    %4069 = vmatpush1.msra.mxu0 0.0
    %4070 = vmatprep.subr.mxu0 0.0
    %4071 = vmatpush1.msra.mxu0 0.0
    %4072 = vmatprep.subr.mxu0 0.0
    %4073 = vmatpush1.msra.mxu0 0.0
    %4074 = vmatprep.subr.mxu0 0.0
    %4075 = vmatpush1.msra.mxu0 0.0
    %4076 = vmatprep.subr.mxu0 0.0
    %4077 = vmatpush1.msra.mxu0 0.0
    %4078 = vmatprep.subr.mxu0 0.0
    %4079 = vmatpush1.msra.mxu0 0.0
    %4080 = vmatprep.subr.mxu0 0.0
    %4081 = vmatpush1.msra.mxu0 0.0
    %4082 = vmatprep.subr.mxu0 0.0
    %4083 = vmatpush1.msra.mxu0 0.0
    %4084 = vmatprep.subr.mxu0 0.0
    %4085 = vmatpush1.msra.mxu0 0.0
    %4086 = vmatprep.subr.mxu0 0.0
    %4087 = vmatpush1.msra.mxu0 0.0
    %4088 = vmatprep.subr.mxu0 0.0
    %4089 = vmatpush1.msra.mxu0 0.0
    %4090 = vmatprep.subr.mxu0 0.0
    %4091 = vmatpush1.msra.mxu0 0.0
    %4092 = vmatprep.subr.mxu0 0.0
    %4093 = vmatpush1.msra.mxu0 0.0
    %4094 = vmatprep.subr.mxu0 0.0
    %4095 = vmatpush1.msra.mxu0 0.0
    %4096 = vmatprep.subr.mxu0 0.0
    %4097 = vmatpush1.msra.mxu0 0.0
    %4098 = vmatprep.subr.mxu0 0.0
    %4099 = vmatpush1.msra.mxu0 0.0
    %4100 = vmatprep.subr.mxu0 0.0
    %4101 = vmatpush1.msra.mxu0 0.0
    %4102 = vmatprep.subr.mxu0 0.0
    %4103 = vmatpush1.msra.mxu0 0.0
    %4104 = vmatprep.subr.mxu0 0.0
    %4105 = vmatpush1.msra.mxu0 0.0
    %4106 = vmatprep.subr.mxu0 0.0
    %4107 = vmatpush1.msra.mxu0 0.0
    %4108 = vmatprep.subr.mxu0 0.0
    %4109 = vmatpush1.msra.mxu0 0.0
    %4110 = vmatprep.subr.mxu0 0.0
    %4111 = vmatpush1.msra.mxu0 0.0
    %4112 = vmatprep.subr.mxu0 0.0
    %4113 = vmatpush1.msra.mxu0 0.0
    %4114 = vmatprep.subr.mxu0 0.0
    %4115 = vmatpush1.msra.mxu0 0.0
    %4116 = vmatprep.mubr.f32.mxu0 0.0
    %4117 = vmatmul.mubr.f32.gmra.mrb[0].mxu0 %v4050
    %v4118 = vpop.f32.mrb[0].mxu0
    %v4119 = vadd.f32 0.0, %v4118
    %v4120 = vpop.f32.mrb[0].mxu0
    %4121 = vdwg.mxu0
    %v4122 = vadd.f32 %v3466, %v4119
    %v4123 = vld [vmem:[#allocation2 + $0x28] sm:$0x1]
    %v4124 = vld [vmem:[#allocation2 + $0x68] sm:$0x1]
    %s4125 = scalar_lea.vmem %s3, 640
    %v4126 = vld [vmem:[%s4125] sm:$0xff]
    %v4127 = vld [vmem:[%s4125 + $0x8] sm:$0xff]
    %v4130 = vrot.slane %v4124, 7
    %v4131 = vsel %vm906, %v4130, %v4123
    %v4132 = vsel %vm812, %v4131, 0
    %4134 = vmatprep.subr.mxu0 0.0
    %4135 = vmatpush1.msra.mxu0 %v4126
    %4136 = vmatprep.subr.mxu0 0.0
    %4137 = vmatpush1.msra.mxu0 %v4127
    %4138 = vmatprep.subr.mxu0 0.0
    %4139 = vmatpush1.msra.mxu0 0.0
    %4140 = vmatprep.subr.mxu0 0.0
    %4141 = vmatpush1.msra.mxu0 0.0
    %4142 = vmatprep.subr.mxu0 0.0
    %4143 = vmatpush1.msra.mxu0 0.0
    %4144 = vmatprep.subr.mxu0 0.0
    %4145 = vmatpush1.msra.mxu0 0.0
    %4146 = vmatprep.subr.mxu0 0.0
    %4147 = vmatpush1.msra.mxu0 0.0
    %4148 = vmatprep.subr.mxu0 0.0
    %4149 = vmatpush1.msra.mxu0 0.0
    %4150 = vmatprep.subr.mxu0 0.0
    %4151 = vmatpush1.msra.mxu0 0.0
    %4152 = vmatprep.subr.mxu0 0.0
    %4153 = vmatpush1.msra.mxu0 0.0
    %4154 = vmatprep.subr.mxu0 0.0
    %4155 = vmatpush1.msra.mxu0 0.0
    %4156 = vmatprep.subr.mxu0 0.0
    %4157 = vmatpush1.msra.mxu0 0.0
    %4158 = vmatprep.subr.mxu0 0.0
    %4159 = vmatpush1.msra.mxu0 0.0
    %4160 = vmatprep.subr.mxu0 0.0
    %4161 = vmatpush1.msra.mxu0 0.0
    %4162 = vmatprep.subr.mxu0 0.0
    %4163 = vmatpush1.msra.mxu0 0.0
    %4164 = vmatprep.subr.mxu0 0.0
    %4165 = vmatpush1.msra.mxu0 0.0
    %4166 = vmatprep.subr.mxu0 0.0
    %4167 = vmatpush1.msra.mxu0 0.0
    %4168 = vmatprep.subr.mxu0 0.0
    %4169 = vmatpush1.msra.mxu0 0.0
    %4170 = vmatprep.subr.mxu0 0.0
    %4171 = vmatpush1.msra.mxu0 0.0
    %4172 = vmatprep.subr.mxu0 0.0
    %4173 = vmatpush1.msra.mxu0 0.0
    %4174 = vmatprep.subr.mxu0 0.0
    %4175 = vmatpush1.msra.mxu0 0.0
    %4176 = vmatprep.subr.mxu0 0.0
    %4177 = vmatpush1.msra.mxu0 0.0
    %4178 = vmatprep.subr.mxu0 0.0
    %4179 = vmatpush1.msra.mxu0 0.0
    %4180 = vmatprep.subr.mxu0 0.0
    %4181 = vmatpush1.msra.mxu0 0.0
    %4182 = vmatprep.subr.mxu0 0.0
    %4183 = vmatpush1.msra.mxu0 0.0
    %4184 = vmatprep.subr.mxu0 0.0
    %4185 = vmatpush1.msra.mxu0 0.0
    %4186 = vmatprep.subr.mxu0 0.0
    %4187 = vmatpush1.msra.mxu0 0.0
    %4188 = vmatprep.subr.mxu0 0.0
    %4189 = vmatpush1.msra.mxu0 0.0
    %4190 = vmatprep.subr.mxu0 0.0
    %4191 = vmatpush1.msra.mxu0 0.0
    %4192 = vmatprep.subr.mxu0 0.0
    %4193 = vmatpush1.msra.mxu0 0.0
    %4194 = vmatprep.subr.mxu0 0.0
    %4195 = vmatpush1.msra.mxu0 0.0
    %4196 = vmatprep.subr.mxu0 0.0
    %4197 = vmatpush1.msra.mxu0 0.0
    %4198 = vmatprep.mubr.f32.mxu0 0.0
    %4199 = vmatmul.mubr.f32.gmra.mrb[0].mxu0 %v4132
    %v4200 = vpop.f32.mrb[0].mxu0
    %v4201 = vadd.f32 0.0, %v4200
    %v4202 = vpop.f32.mrb[0].mxu0
    %4203 = vdwg.mxu0
    %v4204 = vadd.f32 %v3548, %v4201
    %v4205 = vld [vmem:[#allocation2 + $0x29] sm:$0x1]
    %v4206 = vld [vmem:[#allocation2 + $0x69] sm:$0x1]
    %s4207 = scalar_lea.vmem %s3, 656
    %v4208 = vld [vmem:[%s4207] sm:$0xff]
    %v4209 = vld [vmem:[%s4207 + $0x8] sm:$0xff]
    %v4212 = vrot.slane %v4206, 7
    %v4213 = vsel %vm906, %v4212, %v4205
    %v4214 = vsel %vm812, %v4213, 0
    %4216 = vmatprep.subr.mxu0 0.0
    %4217 = vmatpush1.msra.mxu0 %v4208
    %4218 = vmatprep.subr.mxu0 0.0
    %4219 = vmatpush1.msra.mxu0 %v4209
    %4220 = vmatprep.subr.mxu0 0.0
    %4221 = vmatpush1.msra.mxu0 0.0
    %4222 = vmatprep.subr.mxu0 0.0
    %4223 = vmatpush1.msra.mxu0 0.0
    %4224 = vmatprep.subr.mxu0 0.0
    %4225 = vmatpush1.msra.mxu0 0.0
    %4226 = vmatprep.subr.mxu0 0.0
    %4227 = vmatpush1.msra.mxu0 0.0
    %4228 = vmatprep.subr.mxu0 0.0
    %4229 = vmatpush1.msra.mxu0 0.0
    %4230 = vmatprep.subr.mxu0 0.0
    %4231 = vmatpush1.msra.mxu0 0.0
    %4232 = vmatprep.subr.mxu0 0.0
    %4233 = vmatpush1.msra.mxu0 0.0
    %4234 = vmatprep.subr.mxu0 0.0
    %4235 = vmatpush1.msra.mxu0 0.0
    %4236 = vmatprep.subr.mxu0 0.0
    %4237 = vmatpush1.msra.mxu0 0.0
    %4238 = vmatprep.subr.mxu0 0.0
    %4239 = vmatpush1.msra.mxu0 0.0
    %4240 = vmatprep.subr.mxu0 0.0
    %4241 = vmatpush1.msra.mxu0 0.0
    %4242 = vmatprep.subr.mxu0 0.0
    %4243 = vmatpush1.msra.mxu0 0.0
    %4244 = vmatprep.subr.mxu0 0.0
    %4245 = vmatpush1.msra.mxu0 0.0
    %4246 = vmatprep.subr.mxu0 0.0
    %4247 = vmatpush1.msra.mxu0 0.0
    %4248 = vmatprep.subr.mxu0 0.0
    %4249 = vmatpush1.msra.mxu0 0.0
    %4250 = vmatprep.subr.mxu0 0.0
    %4251 = vmatpush1.msra.mxu0 0.0
    %4252 = vmatprep.subr.mxu0 0.0
    %4253 = vmatpush1.msra.mxu0 0.0
    %4254 = vmatprep.subr.mxu0 0.0
    %4255 = vmatpush1.msra.mxu0 0.0
    %4256 = vmatprep.subr.mxu0 0.0
    %4257 = vmatpush1.msra.mxu0 0.0
    %4258 = vmatprep.subr.mxu0 0.0
    %4259 = vmatpush1.msra.mxu0 0.0
    %4260 = vmatprep.subr.mxu0 0.0
    %4261 = vmatpush1.msra.mxu0 0.0
    %4262 = vmatprep.subr.mxu0 0.0
    %4263 = vmatpush1.msra.mxu0 0.0
    %4264 = vmatprep.subr.mxu0 0.0
    %4265 = vmatpush1.msra.mxu0 0.0
    %4266 = vmatprep.subr.mxu0 0.0
    %4267 = vmatpush1.msra.mxu0 0.0
    %4268 = vmatprep.subr.mxu0 0.0
    %4269 = vmatpush1.msra.mxu0 0.0
    %4270 = vmatprep.subr.mxu0 0.0
    %4271 = vmatpush1.msra.mxu0 0.0
    %4272 = vmatprep.subr.mxu0 0.0
    %4273 = vmatpush1.msra.mxu0 0.0
    %4274 = vmatprep.subr.mxu0 0.0
    %4275 = vmatpush1.msra.mxu0 0.0
    %4276 = vmatprep.subr.mxu0 0.0
    %4277 = vmatpush1.msra.mxu0 0.0
    %4278 = vmatprep.subr.mxu0 0.0
    %4279 = vmatpush1.msra.mxu0 0.0
    %4280 = vmatprep.mubr.f32.mxu0 0.0
    %4281 = vmatmul.mubr.f32.gmra.mrb[0].mxu0 %v4214
    %v4282 = vpop.f32.mrb[0].mxu0
    %v4283 = vadd.f32 0.0, %v4282
    %v4284 = vpop.f32.mrb[0].mxu0
    %4285 = vdwg.mxu0
    %v4286 = vadd.f32 %v3630, %v4283
    %v4287 = vld [vmem:[#allocation2 + $0x2a] sm:$0x1]
    %v4288 = vld [vmem:[#allocation2 + $0x6a] sm:$0x1]
    %s4289 = scalar_lea.vmem %s3, 672
    %v4290 = vld [vmem:[%s4289] sm:$0xff]
    %v4291 = vld [vmem:[%s4289 + $0x8] sm:$0xff]
    %v4294 = vrot.slane %v4288, 7
    %v4295 = vsel %vm906, %v4294, %v4287
    %v4296 = vsel %vm812, %v4295, 0
    %4298 = vmatprep.subr.mxu0 0.0
    %4299 = vmatpush1.msra.mxu0 %v4290
    %4300 = vmatprep.subr.mxu0 0.0
    %4301 = vmatpush1.msra.mxu0 %v4291
    %4302 = vmatprep.subr.mxu0 0.0
    %4303 = vmatpush1.msra.mxu0 0.0
    %4304 = vmatprep.subr.mxu0 0.0
    %4305 = vmatpush1.msra.mxu0 0.0
    %4306 = vmatprep.subr.mxu0 0.0
    %4307 = vmatpush1.msra.mxu0 0.0
    %4308 = vmatprep.subr.mxu0 0.0
    %4309 = vmatpush1.msra.mxu0 0.0
    %4310 = vmatprep.subr.mxu0 0.0
    %4311 = vmatpush1.msra.mxu0 0.0
    %4312 = vmatprep.subr.mxu0 0.0
    %4313 = vmatpush1.msra.mxu0 0.0
    %4314 = vmatprep.subr.mxu0 0.0
    %4315 = vmatpush1.msra.mxu0 0.0
    %4316 = vmatprep.subr.mxu0 0.0
    %4317 = vmatpush1.msra.mxu0 0.0
    %4318 = vmatprep.subr.mxu0 0.0
    %4319 = vmatpush1.msra.mxu0 0.0
    %4320 = vmatprep.subr.mxu0 0.0
    %4321 = vmatpush1.msra.mxu0 0.0
    %4322 = vmatprep.subr.mxu0 0.0
    %4323 = vmatpush1.msra.mxu0 0.0
    %4324 = vmatprep.subr.mxu0 0.0
    %4325 = vmatpush1.msra.mxu0 0.0
    %4326 = vmatprep.subr.mxu0 0.0
    %4327 = vmatpush1.msra.mxu0 0.0
    %4328 = vmatprep.subr.mxu0 0.0
    %4329 = vmatpush1.msra.mxu0 0.0
    %4330 = vmatprep.subr.mxu0 0.0
    %4331 = vmatpush1.msra.mxu0 0.0
    %4332 = vmatprep.subr.mxu0 0.0
    %4333 = vmatpush1.msra.mxu0 0.0
    %4334 = vmatprep.subr.mxu0 0.0
    %4335 = vmatpush1.msra.mxu0 0.0
    %4336 = vmatprep.subr.mxu0 0.0
    %4337 = vmatpush1.msra.mxu0 0.0
    %4338 = vmatprep.subr.mxu0 0.0
    %4339 = vmatpush1.msra.mxu0 0.0
    %4340 = vmatprep.subr.mxu0 0.0
    %4341 = vmatpush1.msra.mxu0 0.0
    %4342 = vmatprep.subr.mxu0 0.0
    %4343 = vmatpush1.msra.mxu0 0.0
    %4344 = vmatprep.subr.mxu0 0.0
    %4345 = vmatpush1.msra.mxu0 0.0
    %4346 = vmatprep.subr.mxu0 0.0
    %4347 = vmatpush1.msra.mxu0 0.0
    %4348 = vmatprep.subr.mxu0 0.0
    %4349 = vmatpush1.msra.mxu0 0.0
    %4350 = vmatprep.subr.mxu0 0.0
    %4351 = vmatpush1.msra.mxu0 0.0
    %4352 = vmatprep.subr.mxu0 0.0
    %4353 = vmatpush1.msra.mxu0 0.0
    %4354 = vmatprep.subr.mxu0 0.0
    %4355 = vmatpush1.msra.mxu0 0.0
    %4356 = vmatprep.subr.mxu0 0.0
    %4357 = vmatpush1.msra.mxu0 0.0
    %4358 = vmatprep.subr.mxu0 0.0
    %4359 = vmatpush1.msra.mxu0 0.0
    %4360 = vmatprep.subr.mxu0 0.0
    %4361 = vmatpush1.msra.mxu0 0.0
    %4362 = vmatprep.mubr.f32.mxu0 0.0
    %4363 = vmatmul.mubr.f32.gmra.mrb[0].mxu0 %v4296
    %v4364 = vpop.f32.mrb[0].mxu0
    %v4365 = vadd.f32 0.0, %v4364
    %v4366 = vpop.f32.mrb[0].mxu0
    %4367 = vdwg.mxu0
    %v4368 = vadd.f32 %v3712, %v4365
    %v4369 = vld [vmem:[#allocation2 + $0x2b] sm:$0x1]
    %v4370 = vld [vmem:[#allocation2 + $0x6b] sm:$0x1]
    %s4371 = scalar_lea.vmem %s3, 688
    %v4372 = vld [vmem:[%s4371] sm:$0xff]
    %v4373 = vld [vmem:[%s4371 + $0x8] sm:$0xff]
    %v4376 = vrot.slane %v4370, 7
    %v4377 = vsel %vm906, %v4376, %v4369
    %v4378 = vsel %vm812, %v4377, 0
    %4380 = vmatprep.subr.mxu0 0.0
    %4381 = vmatpush1.msra.mxu0 %v4372
    %4382 = vmatprep.subr.mxu0 0.0
    %4383 = vmatpush1.msra.mxu0 %v4373
    %4384 = vmatprep.subr.mxu0 0.0
    %4385 = vmatpush1.msra.mxu0 0.0
    %4386 = vmatprep.subr.mxu0 0.0
    %4387 = vmatpush1.msra.mxu0 0.0
    %4388 = vmatprep.subr.mxu0 0.0
    %4389 = vmatpush1.msra.mxu0 0.0
    %4390 = vmatprep.subr.mxu0 0.0
    %4391 = vmatpush1.msra.mxu0 0.0
    %4392 = vmatprep.subr.mxu0 0.0
    %4393 = vmatpush1.msra.mxu0 0.0
    %4394 = vmatprep.subr.mxu0 0.0
    %4395 = vmatpush1.msra.mxu0 0.0
    %4396 = vmatprep.subr.mxu0 0.0
    %4397 = vmatpush1.msra.mxu0 0.0
    %4398 = vmatprep.subr.mxu0 0.0
    %4399 = vmatpush1.msra.mxu0 0.0
    %4400 = vmatprep.subr.mxu0 0.0
    %4401 = vmatpush1.msra.mxu0 0.0
    %4402 = vmatprep.subr.mxu0 0.0
    %4403 = vmatpush1.msra.mxu0 0.0
    %4404 = vmatprep.subr.mxu0 0.0
    %4405 = vmatpush1.msra.mxu0 0.0
    %4406 = vmatprep.subr.mxu0 0.0
    %4407 = vmatpush1.msra.mxu0 0.0
    %4408 = vmatprep.subr.mxu0 0.0
    %4409 = vmatpush1.msra.mxu0 0.0
    %4410 = vmatprep.subr.mxu0 0.0
    %4411 = vmatpush1.msra.mxu0 0.0
    %4412 = vmatprep.subr.mxu0 0.0
    %4413 = vmatpush1.msra.mxu0 0.0
    %4414 = vmatprep.subr.mxu0 0.0
    %4415 = vmatpush1.msra.mxu0 0.0
    %4416 = vmatprep.subr.mxu0 0.0
    %4417 = vmatpush1.msra.mxu0 0.0
    %4418 = vmatprep.subr.mxu0 0.0
    %4419 = vmatpush1.msra.mxu0 0.0
    %4420 = vmatprep.subr.mxu0 0.0
    %4421 = vmatpush1.msra.mxu0 0.0
    %4422 = vmatprep.subr.mxu0 0.0
    %4423 = vmatpush1.msra.mxu0 0.0
    %4424 = vmatprep.subr.mxu0 0.0
    %4425 = vmatpush1.msra.mxu0 0.0
    %4426 = vmatprep.subr.mxu0 0.0
    %4427 = vmatpush1.msra.mxu0 0.0
    %4428 = vmatprep.subr.mxu0 0.0
    %4429 = vmatpush1.msra.mxu0 0.0
    %4430 = vmatprep.subr.mxu0 0.0
    %4431 = vmatpush1.msra.mxu0 0.0
    %4432 = vmatprep.subr.mxu0 0.0
    %4433 = vmatpush1.msra.mxu0 0.0
    %4434 = vmatprep.subr.mxu0 0.0
    %4435 = vmatpush1.msra.mxu0 0.0
    %4436 = vmatprep.subr.mxu0 0.0
    %4437 = vmatpush1.msra.mxu0 0.0
    %4438 = vmatprep.subr.mxu0 0.0
    %4439 = vmatpush1.msra.mxu0 0.0
    %4440 = vmatprep.subr.mxu0 0.0
    %4441 = vmatpush1.msra.mxu0 0.0
    %4442 = vmatprep.subr.mxu0 0.0
    %4443 = vmatpush1.msra.mxu0 0.0
    %4444 = vmatprep.mubr.f32.mxu0 0.0
    %4445 = vmatmul.mubr.f32.gmra.mrb[0].mxu0 %v4378
    %v4446 = vpop.f32.mrb[0].mxu0
    %v4447 = vadd.f32 0.0, %v4446
    %v4448 = vpop.f32.mrb[0].mxu0
    %4449 = vdwg.mxu0
    %v4450 = vadd.f32 %v3794, %v4447
    %v4451 = vld [vmem:[#allocation2 + $0x2c] sm:$0x1]
    %v4452 = vld [vmem:[#allocation2 + $0x6c] sm:$0x1]
    %s4453 = scalar_lea.vmem %s3, 704
    %v4454 = vld [vmem:[%s4453] sm:$0xff]
    %v4455 = vld [vmem:[%s4453 + $0x8] sm:$0xff]
    %v4458 = vrot.slane %v4452, 7
    %v4459 = vsel %vm906, %v4458, %v4451
    %v4460 = vsel %vm812, %v4459, 0
    %4462 = vmatprep.subr.mxu0 0.0
    %4463 = vmatpush1.msra.mxu0 %v4454
    %4464 = vmatprep.subr.mxu0 0.0
    %4465 = vmatpush1.msra.mxu0 %v4455
    %4466 = vmatprep.subr.mxu0 0.0
    %4467 = vmatpush1.msra.mxu0 0.0
    %4468 = vmatprep.subr.mxu0 0.0
    %4469 = vmatpush1.msra.mxu0 0.0
    %4470 = vmatprep.subr.mxu0 0.0
    %4471 = vmatpush1.msra.mxu0 0.0
    %4472 = vmatprep.subr.mxu0 0.0
    %4473 = vmatpush1.msra.mxu0 0.0
    %4474 = vmatprep.subr.mxu0 0.0
    %4475 = vmatpush1.msra.mxu0 0.0
    %4476 = vmatprep.subr.mxu0 0.0
    %4477 = vmatpush1.msra.mxu0 0.0
    %4478 = vmatprep.subr.mxu0 0.0
    %4479 = vmatpush1.msra.mxu0 0.0
    %4480 = vmatprep.subr.mxu0 0.0
    %4481 = vmatpush1.msra.mxu0 0.0
    %4482 = vmatprep.subr.mxu0 0.0
    %4483 = vmatpush1.msra.mxu0 0.0
    %4484 = vmatprep.subr.mxu0 0.0
    %4485 = vmatpush1.msra.mxu0 0.0
    %4486 = vmatprep.subr.mxu0 0.0
    %4487 = vmatpush1.msra.mxu0 0.0
    %4488 = vmatprep.subr.mxu0 0.0
    %4489 = vmatpush1.msra.mxu0 0.0
    %4490 = vmatprep.subr.mxu0 0.0
    %4491 = vmatpush1.msra.mxu0 0.0
    %4492 = vmatprep.subr.mxu0 0.0
    %4493 = vmatpush1.msra.mxu0 0.0
    %4494 = vmatprep.subr.mxu0 0.0
    %4495 = vmatpush1.msra.mxu0 0.0
    %4496 = vmatprep.subr.mxu0 0.0
    %4497 = vmatpush1.msra.mxu0 0.0
    %4498 = vmatprep.subr.mxu0 0.0
    %4499 = vmatpush1.msra.mxu0 0.0
    %4500 = vmatprep.subr.mxu0 0.0
    %4501 = vmatpush1.msra.mxu0 0.0
    %4502 = vmatprep.subr.mxu0 0.0
    %4503 = vmatpush1.msra.mxu0 0.0
    %4504 = vmatprep.subr.mxu0 0.0
    %4505 = vmatpush1.msra.mxu0 0.0
    %4506 = vmatprep.subr.mxu0 0.0
    %4507 = vmatpush1.msra.mxu0 0.0
    %4508 = vmatprep.subr.mxu0 0.0
    %4509 = vmatpush1.msra.mxu0 0.0
    %4510 = vmatprep.subr.mxu0 0.0
    %4511 = vmatpush1.msra.mxu0 0.0
    %4512 = vmatprep.subr.mxu0 0.0
    %4513 = vmatpush1.msra.mxu0 0.0
    %4514 = vmatprep.subr.mxu0 0.0
    %4515 = vmatpush1.msra.mxu0 0.0
    %4516 = vmatprep.subr.mxu0 0.0
    %4517 = vmatpush1.msra.mxu0 0.0
    %4518 = vmatprep.subr.mxu0 0.0
    %4519 = vmatpush1.msra.mxu0 0.0
    %4520 = vmatprep.subr.mxu0 0.0
    %4521 = vmatpush1.msra.mxu0 0.0
    %4522 = vmatprep.subr.mxu0 0.0
    %4523 = vmatpush1.msra.mxu0 0.0
    %4524 = vmatprep.subr.mxu0 0.0
    %4525 = vmatpush1.msra.mxu0 0.0
    %4526 = vmatprep.mubr.f32.mxu0 0.0
    %4527 = vmatmul.mubr.f32.gmra.mrb[0].mxu0 %v4460
    %v4528 = vpop.f32.mrb[0].mxu0
    %v4529 = vadd.f32 0.0, %v4528
    %v4530 = vpop.f32.mrb[0].mxu0
    %4531 = vdwg.mxu0
    %v4532 = vadd.f32 %v3876, %v4529
    %v4533 = vld [vmem:[#allocation2 + $0x2d] sm:$0x1]
    %v4534 = vld [vmem:[#allocation2 + $0x6d] sm:$0x1]
    %s4535 = scalar_lea.vmem %s3, 720
    %v4536 = vld [vmem:[%s4535] sm:$0xff]
    %v4537 = vld [vmem:[%s4535 + $0x8] sm:$0xff]
    %v4540 = vrot.slane %v4534, 7
    %v4541 = vsel %vm906, %v4540, %v4533
    %v4542 = vsel %vm812, %v4541, 0
    %4544 = vmatprep.subr.mxu0 0.0
    %4545 = vmatpush1.msra.mxu0 %v4536
    %4546 = vmatprep.subr.mxu0 0.0
    %4547 = vmatpush1.msra.mxu0 %v4537
    %4548 = vmatprep.subr.mxu0 0.0
    %4549 = vmatpush1.msra.mxu0 0.0
    %4550 = vmatprep.subr.mxu0 0.0
    %4551 = vmatpush1.msra.mxu0 0.0
    %4552 = vmatprep.subr.mxu0 0.0
    %4553 = vmatpush1.msra.mxu0 0.0
    %4554 = vmatprep.subr.mxu0 0.0
    %4555 = vmatpush1.msra.mxu0 0.0
    %4556 = vmatprep.subr.mxu0 0.0
    %4557 = vmatpush1.msra.mxu0 0.0
    %4558 = vmatprep.subr.mxu0 0.0
    %4559 = vmatpush1.msra.mxu0 0.0
    %4560 = vmatprep.subr.mxu0 0.0
    %4561 = vmatpush1.msra.mxu0 0.0
    %4562 = vmatprep.subr.mxu0 0.0
    %4563 = vmatpush1.msra.mxu0 0.0
    %4564 = vmatprep.subr.mxu0 0.0
    %4565 = vmatpush1.msra.mxu0 0.0
    %4566 = vmatprep.subr.mxu0 0.0
    %4567 = vmatpush1.msra.mxu0 0.0
    %4568 = vmatprep.subr.mxu0 0.0
    %4569 = vmatpush1.msra.mxu0 0.0
    %4570 = vmatprep.subr.mxu0 0.0
    %4571 = vmatpush1.msra.mxu0 0.0
    %4572 = vmatprep.subr.mxu0 0.0
    %4573 = vmatpush1.msra.mxu0 0.0
    %4574 = vmatprep.subr.mxu0 0.0
    %4575 = vmatpush1.msra.mxu0 0.0
    %4576 = vmatprep.subr.mxu0 0.0
    %4577 = vmatpush1.msra.mxu0 0.0
    %4578 = vmatprep.subr.mxu0 0.0
    %4579 = vmatpush1.msra.mxu0 0.0
    %4580 = vmatprep.subr.mxu0 0.0
    %4581 = vmatpush1.msra.mxu0 0.0
    %4582 = vmatprep.subr.mxu0 0.0
    %4583 = vmatpush1.msra.mxu0 0.0
    %4584 = vmatprep.subr.mxu0 0.0
    %4585 = vmatpush1.msra.mxu0 0.0
    %4586 = vmatprep.subr.mxu0 0.0
    %4587 = vmatpush1.msra.mxu0 0.0
    %4588 = vmatprep.subr.mxu0 0.0
    %4589 = vmatpush1.msra.mxu0 0.0
    %4590 = vmatprep.subr.mxu0 0.0
    %4591 = vmatpush1.msra.mxu0 0.0
    %4592 = vmatprep.subr.mxu0 0.0
    %4593 = vmatpush1.msra.mxu0 0.0
    %4594 = vmatprep.subr.mxu0 0.0
    %4595 = vmatpush1.msra.mxu0 0.0
    %4596 = vmatprep.subr.mxu0 0.0
    %4597 = vmatpush1.msra.mxu0 0.0
    %4598 = vmatprep.subr.mxu0 0.0
    %4599 = vmatpush1.msra.mxu0 0.0
    %4600 = vmatprep.subr.mxu0 0.0
    %4601 = vmatpush1.msra.mxu0 0.0
    %4602 = vmatprep.subr.mxu0 0.0
    %4603 = vmatpush1.msra.mxu0 0.0
    %4604 = vmatprep.subr.mxu0 0.0
    %4605 = vmatpush1.msra.mxu0 0.0
    %4606 = vmatprep.subr.mxu0 0.0
    %4607 = vmatpush1.msra.mxu0 0.0
    %4608 = vmatprep.mubr.f32.mxu0 0.0
    %4609 = vmatmul.mubr.f32.gmra.mrb[0].mxu0 %v4542
    %v4610 = vpop.f32.mrb[0].mxu0
    %v4611 = vadd.f32 0.0, %v4610
    %v4612 = vpop.f32.mrb[0].mxu0
    %4613 = vdwg.mxu0
    %v4614 = vadd.f32 %v3958, %v4611
    %v4615 = vld [vmem:[#allocation2 + $0x2e] sm:$0x1]
    %v4616 = vld [vmem:[#allocation2 + $0x6e] sm:$0x1]
    %s4617 = scalar_lea.vmem %s3, 736
    %v4618 = vld [vmem:[%s4617] sm:$0xff]
    %v4619 = vld [vmem:[%s4617 + $0x8] sm:$0xff]
    %v4622 = vrot.slane %v4616, 7
    %v4623 = vsel %vm906, %v4622, %v4615
    %v4624 = vsel %vm812, %v4623, 0
    %4626 = vmatprep.subr.mxu0 0.0
    %4627 = vmatpush1.msra.mxu0 %v4618
    %4628 = vmatprep.subr.mxu0 0.0
    %4629 = vmatpush1.msra.mxu0 %v4619
    %4630 = vmatprep.subr.mxu0 0.0
    %4631 = vmatpush1.msra.mxu0 0.0
    %4632 = vmatprep.subr.mxu0 0.0
    %4633 = vmatpush1.msra.mxu0 0.0
    %4634 = vmatprep.subr.mxu0 0.0
    %4635 = vmatpush1.msra.mxu0 0.0
    %4636 = vmatprep.subr.mxu0 0.0
    %4637 = vmatpush1.msra.mxu0 0.0
    %4638 = vmatprep.subr.mxu0 0.0
    %4639 = vmatpush1.msra.mxu0 0.0
    %4640 = vmatprep.subr.mxu0 0.0
    %4641 = vmatpush1.msra.mxu0 0.0
    %4642 = vmatprep.subr.mxu0 0.0
    %4643 = vmatpush1.msra.mxu0 0.0
    %4644 = vmatprep.subr.mxu0 0.0
    %4645 = vmatpush1.msra.mxu0 0.0
    %4646 = vmatprep.subr.mxu0 0.0
    %4647 = vmatpush1.msra.mxu0 0.0
    %4648 = vmatprep.subr.mxu0 0.0
    %4649 = vmatpush1.msra.mxu0 0.0
    %4650 = vmatprep.subr.mxu0 0.0
    %4651 = vmatpush1.msra.mxu0 0.0
    %4652 = vmatprep.subr.mxu0 0.0
    %4653 = vmatpush1.msra.mxu0 0.0
    %4654 = vmatprep.subr.mxu0 0.0
    %4655 = vmatpush1.msra.mxu0 0.0
    %4656 = vmatprep.subr.mxu0 0.0
    %4657 = vmatpush1.msra.mxu0 0.0
    %4658 = vmatprep.subr.mxu0 0.0
    %4659 = vmatpush1.msra.mxu0 0.0
    %4660 = vmatprep.subr.mxu0 0.0
    %4661 = vmatpush1.msra.mxu0 0.0
    %4662 = vmatprep.subr.mxu0 0.0
    %4663 = vmatpush1.msra.mxu0 0.0
    %4664 = vmatprep.subr.mxu0 0.0
    %4665 = vmatpush1.msra.mxu0 0.0
    %4666 = vmatprep.subr.mxu0 0.0
    %4667 = vmatpush1.msra.mxu0 0.0
    %4668 = vmatprep.subr.mxu0 0.0
    %4669 = vmatpush1.msra.mxu0 0.0
    %4670 = vmatprep.subr.mxu0 0.0
    %4671 = vmatpush1.msra.mxu0 0.0
    %4672 = vmatprep.subr.mxu0 0.0
    %4673 = vmatpush1.msra.mxu0 0.0
    %4674 = vmatprep.subr.mxu0 0.0
    %4675 = vmatpush1.msra.mxu0 0.0
    %4676 = vmatprep.subr.mxu0 0.0
    %4677 = vmatpush1.msra.mxu0 0.0
    %4678 = vmatprep.subr.mxu0 0.0
    %4679 = vmatpush1.msra.mxu0 0.0
    %4680 = vmatprep.subr.mxu0 0.0
    %4681 = vmatpush1.msra.mxu0 0.0
    %4682 = vmatprep.subr.mxu0 0.0
    %4683 = vmatpush1.msra.mxu0 0.0
    %4684 = vmatprep.subr.mxu0 0.0
    %4685 = vmatpush1.msra.mxu0 0.0
    %4686 = vmatprep.subr.mxu0 0.0
    %4687 = vmatpush1.msra.mxu0 0.0
    %4688 = vmatprep.subr.mxu0 0.0
    %4689 = vmatpush1.msra.mxu0 0.0
    %4690 = vmatprep.mubr.f32.mxu0 0.0
    %4691 = vmatmul.mubr.f32.gmra.mrb[0].mxu0 %v4624
    %v4692 = vpop.f32.mrb[0].mxu0
    %v4693 = vadd.f32 0.0, %v4692
    %v4694 = vpop.f32.mrb[0].mxu0
    %4695 = vdwg.mxu0
    %v4696 = vadd.f32 %v4040, %v4693
    %v4697 = vld [vmem:[#allocation2 + $0x2f] sm:$0x1]
    %v4698 = vld [vmem:[#allocation2 + $0x6f] sm:$0x1]
    %s4699 = scalar_lea.vmem %s3, 752
    %v4700 = vld [vmem:[%s4699] sm:$0xff]
    %v4701 = vld [vmem:[%s4699 + $0x8] sm:$0xff]
    %v4704 = vrot.slane %v4698, 7
    %v4705 = vsel %vm906, %v4704, %v4697
    %v4706 = vsel %vm812, %v4705, 0
    %4708 = vmatprep.subr.mxu0 0.0
    %4709 = vmatpush1.msra.mxu0 %v4700
    %4710 = vmatprep.subr.mxu0 0.0
    %4711 = vmatpush1.msra.mxu0 %v4701
    %4712 = vmatprep.subr.mxu0 0.0
    %4713 = vmatpush1.msra.mxu0 0.0
    %4714 = vmatprep.subr.mxu0 0.0
    %4715 = vmatpush1.msra.mxu0 0.0
    %4716 = vmatprep.subr.mxu0 0.0
    %4717 = vmatpush1.msra.mxu0 0.0
    %4718 = vmatprep.subr.mxu0 0.0
    %4719 = vmatpush1.msra.mxu0 0.0
    %4720 = vmatprep.subr.mxu0 0.0
    %4721 = vmatpush1.msra.mxu0 0.0
    %4722 = vmatprep.subr.mxu0 0.0
    %4723 = vmatpush1.msra.mxu0 0.0
    %4724 = vmatprep.subr.mxu0 0.0
    %4725 = vmatpush1.msra.mxu0 0.0
    %4726 = vmatprep.subr.mxu0 0.0
    %4727 = vmatpush1.msra.mxu0 0.0
    %4728 = vmatprep.subr.mxu0 0.0
    %4729 = vmatpush1.msra.mxu0 0.0
    %4730 = vmatprep.subr.mxu0 0.0
    %4731 = vmatpush1.msra.mxu0 0.0
    %4732 = vmatprep.subr.mxu0 0.0
    %4733 = vmatpush1.msra.mxu0 0.0
    %4734 = vmatprep.subr.mxu0 0.0
    %4735 = vmatpush1.msra.mxu0 0.0
    %4736 = vmatprep.subr.mxu0 0.0
    %4737 = vmatpush1.msra.mxu0 0.0
    %4738 = vmatprep.subr.mxu0 0.0
    %4739 = vmatpush1.msra.mxu0 0.0
    %4740 = vmatprep.subr.mxu0 0.0
    %4741 = vmatpush1.msra.mxu0 0.0
    %4742 = vmatprep.subr.mxu0 0.0
    %4743 = vmatpush1.msra.mxu0 0.0
    %4744 = vmatprep.subr.mxu0 0.0
    %4745 = vmatpush1.msra.mxu0 0.0
    %4746 = vmatprep.subr.mxu0 0.0
    %4747 = vmatpush1.msra.mxu0 0.0
    %4748 = vmatprep.subr.mxu0 0.0
    %4749 = vmatpush1.msra.mxu0 0.0
    %4750 = vmatprep.subr.mxu0 0.0
    %4751 = vmatpush1.msra.mxu0 0.0
    %4752 = vmatprep.subr.mxu0 0.0
    %4753 = vmatpush1.msra.mxu0 0.0
    %4754 = vmatprep.subr.mxu0 0.0
    %4755 = vmatpush1.msra.mxu0 0.0
    %4756 = vmatprep.subr.mxu0 0.0
    %4757 = vmatpush1.msra.mxu0 0.0
    %4758 = vmatprep.subr.mxu0 0.0
    %4759 = vmatpush1.msra.mxu0 0.0
    %4760 = vmatprep.subr.mxu0 0.0
    %4761 = vmatpush1.msra.mxu0 0.0
    %4762 = vmatprep.subr.mxu0 0.0
    %4763 = vmatpush1.msra.mxu0 0.0
    %4764 = vmatprep.subr.mxu0 0.0
    %4765 = vmatpush1.msra.mxu0 0.0
    %4766 = vmatprep.subr.mxu0 0.0
    %4767 = vmatpush1.msra.mxu0 0.0
    %4768 = vmatprep.subr.mxu0 0.0
    %4769 = vmatpush1.msra.mxu0 0.0
    %4770 = vmatprep.subr.mxu0 0.0
    %4771 = vmatpush1.msra.mxu0 0.0
    %4772 = vmatprep.mubr.f32.mxu0 0.0
    %4773 = vmatmul.mubr.f32.gmra.mrb[0].mxu0 %v4706
    %v4774 = vpop.f32.mrb[0].mxu0
    %v4775 = vadd.f32 0.0, %v4774
    %v4776 = vpop.f32.mrb[0].mxu0
    %4777 = vdwg.mxu0
    %v4778 = vadd.f32 %v4122, %v4775
    %v4779 = vld [vmem:[#allocation2 + $0x30] sm:$0x1]
    %v4780 = vld [vmem:[#allocation2 + $0x70] sm:$0x1]
    %s4781 = scalar_lea.vmem %s3, 768
    %v4782 = vld [vmem:[%s4781] sm:$0xff]
    %v4783 = vld [vmem:[%s4781 + $0x8] sm:$0xff]
    %v4786 = vrot.slane %v4780, 7
    %v4787 = vsel %vm906, %v4786, %v4779
    %v4788 = vsel %vm812, %v4787, 0
    %4790 = vmatprep.subr.mxu0 0.0
    %4791 = vmatpush1.msra.mxu0 %v4782
    %4792 = vmatprep.subr.mxu0 0.0
    %4793 = vmatpush1.msra.mxu0 %v4783
    %4794 = vmatprep.subr.mxu0 0.0
    %4795 = vmatpush1.msra.mxu0 0.0
    %4796 = vmatprep.subr.mxu0 0.0
    %4797 = vmatpush1.msra.mxu0 0.0
    %4798 = vmatprep.subr.mxu0 0.0
    %4799 = vmatpush1.msra.mxu0 0.0
    %4800 = vmatprep.subr.mxu0 0.0
    %4801 = vmatpush1.msra.mxu0 0.0
    %4802 = vmatprep.subr.mxu0 0.0
    %4803 = vmatpush1.msra.mxu0 0.0
    %4804 = vmatprep.subr.mxu0 0.0
    %4805 = vmatpush1.msra.mxu0 0.0
    %4806 = vmatprep.subr.mxu0 0.0
    %4807 = vmatpush1.msra.mxu0 0.0
    %4808 = vmatprep.subr.mxu0 0.0
    %4809 = vmatpush1.msra.mxu0 0.0
    %4810 = vmatprep.subr.mxu0 0.0
    %4811 = vmatpush1.msra.mxu0 0.0
    %4812 = vmatprep.subr.mxu0 0.0
    %4813 = vmatpush1.msra.mxu0 0.0
    %4814 = vmatprep.subr.mxu0 0.0
    %4815 = vmatpush1.msra.mxu0 0.0
    %4816 = vmatprep.subr.mxu0 0.0
    %4817 = vmatpush1.msra.mxu0 0.0
    %4818 = vmatprep.subr.mxu0 0.0
    %4819 = vmatpush1.msra.mxu0 0.0
    %4820 = vmatprep.subr.mxu0 0.0
    %4821 = vmatpush1.msra.mxu0 0.0
    %4822 = vmatprep.subr.mxu0 0.0
    %4823 = vmatpush1.msra.mxu0 0.0
    %4824 = vmatprep.subr.mxu0 0.0
    %4825 = vmatpush1.msra.mxu0 0.0
    %4826 = vmatprep.subr.mxu0 0.0
    %4827 = vmatpush1.msra.mxu0 0.0
    %4828 = vmatprep.subr.mxu0 0.0
    %4829 = vmatpush1.msra.mxu0 0.0
    %4830 = vmatprep.subr.mxu0 0.0
    %4831 = vmatpush1.msra.mxu0 0.0
    %4832 = vmatprep.subr.mxu0 0.0
    %4833 = vmatpush1.msra.mxu0 0.0
    %4834 = vmatprep.subr.mxu0 0.0
    %4835 = vmatpush1.msra.mxu0 0.0
    %4836 = vmatprep.subr.mxu0 0.0
    %4837 = vmatpush1.msra.mxu0 0.0
    %4838 = vmatprep.subr.mxu0 0.0
    %4839 = vmatpush1.msra.mxu0 0.0
    %4840 = vmatprep.subr.mxu0 0.0
    %4841 = vmatpush1.msra.mxu0 0.0
    %4842 = vmatprep.subr.mxu0 0.0
    %4843 = vmatpush1.msra.mxu0 0.0
    %4844 = vmatprep.subr.mxu0 0.0
    %4845 = vmatpush1.msra.mxu0 0.0
    %4846 = vmatprep.subr.mxu0 0.0
    %4847 = vmatpush1.msra.mxu0 0.0
    %4848 = vmatprep.subr.mxu0 0.0
    %4849 = vmatpush1.msra.mxu0 0.0
    %4850 = vmatprep.subr.mxu0 0.0
    %4851 = vmatpush1.msra.mxu0 0.0
    %4852 = vmatprep.subr.mxu0 0.0
    %4853 = vmatpush1.msra.mxu0 0.0
    %4854 = vmatprep.mubr.f32.mxu0 0.0
    %4855 = vmatmul.mubr.f32.gmra.mrb[0].mxu0 %v4788
    %v4856 = vpop.f32.mrb[0].mxu0
    %v4857 = vadd.f32 0.0, %v4856
    %v4858 = vpop.f32.mrb[0].mxu0
    %4859 = vdwg.mxu0
    %v4860 = vadd.f32 %v4204, %v4857
    %v4861 = vld [vmem:[#allocation2 + $0x31] sm:$0x1]
    %v4862 = vld [vmem:[#allocation2 + $0x71] sm:$0x1]
    %s4863 = scalar_lea.vmem %s3, 784
    %v4864 = vld [vmem:[%s4863] sm:$0xff]
    %v4865 = vld [vmem:[%s4863 + $0x8] sm:$0xff]
    %v4868 = vrot.slane %v4862, 7
    %v4869 = vsel %vm906, %v4868, %v4861
    %v4870 = vsel %vm812, %v4869, 0
    %4872 = vmatprep.subr.mxu0 0.0
    %4873 = vmatpush1.msra.mxu0 %v4864
    %4874 = vmatprep.subr.mxu0 0.0
    %4875 = vmatpush1.msra.mxu0 %v4865
    %4876 = vmatprep.subr.mxu0 0.0
    %4877 = vmatpush1.msra.mxu0 0.0
    %4878 = vmatprep.subr.mxu0 0.0
    %4879 = vmatpush1.msra.mxu0 0.0
    %4880 = vmatprep.subr.mxu0 0.0
    %4881 = vmatpush1.msra.mxu0 0.0
    %4882 = vmatprep.subr.mxu0 0.0
    %4883 = vmatpush1.msra.mxu0 0.0
    %4884 = vmatprep.subr.mxu0 0.0
    %4885 = vmatpush1.msra.mxu0 0.0
    %4886 = vmatprep.subr.mxu0 0.0
    %4887 = vmatpush1.msra.mxu0 0.0
    %4888 = vmatprep.subr.mxu0 0.0
    %4889 = vmatpush1.msra.mxu0 0.0
    %4890 = vmatprep.subr.mxu0 0.0
    %4891 = vmatpush1.msra.mxu0 0.0
    %4892 = vmatprep.subr.mxu0 0.0
    %4893 = vmatpush1.msra.mxu0 0.0
    %4894 = vmatprep.subr.mxu0 0.0
    %4895 = vmatpush1.msra.mxu0 0.0
    %4896 = vmatprep.subr.mxu0 0.0
    %4897 = vmatpush1.msra.mxu0 0.0
    %4898 = vmatprep.subr.mxu0 0.0
    %4899 = vmatpush1.msra.mxu0 0.0
    %4900 = vmatprep.subr.mxu0 0.0
    %4901 = vmatpush1.msra.mxu0 0.0
    %4902 = vmatprep.subr.mxu0 0.0
    %4903 = vmatpush1.msra.mxu0 0.0
    %4904 = vmatprep.subr.mxu0 0.0
    %4905 = vmatpush1.msra.mxu0 0.0
    %4906 = vmatprep.subr.mxu0 0.0
    %4907 = vmatpush1.msra.mxu0 0.0
    %4908 = vmatprep.subr.mxu0 0.0
    %4909 = vmatpush1.msra.mxu0 0.0
    %4910 = vmatprep.subr.mxu0 0.0
    %4911 = vmatpush1.msra.mxu0 0.0
    %4912 = vmatprep.subr.mxu0 0.0
    %4913 = vmatpush1.msra.mxu0 0.0
    %4914 = vmatprep.subr.mxu0 0.0
    %4915 = vmatpush1.msra.mxu0 0.0
    %4916 = vmatprep.subr.mxu0 0.0
    %4917 = vmatpush1.msra.mxu0 0.0
    %4918 = vmatprep.subr.mxu0 0.0
    %4919 = vmatpush1.msra.mxu0 0.0
    %4920 = vmatprep.subr.mxu0 0.0
    %4921 = vmatpush1.msra.mxu0 0.0
    %4922 = vmatprep.subr.mxu0 0.0
    %4923 = vmatpush1.msra.mxu0 0.0
    %4924 = vmatprep.subr.mxu0 0.0
    %4925 = vmatpush1.msra.mxu0 0.0
    %4926 = vmatprep.subr.mxu0 0.0
    %4927 = vmatpush1.msra.mxu0 0.0
    %4928 = vmatprep.subr.mxu0 0.0
    %4929 = vmatpush1.msra.mxu0 0.0
    %4930 = vmatprep.subr.mxu0 0.0
    %4931 = vmatpush1.msra.mxu0 0.0
    %4932 = vmatprep.subr.mxu0 0.0
    %4933 = vmatpush1.msra.mxu0 0.0
    %4934 = vmatprep.subr.mxu0 0.0
    %4935 = vmatpush1.msra.mxu0 0.0
    %4936 = vmatprep.mubr.f32.mxu0 0.0
    %4937 = vmatmul.mubr.f32.gmra.mrb[0].mxu0 %v4870
    %v4938 = vpop.f32.mrb[0].mxu0
    %v4939 = vadd.f32 0.0, %v4938
    %v4940 = vpop.f32.mrb[0].mxu0
    %4941 = vdwg.mxu0
    %v4942 = vadd.f32 %v4286, %v4939
    %v4943 = vld [vmem:[#allocation2 + $0x32] sm:$0x1]
    %v4944 = vld [vmem:[#allocation2 + $0x72] sm:$0x1]
    %s4945 = scalar_lea.vmem %s3, 800
    %v4946 = vld [vmem:[%s4945] sm:$0xff]
    %v4947 = vld [vmem:[%s4945 + $0x8] sm:$0xff]
    %v4950 = vrot.slane %v4944, 7
    %v4951 = vsel %vm906, %v4950, %v4943
    %v4952 = vsel %vm812, %v4951, 0
    %4954 = vmatprep.subr.mxu0 0.0
    %4955 = vmatpush1.msra.mxu0 %v4946
    %4956 = vmatprep.subr.mxu0 0.0
    %4957 = vmatpush1.msra.mxu0 %v4947
    %4958 = vmatprep.subr.mxu0 0.0
    %4959 = vmatpush1.msra.mxu0 0.0
    %4960 = vmatprep.subr.mxu0 0.0
    %4961 = vmatpush1.msra.mxu0 0.0
    %4962 = vmatprep.subr.mxu0 0.0
    %4963 = vmatpush1.msra.mxu0 0.0
    %4964 = vmatprep.subr.mxu0 0.0
    %4965 = vmatpush1.msra.mxu0 0.0
    %4966 = vmatprep.subr.mxu0 0.0
    %4967 = vmatpush1.msra.mxu0 0.0
    %4968 = vmatprep.subr.mxu0 0.0
    %4969 = vmatpush1.msra.mxu0 0.0
    %4970 = vmatprep.subr.mxu0 0.0
    %4971 = vmatpush1.msra.mxu0 0.0
    %4972 = vmatprep.subr.mxu0 0.0
    %4973 = vmatpush1.msra.mxu0 0.0
    %4974 = vmatprep.subr.mxu0 0.0
    %4975 = vmatpush1.msra.mxu0 0.0
    %4976 = vmatprep.subr.mxu0 0.0
    %4977 = vmatpush1.msra.mxu0 0.0
    %4978 = vmatprep.subr.mxu0 0.0
    %4979 = vmatpush1.msra.mxu0 0.0
    %4980 = vmatprep.subr.mxu0 0.0
    %4981 = vmatpush1.msra.mxu0 0.0
    %4982 = vmatprep.subr.mxu0 0.0
    %4983 = vmatpush1.msra.mxu0 0.0
    %4984 = vmatprep.subr.mxu0 0.0
    %4985 = vmatpush1.msra.mxu0 0.0
    %4986 = vmatprep.subr.mxu0 0.0
    %4987 = vmatpush1.msra.mxu0 0.0
    %4988 = vmatprep.subr.mxu0 0.0
    %4989 = vmatpush1.msra.mxu0 0.0
    %4990 = vmatprep.subr.mxu0 0.0
    %4991 = vmatpush1.msra.mxu0 0.0
    %4992 = vmatprep.subr.mxu0 0.0
    %4993 = vmatpush1.msra.mxu0 0.0
    %4994 = vmatprep.subr.mxu0 0.0
    %4995 = vmatpush1.msra.mxu0 0.0
    %4996 = vmatprep.subr.mxu0 0.0
    %4997 = vmatpush1.msra.mxu0 0.0
    %4998 = vmatprep.subr.mxu0 0.0
    %4999 = vmatpush1.msra.mxu0 0.0
    %5000 = vmatprep.subr.mxu0 0.0
    %5001 = vmatpush1.msra.mxu0 0.0
    %5002 = vmatprep.subr.mxu0 0.0
    %5003 = vmatpush1.msra.mxu0 0.0
    %5004 = vmatprep.subr.mxu0 0.0
    %5005 = vmatpush1.msra.mxu0 0.0
    %5006 = vmatprep.subr.mxu0 0.0
    %5007 = vmatpush1.msra.mxu0 0.0
    %5008 = vmatprep.subr.mxu0 0.0
    %5009 = vmatpush1.msra.mxu0 0.0
    %5010 = vmatprep.subr.mxu0 0.0
    %5011 = vmatpush1.msra.mxu0 0.0
    %5012 = vmatprep.subr.mxu0 0.0
    %5013 = vmatpush1.msra.mxu0 0.0
    %5014 = vmatprep.subr.mxu0 0.0
    %5015 = vmatpush1.msra.mxu0 0.0
    %5016 = vmatprep.subr.mxu0 0.0
    %5017 = vmatpush1.msra.mxu0 0.0
    %5018 = vmatprep.mubr.f32.mxu0 0.0
    %5019 = vmatmul.mubr.f32.gmra.mrb[0].mxu0 %v4952
    %v5020 = vpop.f32.mrb[0].mxu0
    %v5021 = vadd.f32 0.0, %v5020
    %v5022 = vpop.f32.mrb[0].mxu0
    %5023 = vdwg.mxu0
    %v5024 = vadd.f32 %v4368, %v5021
    %v5025 = vld [vmem:[#allocation2 + $0x33] sm:$0x1]
    %v5026 = vld [vmem:[#allocation2 + $0x73] sm:$0x1]
    %s5027 = scalar_lea.vmem %s3, 816
    %v5028 = vld [vmem:[%s5027] sm:$0xff]
    %v5029 = vld [vmem:[%s5027 + $0x8] sm:$0xff]
    %v5032 = vrot.slane %v5026, 7
    %v5033 = vsel %vm906, %v5032, %v5025
    %v5034 = vsel %vm812, %v5033, 0
    %5036 = vmatprep.subr.mxu0 0.0
    %5037 = vmatpush1.msra.mxu0 %v5028
    %5038 = vmatprep.subr.mxu0 0.0
    %5039 = vmatpush1.msra.mxu0 %v5029
    %5040 = vmatprep.subr.mxu0 0.0
    %5041 = vmatpush1.msra.mxu0 0.0
    %5042 = vmatprep.subr.mxu0 0.0
    %5043 = vmatpush1.msra.mxu0 0.0
    %5044 = vmatprep.subr.mxu0 0.0
    %5045 = vmatpush1.msra.mxu0 0.0
    %5046 = vmatprep.subr.mxu0 0.0
    %5047 = vmatpush1.msra.mxu0 0.0
    %5048 = vmatprep.subr.mxu0 0.0
    %5049 = vmatpush1.msra.mxu0 0.0
    %5050 = vmatprep.subr.mxu0 0.0
    %5051 = vmatpush1.msra.mxu0 0.0
    %5052 = vmatprep.subr.mxu0 0.0
    %5053 = vmatpush1.msra.mxu0 0.0
    %5054 = vmatprep.subr.mxu0 0.0
    %5055 = vmatpush1.msra.mxu0 0.0
    %5056 = vmatprep.subr.mxu0 0.0
    %5057 = vmatpush1.msra.mxu0 0.0
    %5058 = vmatprep.subr.mxu0 0.0
    %5059 = vmatpush1.msra.mxu0 0.0
    %5060 = vmatprep.subr.mxu0 0.0
    %5061 = vmatpush1.msra.mxu0 0.0
    %5062 = vmatprep.subr.mxu0 0.0
    %5063 = vmatpush1.msra.mxu0 0.0
    %5064 = vmatprep.subr.mxu0 0.0
    %5065 = vmatpush1.msra.mxu0 0.0
    %5066 = vmatprep.subr.mxu0 0.0
    %5067 = vmatpush1.msra.mxu0 0.0
    %5068 = vmatprep.subr.mxu0 0.0
    %5069 = vmatpush1.msra.mxu0 0.0
    %5070 = vmatprep.subr.mxu0 0.0
    %5071 = vmatpush1.msra.mxu0 0.0
    %5072 = vmatprep.subr.mxu0 0.0
    %5073 = vmatpush1.msra.mxu0 0.0
    %5074 = vmatprep.subr.mxu0 0.0
    %5075 = vmatpush1.msra.mxu0 0.0
    %5076 = vmatprep.subr.mxu0 0.0
    %5077 = vmatpush1.msra.mxu0 0.0
    %5078 = vmatprep.subr.mxu0 0.0
    %5079 = vmatpush1.msra.mxu0 0.0
    %5080 = vmatprep.subr.mxu0 0.0
    %5081 = vmatpush1.msra.mxu0 0.0
    %5082 = vmatprep.subr.mxu0 0.0
    %5083 = vmatpush1.msra.mxu0 0.0
    %5084 = vmatprep.subr.mxu0 0.0
    %5085 = vmatpush1.msra.mxu0 0.0
    %5086 = vmatprep.subr.mxu0 0.0
    %5087 = vmatpush1.msra.mxu0 0.0
    %5088 = vmatprep.subr.mxu0 0.0
    %5089 = vmatpush1.msra.mxu0 0.0
    %5090 = vmatprep.subr.mxu0 0.0
    %5091 = vmatpush1.msra.mxu0 0.0
    %5092 = vmatprep.subr.mxu0 0.0
    %5093 = vmatpush1.msra.mxu0 0.0
    %5094 = vmatprep.subr.mxu0 0.0
    %5095 = vmatpush1.msra.mxu0 0.0
    %5096 = vmatprep.subr.mxu0 0.0
    %5097 = vmatpush1.msra.mxu0 0.0
    %5098 = vmatprep.subr.mxu0 0.0
    %5099 = vmatpush1.msra.mxu0 0.0
    %5100 = vmatprep.mubr.f32.mxu0 0.0
    %5101 = vmatmul.mubr.f32.gmra.mrb[0].mxu0 %v5034
    %v5102 = vpop.f32.mrb[0].mxu0
    %v5103 = vadd.f32 0.0, %v5102
    %v5104 = vpop.f32.mrb[0].mxu0
    %5105 = vdwg.mxu0
    %v5106 = vadd.f32 %v4450, %v5103
    %v5107 = vld [vmem:[#allocation2 + $0x34] sm:$0x1]
    %v5108 = vld [vmem:[#allocation2 + $0x74] sm:$0x1]
    %s5109 = scalar_lea.vmem %s3, 832
    %v5110 = vld [vmem:[%s5109] sm:$0xff]
    %v5111 = vld [vmem:[%s5109 + $0x8] sm:$0xff]
    %v5114 = vrot.slane %v5108, 7
    %v5115 = vsel %vm906, %v5114, %v5107
    %v5116 = vsel %vm812, %v5115, 0
    %5118 = vmatprep.subr.mxu0 0.0
    %5119 = vmatpush1.msra.mxu0 %v5110
    %5120 = vmatprep.subr.mxu0 0.0
    %5121 = vmatpush1.msra.mxu0 %v5111
    %5122 = vmatprep.subr.mxu0 0.0
    %5123 = vmatpush1.msra.mxu0 0.0
    %5124 = vmatprep.subr.mxu0 0.0
    %5125 = vmatpush1.msra.mxu0 0.0
    %5126 = vmatprep.subr.mxu0 0.0
    %5127 = vmatpush1.msra.mxu0 0.0
    %5128 = vmatprep.subr.mxu0 0.0
    %5129 = vmatpush1.msra.mxu0 0.0
    %5130 = vmatprep.subr.mxu0 0.0
    %5131 = vmatpush1.msra.mxu0 0.0
    %5132 = vmatprep.subr.mxu0 0.0
    %5133 = vmatpush1.msra.mxu0 0.0
    %5134 = vmatprep.subr.mxu0 0.0
    %5135 = vmatpush1.msra.mxu0 0.0
    %5136 = vmatprep.subr.mxu0 0.0
    %5137 = vmatpush1.msra.mxu0 0.0
    %5138 = vmatprep.subr.mxu0 0.0
    %5139 = vmatpush1.msra.mxu0 0.0
    %5140 = vmatprep.subr.mxu0 0.0
    %5141 = vmatpush1.msra.mxu0 0.0
    %5142 = vmatprep.subr.mxu0 0.0
    %5143 = vmatpush1.msra.mxu0 0.0
    %5144 = vmatprep.subr.mxu0 0.0
    %5145 = vmatpush1.msra.mxu0 0.0
    %5146 = vmatprep.subr.mxu0 0.0
    %5147 = vmatpush1.msra.mxu0 0.0
    %5148 = vmatprep.subr.mxu0 0.0
    %5149 = vmatpush1.msra.mxu0 0.0
    %5150 = vmatprep.subr.mxu0 0.0
    %5151 = vmatpush1.msra.mxu0 0.0
    %5152 = vmatprep.subr.mxu0 0.0
    %5153 = vmatpush1.msra.mxu0 0.0
    %5154 = vmatprep.subr.mxu0 0.0
    %5155 = vmatpush1.msra.mxu0 0.0
    %5156 = vmatprep.subr.mxu0 0.0
    %5157 = vmatpush1.msra.mxu0 0.0
    %5158 = vmatprep.subr.mxu0 0.0
    %5159 = vmatpush1.msra.mxu0 0.0
    %5160 = vmatprep.subr.mxu0 0.0
    %5161 = vmatpush1.msra.mxu0 0.0
    %5162 = vmatprep.subr.mxu0 0.0
    %5163 = vmatpush1.msra.mxu0 0.0
    %5164 = vmatprep.subr.mxu0 0.0
    %5165 = vmatpush1.msra.mxu0 0.0
    %5166 = vmatprep.subr.mxu0 0.0
    %5167 = vmatpush1.msra.mxu0 0.0
    %5168 = vmatprep.subr.mxu0 0.0
    %5169 = vmatpush1.msra.mxu0 0.0
    %5170 = vmatprep.subr.mxu0 0.0
    %5171 = vmatpush1.msra.mxu0 0.0
    %5172 = vmatprep.subr.mxu0 0.0
    %5173 = vmatpush1.msra.mxu0 0.0
    %5174 = vmatprep.subr.mxu0 0.0
    %5175 = vmatpush1.msra.mxu0 0.0
    %5176 = vmatprep.subr.mxu0 0.0
    %5177 = vmatpush1.msra.mxu0 0.0
    %5178 = vmatprep.subr.mxu0 0.0
    %5179 = vmatpush1.msra.mxu0 0.0
    %5180 = vmatprep.subr.mxu0 0.0
    %5181 = vmatpush1.msra.mxu0 0.0
    %5182 = vmatprep.mubr.f32.mxu0 0.0
    %5183 = vmatmul.mubr.f32.gmra.mrb[0].mxu0 %v5116
    %v5184 = vpop.f32.mrb[0].mxu0
    %v5185 = vadd.f32 0.0, %v5184
    %v5186 = vpop.f32.mrb[0].mxu0
    %5187 = vdwg.mxu0
    %v5188 = vadd.f32 %v4532, %v5185
    %v5189 = vld [vmem:[#allocation2 + $0x35] sm:$0x1]
    %v5190 = vld [vmem:[#allocation2 + $0x75] sm:$0x1]
    %s5191 = scalar_lea.vmem %s3, 848
    %v5192 = vld [vmem:[%s5191] sm:$0xff]
    %v5193 = vld [vmem:[%s5191 + $0x8] sm:$0xff]
    %v5196 = vrot.slane %v5190, 7
    %v5197 = vsel %vm906, %v5196, %v5189
    %v5198 = vsel %vm812, %v5197, 0
    %5200 = vmatprep.subr.mxu0 0.0
    %5201 = vmatpush1.msra.mxu0 %v5192
    %5202 = vmatprep.subr.mxu0 0.0
    %5203 = vmatpush1.msra.mxu0 %v5193
    %5204 = vmatprep.subr.mxu0 0.0
    %5205 = vmatpush1.msra.mxu0 0.0
    %5206 = vmatprep.subr.mxu0 0.0
    %5207 = vmatpush1.msra.mxu0 0.0
    %5208 = vmatprep.subr.mxu0 0.0
    %5209 = vmatpush1.msra.mxu0 0.0
    %5210 = vmatprep.subr.mxu0 0.0
    %5211 = vmatpush1.msra.mxu0 0.0
    %5212 = vmatprep.subr.mxu0 0.0
    %5213 = vmatpush1.msra.mxu0 0.0
    %5214 = vmatprep.subr.mxu0 0.0
    %5215 = vmatpush1.msra.mxu0 0.0
    %5216 = vmatprep.subr.mxu0 0.0
    %5217 = vmatpush1.msra.mxu0 0.0
    %5218 = vmatprep.subr.mxu0 0.0
    %5219 = vmatpush1.msra.mxu0 0.0
    %5220 = vmatprep.subr.mxu0 0.0
    %5221 = vmatpush1.msra.mxu0 0.0
    %5222 = vmatprep.subr.mxu0 0.0
    %5223 = vmatpush1.msra.mxu0 0.0
    %5224 = vmatprep.subr.mxu0 0.0
    %5225 = vmatpush1.msra.mxu0 0.0
    %5226 = vmatprep.subr.mxu0 0.0
    %5227 = vmatpush1.msra.mxu0 0.0
    %5228 = vmatprep.subr.mxu0 0.0
    %5229 = vmatpush1.msra.mxu0 0.0
    %5230 = vmatprep.subr.mxu0 0.0
    %5231 = vmatpush1.msra.mxu0 0.0
    %5232 = vmatprep.subr.mxu0 0.0
    %5233 = vmatpush1.msra.mxu0 0.0
    %5234 = vmatprep.subr.mxu0 0.0
    %5235 = vmatpush1.msra.mxu0 0.0
    %5236 = vmatprep.subr.mxu0 0.0
    %5237 = vmatpush1.msra.mxu0 0.0
    %5238 = vmatprep.subr.mxu0 0.0
    %5239 = vmatpush1.msra.mxu0 0.0
    %5240 = vmatprep.subr.mxu0 0.0
    %5241 = vmatpush1.msra.mxu0 0.0
    %5242 = vmatprep.subr.mxu0 0.0
    %5243 = vmatpush1.msra.mxu0 0.0
    %5244 = vmatprep.subr.mxu0 0.0
    %5245 = vmatpush1.msra.mxu0 0.0
    %5246 = vmatprep.subr.mxu0 0.0
    %5247 = vmatpush1.msra.mxu0 0.0
    %5248 = vmatprep.subr.mxu0 0.0
    %5249 = vmatpush1.msra.mxu0 0.0
    %5250 = vmatprep.subr.mxu0 0.0
    %5251 = vmatpush1.msra.mxu0 0.0
    %5252 = vmatprep.subr.mxu0 0.0
    %5253 = vmatpush1.msra.mxu0 0.0
    %5254 = vmatprep.subr.mxu0 0.0
    %5255 = vmatpush1.msra.mxu0 0.0
    %5256 = vmatprep.subr.mxu0 0.0
    %5257 = vmatpush1.msra.mxu0 0.0
    %5258 = vmatprep.subr.mxu0 0.0
    %5259 = vmatpush1.msra.mxu0 0.0
    %5260 = vmatprep.subr.mxu0 0.0
    %5261 = vmatpush1.msra.mxu0 0.0
    %5262 = vmatprep.subr.mxu0 0.0
    %5263 = vmatpush1.msra.mxu0 0.0
    %5264 = vmatprep.mubr.f32.mxu0 0.0
    %5265 = vmatmul.mubr.f32.gmra.mrb[0].mxu0 %v5198
    %v5266 = vpop.f32.mrb[0].mxu0
    %v5267 = vadd.f32 0.0, %v5266
    %v5268 = vpop.f32.mrb[0].mxu0
    %5269 = vdwg.mxu0
    %v5270 = vadd.f32 %v4614, %v5267
    %v5271 = vld [vmem:[#allocation2 + $0x36] sm:$0x1]
    %v5272 = vld [vmem:[#allocation2 + $0x76] sm:$0x1]
    %s5273 = scalar_lea.vmem %s3, 864
    %v5274 = vld [vmem:[%s5273] sm:$0xff]
    %v5275 = vld [vmem:[%s5273 + $0x8] sm:$0xff]
    %v5278 = vrot.slane %v5272, 7
    %v5279 = vsel %vm906, %v5278, %v5271
    %v5280 = vsel %vm812, %v5279, 0
    %5282 = vmatprep.subr.mxu0 0.0
    %5283 = vmatpush1.msra.mxu0 %v5274
    %5284 = vmatprep.subr.mxu0 0.0
    %5285 = vmatpush1.msra.mxu0 %v5275
    %5286 = vmatprep.subr.mxu0 0.0
    %5287 = vmatpush1.msra.mxu0 0.0
    %5288 = vmatprep.subr.mxu0 0.0
    %5289 = vmatpush1.msra.mxu0 0.0
    %5290 = vmatprep.subr.mxu0 0.0
    %5291 = vmatpush1.msra.mxu0 0.0
    %5292 = vmatprep.subr.mxu0 0.0
    %5293 = vmatpush1.msra.mxu0 0.0
    %5294 = vmatprep.subr.mxu0 0.0
    %5295 = vmatpush1.msra.mxu0 0.0
    %5296 = vmatprep.subr.mxu0 0.0
    %5297 = vmatpush1.msra.mxu0 0.0
    %5298 = vmatprep.subr.mxu0 0.0
    %5299 = vmatpush1.msra.mxu0 0.0
    %5300 = vmatprep.subr.mxu0 0.0
    %5301 = vmatpush1.msra.mxu0 0.0
    %5302 = vmatprep.subr.mxu0 0.0
    %5303 = vmatpush1.msra.mxu0 0.0
    %5304 = vmatprep.subr.mxu0 0.0
    %5305 = vmatpush1.msra.mxu0 0.0
    %5306 = vmatprep.subr.mxu0 0.0
    %5307 = vmatpush1.msra.mxu0 0.0
    %5308 = vmatprep.subr.mxu0 0.0
    %5309 = vmatpush1.msra.mxu0 0.0
    %5310 = vmatprep.subr.mxu0 0.0
    %5311 = vmatpush1.msra.mxu0 0.0
    %5312 = vmatprep.subr.mxu0 0.0
    %5313 = vmatpush1.msra.mxu0 0.0
    %5314 = vmatprep.subr.mxu0 0.0
    %5315 = vmatpush1.msra.mxu0 0.0
    %5316 = vmatprep.subr.mxu0 0.0
    %5317 = vmatpush1.msra.mxu0 0.0
    %5318 = vmatprep.subr.mxu0 0.0
    %5319 = vmatpush1.msra.mxu0 0.0
    %5320 = vmatprep.subr.mxu0 0.0
    %5321 = vmatpush1.msra.mxu0 0.0
    %5322 = vmatprep.subr.mxu0 0.0
    %5323 = vmatpush1.msra.mxu0 0.0
    %5324 = vmatprep.subr.mxu0 0.0
    %5325 = vmatpush1.msra.mxu0 0.0
    %5326 = vmatprep.subr.mxu0 0.0
    %5327 = vmatpush1.msra.mxu0 0.0
    %5328 = vmatprep.subr.mxu0 0.0
    %5329 = vmatpush1.msra.mxu0 0.0
    %5330 = vmatprep.subr.mxu0 0.0
    %5331 = vmatpush1.msra.mxu0 0.0
    %5332 = vmatprep.subr.mxu0 0.0
    %5333 = vmatpush1.msra.mxu0 0.0
    %5334 = vmatprep.subr.mxu0 0.0
    %5335 = vmatpush1.msra.mxu0 0.0
    %5336 = vmatprep.subr.mxu0 0.0
    %5337 = vmatpush1.msra.mxu0 0.0
    %5338 = vmatprep.subr.mxu0 0.0
    %5339 = vmatpush1.msra.mxu0 0.0
    %5340 = vmatprep.subr.mxu0 0.0
    %5341 = vmatpush1.msra.mxu0 0.0
    %5342 = vmatprep.subr.mxu0 0.0
    %5343 = vmatpush1.msra.mxu0 0.0
    %5344 = vmatprep.subr.mxu0 0.0
    %5345 = vmatpush1.msra.mxu0 0.0
    %5346 = vmatprep.mubr.f32.mxu0 0.0
    %5347 = vmatmul.mubr.f32.gmra.mrb[0].mxu0 %v5280
    %v5348 = vpop.f32.mrb[0].mxu0
    %v5349 = vadd.f32 0.0, %v5348
    %v5350 = vpop.f32.mrb[0].mxu0
    %5351 = vdwg.mxu0
    %v5352 = vadd.f32 %v4696, %v5349
    %v5353 = vld [vmem:[#allocation2 + $0x37] sm:$0x1]
    %v5354 = vld [vmem:[#allocation2 + $0x77] sm:$0x1]
    %s5355 = scalar_lea.vmem %s3, 880
    %v5356 = vld [vmem:[%s5355] sm:$0xff]
    %v5357 = vld [vmem:[%s5355 + $0x8] sm:$0xff]
    %v5360 = vrot.slane %v5354, 7
    %v5361 = vsel %vm906, %v5360, %v5353
    %v5362 = vsel %vm812, %v5361, 0
    %5364 = vmatprep.subr.mxu0 0.0
    %5365 = vmatpush1.msra.mxu0 %v5356
    %5366 = vmatprep.subr.mxu0 0.0
    %5367 = vmatpush1.msra.mxu0 %v5357
    %5368 = vmatprep.subr.mxu0 0.0
    %5369 = vmatpush1.msra.mxu0 0.0
    %5370 = vmatprep.subr.mxu0 0.0
    %5371 = vmatpush1.msra.mxu0 0.0
    %5372 = vmatprep.subr.mxu0 0.0
    %5373 = vmatpush1.msra.mxu0 0.0
    %5374 = vmatprep.subr.mxu0 0.0
    %5375 = vmatpush1.msra.mxu0 0.0
    %5376 = vmatprep.subr.mxu0 0.0
    %5377 = vmatpush1.msra.mxu0 0.0
    %5378 = vmatprep.subr.mxu0 0.0
    %5379 = vmatpush1.msra.mxu0 0.0
    %5380 = vmatprep.subr.mxu0 0.0
    %5381 = vmatpush1.msra.mxu0 0.0
    %5382 = vmatprep.subr.mxu0 0.0
    %5383 = vmatpush1.msra.mxu0 0.0
    %5384 = vmatprep.subr.mxu0 0.0
    %5385 = vmatpush1.msra.mxu0 0.0
    %5386 = vmatprep.subr.mxu0 0.0
    %5387 = vmatpush1.msra.mxu0 0.0
    %5388 = vmatprep.subr.mxu0 0.0
    %5389 = vmatpush1.msra.mxu0 0.0
    %5390 = vmatprep.subr.mxu0 0.0
    %5391 = vmatpush1.msra.mxu0 0.0
    %5392 = vmatprep.subr.mxu0 0.0
    %5393 = vmatpush1.msra.mxu0 0.0
    %5394 = vmatprep.subr.mxu0 0.0
    %5395 = vmatpush1.msra.mxu0 0.0
    %5396 = vmatprep.subr.mxu0 0.0
    %5397 = vmatpush1.msra.mxu0 0.0
    %5398 = vmatprep.subr.mxu0 0.0
    %5399 = vmatpush1.msra.mxu0 0.0
    %5400 = vmatprep.subr.mxu0 0.0
    %5401 = vmatpush1.msra.mxu0 0.0
    %5402 = vmatprep.subr.mxu0 0.0
    %5403 = vmatpush1.msra.mxu0 0.0
    %5404 = vmatprep.subr.mxu0 0.0
    %5405 = vmatpush1.msra.mxu0 0.0
    %5406 = vmatprep.subr.mxu0 0.0
    %5407 = vmatpush1.msra.mxu0 0.0
    %5408 = vmatprep.subr.mxu0 0.0
    %5409 = vmatpush1.msra.mxu0 0.0
    %5410 = vmatprep.subr.mxu0 0.0
    %5411 = vmatpush1.msra.mxu0 0.0
    %5412 = vmatprep.subr.mxu0 0.0
    %5413 = vmatpush1.msra.mxu0 0.0
    %5414 = vmatprep.subr.mxu0 0.0
    %5415 = vmatpush1.msra.mxu0 0.0
    %5416 = vmatprep.subr.mxu0 0.0
    %5417 = vmatpush1.msra.mxu0 0.0
    %5418 = vmatprep.subr.mxu0 0.0
    %5419 = vmatpush1.msra.mxu0 0.0
    %5420 = vmatprep.subr.mxu0 0.0
    %5421 = vmatpush1.msra.mxu0 0.0
    %5422 = vmatprep.subr.mxu0 0.0
    %5423 = vmatpush1.msra.mxu0 0.0
    %5424 = vmatprep.subr.mxu0 0.0
    %5425 = vmatpush1.msra.mxu0 0.0
    %5426 = vmatprep.subr.mxu0 0.0
    %5427 = vmatpush1.msra.mxu0 0.0
    %5428 = vmatprep.mubr.f32.mxu0 0.0
    %5429 = vmatmul.mubr.f32.gmra.mrb[0].mxu0 %v5362
    %v5430 = vpop.f32.mrb[0].mxu0
    %v5431 = vadd.f32 0.0, %v5430
    %v5432 = vpop.f32.mrb[0].mxu0
    %5433 = vdwg.mxu0
    %v5434 = vadd.f32 %v4778, %v5431
    %v5435 = vld [vmem:[#allocation2 + $0x38] sm:$0x1]
    %v5436 = vld [vmem:[#allocation2 + $0x78] sm:$0x1]
    %s5437 = scalar_lea.vmem %s3, 896
    %v5438 = vld [vmem:[%s5437] sm:$0xff]
    %v5439 = vld [vmem:[%s5437 + $0x8] sm:$0xff]
    %v5442 = vrot.slane %v5436, 7
    %v5443 = vsel %vm906, %v5442, %v5435
    %v5444 = vsel %vm812, %v5443, 0
    %5446 = vmatprep.subr.mxu0 0.0
    %5447 = vmatpush1.msra.mxu0 %v5438
    %5448 = vmatprep.subr.mxu0 0.0
    %5449 = vmatpush1.msra.mxu0 %v5439
    %5450 = vmatprep.subr.mxu0 0.0
    %5451 = vmatpush1.msra.mxu0 0.0
    %5452 = vmatprep.subr.mxu0 0.0
    %5453 = vmatpush1.msra.mxu0 0.0
    %5454 = vmatprep.subr.mxu0 0.0
    %5455 = vmatpush1.msra.mxu0 0.0
    %5456 = vmatprep.subr.mxu0 0.0
    %5457 = vmatpush1.msra.mxu0 0.0
    %5458 = vmatprep.subr.mxu0 0.0
    %5459 = vmatpush1.msra.mxu0 0.0
    %5460 = vmatprep.subr.mxu0 0.0
    %5461 = vmatpush1.msra.mxu0 0.0
    %5462 = vmatprep.subr.mxu0 0.0
    %5463 = vmatpush1.msra.mxu0 0.0
    %5464 = vmatprep.subr.mxu0 0.0
    %5465 = vmatpush1.msra.mxu0 0.0
    %5466 = vmatprep.subr.mxu0 0.0
    %5467 = vmatpush1.msra.mxu0 0.0
    %5468 = vmatprep.subr.mxu0 0.0
    %5469 = vmatpush1.msra.mxu0 0.0
    %5470 = vmatprep.subr.mxu0 0.0
    %5471 = vmatpush1.msra.mxu0 0.0
    %5472 = vmatprep.subr.mxu0 0.0
    %5473 = vmatpush1.msra.mxu0 0.0
    %5474 = vmatprep.subr.mxu0 0.0
    %5475 = vmatpush1.msra.mxu0 0.0
    %5476 = vmatprep.subr.mxu0 0.0
    %5477 = vmatpush1.msra.mxu0 0.0
    %5478 = vmatprep.subr.mxu0 0.0
    %5479 = vmatpush1.msra.mxu0 0.0
    %5480 = vmatprep.subr.mxu0 0.0
    %5481 = vmatpush1.msra.mxu0 0.0
    %5482 = vmatprep.subr.mxu0 0.0
    %5483 = vmatpush1.msra.mxu0 0.0
    %5484 = vmatprep.subr.mxu0 0.0
    %5485 = vmatpush1.msra.mxu0 0.0
    %5486 = vmatprep.subr.mxu0 0.0
    %5487 = vmatpush1.msra.mxu0 0.0
    %5488 = vmatprep.subr.mxu0 0.0
    %5489 = vmatpush1.msra.mxu0 0.0
    %5490 = vmatprep.subr.mxu0 0.0
    %5491 = vmatpush1.msra.mxu0 0.0
    %5492 = vmatprep.subr.mxu0 0.0
    %5493 = vmatpush1.msra.mxu0 0.0
    %5494 = vmatprep.subr.mxu0 0.0
    %5495 = vmatpush1.msra.mxu0 0.0
    %5496 = vmatprep.subr.mxu0 0.0
    %5497 = vmatpush1.msra.mxu0 0.0
    %5498 = vmatprep.subr.mxu0 0.0
    %5499 = vmatpush1.msra.mxu0 0.0
    %5500 = vmatprep.subr.mxu0 0.0
    %5501 = vmatpush1.msra.mxu0 0.0
    %5502 = vmatprep.subr.mxu0 0.0
    %5503 = vmatpush1.msra.mxu0 0.0
    %5504 = vmatprep.subr.mxu0 0.0
    %5505 = vmatpush1.msra.mxu0 0.0
    %5506 = vmatprep.subr.mxu0 0.0
    %5507 = vmatpush1.msra.mxu0 0.0
    %5508 = vmatprep.subr.mxu0 0.0
    %5509 = vmatpush1.msra.mxu0 0.0
    %5510 = vmatprep.mubr.f32.mxu0 0.0
    %5511 = vmatmul.mubr.f32.gmra.mrb[0].mxu0 %v5444
    %v5512 = vpop.f32.mrb[0].mxu0
    %v5513 = vadd.f32 0.0, %v5512
    %v5514 = vpop.f32.mrb[0].mxu0
    %5515 = vdwg.mxu0
    %v5516 = vadd.f32 %v4860, %v5513
    %v5517 = vld [vmem:[#allocation2 + $0x39] sm:$0x1]
    %v5518 = vld [vmem:[#allocation2 + $0x79] sm:$0x1]
    %s5519 = scalar_lea.vmem %s3, 912
    %v5520 = vld [vmem:[%s5519] sm:$0xff]
    %v5521 = vld [vmem:[%s5519 + $0x8] sm:$0xff]
    %v5524 = vrot.slane %v5518, 7
    %v5525 = vsel %vm906, %v5524, %v5517
    %v5526 = vsel %vm812, %v5525, 0
    %5528 = vmatprep.subr.mxu0 0.0
    %5529 = vmatpush1.msra.mxu0 %v5520
    %5530 = vmatprep.subr.mxu0 0.0
    %5531 = vmatpush1.msra.mxu0 %v5521
    %5532 = vmatprep.subr.mxu0 0.0
    %5533 = vmatpush1.msra.mxu0 0.0
    %5534 = vmatprep.subr.mxu0 0.0
    %5535 = vmatpush1.msra.mxu0 0.0
    %5536 = vmatprep.subr.mxu0 0.0
    %5537 = vmatpush1.msra.mxu0 0.0
    %5538 = vmatprep.subr.mxu0 0.0
    %5539 = vmatpush1.msra.mxu0 0.0
    %5540 = vmatprep.subr.mxu0 0.0
    %5541 = vmatpush1.msra.mxu0 0.0
    %5542 = vmatprep.subr.mxu0 0.0
    %5543 = vmatpush1.msra.mxu0 0.0
    %5544 = vmatprep.subr.mxu0 0.0
    %5545 = vmatpush1.msra.mxu0 0.0
    %5546 = vmatprep.subr.mxu0 0.0
    %5547 = vmatpush1.msra.mxu0 0.0
    %5548 = vmatprep.subr.mxu0 0.0
    %5549 = vmatpush1.msra.mxu0 0.0
    %5550 = vmatprep.subr.mxu0 0.0
    %5551 = vmatpush1.msra.mxu0 0.0
    %5552 = vmatprep.subr.mxu0 0.0
    %5553 = vmatpush1.msra.mxu0 0.0
    %5554 = vmatprep.subr.mxu0 0.0
    %5555 = vmatpush1.msra.mxu0 0.0
    %5556 = vmatprep.subr.mxu0 0.0
    %5557 = vmatpush1.msra.mxu0 0.0
    %5558 = vmatprep.subr.mxu0 0.0
    %5559 = vmatpush1.msra.mxu0 0.0
    %5560 = vmatprep.subr.mxu0 0.0
    %5561 = vmatpush1.msra.mxu0 0.0
    %5562 = vmatprep.subr.mxu0 0.0
    %5563 = vmatpush1.msra.mxu0 0.0
    %5564 = vmatprep.subr.mxu0 0.0
    %5565 = vmatpush1.msra.mxu0 0.0
    %5566 = vmatprep.subr.mxu0 0.0
    %5567 = vmatpush1.msra.mxu0 0.0
    %5568 = vmatprep.subr.mxu0 0.0
    %5569 = vmatpush1.msra.mxu0 0.0
    %5570 = vmatprep.subr.mxu0 0.0
    %5571 = vmatpush1.msra.mxu0 0.0
    %5572 = vmatprep.subr.mxu0 0.0
    %5573 = vmatpush1.msra.mxu0 0.0
    %5574 = vmatprep.subr.mxu0 0.0
    %5575 = vmatpush1.msra.mxu0 0.0
    %5576 = vmatprep.subr.mxu0 0.0
    %5577 = vmatpush1.msra.mxu0 0.0
    %5578 = vmatprep.subr.mxu0 0.0
    %5579 = vmatpush1.msra.mxu0 0.0
    %5580 = vmatprep.subr.mxu0 0.0
    %5581 = vmatpush1.msra.mxu0 0.0
    %5582 = vmatprep.subr.mxu0 0.0
    %5583 = vmatpush1.msra.mxu0 0.0
    %5584 = vmatprep.subr.mxu0 0.0
    %5585 = vmatpush1.msra.mxu0 0.0
    %5586 = vmatprep.subr.mxu0 0.0
    %5587 = vmatpush1.msra.mxu0 0.0
    %5588 = vmatprep.subr.mxu0 0.0
    %5589 = vmatpush1.msra.mxu0 0.0
    %5590 = vmatprep.subr.mxu0 0.0
    %5591 = vmatpush1.msra.mxu0 0.0
    %5592 = vmatprep.mubr.f32.mxu0 0.0
    %5593 = vmatmul.mubr.f32.gmra.mrb[0].mxu0 %v5526
    %v5594 = vpop.f32.mrb[0].mxu0
    %v5595 = vadd.f32 0.0, %v5594
    %v5596 = vpop.f32.mrb[0].mxu0
    %5597 = vdwg.mxu0
    %v5598 = vadd.f32 %v4942, %v5595
    %v5599 = vld [vmem:[#allocation2 + $0x3a] sm:$0x1]
    %v5600 = vld [vmem:[#allocation2 + $0x7a] sm:$0x1]
    %s5601 = scalar_lea.vmem %s3, 928
    %v5602 = vld [vmem:[%s5601] sm:$0xff]
    %v5603 = vld [vmem:[%s5601 + $0x8] sm:$0xff]
    %v5606 = vrot.slane %v5600, 7
    %v5607 = vsel %vm906, %v5606, %v5599
    %v5608 = vsel %vm812, %v5607, 0
    %5610 = vmatprep.subr.mxu0 0.0
    %5611 = vmatpush1.msra.mxu0 %v5602
    %5612 = vmatprep.subr.mxu0 0.0
    %5613 = vmatpush1.msra.mxu0 %v5603
    %5614 = vmatprep.subr.mxu0 0.0
    %5615 = vmatpush1.msra.mxu0 0.0
    %5616 = vmatprep.subr.mxu0 0.0
    %5617 = vmatpush1.msra.mxu0 0.0
    %5618 = vmatprep.subr.mxu0 0.0
    %5619 = vmatpush1.msra.mxu0 0.0
    %5620 = vmatprep.subr.mxu0 0.0
    %5621 = vmatpush1.msra.mxu0 0.0
    %5622 = vmatprep.subr.mxu0 0.0
    %5623 = vmatpush1.msra.mxu0 0.0
    %5624 = vmatprep.subr.mxu0 0.0
    %5625 = vmatpush1.msra.mxu0 0.0
    %5626 = vmatprep.subr.mxu0 0.0
    %5627 = vmatpush1.msra.mxu0 0.0
    %5628 = vmatprep.subr.mxu0 0.0
    %5629 = vmatpush1.msra.mxu0 0.0
    %5630 = vmatprep.subr.mxu0 0.0
    %5631 = vmatpush1.msra.mxu0 0.0
    %5632 = vmatprep.subr.mxu0 0.0
    %5633 = vmatpush1.msra.mxu0 0.0
    %5634 = vmatprep.subr.mxu0 0.0
    %5635 = vmatpush1.msra.mxu0 0.0
    %5636 = vmatprep.subr.mxu0 0.0
    %5637 = vmatpush1.msra.mxu0 0.0
    %5638 = vmatprep.subr.mxu0 0.0
    %5639 = vmatpush1.msra.mxu0 0.0
    %5640 = vmatprep.subr.mxu0 0.0
    %5641 = vmatpush1.msra.mxu0 0.0
    %5642 = vmatprep.subr.mxu0 0.0
    %5643 = vmatpush1.msra.mxu0 0.0
    %5644 = vmatprep.subr.mxu0 0.0
    %5645 = vmatpush1.msra.mxu0 0.0
    %5646 = vmatprep.subr.mxu0 0.0
    %5647 = vmatpush1.msra.mxu0 0.0
    %5648 = vmatprep.subr.mxu0 0.0
    %5649 = vmatpush1.msra.mxu0 0.0
    %5650 = vmatprep.subr.mxu0 0.0
    %5651 = vmatpush1.msra.mxu0 0.0
    %5652 = vmatprep.subr.mxu0 0.0
    %5653 = vmatpush1.msra.mxu0 0.0
    %5654 = vmatprep.subr.mxu0 0.0
    %5655 = vmatpush1.msra.mxu0 0.0
    %5656 = vmatprep.subr.mxu0 0.0
    %5657 = vmatpush1.msra.mxu0 0.0
    %5658 = vmatprep.subr.mxu0 0.0
    %5659 = vmatpush1.msra.mxu0 0.0
    %5660 = vmatprep.subr.mxu0 0.0
    %5661 = vmatpush1.msra.mxu0 0.0
    %5662 = vmatprep.subr.mxu0 0.0
    %5663 = vmatpush1.msra.mxu0 0.0
    %5664 = vmatprep.subr.mxu0 0.0
    %5665 = vmatpush1.msra.mxu0 0.0
    %5666 = vmatprep.subr.mxu0 0.0
    %5667 = vmatpush1.msra.mxu0 0.0
    %5668 = vmatprep.subr.mxu0 0.0
    %5669 = vmatpush1.msra.mxu0 0.0
    %5670 = vmatprep.subr.mxu0 0.0
    %5671 = vmatpush1.msra.mxu0 0.0
    %5672 = vmatprep.subr.mxu0 0.0
    %5673 = vmatpush1.msra.mxu0 0.0
    %5674 = vmatprep.mubr.f32.mxu0 0.0
    %5675 = vmatmul.mubr.f32.gmra.mrb[0].mxu0 %v5608
    %v5676 = vpop.f32.mrb[0].mxu0
    %v5677 = vadd.f32 0.0, %v5676
    %v5678 = vpop.f32.mrb[0].mxu0
    %5679 = vdwg.mxu0
    %v5680 = vadd.f32 %v5024, %v5677
    %v5681 = vld [vmem:[#allocation2 + $0x3b] sm:$0x1]
    %v5682 = vld [vmem:[#allocation2 + $0x7b] sm:$0x1]
    %s5683 = scalar_lea.vmem %s3, 944
    %v5684 = vld [vmem:[%s5683] sm:$0xff]
    %v5685 = vld [vmem:[%s5683 + $0x8] sm:$0xff]
    %v5688 = vrot.slane %v5682, 7
    %v5689 = vsel %vm906, %v5688, %v5681
    %v5690 = vsel %vm812, %v5689, 0
    %5692 = vmatprep.subr.mxu0 0.0
    %5693 = vmatpush1.msra.mxu0 %v5684
    %5694 = vmatprep.subr.mxu0 0.0
    %5695 = vmatpush1.msra.mxu0 %v5685
    %5696 = vmatprep.subr.mxu0 0.0
    %5697 = vmatpush1.msra.mxu0 0.0
    %5698 = vmatprep.subr.mxu0 0.0
    %5699 = vmatpush1.msra.mxu0 0.0
    %5700 = vmatprep.subr.mxu0 0.0
    %5701 = vmatpush1.msra.mxu0 0.0
    %5702 = vmatprep.subr.mxu0 0.0
    %5703 = vmatpush1.msra.mxu0 0.0
    %5704 = vmatprep.subr.mxu0 0.0
    %5705 = vmatpush1.msra.mxu0 0.0
    %5706 = vmatprep.subr.mxu0 0.0
    %5707 = vmatpush1.msra.mxu0 0.0
    %5708 = vmatprep.subr.mxu0 0.0
    %5709 = vmatpush1.msra.mxu0 0.0
    %5710 = vmatprep.subr.mxu0 0.0
    %5711 = vmatpush1.msra.mxu0 0.0
    %5712 = vmatprep.subr.mxu0 0.0
    %5713 = vmatpush1.msra.mxu0 0.0
    %5714 = vmatprep.subr.mxu0 0.0
    %5715 = vmatpush1.msra.mxu0 0.0
    %5716 = vmatprep.subr.mxu0 0.0
    %5717 = vmatpush1.msra.mxu0 0.0
    %5718 = vmatprep.subr.mxu0 0.0
    %5719 = vmatpush1.msra.mxu0 0.0
    %5720 = vmatprep.subr.mxu0 0.0
    %5721 = vmatpush1.msra.mxu0 0.0
    %5722 = vmatprep.subr.mxu0 0.0
    %5723 = vmatpush1.msra.mxu0 0.0
    %5724 = vmatprep.subr.mxu0 0.0
    %5725 = vmatpush1.msra.mxu0 0.0
    %5726 = vmatprep.subr.mxu0 0.0
    %5727 = vmatpush1.msra.mxu0 0.0
    %5728 = vmatprep.subr.mxu0 0.0
    %5729 = vmatpush1.msra.mxu0 0.0
    %5730 = vmatprep.subr.mxu0 0.0
    %5731 = vmatpush1.msra.mxu0 0.0
    %5732 = vmatprep.subr.mxu0 0.0
    %5733 = vmatpush1.msra.mxu0 0.0
    %5734 = vmatprep.subr.mxu0 0.0
    %5735 = vmatpush1.msra.mxu0 0.0
    %5736 = vmatprep.subr.mxu0 0.0
    %5737 = vmatpush1.msra.mxu0 0.0
    %5738 = vmatprep.subr.mxu0 0.0
    %5739 = vmatpush1.msra.mxu0 0.0
    %5740 = vmatprep.subr.mxu0 0.0
    %5741 = vmatpush1.msra.mxu0 0.0
    %5742 = vmatprep.subr.mxu0 0.0
    %5743 = vmatpush1.msra.mxu0 0.0
    %5744 = vmatprep.subr.mxu0 0.0
    %5745 = vmatpush1.msra.mxu0 0.0
    %5746 = vmatprep.subr.mxu0 0.0
    %5747 = vmatpush1.msra.mxu0 0.0
    %5748 = vmatprep.subr.mxu0 0.0
    %5749 = vmatpush1.msra.mxu0 0.0
    %5750 = vmatprep.subr.mxu0 0.0
    %5751 = vmatpush1.msra.mxu0 0.0
    %5752 = vmatprep.subr.mxu0 0.0
    %5753 = vmatpush1.msra.mxu0 0.0
    %5754 = vmatprep.subr.mxu0 0.0
    %5755 = vmatpush1.msra.mxu0 0.0
    %5756 = vmatprep.mubr.f32.mxu0 0.0
    %5757 = vmatmul.mubr.f32.gmra.mrb[0].mxu0 %v5690
    %v5758 = vpop.f32.mrb[0].mxu0
    %v5759 = vadd.f32 0.0, %v5758
    %v5760 = vpop.f32.mrb[0].mxu0
    %5761 = vdwg.mxu0
    %v5762 = vadd.f32 %v5106, %v5759
    %v5763 = vld [vmem:[#allocation2 + $0x3c] sm:$0x1]
    %v5764 = vld [vmem:[#allocation2 + $0x7c] sm:$0x1]
    %s5765 = scalar_lea.vmem %s3, 960
    %v5766 = vld [vmem:[%s5765] sm:$0xff]
    %v5767 = vld [vmem:[%s5765 + $0x8] sm:$0xff]
    %v5770 = vrot.slane %v5764, 7
    %v5771 = vsel %vm906, %v5770, %v5763
    %v5772 = vsel %vm812, %v5771, 0
    %5774 = vmatprep.subr.mxu0 0.0
    %5775 = vmatpush1.msra.mxu0 %v5766
    %5776 = vmatprep.subr.mxu0 0.0
    %5777 = vmatpush1.msra.mxu0 %v5767
    %5778 = vmatprep.subr.mxu0 0.0
    %5779 = vmatpush1.msra.mxu0 0.0
    %5780 = vmatprep.subr.mxu0 0.0
    %5781 = vmatpush1.msra.mxu0 0.0
    %5782 = vmatprep.subr.mxu0 0.0
    %5783 = vmatpush1.msra.mxu0 0.0
    %5784 = vmatprep.subr.mxu0 0.0
    %5785 = vmatpush1.msra.mxu0 0.0
    %5786 = vmatprep.subr.mxu0 0.0
    %5787 = vmatpush1.msra.mxu0 0.0
    %5788 = vmatprep.subr.mxu0 0.0
    %5789 = vmatpush1.msra.mxu0 0.0
    %5790 = vmatprep.subr.mxu0 0.0
    %5791 = vmatpush1.msra.mxu0 0.0
    %5792 = vmatprep.subr.mxu0 0.0
    %5793 = vmatpush1.msra.mxu0 0.0
    %5794 = vmatprep.subr.mxu0 0.0
    %5795 = vmatpush1.msra.mxu0 0.0
    %5796 = vmatprep.subr.mxu0 0.0
    %5797 = vmatpush1.msra.mxu0 0.0
    %5798 = vmatprep.subr.mxu0 0.0
    %5799 = vmatpush1.msra.mxu0 0.0
    %5800 = vmatprep.subr.mxu0 0.0
    %5801 = vmatpush1.msra.mxu0 0.0
    %5802 = vmatprep.subr.mxu0 0.0
    %5803 = vmatpush1.msra.mxu0 0.0
    %5804 = vmatprep.subr.mxu0 0.0
    %5805 = vmatpush1.msra.mxu0 0.0
    %5806 = vmatprep.subr.mxu0 0.0
    %5807 = vmatpush1.msra.mxu0 0.0
    %5808 = vmatprep.subr.mxu0 0.0
    %5809 = vmatpush1.msra.mxu0 0.0
    %5810 = vmatprep.subr.mxu0 0.0
    %5811 = vmatpush1.msra.mxu0 0.0
    %5812 = vmatprep.subr.mxu0 0.0
    %5813 = vmatpush1.msra.mxu0 0.0
    %5814 = vmatprep.subr.mxu0 0.0
    %5815 = vmatpush1.msra.mxu0 0.0
    %5816 = vmatprep.subr.mxu0 0.0
    %5817 = vmatpush1.msra.mxu0 0.0
    %5818 = vmatprep.subr.mxu0 0.0
    %5819 = vmatpush1.msra.mxu0 0.0
    %5820 = vmatprep.subr.mxu0 0.0
    %5821 = vmatpush1.msra.mxu0 0.0
    %5822 = vmatprep.subr.mxu0 0.0
    %5823 = vmatpush1.msra.mxu0 0.0
    %5824 = vmatprep.subr.mxu0 0.0
    %5825 = vmatpush1.msra.mxu0 0.0
    %5826 = vmatprep.subr.mxu0 0.0
    %5827 = vmatpush1.msra.mxu0 0.0
    %5828 = vmatprep.subr.mxu0 0.0
    %5829 = vmatpush1.msra.mxu0 0.0
    %5830 = vmatprep.subr.mxu0 0.0
    %5831 = vmatpush1.msra.mxu0 0.0
    %5832 = vmatprep.subr.mxu0 0.0
    %5833 = vmatpush1.msra.mxu0 0.0
    %5834 = vmatprep.subr.mxu0 0.0
    %5835 = vmatpush1.msra.mxu0 0.0
    %5836 = vmatprep.subr.mxu0 0.0
    %5837 = vmatpush1.msra.mxu0 0.0
    %5838 = vmatprep.mubr.f32.mxu0 0.0
    %5839 = vmatmul.mubr.f32.gmra.mrb[0].mxu0 %v5772
    %v5840 = vpop.f32.mrb[0].mxu0
    %v5841 = vadd.f32 0.0, %v5840
    %v5842 = vpop.f32.mrb[0].mxu0
    %5843 = vdwg.mxu0
    %v5844 = vadd.f32 %v5188, %v5841
    %v5845 = vld [vmem:[#allocation2 + $0x3d] sm:$0x1]
    %v5846 = vld [vmem:[#allocation2 + $0x7d] sm:$0x1]
    %s5847 = scalar_lea.vmem %s3, 976
    %v5848 = vld [vmem:[%s5847] sm:$0xff]
    %v5849 = vld [vmem:[%s5847 + $0x8] sm:$0xff]
    %v5852 = vrot.slane %v5846, 7
    %v5853 = vsel %vm906, %v5852, %v5845
    %v5854 = vsel %vm812, %v5853, 0
    %5856 = vmatprep.subr.mxu0 0.0
    %5857 = vmatpush1.msra.mxu0 %v5848
    %5858 = vmatprep.subr.mxu0 0.0
    %5859 = vmatpush1.msra.mxu0 %v5849
    %5860 = vmatprep.subr.mxu0 0.0
    %5861 = vmatpush1.msra.mxu0 0.0
    %5862 = vmatprep.subr.mxu0 0.0
    %5863 = vmatpush1.msra.mxu0 0.0
    %5864 = vmatprep.subr.mxu0 0.0
    %5865 = vmatpush1.msra.mxu0 0.0
    %5866 = vmatprep.subr.mxu0 0.0
    %5867 = vmatpush1.msra.mxu0 0.0
    %5868 = vmatprep.subr.mxu0 0.0
    %5869 = vmatpush1.msra.mxu0 0.0
    %5870 = vmatprep.subr.mxu0 0.0
    %5871 = vmatpush1.msra.mxu0 0.0
    %5872 = vmatprep.subr.mxu0 0.0
    %5873 = vmatpush1.msra.mxu0 0.0
    %5874 = vmatprep.subr.mxu0 0.0
    %5875 = vmatpush1.msra.mxu0 0.0
    %5876 = vmatprep.subr.mxu0 0.0
    %5877 = vmatpush1.msra.mxu0 0.0
    %5878 = vmatprep.subr.mxu0 0.0
    %5879 = vmatpush1.msra.mxu0 0.0
    %5880 = vmatprep.subr.mxu0 0.0
    %5881 = vmatpush1.msra.mxu0 0.0
    %5882 = vmatprep.subr.mxu0 0.0
    %5883 = vmatpush1.msra.mxu0 0.0
    %5884 = vmatprep.subr.mxu0 0.0
    %5885 = vmatpush1.msra.mxu0 0.0
    %5886 = vmatprep.subr.mxu0 0.0
    %5887 = vmatpush1.msra.mxu0 0.0
    %5888 = vmatprep.subr.mxu0 0.0
    %5889 = vmatpush1.msra.mxu0 0.0
    %5890 = vmatprep.subr.mxu0 0.0
    %5891 = vmatpush1.msra.mxu0 0.0
    %5892 = vmatprep.subr.mxu0 0.0
    %5893 = vmatpush1.msra.mxu0 0.0
    %5894 = vmatprep.subr.mxu0 0.0
    %5895 = vmatpush1.msra.mxu0 0.0
    %5896 = vmatprep.subr.mxu0 0.0
    %5897 = vmatpush1.msra.mxu0 0.0
    %5898 = vmatprep.subr.mxu0 0.0
    %5899 = vmatpush1.msra.mxu0 0.0
    %5900 = vmatprep.subr.mxu0 0.0
    %5901 = vmatpush1.msra.mxu0 0.0
    %5902 = vmatprep.subr.mxu0 0.0
    %5903 = vmatpush1.msra.mxu0 0.0
    %5904 = vmatprep.subr.mxu0 0.0
    %5905 = vmatpush1.msra.mxu0 0.0
    %5906 = vmatprep.subr.mxu0 0.0
    %5907 = vmatpush1.msra.mxu0 0.0
    %5908 = vmatprep.subr.mxu0 0.0
    %5909 = vmatpush1.msra.mxu0 0.0
    %5910 = vmatprep.subr.mxu0 0.0
    %5911 = vmatpush1.msra.mxu0 0.0
    %5912 = vmatprep.subr.mxu0 0.0
    %5913 = vmatpush1.msra.mxu0 0.0
    %5914 = vmatprep.subr.mxu0 0.0
    %5915 = vmatpush1.msra.mxu0 0.0
    %5916 = vmatprep.subr.mxu0 0.0
    %5917 = vmatpush1.msra.mxu0 0.0
    %5918 = vmatprep.subr.mxu0 0.0
    %5919 = vmatpush1.msra.mxu0 0.0
    %5920 = vmatprep.mubr.f32.mxu0 0.0
    %5921 = vmatmul.mubr.f32.gmra.mrb[0].mxu0 %v5854
    %v5922 = vpop.f32.mrb[0].mxu0
    %v5923 = vadd.f32 0.0, %v5922
    %v5924 = vpop.f32.mrb[0].mxu0
    %5925 = vdwg.mxu0
    %v5926 = vadd.f32 %v5270, %v5923
    %v5927 = vld [vmem:[#allocation2 + $0x3e] sm:$0x1]
    %v5928 = vld [vmem:[#allocation2 + $0x7e] sm:$0x1]
    %s5929 = scalar_lea.vmem %s3, 992
    %v5930 = vld [vmem:[%s5929] sm:$0xff]
    %v5931 = vld [vmem:[%s5929 + $0x8] sm:$0xff]
    %v5934 = vrot.slane %v5928, 7
    %v5935 = vsel %vm906, %v5934, %v5927
    %v5936 = vsel %vm812, %v5935, 0
    %5938 = vmatprep.subr.mxu0 0.0
    %5939 = vmatpush1.msra.mxu0 %v5930
    %5940 = vmatprep.subr.mxu0 0.0
    %5941 = vmatpush1.msra.mxu0 %v5931
    %5942 = vmatprep.subr.mxu0 0.0
    %5943 = vmatpush1.msra.mxu0 0.0
    %5944 = vmatprep.subr.mxu0 0.0
    %5945 = vmatpush1.msra.mxu0 0.0
    %5946 = vmatprep.subr.mxu0 0.0
    %5947 = vmatpush1.msra.mxu0 0.0
    %5948 = vmatprep.subr.mxu0 0.0
    %5949 = vmatpush1.msra.mxu0 0.0
    %5950 = vmatprep.subr.mxu0 0.0
    %5951 = vmatpush1.msra.mxu0 0.0
    %5952 = vmatprep.subr.mxu0 0.0
    %5953 = vmatpush1.msra.mxu0 0.0
    %5954 = vmatprep.subr.mxu0 0.0
    %5955 = vmatpush1.msra.mxu0 0.0
    %5956 = vmatprep.subr.mxu0 0.0
    %5957 = vmatpush1.msra.mxu0 0.0
    %5958 = vmatprep.subr.mxu0 0.0
    %5959 = vmatpush1.msra.mxu0 0.0
    %5960 = vmatprep.subr.mxu0 0.0
    %5961 = vmatpush1.msra.mxu0 0.0
    %5962 = vmatprep.subr.mxu0 0.0
    %5963 = vmatpush1.msra.mxu0 0.0
    %5964 = vmatprep.subr.mxu0 0.0
    %5965 = vmatpush1.msra.mxu0 0.0
    %5966 = vmatprep.subr.mxu0 0.0
    %5967 = vmatpush1.msra.mxu0 0.0
    %5968 = vmatprep.subr.mxu0 0.0
    %5969 = vmatpush1.msra.mxu0 0.0
    %5970 = vmatprep.subr.mxu0 0.0
    %5971 = vmatpush1.msra.mxu0 0.0
    %5972 = vmatprep.subr.mxu0 0.0
    %5973 = vmatpush1.msra.mxu0 0.0
    %5974 = vmatprep.subr.mxu0 0.0
    %5975 = vmatpush1.msra.mxu0 0.0
    %5976 = vmatprep.subr.mxu0 0.0
    %5977 = vmatpush1.msra.mxu0 0.0
    %5978 = vmatprep.subr.mxu0 0.0
    %5979 = vmatpush1.msra.mxu0 0.0
    %5980 = vmatprep.subr.mxu0 0.0
    %5981 = vmatpush1.msra.mxu0 0.0
    %5982 = vmatprep.subr.mxu0 0.0
    %5983 = vmatpush1.msra.mxu0 0.0
    %5984 = vmatprep.subr.mxu0 0.0
    %5985 = vmatpush1.msra.mxu0 0.0
    %5986 = vmatprep.subr.mxu0 0.0
    %5987 = vmatpush1.msra.mxu0 0.0
    %5988 = vmatprep.subr.mxu0 0.0
    %5989 = vmatpush1.msra.mxu0 0.0
    %5990 = vmatprep.subr.mxu0 0.0
    %5991 = vmatpush1.msra.mxu0 0.0
    %5992 = vmatprep.subr.mxu0 0.0
    %5993 = vmatpush1.msra.mxu0 0.0
    %5994 = vmatprep.subr.mxu0 0.0
    %5995 = vmatpush1.msra.mxu0 0.0
    %5996 = vmatprep.subr.mxu0 0.0
    %5997 = vmatpush1.msra.mxu0 0.0
    %5998 = vmatprep.subr.mxu0 0.0
    %5999 = vmatpush1.msra.mxu0 0.0
    %6000 = vmatprep.subr.mxu0 0.0
    %6001 = vmatpush1.msra.mxu0 0.0
    %6002 = vmatprep.mubr.f32.mxu0 0.0
    %6003 = vmatmul.mubr.f32.gmra.mrb[0].mxu0 %v5936
    %v6004 = vpop.f32.mrb[0].mxu0
    %v6005 = vadd.f32 0.0, %v6004
    %v6006 = vpop.f32.mrb[0].mxu0
    %6007 = vdwg.mxu0
    %v6008 = vadd.f32 %v5352, %v6005
    %v6009 = vld [vmem:[#allocation2 + $0x3f] sm:$0x1]
    %v6010 = vld [vmem:[#allocation2 + $0x7f] sm:$0x1]
    %s6011 = scalar_lea.vmem %s3, 1008
    %v6012 = vld [vmem:[%s6011] sm:$0xff]
    %v6013 = vld [vmem:[%s6011 + $0x8] sm:$0xff]
    %v6016 = vrot.slane %v6010, 7
    %v6017 = vsel %vm906, %v6016, %v6009
    %v6018 = vsel %vm812, %v6017, 0
    %6020 = vmatprep.subr.mxu0 0.0
    %6021 = vmatpush1.msra.mxu0 %v6012
    %6022 = vmatprep.subr.mxu0 0.0
    %6023 = vmatpush1.msra.mxu0 %v6013
    %6024 = vmatprep.subr.mxu0 0.0
    %6025 = vmatpush1.msra.mxu0 0.0
    %6026 = vmatprep.subr.mxu0 0.0
    %6027 = vmatpush1.msra.mxu0 0.0
    %6028 = vmatprep.subr.mxu0 0.0
    %6029 = vmatpush1.msra.mxu0 0.0
    %6030 = vmatprep.subr.mxu0 0.0
    %6031 = vmatpush1.msra.mxu0 0.0
    %6032 = vmatprep.subr.mxu0 0.0
    %6033 = vmatpush1.msra.mxu0 0.0
    %6034 = vmatprep.subr.mxu0 0.0
    %6035 = vmatpush1.msra.mxu0 0.0
    %6036 = vmatprep.subr.mxu0 0.0
    %6037 = vmatpush1.msra.mxu0 0.0
    %6038 = vmatprep.subr.mxu0 0.0
    %6039 = vmatpush1.msra.mxu0 0.0
    %6040 = vmatprep.subr.mxu0 0.0
    %6041 = vmatpush1.msra.mxu0 0.0
    %6042 = vmatprep.subr.mxu0 0.0
    %6043 = vmatpush1.msra.mxu0 0.0
    %6044 = vmatprep.subr.mxu0 0.0
    %6045 = vmatpush1.msra.mxu0 0.0
    %6046 = vmatprep.subr.mxu0 0.0
    %6047 = vmatpush1.msra.mxu0 0.0
    %6048 = vmatprep.subr.mxu0 0.0
    %6049 = vmatpush1.msra.mxu0 0.0
    %6050 = vmatprep.subr.mxu0 0.0
    %6051 = vmatpush1.msra.mxu0 0.0
    %6052 = vmatprep.subr.mxu0 0.0
    %6053 = vmatpush1.msra.mxu0 0.0
    %6054 = vmatprep.subr.mxu0 0.0
    %6055 = vmatpush1.msra.mxu0 0.0
    %6056 = vmatprep.subr.mxu0 0.0
    %6057 = vmatpush1.msra.mxu0 0.0
    %6058 = vmatprep.subr.mxu0 0.0
    %6059 = vmatpush1.msra.mxu0 0.0
    %6060 = vmatprep.subr.mxu0 0.0
    %6061 = vmatpush1.msra.mxu0 0.0
    %6062 = vmatprep.subr.mxu0 0.0
    %6063 = vmatpush1.msra.mxu0 0.0
    %6064 = vmatprep.subr.mxu0 0.0
    %6065 = vmatpush1.msra.mxu0 0.0
    %6066 = vmatprep.subr.mxu0 0.0
    %6067 = vmatpush1.msra.mxu0 0.0
    %6068 = vmatprep.subr.mxu0 0.0
    %6069 = vmatpush1.msra.mxu0 0.0
    %6070 = vmatprep.subr.mxu0 0.0
    %6071 = vmatpush1.msra.mxu0 0.0
    %6072 = vmatprep.subr.mxu0 0.0
    %6073 = vmatpush1.msra.mxu0 0.0
    %6074 = vmatprep.subr.mxu0 0.0
    %6075 = vmatpush1.msra.mxu0 0.0
    %6076 = vmatprep.subr.mxu0 0.0
    %6077 = vmatpush1.msra.mxu0 0.0
    %6078 = vmatprep.subr.mxu0 0.0
    %6079 = vmatpush1.msra.mxu0 0.0
    %6080 = vmatprep.subr.mxu0 0.0
    %6081 = vmatpush1.msra.mxu0 0.0
    %6082 = vmatprep.subr.mxu0 0.0
    %6083 = vmatpush1.msra.mxu0 0.0
    %6084 = vmatprep.mubr.f32.mxu0 0.0
    %6085 = vmatmul.mubr.f32.gmra.mrb[0].mxu0 %v6018
    %v6086 = vpop.f32.mrb[0].mxu0
    %v6087 = vadd.f32 0.0, %v6086
    %v6088 = vpop.f32.mrb[0].mxu0
    %6089 = vdwg.mxu0
    %v6090 = vadd.f32 %v5434, %v6087
    %v6091 = vadd.f32 %v5516, %v5598
    %v6092 = vadd.f32 %v5680, %v5762
    %v6093 = vadd.f32 %v5844, %v5926
    %v6094 = vadd.f32 %v6008, %v6090
    %v6095 = vadd.f32 %v6091, %v6092
    %v6096 = vadd.f32 %v6093, %v6094
    %v6097 = vadd.f32 %v6095, %v6096
    %v6098 = vld [vmem:[%s4] sm:$0x1]
    %v6100 = vlaneseq
    %v6101 = vshrl.u32 %v6100, 7
    %v6102 = vsub.s32 0, %v6101
    %v6103 = vrot.slane %v6098, %v6102
    %v6105 = vadd.f32 %v6097, %v6103
    %vm6106 = vcmask 254976
    %6107 = vst.msk [vmem:[#allocation8] sm:$0x3] %vm6106, %v6105
    // Predicated region
    $region30: #{encoder_forward.1} parent=1 // pred_check
      _
    $region31: #{encoder_forward.1} parent=1 // pred_check_branch
      %6109 = sbr.rel (0) target = $region33
    $region32: #{encoder_forward.1} parent=1 // pred_region
      %s6111 = ssub.s32 32, 32
      %6112 = vsyncadd [#allocation4], %s6111
      %s6114 = sshll.u32 [#allocation8], 4
      %s6115 = int_to_ptr.vmem [resolvable:$true] %s6114
      %6117 = dma.vmem_to_hbm [thread:$0]  %s6115, 32, %s5, [#allocation4]
    $region33: #{encoder_forward.1} parent=1 // pred_fallthru
      _
    // Predicated region
    $region34: #{encoder_forward.1} parent=1 // pred_check
      _
    $region35: #{encoder_forward.1} parent=1 // pred_check_branch
      %6119 = sbr.rel (0) target = $region37
    $region36: #{encoder_forward.1} parent=1 // pred_region
      %6120 = dma.done [#allocation4], 32
    $region37: #{encoder_forward.1} parent=1 // pred_fallthru
      _
    %6121 = vsyncpa [#allocation4], 1
    %6122 = vsyncpa [#allocation5], 1
    %6123 = vsyncpa [#allocation7], 1

</llo_original>
